<compile_context>
chip_gen: v6e
topology: v6e:2x2x1
jax: 0.10.0
libtpu: 0.0.40
codegen_flags: <defaults>
</compile_context>

<pallas_src>
import jax
import jax.numpy as jnp
import numpy as np
from jax.experimental import pallas as pl
from jax.experimental.pallas import tpu as pltpu


# --------------------------------------------------------------------------- #
# In-kernel building blocks
# --------------------------------------------------------------------------- #
def _maxpool2x2(x):
    """2x2 max pool, stride 2 (floor, like nn.MaxPool2d(2)) on an (H, W, C) value."""
    H, W, C = x.shape
    Hp, Wp = H // 2, W // 2
    x = x[: 2 * Hp, : 2 * Wp, :]
    x = jnp.max(x.reshape(Hp, 2, 2 * Wp, C), axis=1)   # pool rows  -> (Hp, 2*Wp, C)
    x = jnp.max(x.reshape(Hp, Wp, 2, C), axis=2)        # pool cols  -> (Hp, Wp, C)
    return x


def _conv3x3_relu(x, w_ref, b_ref, xpad_ref, patch_ref):
    """3x3 conv (pad=1, stride=1) + bias + ReLU on an (H, W, Cin) f32 value.

    Zero-pads into a VMEM scratch, builds the (H*W, 9*Cin) im2col patch matrix
    in a VMEM scratch, and does ONE MXU matmul with f32 accumulation.
    """
    H, W, C = x.shape
    Cout = w_ref.shape[1]

    # Zero-padded input lives entirely in VMEM (no HBM traffic, no jnp.pad).
    xpad_ref[...] = jnp.zeros(xpad_ref.shape, xpad_ref.dtype)
    xpad_ref[1:H + 1, 1:W + 1, :] = x

    # im2col: tap k = (dh*3 + dw) fills lane block [k*C, (k+1)*C) of the patch matrix.
    for dh in range(3):
        for dw in range(3):
            k = dh * 3 + dw
            tap = xpad_ref[dh:dh + H, dw:dw + W, :]                # (H, W, C)
            patch_ref[:, k * C:(k + 1) * C] = tap.reshape(H * W, C)

    # Single MXU contraction: (H*W, 9C) x (9C, Cout), f32 accumulation.
    acc = jnp.dot(patch_ref[...], w_ref[...], preferred_element_type=jnp.float32)
    acc = acc + b_ref[...]                                         # (1, Cout) broadcast
    acc = jnp.maximum(acc, 0.0)                                    # ReLU
    return acc.reshape(H, W, Cout)


def _make_fused_kernel(n_levels, n_mlp, relu_slope):
    """Whole-network fused kernel: encoder -> GAP -> MLP for one batch element."""
    n_conv = 2 * n_levels

    def kernel(*refs):
        x_ref = refs[0]
        conv_refs = refs[1:1 + 2 * n_conv]                         # w0, b0, w1, b1, ...
        mlp_refs = refs[1 + 2 * n_conv:1 + 2 * n_conv + 2 * n_mlp]
        o_ref = refs[1 + 2 * n_conv + 2 * n_mlp]
        scratch = refs[2 + 2 * n_conv + 2 * n_mlp:]                # xpad0, patch0, ...

        x = x_ref[0]                                               # (H, W, Cin) f32

        ci = 0
        for level in range(n_levels):
            if level > 0:
                x = _maxpool2x2(x)
            for _ in range(2):                                     # two convs per block
                x = _conv3x3_relu(x,
                                  conv_refs[2 * ci], conv_refs[2 * ci + 1],
                                  scratch[2 * ci], scratch[2 * ci + 1])
                ci += 1

        # Global average pool (== AdaptiveAvgPool2d((1,1)) + flatten) -> (1, C)
        H, W, C = x.shape
        h = jnp.sum(x.reshape(H * W, C), axis=0, keepdims=True) * (1.0 / (H * W))

        # MLP head: LeakyReLU on hidden layers, no activation on the last.
        for i in range(n_mlp):
            h = jnp.dot(h, mlp_refs[2 * i][...], preferred_element_type=jnp.float32)
            h = h + mlp_refs[2 * i + 1][...]
            if i < n_mlp - 1:
                h = jnp.where(h >= 0, h, relu_slope * h)

        o_ref[...] = h.reshape(o_ref.shape).astype(o_ref.dtype)

    return kernel


# --------------------------------------------------------------------------- #
# Parameters, Pallas wrapper and pure-JAX reference
# --------------------------------------------------------------------------- #
def init_params(key, nr_input_channels, encoder_channels_list, mlp_channels_list):
    params = {"encoder": [], "mlp_w": [], "mlp_b": []}
    c_in = nr_input_channels
    for c_out in encoder_channels_list:
        block = []
        for c in (c_out, c_out):                                   # two convs per block
            key, kw = jax.random.split(key)
            scale = (2.0 / (9 * c_in)) ** 0.5
            w = scale * jax.random.normal(kw, (3, 3, c_in, c), jnp.float32)
            b = jnp.zeros((1, c), jnp.float32)
            block.append((w, b))
            c_in = c
        params["encoder"].append(block)

    f_in = encoder_channels_list[-1]
    for f_out in mlp_channels_list:
        key, kw = jax.random.split(key)
        scale = (2.0 / f_in) ** 0.5
        params["mlp_w"].append(scale * jax.random.normal(kw, (f_in, f_out), jnp.float32))
        params["mlp_b"].append(jnp.zeros((1, f_out), jnp.float32))
        f_in = f_out
    return params


def encoder_mlp2d_forward(x_nchw, params, mlp_relu_slope=0.0):
    # NCHW (PyTorch) -> NHWC: channels on the lane (minor) dimension.
    x = jnp.transpose(x_nchw, (0, 2, 3, 1)).astype(jnp.float32)
    N, H, W, C_in = x.shape

    enc = params["encoder"]
    mlp_w, mlp_b = params["mlp_w"], params["mlp_b"]
    n_levels, n_mlp = len(enc), len(mlp_w)
    f_out = mlp_w[-1].shape[1]

    args = [x]
    in_specs = [pl.BlockSpec((1, H, W, C_in), lambda n: (n, 0, 0, 0))]
    scratch_shapes = []

    h_, w_ = H, W
    for level, block in enumerate(enc):
        if level > 0:
            h_, w_ = h_ // 2, w_ // 2
        for (cw, cb) in block:
            _, _, cin, cout = cw.shape
            w2 = cw.reshape(9 * cin, cout).astype(jnp.float32)     # im2col weight layout
            args += [w2, cb.astype(jnp.float32)]
            in_specs += [pl.BlockSpec(w2.shape, lambda n: (0, 0)),
                         pl.BlockSpec(cb.shape, lambda n: (0, 0))]
            scratch_shapes += [pltpu.VMEM((h_ + 2, w_ + 2, cin), jnp.float32),  # padded input
                               pltpu.VMEM((h_ * w_, 9 * cin), jnp.float32)]     # im2col patches

    for (mw, mb) in zip(mlp_w, mlp_b):
        args += [mw.astype(jnp.float32), mb.astype(jnp.float32)]
        in_specs += [pl.BlockSpec(mw.shape, lambda n: (0, 0)),
                     pl.BlockSpec(mb.shape, lambda n: (0, 0))]

    kernel = _make_fused_kernel(n_levels, n_mlp, mlp_relu_slope)
    out3 = pl.pallas_call(
        kernel,
        out_shape=jax.ShapeDtypeStruct((N, 1, f_out), jnp.float32),
        grid=(N,),
        in_specs=in_specs,
        out_specs=pl.BlockSpec((1, 1, f_out), lambda n: (n, 0, 0)),
        scratch_shapes=scratch_shapes,
        compiler_params=pltpu.CompilerParams(dimension_semantics=("parallel",)),
    )(*args)
    return out3.reshape(N, f_out).astype(x_nchw.dtype)


def encoder_mlp2d_reference(x_nchw, params, mlp_relu_slope=0.0):
    """Pure-JAX (XLA) reference with identical semantics, for correctness checking."""
    x = jnp.transpose(x_nchw, (0, 2, 3, 1)).astype(jnp.float32)
    for level, block in enumerate(params["encoder"]):
        if level > 0:
            N, H, W, C = x.shape
            x = x.reshape(N, H // 2, 2, W // 2, 2, C).max(axis=(2, 4))
        for (cw, cb) in block:
            x = jax.lax.conv_general_dilated(
                x, cw, window_strides=(1, 1), padding="SAME",
                dimension_numbers=("NHWC", "HWIO", "NHWC"))
            x = jnp.maximum(x + cb.reshape(1, 1, 1, -1), 0.0)
    h = jnp.mean(x, axis=(1, 2))                                    # global average pool
    n_mlp = len(params["mlp_w"])
    for i, (mw, mb) in enumerate(zip(params["mlp_w"], params["mlp_b"])):
        h = h @ mw + mb
        if i < n_mlp - 1:
            h = jnp.where(h >= 0, h, mlp_relu_slope * h)
    return h.astype(x_nchw.dtype)


# --------------------------------------------------------------------------- #
if __name__ == "__main__":
    nr_input_channels = 4
    encoder_channels_list = [8, 16, 32]
    mlp_channels_list = [64, 32]
    mlp_relu_slope = 0.0

    key = jax.random.PRNGKey(0)
    key, kx = jax.random.split(key)
    x = jax.random.normal(kx, (2, nr_input_channels, 16, 16), jnp.float32)  # NCHW

    params = init_params(key, nr_input_channels, encoder_channels_list, mlp_channels_list)

    out = encoder_mlp2d_forward(x, params, mlp_relu_slope)
    out = jax.block_until_ready(out)
    assert out.shape == (2, mlp_channels_list[-1]), out.shape

    ref = jax.block_until_ready(encoder_mlp2d_reference(x, params, mlp_relu_slope))
    np.testing.assert_allclose(np.asarray(out), np.asarray(ref), rtol=2e-2, atol=2e-2)

    print("KERNEL_OK")
</pallas_src>

<mosaic_0001>
module attributes {stable_mosaic.version = 11 : i64} {
  func.func @kernel(%arg0: i32, %arg1: memref<1x16x16x4xf32, #tpu.memory_space<vmem>>, %arg2: memref<36x8xf32, #tpu.memory_space<vmem>>, %arg3: memref<1x8xf32, #tpu.memory_space<vmem>>, %arg4: memref<72x8xf32, #tpu.memory_space<vmem>>, %arg5: memref<1x8xf32, #tpu.memory_space<vmem>>, %arg6: memref<72x16xf32, #tpu.memory_space<vmem>>, %arg7: memref<1x16xf32, #tpu.memory_space<vmem>>, %arg8: memref<144x16xf32, #tpu.memory_space<vmem>>, %arg9: memref<1x16xf32, #tpu.memory_space<vmem>>, %arg10: memref<144x32xf32, #tpu.memory_space<vmem>>, %arg11: memref<1x32xf32, #tpu.memory_space<vmem>>, %arg12: memref<288x32xf32, #tpu.memory_space<vmem>>, %arg13: memref<1x32xf32, #tpu.memory_space<vmem>>, %arg14: memref<32x64xf32, #tpu.memory_space<vmem>>, %arg15: memref<1x64xf32, #tpu.memory_space<vmem>>, %arg16: memref<64x32xf32, #tpu.memory_space<vmem>>, %arg17: memref<1x32xf32, #tpu.memory_space<vmem>>, %arg18: memref<1x1x32xf32, #tpu.memory_space<vmem>>, %arg19: memref<18x18x4xf32, #tpu.memory_space<vmem>>, %arg20: memref<256x36xf32, #tpu.memory_space<vmem>>, %arg21: memref<18x18x8xf32, #tpu.memory_space<vmem>>, %arg22: memref<256x72xf32, #tpu.memory_space<vmem>>, %arg23: memref<10x10x8xf32, #tpu.memory_space<vmem>>, %arg24: memref<64x72xf32, #tpu.memory_space<vmem>>, %arg25: memref<10x10x16xf32, #tpu.memory_space<vmem>>, %arg26: memref<64x144xf32, #tpu.memory_space<vmem>>, %arg27: memref<6x6x16xf32, #tpu.memory_space<vmem>>, %arg28: memref<16x144xf32, #tpu.memory_space<vmem>>, %arg29: memref<6x6x32xf32, #tpu.memory_space<vmem>>, %arg30: memref<16x288xf32, #tpu.memory_space<vmem>>) attributes {dimension_semantics = [#tpu.dimension_semantics<parallel>], iteration_bounds = array<i64: 2>, scalar_prefetch = 0 : i64, scratch_operands = 12 : i64, tpu.core_type = #tpu.core_type<tc>, window_params = [{transform_indices = @transform_0, window_bounds = array<i64: 1, 16, 16, 4>}, {pipeline_mode = #tpu.pipeline_mode<synchronous>, transform_indices = @transform_1, window_bounds = array<i64: 36, 8>}, {pipeline_mode = #tpu.pipeline_mode<synchronous>, transform_indices = @transform_2, window_bounds = array<i64: 1, 8>}, {pipeline_mode = #tpu.pipeline_mode<synchronous>, transform_indices = @transform_3, window_bounds = array<i64: 72, 8>}, {pipeline_mode = #tpu.pipeline_mode<synchronous>, transform_indices = @transform_4, window_bounds = array<i64: 1, 8>}, {pipeline_mode = #tpu.pipeline_mode<synchronous>, transform_indices = @transform_5, window_bounds = array<i64: 72, 16>}, {pipeline_mode = #tpu.pipeline_mode<synchronous>, transform_indices = @transform_6, window_bounds = array<i64: 1, 16>}, {pipeline_mode = #tpu.pipeline_mode<synchronous>, transform_indices = @transform_7, window_bounds = array<i64: 144, 16>}, {pipeline_mode = #tpu.pipeline_mode<synchronous>, transform_indices = @transform_8, window_bounds = array<i64: 1, 16>}, {pipeline_mode = #tpu.pipeline_mode<synchronous>, transform_indices = @transform_9, window_bounds = array<i64: 144, 32>}, {pipeline_mode = #tpu.pipeline_mode<synchronous>, transform_indices = @transform_10, window_bounds = array<i64: 1, 32>}, {pipeline_mode = #tpu.pipeline_mode<synchronous>, transform_indices = @transform_11, window_bounds = array<i64: 288, 32>}, {pipeline_mode = #tpu.pipeline_mode<synchronous>, transform_indices = @transform_12, window_bounds = array<i64: 1, 32>}, {pipeline_mode = #tpu.pipeline_mode<synchronous>, transform_indices = @transform_13, window_bounds = array<i64: 32, 64>}, {pipeline_mode = #tpu.pipeline_mode<synchronous>, transform_indices = @transform_14, window_bounds = array<i64: 1, 64>}, {pipeline_mode = #tpu.pipeline_mode<synchronous>, transform_indices = @transform_15, window_bounds = array<i64: 64, 32>}, {pipeline_mode = #tpu.pipeline_mode<synchronous>, transform_indices = @transform_16, window_bounds = array<i64: 1, 32>}, {transform_indices = @transform_17, window_bounds = array<i64: 1, 1, 32>}]} {
    %c0 = arith.constant 0 : index
    %c0_0 = arith.constant 0 : index
    %c0_1 = arith.constant 0 : index
    %c0_2 = arith.constant 0 : index
    %0 = vector.load %arg1[%c0, %c0_0, %c0_1, %c0_2] : memref<1x16x16x4xf32, #tpu.memory_space<vmem>>, vector<1x16x16x4xf32>
    %1 = vector.shape_cast %0 : vector<1x16x16x4xf32> to vector<16x16x4xf32>
    %cst = arith.constant 0.000000e+00 : f32
    %2 = vector.broadcast %cst : f32 to vector<18x18x4xf32>
    %c0_3 = arith.constant 0 : index
    %c0_4 = arith.constant 0 : index
    %c0_5 = arith.constant 0 : index
    %3 = vector.load %arg19[%c0_3, %c0_4, %c0_5] : memref<18x18x4xf32, #tpu.memory_space<vmem>>, vector<18x18x4xf32>
    tpu.vector_store %arg19[%c0_3, %c0_4, %c0_5], %2 {strides = array<i32>} : memref<18x18x4xf32, #tpu.memory_space<vmem>>, vector<18x18x4xf32>,
    %c1 = arith.constant 1 : index
    %c1_6 = arith.constant 1 : index
    %c0_7 = arith.constant 0 : index
    %4 = vector.load %arg19[%c1, %c1_6, %c0_7] : memref<18x18x4xf32, #tpu.memory_space<vmem>>, vector<16x16x4xf32>
    tpu.vector_store %arg19[%c1, %c1_6, %c0_7], %1 {strides = array<i32>} : memref<18x18x4xf32, #tpu.memory_space<vmem>>, vector<16x16x4xf32>,
    %c0_8 = arith.constant 0 : index
    %c0_9 = arith.constant 0 : index
    %c0_10 = arith.constant 0 : index
    %5 = vector.load %arg19[%c0_8, %c0_9, %c0_10] : memref<18x18x4xf32, #tpu.memory_space<vmem>>, vector<16x16x4xf32>
    %6 = vector.shape_cast %5 : vector<16x16x4xf32> to vector<256x4xf32>
    %c0_11 = arith.constant 0 : index
    %c0_12 = arith.constant 0 : index
    %7 = vector.load %arg20[%c0_11, %c0_12] : memref<256x36xf32, #tpu.memory_space<vmem>>, vector<256x4xf32>
    tpu.vector_store %arg20[%c0_11, %c0_12], %6 {strides = array<i32>} : memref<256x36xf32, #tpu.memory_space<vmem>>, vector<256x4xf32>,
    %c0_13 = arith.constant 0 : index
    %c1_14 = arith.constant 1 : index
    %c0_15 = arith.constant 0 : index
    %8 = vector.load %arg19[%c0_13, %c1_14, %c0_15] : memref<18x18x4xf32, #tpu.memory_space<vmem>>, vector<16x16x4xf32>
    %9 = vector.shape_cast %8 : vector<16x16x4xf32> to vector<256x4xf32>
    %c0_16 = arith.constant 0 : index
    %c4 = arith.constant 4 : index
    %10 = vector.load %arg20[%c0_16, %c4] : memref<256x36xf32, #tpu.memory_space<vmem>>, vector<256x4xf32>
    tpu.vector_store %arg20[%c0_16, %c4], %9 {strides = array<i32>} : memref<256x36xf32, #tpu.memory_space<vmem>>, vector<256x4xf32>,
    %c0_17 = arith.constant 0 : index
    %c2 = arith.constant 2 : index
    %c0_18 = arith.constant 0 : index
    %11 = vector.load %arg19[%c0_17, %c2, %c0_18] : memref<18x18x4xf32, #tpu.memory_space<vmem>>, vector<16x16x4xf32>
    %12 = vector.shape_cast %11 : vector<16x16x4xf32> to vector<256x4xf32>
    %c0_19 = arith.constant 0 : index
    %c8 = arith.constant 8 : index
    %13 = vector.load %arg20[%c0_19, %c8] : memref<256x36xf32, #tpu.memory_space<vmem>>, vector<256x4xf32>
    tpu.vector_store %arg20[%c0_19, %c8], %12 {strides = array<i32>} : memref<256x36xf32, #tpu.memory_space<vmem>>, vector<256x4xf32>,
    %c1_20 = arith.constant 1 : index
    %c0_21 = arith.constant 0 : index
    %c0_22 = arith.constant 0 : index
    %14 = vector.load %arg19[%c1_20, %c0_21, %c0_22] : memref<18x18x4xf32, #tpu.memory_space<vmem>>, vector<16x16x4xf32>
    %15 = vector.shape_cast %14 : vector<16x16x4xf32> to vector<256x4xf32>
    %c0_23 = arith.constant 0 : index
    %c12 = arith.constant 12 : index
    %16 = vector.load %arg20[%c0_23, %c12] : memref<256x36xf32, #tpu.memory_space<vmem>>, vector<256x4xf32>
    tpu.vector_store %arg20[%c0_23, %c12], %15 {strides = array<i32>} : memref<256x36xf32, #tpu.memory_space<vmem>>, vector<256x4xf32>,
    %c1_24 = arith.constant 1 : index
    %c1_25 = arith.constant 1 : index
    %c0_26 = arith.constant 0 : index
    %17 = vector.load %arg19[%c1_24, %c1_25, %c0_26] : memref<18x18x4xf32, #tpu.memory_space<vmem>>, vector<16x16x4xf32>
    %18 = vector.shape_cast %17 : vector<16x16x4xf32> to vector<256x4xf32>
    %c0_27 = arith.constant 0 : index
    %c16 = arith.constant 16 : index
    %19 = vector.load %arg20[%c0_27, %c16] : memref<256x36xf32, #tpu.memory_space<vmem>>, vector<256x4xf32>
    tpu.vector_store %arg20[%c0_27, %c16], %18 {strides = array<i32>} : memref<256x36xf32, #tpu.memory_space<vmem>>, vector<256x4xf32>,
    %c1_28 = arith.constant 1 : index
    %c2_29 = arith.constant 2 : index
    %c0_30 = arith.constant 0 : index
    %20 = vector.load %arg19[%c1_28, %c2_29, %c0_30] : memref<18x18x4xf32, #tpu.memory_space<vmem>>, vector<16x16x4xf32>
    %21 = vector.shape_cast %20 : vector<16x16x4xf32> to vector<256x4xf32>
    %c0_31 = arith.constant 0 : index
    %c20 = arith.constant 20 : index
    %22 = vector.load %arg20[%c0_31, %c20] : memref<256x36xf32, #tpu.memory_space<vmem>>, vector<256x4xf32>
    tpu.vector_store %arg20[%c0_31, %c20], %21 {strides = array<i32>} : memref<256x36xf32, #tpu.memory_space<vmem>>, vector<256x4xf32>,
    %c2_32 = arith.constant 2 : index
    %c0_33 = arith.constant 0 : index
    %c0_34 = arith.constant 0 : index
    %23 = vector.load %arg19[%c2_32, %c0_33, %c0_34] : memref<18x18x4xf32, #tpu.memory_space<vmem>>, vector<16x16x4xf32>
    %24 = vector.shape_cast %23 : vector<16x16x4xf32> to vector<256x4xf32>
    %c0_35 = arith.constant 0 : index
    %c24 = arith.constant 24 : index
    %25 = vector.load %arg20[%c0_35, %c24] : memref<256x36xf32, #tpu.memory_space<vmem>>, vector<256x4xf32>
    tpu.vector_store %arg20[%c0_35, %c24], %24 {strides = array<i32>} : memref<256x36xf32, #tpu.memory_space<vmem>>, vector<256x4xf32>,
    %c2_36 = arith.constant 2 : index
    %c1_37 = arith.constant 1 : index
    %c0_38 = arith.constant 0 : index
    %26 = vector.load %arg19[%c2_36, %c1_37, %c0_38] : memref<18x18x4xf32, #tpu.memory_space<vmem>>, vector<16x16x4xf32>
    %27 = vector.shape_cast %26 : vector<16x16x4xf32> to vector<256x4xf32>
    %c0_39 = arith.constant 0 : index
    %c28 = arith.constant 28 : index
    %28 = vector.load %arg20[%c0_39, %c28] : memref<256x36xf32, #tpu.memory_space<vmem>>, vector<256x4xf32>
    tpu.vector_store %arg20[%c0_39, %c28], %27 {strides = array<i32>} : memref<256x36xf32, #tpu.memory_space<vmem>>, vector<256x4xf32>,
    %c2_40 = arith.constant 2 : index
    %c2_41 = arith.constant 2 : index
    %c0_42 = arith.constant 0 : index
    %29 = vector.load %arg19[%c2_40, %c2_41, %c0_42] : memref<18x18x4xf32, #tpu.memory_space<vmem>>, vector<16x16x4xf32>
    %30 = vector.shape_cast %29 : vector<16x16x4xf32> to vector<256x4xf32>
    %c0_43 = arith.constant 0 : index
    %c32 = arith.constant 32 : index
    %31 = vector.load %arg20[%c0_43, %c32] : memref<256x36xf32, #tpu.memory_space<vmem>>, vector<256x4xf32>
    tpu.vector_store %arg20[%c0_43, %c32], %30 {strides = array<i32>} : memref<256x36xf32, #tpu.memory_space<vmem>>, vector<256x4xf32>,
    %c0_44 = arith.constant 0 : index
    %c0_45 = arith.constant 0 : index
    %32 = vector.load %arg20[%c0_44, %c0_45] : memref<256x36xf32, #tpu.memory_space<vmem>>, vector<256x36xf32>
    %c0_46 = arith.constant 0 : index
    %c0_47 = arith.constant 0 : index
    %33 = vector.load %arg2[%c0_46, %c0_47] : memref<36x8xf32, #tpu.memory_space<vmem>>, vector<36x8xf32>
    %cst_48 = arith.constant dense<0.000000e+00> : vector<256x8xf32>
    %34 = tpu.matmul %32, %33, %cst_48 {dimension_numbers = #tpu.dot_dimension_numbers<[1], [0], [0], [1], [0, 0, 1, 1], [], []>} : vector<256x36xf32>, vector<36x8xf32>, vector<256x8xf32> -> vector<256x8xf32>
    %c0_49 = arith.constant 0 : index
    %c0_50 = arith.constant 0 : index
    %35 = vector.load %arg3[%c0_49, %c0_50] : memref<1x8xf32, #tpu.memory_space<vmem>>, vector<1x8xf32>
    %36 = vector.broadcast %35 : vector<1x8xf32> to vector<256x8xf32>
    %37 = arith.addf %34, %36 : vector<256x8xf32>
    %cst_51 = arith.constant 0.000000e+00 : f32
    %38 = vector.broadcast %cst_51 : f32 to vector<256x8xf32>
    %39 = arith.maximumf %37, %38 : vector<256x8xf32>
    %40 = vector.shape_cast %39 : vector<256x8xf32> to vector<16x16x8xf32>
    %cst_52 = arith.constant 0.000000e+00 : f32
    %41 = vector.broadcast %cst_52 : f32 to vector<18x18x8xf32>
    %c0_53 = arith.constant 0 : index
    %c0_54 = arith.constant 0 : index
    %c0_55 = arith.constant 0 : index
    %42 = vector.load %arg21[%c0_53, %c0_54, %c0_55] : memref<18x18x8xf32, #tpu.memory_space<vmem>>, vector<18x18x8xf32>
    tpu.vector_store %arg21[%c0_53, %c0_54, %c0_55], %41 {strides = array<i32>} : memref<18x18x8xf32, #tpu.memory_space<vmem>>, vector<18x18x8xf32>,
    %c1_56 = arith.constant 1 : index
    %c1_57 = arith.constant 1 : index
    %c0_58 = arith.constant 0 : index
    %43 = vector.load %arg21[%c1_56, %c1_57, %c0_58] : memref<18x18x8xf32, #tpu.memory_space<vmem>>, vector<16x16x8xf32>
    tpu.vector_store %arg21[%c1_56, %c1_57, %c0_58], %40 {strides = array<i32>} : memref<18x18x8xf32, #tpu.memory_space<vmem>>, vector<16x16x8xf32>,
    %c0_59 = arith.constant 0 : index
    %c0_60 = arith.constant 0 : index
    %c0_61 = arith.constant 0 : index
    %44 = vector.load %arg21[%c0_59, %c0_60, %c0_61] : memref<18x18x8xf32, #tpu.memory_space<vmem>>, vector<16x16x8xf32>
    %45 = vector.shape_cast %44 : vector<16x16x8xf32> to vector<256x8xf32>
    %c0_62 = arith.constant 0 : index
    %c0_63 = arith.constant 0 : index
    %46 = vector.load %arg22[%c0_62, %c0_63] : memref<256x72xf32, #tpu.memory_space<vmem>>, vector<256x8xf32>
    tpu.vector_store %arg22[%c0_62, %c0_63], %45 {strides = array<i32>} : memref<256x72xf32, #tpu.memory_space<vmem>>, vector<256x8xf32>,
    %c0_64 = arith.constant 0 : index
    %c1_65 = arith.constant 1 : index
    %c0_66 = arith.constant 0 : index
    %47 = vector.load %arg21[%c0_64, %c1_65, %c0_66] : memref<18x18x8xf32, #tpu.memory_space<vmem>>, vector<16x16x8xf32>
    %48 = vector.shape_cast %47 : vector<16x16x8xf32> to vector<256x8xf32>
    %c0_67 = arith.constant 0 : index
    %c8_68 = arith.constant 8 : index
    %49 = vector.load %arg22[%c0_67, %c8_68] : memref<256x72xf32, #tpu.memory_space<vmem>>, vector<256x8xf32>
    tpu.vector_store %arg22[%c0_67, %c8_68], %48 {strides = array<i32>} : memref<256x72xf32, #tpu.memory_space<vmem>>, vector<256x8xf32>,
    %c0_69 = arith.constant 0 : index
    %c2_70 = arith.constant 2 : index
    %c0_71 = arith.constant 0 : index
    %50 = vector.load %arg21[%c0_69, %c2_70, %c0_71] : memref<18x18x8xf32, #tpu.memory_space<vmem>>, vector<16x16x8xf32>
    %51 = vector.shape_cast %50 : vector<16x16x8xf32> to vector<256x8xf32>
    %c0_72 = arith.constant 0 : index
    %c16_73 = arith.constant 16 : index
    %52 = vector.load %arg22[%c0_72, %c16_73] : memref<256x72xf32, #tpu.memory_space<vmem>>, vector<256x8xf32>
    tpu.vector_store %arg22[%c0_72, %c16_73], %51 {strides = array<i32>} : memref<256x72xf32, #tpu.memory_space<vmem>>, vector<256x8xf32>,
    %c1_74 = arith.constant 1 : index
    %c0_75 = arith.constant 0 : index
    %c0_76 = arith.constant 0 : index
    %53 = vector.load %arg21[%c1_74, %c0_75, %c0_76] : memref<18x18x8xf32, #tpu.memory_space<vmem>>, vector<16x16x8xf32>
    %54 = vector.shape_cast %53 : vector<16x16x8xf32> to vector<256x8xf32>
    %c0_77 = arith.constant 0 : index
    %c24_78 = arith.constant 24 : index
    %55 = vector.load %arg22[%c0_77, %c24_78] : memref<256x72xf32, #tpu.memory_space<vmem>>, vector<256x8xf32>
    tpu.vector_store %arg22[%c0_77, %c24_78], %54 {strides = array<i32>} : memref<256x72xf32, #tpu.memory_space<vmem>>, vector<256x8xf32>,
    %c1_79 = arith.constant 1 : index
    %c1_80 = arith.constant 1 : index
    %c0_81 = arith.constant 0 : index
    %56 = vector.load %arg21[%c1_79, %c1_80, %c0_81] : memref<18x18x8xf32, #tpu.memory_space<vmem>>, vector<16x16x8xf32>
    %57 = vector.shape_cast %56 : vector<16x16x8xf32> to vector<256x8xf32>
    %c0_82 = arith.constant 0 : index
    %c32_83 = arith.constant 32 : index
    %58 = vector.load %arg22[%c0_82, %c32_83] : memref<256x72xf32, #tpu.memory_space<vmem>>, vector<256x8xf32>
    tpu.vector_store %arg22[%c0_82, %c32_83], %57 {strides = array<i32>} : memref<256x72xf32, #tpu.memory_space<vmem>>, vector<256x8xf32>,
    %c1_84 = arith.constant 1 : index
    %c2_85 = arith.constant 2 : index
    %c0_86 = arith.constant 0 : index
    %59 = vector.load %arg21[%c1_84, %c2_85, %c0_86] : memref<18x18x8xf32, #tpu.memory_space<vmem>>, vector<16x16x8xf32>
    %60 = vector.shape_cast %59 : vector<16x16x8xf32> to vector<256x8xf32>
    %c0_87 = arith.constant 0 : index
    %c40 = arith.constant 40 : index
    %61 = vector.load %arg22[%c0_87, %c40] : memref<256x72xf32, #tpu.memory_space<vmem>>, vector<256x8xf32>
    tpu.vector_store %arg22[%c0_87, %c40], %60 {strides = array<i32>} : memref<256x72xf32, #tpu.memory_space<vmem>>, vector<256x8xf32>,
    %c2_88 = arith.constant 2 : index
    %c0_89 = arith.constant 0 : index
    %c0_90 = arith.constant 0 : index
    %62 = vector.load %arg21[%c2_88, %c0_89, %c0_90] : memref<18x18x8xf32, #tpu.memory_space<vmem>>, vector<16x16x8xf32>
    %63 = vector.shape_cast %62 : vector<16x16x8xf32> to vector<256x8xf32>
    %c0_91 = arith.constant 0 : index
    %c48 = arith.constant 48 : index
    %64 = vector.load %arg22[%c0_91, %c48] : memref<256x72xf32, #tpu.memory_space<vmem>>, vector<256x8xf32>
    tpu.vector_store %arg22[%c0_91, %c48], %63 {strides = array<i32>} : memref<256x72xf32, #tpu.memory_space<vmem>>, vector<256x8xf32>,
    %c2_92 = arith.constant 2 : index
    %c1_93 = arith.constant 1 : index
    %c0_94 = arith.constant 0 : index
    %65 = vector.load %arg21[%c2_92, %c1_93, %c0_94] : memref<18x18x8xf32, #tpu.memory_space<vmem>>, vector<16x16x8xf32>
    %66 = vector.shape_cast %65 : vector<16x16x8xf32> to vector<256x8xf32>
    %c0_95 = arith.constant 0 : index
    %c56 = arith.constant 56 : index
    %67 = vector.load %arg22[%c0_95, %c56] : memref<256x72xf32, #tpu.memory_space<vmem>>, vector<256x8xf32>
    tpu.vector_store %arg22[%c0_95, %c56], %66 {strides = array<i32>} : memref<256x72xf32, #tpu.memory_space<vmem>>, vector<256x8xf32>,
    %c2_96 = arith.constant 2 : index
    %c2_97 = arith.constant 2 : index
    %c0_98 = arith.constant 0 : index
    %68 = vector.load %arg21[%c2_96, %c2_97, %c0_98] : memref<18x18x8xf32, #tpu.memory_space<vmem>>, vector<16x16x8xf32>
    %69 = vector.shape_cast %68 : vector<16x16x8xf32> to vector<256x8xf32>
    %c0_99 = arith.constant 0 : index
    %c64 = arith.constant 64 : index
    %70 = vector.load %arg22[%c0_99, %c64] : memref<256x72xf32, #tpu.memory_space<vmem>>, vector<256x8xf32>
    tpu.vector_store %arg22[%c0_99, %c64], %69 {strides = array<i32>} : memref<256x72xf32, #tpu.memory_space<vmem>>, vector<256x8xf32>,
    %c0_100 = arith.constant 0 : index
    %c0_101 = arith.constant 0 : index
    %71 = vector.load %arg22[%c0_100, %c0_101] : memref<256x72xf32, #tpu.memory_space<vmem>>, vector<256x72xf32>
    %c0_102 = arith.constant 0 : index
    %c0_103 = arith.constant 0 : index
    %72 = vector.load %arg4[%c0_102, %c0_103] : memref<72x8xf32, #tpu.memory_space<vmem>>, vector<72x8xf32>
    %cst_104 = arith.constant dense<0.000000e+00> : vector<256x8xf32>
    %73 = tpu.matmul %71, %72, %cst_104 {dimension_numbers = #tpu.dot_dimension_numbers<[1], [0], [0], [1], [0, 0, 1, 1], [], []>} : vector<256x72xf32>, vector<72x8xf32>, vector<256x8xf32> -> vector<256x8xf32>
    %c0_105 = arith.constant 0 : index
    %c0_106 = arith.constant 0 : index
    %74 = vector.load %arg5[%c0_105, %c0_106] : memref<1x8xf32, #tpu.memory_space<vmem>>, vector<1x8xf32>
    %75 = vector.broadcast %74 : vector<1x8xf32> to vector<256x8xf32>
    %76 = arith.addf %73, %75 : vector<256x8xf32>
    %cst_107 = arith.constant 0.000000e+00 : f32
    %77 = vector.broadcast %cst_107 : f32 to vector<256x8xf32>
    %78 = arith.maximumf %76, %77 : vector<256x8xf32>
    %79 = vector.shape_cast %78 : vector<256x8xf32> to vector<16x16x8xf32>
    %80 = vector.shape_cast %79 : vector<16x16x8xf32> to vector<8x2x16x8xf32>
    %cst_108 = arith.constant dense<0xFF800000> : vector<8x16x8xf32>
    %81 = vector.multi_reduction <maximumf>, %80, %cst_108 [1] : vector<8x2x16x8xf32> to vector<8x16x8xf32>
    %82 = vector.shape_cast %81 : vector<8x16x8xf32> to vector<8x8x2x8xf32>
    %cst_109 = arith.constant dense<0xFF800000> : vector<8x8x8xf32>
    %83 = vector.multi_reduction <maximumf>, %82, %cst_109 [2] : vector<8x8x2x8xf32> to vector<8x8x8xf32>
    %cst_110 = arith.constant 0.000000e+00 : f32
    %84 = vector.broadcast %cst_110 : f32 to vector<10x10x8xf32>
    %c0_111 = arith.constant 0 : index
    %c0_112 = arith.constant 0 : index
    %c0_113 = arith.constant 0 : index
    %85 = vector.load %arg23[%c0_111, %c0_112, %c0_113] : memref<10x10x8xf32, #tpu.memory_space<vmem>>, vector<10x10x8xf32>
    tpu.vector_store %arg23[%c0_111, %c0_112, %c0_113], %84 {strides = array<i32>} : memref<10x10x8xf32, #tpu.memory_space<vmem>>, vector<10x10x8xf32>,
    %c1_114 = arith.constant 1 : index
    %c1_115 = arith.constant 1 : index
    %c0_116 = arith.constant 0 : index
    %86 = vector.load %arg23[%c1_114, %c1_115, %c0_116] : memref<10x10x8xf32, #tpu.memory_space<vmem>>, vector<8x8x8xf32>
    tpu.vector_store %arg23[%c1_114, %c1_115, %c0_116], %83 {strides = array<i32>} : memref<10x10x8xf32, #tpu.memory_space<vmem>>, vector<8x8x8xf32>,
    %c0_117 = arith.constant 0 : index
    %c0_118 = arith.constant 0 : index
    %c0_119 = arith.constant 0 : index
    %87 = vector.load %arg23[%c0_117, %c0_118, %c0_119] : memref<10x10x8xf32, #tpu.memory_space<vmem>>, vector<8x8x8xf32>
    %88 = vector.shape_cast %87 : vector<8x8x8xf32> to vector<64x8xf32>
    %c0_120 = arith.constant 0 : index
    %c0_121 = arith.constant 0 : index
    %89 = vector.load %arg24[%c0_120, %c0_121] : memref<64x72xf32, #tpu.memory_space<vmem>>, vector<64x8xf32>
    tpu.vector_store %arg24[%c0_120, %c0_121], %88 {strides = array<i32>} : memref<64x72xf32, #tpu.memory_space<vmem>>, vector<64x8xf32>,
    %c0_122 = arith.constant 0 : index
    %c1_123 = arith.constant 1 : index
    %c0_124 = arith.constant 0 : index
    %90 = vector.load %arg23[%c0_122, %c1_123, %c0_124] : memref<10x10x8xf32, #tpu.memory_space<vmem>>, vector<8x8x8xf32>
    %91 = vector.shape_cast %90 : vector<8x8x8xf32> to vector<64x8xf32>
    %c0_125 = arith.constant 0 : index
    %c8_126 = arith.constant 8 : index
    %92 = vector.load %arg24[%c0_125, %c8_126] : memref<64x72xf32, #tpu.memory_space<vmem>>, vector<64x8xf32>
    tpu.vector_store %arg24[%c0_125, %c8_126], %91 {strides = array<i32>} : memref<64x72xf32, #tpu.memory_space<vmem>>, vector<64x8xf32>,
    %c0_127 = arith.constant 0 : index
    %c2_128 = arith.constant 2 : index
    %c0_129 = arith.constant 0 : index
    %93 = vector.load %arg23[%c0_127, %c2_128, %c0_129] : memref<10x10x8xf32, #tpu.memory_space<vmem>>, vector<8x8x8xf32>
    %94 = vector.shape_cast %93 : vector<8x8x8xf32> to vector<64x8xf32>
    %c0_130 = arith.constant 0 : index
    %c16_131 = arith.constant 16 : index
    %95 = vector.load %arg24[%c0_130, %c16_131] : memref<64x72xf32, #tpu.memory_space<vmem>>, vector<64x8xf32>
    tpu.vector_store %arg24[%c0_130, %c16_131], %94 {strides = array<i32>} : memref<64x72xf32, #tpu.memory_space<vmem>>, vector<64x8xf32>,
    %c1_132 = arith.constant 1 : index
    %c0_133 = arith.constant 0 : index
    %c0_134 = arith.constant 0 : index
    %96 = vector.load %arg23[%c1_132, %c0_133, %c0_134] : memref<10x10x8xf32, #tpu.memory_space<vmem>>, vector<8x8x8xf32>
    %97 = vector.shape_cast %96 : vector<8x8x8xf32> to vector<64x8xf32>
    %c0_135 = arith.constant 0 : index
    %c24_136 = arith.constant 24 : index
    %98 = vector.load %arg24[%c0_135, %c24_136] : memref<64x72xf32, #tpu.memory_space<vmem>>, vector<64x8xf32>
    tpu.vector_store %arg24[%c0_135, %c24_136], %97 {strides = array<i32>} : memref<64x72xf32, #tpu.memory_space<vmem>>, vector<64x8xf32>,
    %c1_137 = arith.constant 1 : index
    %c1_138 = arith.constant 1 : index
    %c0_139 = arith.constant 0 : index
    %99 = vector.load %arg23[%c1_137, %c1_138, %c0_139] : memref<10x10x8xf32, #tpu.memory_space<vmem>>, vector<8x8x8xf32>
    %100 = vector.shape_cast %99 : vector<8x8x8xf32> to vector<64x8xf32>
    %c0_140 = arith.constant 0 : index
    %c32_141 = arith.constant 32 : index
    %101 = vector.load %arg24[%c0_140, %c32_141] : memref<64x72xf32, #tpu.memory_space<vmem>>, vector<64x8xf32>
    tpu.vector_store %arg24[%c0_140, %c32_141], %100 {strides = array<i32>} : memref<64x72xf32, #tpu.memory_space<vmem>>, vector<64x8xf32>,
    %c1_142 = arith.constant 1 : index
    %c2_143 = arith.constant 2 : index
    %c0_144 = arith.constant 0 : index
    %102 = vector.load %arg23[%c1_142, %c2_143, %c0_144] : memref<10x10x8xf32, #tpu.memory_space<vmem>>, vector<8x8x8xf32>
    %103 = vector.shape_cast %102 : vector<8x8x8xf32> to vector<64x8xf32>
    %c0_145 = arith.constant 0 : index
    %c40_146 = arith.constant 40 : index
    %104 = vector.load %arg24[%c0_145, %c40_146] : memref<64x72xf32, #tpu.memory_space<vmem>>, vector<64x8xf32>
    tpu.vector_store %arg24[%c0_145, %c40_146], %103 {strides = array<i32>} : memref<64x72xf32, #tpu.memory_space<vmem>>, vector<64x8xf32>,
    %c2_147 = arith.constant 2 : index
    %c0_148 = arith.constant 0 : index
    %c0_149 = arith.constant 0 : index
    %105 = vector.load %arg23[%c2_147, %c0_148, %c0_149] : memref<10x10x8xf32, #tpu.memory_space<vmem>>, vector<8x8x8xf32>
    %106 = vector.shape_cast %105 : vector<8x8x8xf32> to vector<64x8xf32>
    %c0_150 = arith.constant 0 : index
    %c48_151 = arith.constant 48 : index
    %107 = vector.load %arg24[%c0_150, %c48_151] : memref<64x72xf32, #tpu.memory_space<vmem>>, vector<64x8xf32>
    tpu.vector_store %arg24[%c0_150, %c48_151], %106 {strides = array<i32>} : memref<64x72xf32, #tpu.memory_space<vmem>>, vector<64x8xf32>,
    %c2_152 = arith.constant 2 : index
    %c1_153 = arith.constant 1 : index
    %c0_154 = arith.constant 0 : index
    %108 = vector.load %arg23[%c2_152, %c1_153, %c0_154] : memref<10x10x8xf32, #tpu.memory_space<vmem>>, vector<8x8x8xf32>
    %109 = vector.shape_cast %108 : vector<8x8x8xf32> to vector<64x8xf32>
    %c0_155 = arith.constant 0 : index
    %c56_156 = arith.constant 56 : index
    %110 = vector.load %arg24[%c0_155, %c56_156] : memref<64x72xf32, #tpu.memory_space<vmem>>, vector<64x8xf32>
    tpu.vector_store %arg24[%c0_155, %c56_156], %109 {strides = array<i32>} : memref<64x72xf32, #tpu.memory_space<vmem>>, vector<64x8xf32>,
    %c2_157 = arith.constant 2 : index
    %c2_158 = arith.constant 2 : index
    %c0_159 = arith.constant 0 : index
    %111 = vector.load %arg23[%c2_157, %c2_158, %c0_159] : memref<10x10x8xf32, #tpu.memory_space<vmem>>, vector<8x8x8xf32>
    %112 = vector.shape_cast %111 : vector<8x8x8xf32> to vector<64x8xf32>
    %c0_160 = arith.constant 0 : index
    %c64_161 = arith.constant 64 : index
    %113 = vector.load %arg24[%c0_160, %c64_161] : memref<64x72xf32, #tpu.memory_space<vmem>>, vector<64x8xf32>
    tpu.vector_store %arg24[%c0_160, %c64_161], %112 {strides = array<i32>} : memref<64x72xf32, #tpu.memory_space<vmem>>, vector<64x8xf32>,
    %c0_162 = arith.constant 0 : index
    %c0_163 = arith.constant 0 : index
    %114 = vector.load %arg24[%c0_162, %c0_163] : memref<64x72xf32, #tpu.memory_space<vmem>>, vector<64x72xf32>
    %c0_164 = arith.constant 0 : index
    %c0_165 = arith.constant 0 : index
    %115 = vector.load %arg6[%c0_164, %c0_165] : memref<72x16xf32, #tpu.memory_space<vmem>>, vector<72x16xf32>
    %cst_166 = arith.constant dense<0.000000e+00> : vector<64x16xf32>
    %116 = tpu.matmul %114, %115, %cst_166 {dimension_numbers = #tpu.dot_dimension_numbers<[1], [0], [0], [1], [0, 0, 1, 1], [], []>} : vector<64x72xf32>, vector<72x16xf32>, vector<64x16xf32> -> vector<64x16xf32>
    %c0_167 = arith.constant 0 : index
    %c0_168 = arith.constant 0 : index
    %117 = vector.load %arg7[%c0_167, %c0_168] : memref<1x16xf32, #tpu.memory_space<vmem>>, vector<1x16xf32>
    %118 = vector.broadcast %117 : vector<1x16xf32> to vector<64x16xf32>
    %119 = arith.addf %116, %118 : vector<64x16xf32>
    %cst_169 = arith.constant 0.000000e+00 : f32
    %120 = vector.broadcast %cst_169 : f32 to vector<64x16xf32>
    %121 = arith.maximumf %119, %120 : vector<64x16xf32>
    %122 = vector.shape_cast %121 : vector<64x16xf32> to vector<8x8x16xf32>
    %cst_170 = arith.constant 0.000000e+00 : f32
    %123 = vector.broadcast %cst_170 : f32 to vector<10x10x16xf32>
    %c0_171 = arith.constant 0 : index
    %c0_172 = arith.constant 0 : index
    %c0_173 = arith.constant 0 : index
    %124 = vector.load %arg25[%c0_171, %c0_172, %c0_173] : memref<10x10x16xf32, #tpu.memory_space<vmem>>, vector<10x10x16xf32>
    tpu.vector_store %arg25[%c0_171, %c0_172, %c0_173], %123 {strides = array<i32>} : memref<10x10x16xf32, #tpu.memory_space<vmem>>, vector<10x10x16xf32>,
    %c1_174 = arith.constant 1 : index
    %c1_175 = arith.constant 1 : index
    %c0_176 = arith.constant 0 : index
    %125 = vector.load %arg25[%c1_174, %c1_175, %c0_176] : memref<10x10x16xf32, #tpu.memory_space<vmem>>, vector<8x8x16xf32>
    tpu.vector_store %arg25[%c1_174, %c1_175, %c0_176], %122 {strides = array<i32>} : memref<10x10x16xf32, #tpu.memory_space<vmem>>, vector<8x8x16xf32>,
    %c0_177 = arith.constant 0 : index
    %c0_178 = arith.constant 0 : index
    %c0_179 = arith.constant 0 : index
    %126 = vector.load %arg25[%c0_177, %c0_178, %c0_179] : memref<10x10x16xf32, #tpu.memory_space<vmem>>, vector<8x8x16xf32>
    %127 = vector.shape_cast %126 : vector<8x8x16xf32> to vector<64x16xf32>
    %c0_180 = arith.constant 0 : index
    %c0_181 = arith.constant 0 : index
    %128 = vector.load %arg26[%c0_180, %c0_181] : memref<64x144xf32, #tpu.memory_space<vmem>>, vector<64x16xf32>
    tpu.vector_store %arg26[%c0_180, %c0_181], %127 {strides = array<i32>} : memref<64x144xf32, #tpu.memory_space<vmem>>, vector<64x16xf32>,
    %c0_182 = arith.constant 0 : index
    %c1_183 = arith.constant 1 : index
    %c0_184 = arith.constant 0 : index
    %129 = vector.load %arg25[%c0_182, %c1_183, %c0_184] : memref<10x10x16xf32, #tpu.memory_space<vmem>>, vector<8x8x16xf32>
    %130 = vector.shape_cast %129 : vector<8x8x16xf32> to vector<64x16xf32>
    %c0_185 = arith.constant 0 : index
    %c16_186 = arith.constant 16 : index
    %131 = vector.load %arg26[%c0_185, %c16_186] : memref<64x144xf32, #tpu.memory_space<vmem>>, vector<64x16xf32>
    tpu.vector_store %arg26[%c0_185, %c16_186], %130 {strides = array<i32>} : memref<64x144xf32, #tpu.memory_space<vmem>>, vector<64x16xf32>,
    %c0_187 = arith.constant 0 : index
    %c2_188 = arith.constant 2 : index
    %c0_189 = arith.constant 0 : index
    %132 = vector.load %arg25[%c0_187, %c2_188, %c0_189] : memref<10x10x16xf32, #tpu.memory_space<vmem>>, vector<8x8x16xf32>
    %133 = vector.shape_cast %132 : vector<8x8x16xf32> to vector<64x16xf32>
    %c0_190 = arith.constant 0 : index
    %c32_191 = arith.constant 32 : index
    %134 = vector.load %arg26[%c0_190, %c32_191] : memref<64x144xf32, #tpu.memory_space<vmem>>, vector<64x16xf32>
    tpu.vector_store %arg26[%c0_190, %c32_191], %133 {strides = array<i32>} : memref<64x144xf32, #tpu.memory_space<vmem>>, vector<64x16xf32>,
    %c1_192 = arith.constant 1 : index
    %c0_193 = arith.constant 0 : index
    %c0_194 = arith.constant 0 : index
    %135 = vector.load %arg25[%c1_192, %c0_193, %c0_194] : memref<10x10x16xf32, #tpu.memory_space<vmem>>, vector<8x8x16xf32>
    %136 = vector.shape_cast %135 : vector<8x8x16xf32> to vector<64x16xf32>
    %c0_195 = arith.constant 0 : index
    %c48_196 = arith.constant 48 : index
    %137 = vector.load %arg26[%c0_195, %c48_196] : memref<64x144xf32, #tpu.memory_space<vmem>>, vector<64x16xf32>
    tpu.vector_store %arg26[%c0_195, %c48_196], %136 {strides = array<i32>} : memref<64x144xf32, #tpu.memory_space<vmem>>, vector<64x16xf32>,
    %c1_197 = arith.constant 1 : index
    %c1_198 = arith.constant 1 : index
    %c0_199 = arith.constant 0 : index
    %138 = vector.load %arg25[%c1_197, %c1_198, %c0_199] : memref<10x10x16xf32, #tpu.memory_space<vmem>>, vector<8x8x16xf32>
    %139 = vector.shape_cast %138 : vector<8x8x16xf32> to vector<64x16xf32>
    %c0_200 = arith.constant 0 : index
    %c64_201 = arith.constant 64 : index
    %140 = vector.load %arg26[%c0_200, %c64_201] : memref<64x144xf32, #tpu.memory_space<vmem>>, vector<64x16xf32>
    tpu.vector_store %arg26[%c0_200, %c64_201], %139 {strides = array<i32>} : memref<64x144xf32, #tpu.memory_space<vmem>>, vector<64x16xf32>,
    %c1_202 = arith.constant 1 : index
    %c2_203 = arith.constant 2 : index
    %c0_204 = arith.constant 0 : index
    %141 = vector.load %arg25[%c1_202, %c2_203, %c0_204] : memref<10x10x16xf32, #tpu.memory_space<vmem>>, vector<8x8x16xf32>
    %142 = vector.shape_cast %141 : vector<8x8x16xf32> to vector<64x16xf32>
    %c0_205 = arith.constant 0 : index
    %c80 = arith.constant 80 : index
    %143 = vector.load %arg26[%c0_205, %c80] : memref<64x144xf32, #tpu.memory_space<vmem>>, vector<64x16xf32>
    tpu.vector_store %arg26[%c0_205, %c80], %142 {strides = array<i32>} : memref<64x144xf32, #tpu.memory_space<vmem>>, vector<64x16xf32>,
    %c2_206 = arith.constant 2 : index
    %c0_207 = arith.constant 0 : index
    %c0_208 = arith.constant 0 : index
    %144 = vector.load %arg25[%c2_206, %c0_207, %c0_208] : memref<10x10x16xf32, #tpu.memory_space<vmem>>, vector<8x8x16xf32>
    %145 = vector.shape_cast %144 : vector<8x8x16xf32> to vector<64x16xf32>
    %c0_209 = arith.constant 0 : index
    %c96 = arith.constant 96 : index
    %146 = vector.load %arg26[%c0_209, %c96] : memref<64x144xf32, #tpu.memory_space<vmem>>, vector<64x16xf32>
    tpu.vector_store %arg26[%c0_209, %c96], %145 {strides = array<i32>} : memref<64x144xf32, #tpu.memory_space<vmem>>, vector<64x16xf32>,
    %c2_210 = arith.constant 2 : index
    %c1_211 = arith.constant 1 : index
    %c0_212 = arith.constant 0 : index
    %147 = vector.load %arg25[%c2_210, %c1_211, %c0_212] : memref<10x10x16xf32, #tpu.memory_space<vmem>>, vector<8x8x16xf32>
    %148 = vector.shape_cast %147 : vector<8x8x16xf32> to vector<64x16xf32>
    %c0_213 = arith.constant 0 : index
    %c112 = arith.constant 112 : index
    %149 = vector.load %arg26[%c0_213, %c112] : memref<64x144xf32, #tpu.memory_space<vmem>>, vector<64x16xf32>
    tpu.vector_store %arg26[%c0_213, %c112], %148 {strides = array<i32>} : memref<64x144xf32, #tpu.memory_space<vmem>>, vector<64x16xf32>,
    %c2_214 = arith.constant 2 : index
    %c2_215 = arith.constant 2 : index
    %c0_216 = arith.constant 0 : index
    %150 = vector.load %arg25[%c2_214, %c2_215, %c0_216] : memref<10x10x16xf32, #tpu.memory_space<vmem>>, vector<8x8x16xf32>
    %151 = vector.shape_cast %150 : vector<8x8x16xf32> to vector<64x16xf32>
    %c0_217 = arith.constant 0 : index
    %c128 = arith.constant 128 : index
    %152 = vector.load %arg26[%c0_217, %c128] : memref<64x144xf32, #tpu.memory_space<vmem>>, vector<64x16xf32>
    tpu.vector_store %arg26[%c0_217, %c128], %151 {strides = array<i32>} : memref<64x144xf32, #tpu.memory_space<vmem>>, vector<64x16xf32>,
    %c0_218 = arith.constant 0 : index
    %c0_219 = arith.constant 0 : index
    %153 = vector.load %arg26[%c0_218, %c0_219] : memref<64x144xf32, #tpu.memory_space<vmem>>, vector<64x144xf32>
    %c0_220 = arith.constant 0 : index
    %c0_221 = arith.constant 0 : index
    %154 = vector.load %arg8[%c0_220, %c0_221] : memref<144x16xf32, #tpu.memory_space<vmem>>, vector<144x16xf32>
    %cst_222 = arith.constant dense<0.000000e+00> : vector<64x16xf32>
    %155 = tpu.matmul %153, %154, %cst_222 {dimension_numbers = #tpu.dot_dimension_numbers<[1], [0], [0], [1], [0, 0, 1, 1], [], []>} : vector<64x144xf32>, vector<144x16xf32>, vector<64x16xf32> -> vector<64x16xf32>
    %c0_223 = arith.constant 0 : index
    %c0_224 = arith.constant 0 : index
    %156 = vector.load %arg9[%c0_223, %c0_224] : memref<1x16xf32, #tpu.memory_space<vmem>>, vector<1x16xf32>
    %157 = vector.broadcast %156 : vector<1x16xf32> to vector<64x16xf32>
    %158 = arith.addf %155, %157 : vector<64x16xf32>
    %cst_225 = arith.constant 0.000000e+00 : f32
    %159 = vector.broadcast %cst_225 : f32 to vector<64x16xf32>
    %160 = arith.maximumf %158, %159 : vector<64x16xf32>
    %161 = vector.shape_cast %160 : vector<64x16xf32> to vector<8x8x16xf32>
    %162 = vector.shape_cast %161 : vector<8x8x16xf32> to vector<4x2x8x16xf32>
    %cst_226 = arith.constant dense<0xFF800000> : vector<4x8x16xf32>
    %163 = vector.multi_reduction <maximumf>, %162, %cst_226 [1] : vector<4x2x8x16xf32> to vector<4x8x16xf32>
    %164 = vector.shape_cast %163 : vector<4x8x16xf32> to vector<4x4x2x16xf32>
    %cst_227 = arith.constant dense<0xFF800000> : vector<4x4x16xf32>
    %165 = vector.multi_reduction <maximumf>, %164, %cst_227 [2] : vector<4x4x2x16xf32> to vector<4x4x16xf32>
    %cst_228 = arith.constant 0.000000e+00 : f32
    %166 = vector.broadcast %cst_228 : f32 to vector<6x6x16xf32>
    %c0_229 = arith.constant 0 : index
    %c0_230 = arith.constant 0 : index
    %c0_231 = arith.constant 0 : index
    %167 = vector.load %arg27[%c0_229, %c0_230, %c0_231] : memref<6x6x16xf32, #tpu.memory_space<vmem>>, vector<6x6x16xf32>
    tpu.vector_store %arg27[%c0_229, %c0_230, %c0_231], %166 {strides = array<i32>} : memref<6x6x16xf32, #tpu.memory_space<vmem>>, vector<6x6x16xf32>,
    %c1_232 = arith.constant 1 : index
    %c1_233 = arith.constant 1 : index
    %c0_234 = arith.constant 0 : index
    %168 = vector.load %arg27[%c1_232, %c1_233, %c0_234] : memref<6x6x16xf32, #tpu.memory_space<vmem>>, vector<4x4x16xf32>
    tpu.vector_store %arg27[%c1_232, %c1_233, %c0_234], %165 {strides = array<i32>} : memref<6x6x16xf32, #tpu.memory_space<vmem>>, vector<4x4x16xf32>,
    %c0_235 = arith.constant 0 : index
    %c0_236 = arith.constant 0 : index
    %c0_237 = arith.constant 0 : index
    %169 = vector.load %arg27[%c0_235, %c0_236, %c0_237] : memref<6x6x16xf32, #tpu.memory_space<vmem>>, vector<4x4x16xf32>
    %170 = vector.shape_cast %169 : vector<4x4x16xf32> to vector<16x16xf32>
    %c0_238 = arith.constant 0 : index
    %c0_239 = arith.constant 0 : index
    %171 = vector.load %arg28[%c0_238, %c0_239] : memref<16x144xf32, #tpu.memory_space<vmem>>, vector<16x16xf32>
    tpu.vector_store %arg28[%c0_238, %c0_239], %170 {strides = array<i32>} : memref<16x144xf32, #tpu.memory_space<vmem>>, vector<16x16xf32>,
    %c0_240 = arith.constant 0 : index
    %c1_241 = arith.constant 1 : index
    %c0_242 = arith.constant 0 : index
    %172 = vector.load %arg27[%c0_240, %c1_241, %c0_242] : memref<6x6x16xf32, #tpu.memory_space<vmem>>, vector<4x4x16xf32>
    %173 = vector.shape_cast %172 : vector<4x4x16xf32> to vector<16x16xf32>
    %c0_243 = arith.constant 0 : index
    %c16_244 = arith.constant 16 : index
    %174 = vector.load %arg28[%c0_243, %c16_244] : memref<16x144xf32, #tpu.memory_space<vmem>>, vector<16x16xf32>
    tpu.vector_store %arg28[%c0_243, %c16_244], %173 {strides = array<i32>} : memref<16x144xf32, #tpu.memory_space<vmem>>, vector<16x16xf32>,
    %c0_245 = arith.constant 0 : index
    %c2_246 = arith.constant 2 : index
    %c0_247 = arith.constant 0 : index
    %175 = vector.load %arg27[%c0_245, %c2_246, %c0_247] : memref<6x6x16xf32, #tpu.memory_space<vmem>>, vector<4x4x16xf32>
    %176 = vector.shape_cast %175 : vector<4x4x16xf32> to vector<16x16xf32>
    %c0_248 = arith.constant 0 : index
    %c32_249 = arith.constant 32 : index
    %177 = vector.load %arg28[%c0_248, %c32_249] : memref<16x144xf32, #tpu.memory_space<vmem>>, vector<16x16xf32>
    tpu.vector_store %arg28[%c0_248, %c32_249], %176 {strides = array<i32>} : memref<16x144xf32, #tpu.memory_space<vmem>>, vector<16x16xf32>,
    %c1_250 = arith.constant 1 : index
    %c0_251 = arith.constant 0 : index
    %c0_252 = arith.constant 0 : index
    %178 = vector.load %arg27[%c1_250, %c0_251, %c0_252] : memref<6x6x16xf32, #tpu.memory_space<vmem>>, vector<4x4x16xf32>
    %179 = vector.shape_cast %178 : vector<4x4x16xf32> to vector<16x16xf32>
    %c0_253 = arith.constant 0 : index
    %c48_254 = arith.constant 48 : index
    %180 = vector.load %arg28[%c0_253, %c48_254] : memref<16x144xf32, #tpu.memory_space<vmem>>, vector<16x16xf32>
    tpu.vector_store %arg28[%c0_253, %c48_254], %179 {strides = array<i32>} : memref<16x144xf32, #tpu.memory_space<vmem>>, vector<16x16xf32>,
    %c1_255 = arith.constant 1 : index
    %c1_256 = arith.constant 1 : index
    %c0_257 = arith.constant 0 : index
    %181 = vector.load %arg27[%c1_255, %c1_256, %c0_257] : memref<6x6x16xf32, #tpu.memory_space<vmem>>, vector<4x4x16xf32>
    %182 = vector.shape_cast %181 : vector<4x4x16xf32> to vector<16x16xf32>
    %c0_258 = arith.constant 0 : index
    %c64_259 = arith.constant 64 : index
    %183 = vector.load %arg28[%c0_258, %c64_259] : memref<16x144xf32, #tpu.memory_space<vmem>>, vector<16x16xf32>
    tpu.vector_store %arg28[%c0_258, %c64_259], %182 {strides = array<i32>} : memref<16x144xf32, #tpu.memory_space<vmem>>, vector<16x16xf32>,
    %c1_260 = arith.constant 1 : index
    %c2_261 = arith.constant 2 : index
    %c0_262 = arith.constant 0 : index
    %184 = vector.load %arg27[%c1_260, %c2_261, %c0_262] : memref<6x6x16xf32, #tpu.memory_space<vmem>>, vector<4x4x16xf32>
    %185 = vector.shape_cast %184 : vector<4x4x16xf32> to vector<16x16xf32>
    %c0_263 = arith.constant 0 : index
    %c80_264 = arith.constant 80 : index
    %186 = vector.load %arg28[%c0_263, %c80_264] : memref<16x144xf32, #tpu.memory_space<vmem>>, vector<16x16xf32>
    tpu.vector_store %arg28[%c0_263, %c80_264], %185 {strides = array<i32>} : memref<16x144xf32, #tpu.memory_space<vmem>>, vector<16x16xf32>,
    %c2_265 = arith.constant 2 : index
    %c0_266 = arith.constant 0 : index
    %c0_267 = arith.constant 0 : index
    %187 = vector.load %arg27[%c2_265, %c0_266, %c0_267] : memref<6x6x16xf32, #tpu.memory_space<vmem>>, vector<4x4x16xf32>
    %188 = vector.shape_cast %187 : vector<4x4x16xf32> to vector<16x16xf32>
    %c0_268 = arith.constant 0 : index
    %c96_269 = arith.constant 96 : index
    %189 = vector.load %arg28[%c0_268, %c96_269] : memref<16x144xf32, #tpu.memory_space<vmem>>, vector<16x16xf32>
    tpu.vector_store %arg28[%c0_268, %c96_269], %188 {strides = array<i32>} : memref<16x144xf32, #tpu.memory_space<vmem>>, vector<16x16xf32>,
    %c2_270 = arith.constant 2 : index
    %c1_271 = arith.constant 1 : index
    %c0_272 = arith.constant 0 : index
    %190 = vector.load %arg27[%c2_270, %c1_271, %c0_272] : memref<6x6x16xf32, #tpu.memory_space<vmem>>, vector<4x4x16xf32>
    %191 = vector.shape_cast %190 : vector<4x4x16xf32> to vector<16x16xf32>
    %c0_273 = arith.constant 0 : index
    %c112_274 = arith.constant 112 : index
    %192 = vector.load %arg28[%c0_273, %c112_274] : memref<16x144xf32, #tpu.memory_space<vmem>>, vector<16x16xf32>
    tpu.vector_store %arg28[%c0_273, %c112_274], %191 {strides = array<i32>} : memref<16x144xf32, #tpu.memory_space<vmem>>, vector<16x16xf32>,
    %c2_275 = arith.constant 2 : index
    %c2_276 = arith.constant 2 : index
    %c0_277 = arith.constant 0 : index
    %193 = vector.load %arg27[%c2_275, %c2_276, %c0_277] : memref<6x6x16xf32, #tpu.memory_space<vmem>>, vector<4x4x16xf32>
    %194 = vector.shape_cast %193 : vector<4x4x16xf32> to vector<16x16xf32>
    %c0_278 = arith.constant 0 : index
    %c128_279 = arith.constant 128 : index
    %195 = vector.load %arg28[%c0_278, %c128_279] : memref<16x144xf32, #tpu.memory_space<vmem>>, vector<16x16xf32>
    tpu.vector_store %arg28[%c0_278, %c128_279], %194 {strides = array<i32>} : memref<16x144xf32, #tpu.memory_space<vmem>>, vector<16x16xf32>,
    %c0_280 = arith.constant 0 : index
    %c0_281 = arith.constant 0 : index
    %196 = vector.load %arg28[%c0_280, %c0_281] : memref<16x144xf32, #tpu.memory_space<vmem>>, vector<16x144xf32>
    %c0_282 = arith.constant 0 : index
    %c0_283 = arith.constant 0 : index
    %197 = vector.load %arg10[%c0_282, %c0_283] : memref<144x32xf32, #tpu.memory_space<vmem>>, vector<144x32xf32>
    %cst_284 = arith.constant dense<0.000000e+00> : vector<16x32xf32>
    %198 = tpu.matmul %196, %197, %cst_284 {dimension_numbers = #tpu.dot_dimension_numbers<[1], [0], [0], [1], [0, 0, 1, 1], [], []>} : vector<16x144xf32>, vector<144x32xf32>, vector<16x32xf32> -> vector<16x32xf32>
    %c0_285 = arith.constant 0 : index
    %c0_286 = arith.constant 0 : index
    %199 = vector.load %arg11[%c0_285, %c0_286] : memref<1x32xf32, #tpu.memory_space<vmem>>, vector<1x32xf32>
    %200 = vector.broadcast %199 : vector<1x32xf32> to vector<16x32xf32>
    %201 = arith.addf %198, %200 : vector<16x32xf32>
    %cst_287 = arith.constant 0.000000e+00 : f32
    %202 = vector.broadcast %cst_287 : f32 to vector<16x32xf32>
    %203 = arith.maximumf %201, %202 : vector<16x32xf32>
    %204 = vector.shape_cast %203 : vector<16x32xf32> to vector<4x4x32xf32>
    %cst_288 = arith.constant 0.000000e+00 : f32
    %205 = vector.broadcast %cst_288 : f32 to vector<6x6x32xf32>
    %c0_289 = arith.constant 0 : index
    %c0_290 = arith.constant 0 : index
    %c0_291 = arith.constant 0 : index
    %206 = vector.load %arg29[%c0_289, %c0_290, %c0_291] : memref<6x6x32xf32, #tpu.memory_space<vmem>>, vector<6x6x32xf32>
    tpu.vector_store %arg29[%c0_289, %c0_290, %c0_291], %205 {strides = array<i32>} : memref<6x6x32xf32, #tpu.memory_space<vmem>>, vector<6x6x32xf32>,
    %c1_292 = arith.constant 1 : index
    %c1_293 = arith.constant 1 : index
    %c0_294 = arith.constant 0 : index
    %207 = vector.load %arg29[%c1_292, %c1_293, %c0_294] : memref<6x6x32xf32, #tpu.memory_space<vmem>>, vector<4x4x32xf32>
    tpu.vector_store %arg29[%c1_292, %c1_293, %c0_294], %204 {strides = array<i32>} : memref<6x6x32xf32, #tpu.memory_space<vmem>>, vector<4x4x32xf32>,
    %c0_295 = arith.constant 0 : index
    %c0_296 = arith.constant 0 : index
    %c0_297 = arith.constant 0 : index
    %208 = vector.load %arg29[%c0_295, %c0_296, %c0_297] : memref<6x6x32xf32, #tpu.memory_space<vmem>>, vector<4x4x32xf32>
    %209 = vector.shape_cast %208 : vector<4x4x32xf32> to vector<16x32xf32>
    %c0_298 = arith.constant 0 : index
    %c0_299 = arith.constant 0 : index
    %210 = vector.load %arg30[%c0_298, %c0_299] : memref<16x288xf32, #tpu.memory_space<vmem>>, vector<16x32xf32>
    tpu.vector_store %arg30[%c0_298, %c0_299], %209 {strides = array<i32>} : memref<16x288xf32, #tpu.memory_space<vmem>>, vector<16x32xf32>,
    %c0_300 = arith.constant 0 : index
    %c1_301 = arith.constant 1 : index
    %c0_302 = arith.constant 0 : index
    %211 = vector.load %arg29[%c0_300, %c1_301, %c0_302] : memref<6x6x32xf32, #tpu.memory_space<vmem>>, vector<4x4x32xf32>
    %212 = vector.shape_cast %211 : vector<4x4x32xf32> to vector<16x32xf32>
    %c0_303 = arith.constant 0 : index
    %c32_304 = arith.constant 32 : index
    %213 = vector.load %arg30[%c0_303, %c32_304] : memref<16x288xf32, #tpu.memory_space<vmem>>, vector<16x32xf32>
    tpu.vector_store %arg30[%c0_303, %c32_304], %212 {strides = array<i32>} : memref<16x288xf32, #tpu.memory_space<vmem>>, vector<16x32xf32>,
    %c0_305 = arith.constant 0 : index
    %c2_306 = arith.constant 2 : index
    %c0_307 = arith.constant 0 : index
    %214 = vector.load %arg29[%c0_305, %c2_306, %c0_307] : memref<6x6x32xf32, #tpu.memory_space<vmem>>, vector<4x4x32xf32>
    %215 = vector.shape_cast %214 : vector<4x4x32xf32> to vector<16x32xf32>
    %c0_308 = arith.constant 0 : index
    %c64_309 = arith.constant 64 : index
    %216 = vector.load %arg30[%c0_308, %c64_309] : memref<16x288xf32, #tpu.memory_space<vmem>>, vector<16x32xf32>
    tpu.vector_store %arg30[%c0_308, %c64_309], %215 {strides = array<i32>} : memref<16x288xf32, #tpu.memory_space<vmem>>, vector<16x32xf32>,
    %c1_310 = arith.constant 1 : index
    %c0_311 = arith.constant 0 : index
    %c0_312 = arith.constant 0 : index
    %217 = vector.load %arg29[%c1_310, %c0_311, %c0_312] : memref<6x6x32xf32, #tpu.memory_space<vmem>>, vector<4x4x32xf32>
    %218 = vector.shape_cast %217 : vector<4x4x32xf32> to vector<16x32xf32>
    %c0_313 = arith.constant 0 : index
    %c96_314 = arith.constant 96 : index
    %219 = vector.load %arg30[%c0_313, %c96_314] : memref<16x288xf32, #tpu.memory_space<vmem>>, vector<16x32xf32>
    tpu.vector_store %arg30[%c0_313, %c96_314], %218 {strides = array<i32>} : memref<16x288xf32, #tpu.memory_space<vmem>>, vector<16x32xf32>,
    %c1_315 = arith.constant 1 : index
    %c1_316 = arith.constant 1 : index
    %c0_317 = arith.constant 0 : index
    %220 = vector.load %arg29[%c1_315, %c1_316, %c0_317] : memref<6x6x32xf32, #tpu.memory_space<vmem>>, vector<4x4x32xf32>
    %221 = vector.shape_cast %220 : vector<4x4x32xf32> to vector<16x32xf32>
    %c0_318 = arith.constant 0 : index
    %c128_319 = arith.constant 128 : index
    %222 = vector.load %arg30[%c0_318, %c128_319] : memref<16x288xf32, #tpu.memory_space<vmem>>, vector<16x32xf32>
    tpu.vector_store %arg30[%c0_318, %c128_319], %221 {strides = array<i32>} : memref<16x288xf32, #tpu.memory_space<vmem>>, vector<16x32xf32>,
    %c1_320 = arith.constant 1 : index
    %c2_321 = arith.constant 2 : index
    %c0_322 = arith.constant 0 : index
    %223 = vector.load %arg29[%c1_320, %c2_321, %c0_322] : memref<6x6x32xf32, #tpu.memory_space<vmem>>, vector<4x4x32xf32>
    %224 = vector.shape_cast %223 : vector<4x4x32xf32> to vector<16x32xf32>
    %c0_323 = arith.constant 0 : index
    %c160 = arith.constant 160 : index
    %225 = vector.load %arg30[%c0_323, %c160] : memref<16x288xf32, #tpu.memory_space<vmem>>, vector<16x32xf32>
    tpu.vector_store %arg30[%c0_323, %c160], %224 {strides = array<i32>} : memref<16x288xf32, #tpu.memory_space<vmem>>, vector<16x32xf32>,
    %c2_324 = arith.constant 2 : index
    %c0_325 = arith.constant 0 : index
    %c0_326 = arith.constant 0 : index
    %226 = vector.load %arg29[%c2_324, %c0_325, %c0_326] : memref<6x6x32xf32, #tpu.memory_space<vmem>>, vector<4x4x32xf32>
    %227 = vector.shape_cast %226 : vector<4x4x32xf32> to vector<16x32xf32>
    %c0_327 = arith.constant 0 : index
    %c192 = arith.constant 192 : index
    %228 = vector.load %arg30[%c0_327, %c192] : memref<16x288xf32, #tpu.memory_space<vmem>>, vector<16x32xf32>
    tpu.vector_store %arg30[%c0_327, %c192], %227 {strides = array<i32>} : memref<16x288xf32, #tpu.memory_space<vmem>>, vector<16x32xf32>,
    %c2_328 = arith.constant 2 : index
    %c1_329 = arith.constant 1 : index
    %c0_330 = arith.constant 0 : index
    %229 = vector.load %arg29[%c2_328, %c1_329, %c0_330] : memref<6x6x32xf32, #tpu.memory_space<vmem>>, vector<4x4x32xf32>
    %230 = vector.shape_cast %229 : vector<4x4x32xf32> to vector<16x32xf32>
    %c0_331 = arith.constant 0 : index
    %c224 = arith.constant 224 : index
    %231 = vector.load %arg30[%c0_331, %c224] : memref<16x288xf32, #tpu.memory_space<vmem>>, vector<16x32xf32>
    tpu.vector_store %arg30[%c0_331, %c224], %230 {strides = array<i32>} : memref<16x288xf32, #tpu.memory_space<vmem>>, vector<16x32xf32>,
    %c2_332 = arith.constant 2 : index
    %c2_333 = arith.constant 2 : index
    %c0_334 = arith.constant 0 : index
    %232 = vector.load %arg29[%c2_332, %c2_333, %c0_334] : memref<6x6x32xf32, #tpu.memory_space<vmem>>, vector<4x4x32xf32>
    %233 = vector.shape_cast %232 : vector<4x4x32xf32> to vector<16x32xf32>
    %c0_335 = arith.constant 0 : index
    %c256 = arith.constant 256 : index
    %234 = vector.load %arg30[%c0_335, %c256] : memref<16x288xf32, #tpu.memory_space<vmem>>, vector<16x32xf32>
    tpu.vector_store %arg30[%c0_335, %c256], %233 {strides = array<i32>} : memref<16x288xf32, #tpu.memory_space<vmem>>, vector<16x32xf32>,
    %c0_336 = arith.constant 0 : index
    %c0_337 = arith.constant 0 : index
    %235 = vector.load %arg30[%c0_336, %c0_337] : memref<16x288xf32, #tpu.memory_space<vmem>>, vector<16x288xf32>
    %c0_338 = arith.constant 0 : index
    %c0_339 = arith.constant 0 : index
    %236 = vector.load %arg12[%c0_338, %c0_339] : memref<288x32xf32, #tpu.memory_space<vmem>>, vector<288x32xf32>
    %cst_340 = arith.constant dense<0.000000e+00> : vector<16x32xf32>
    %237 = tpu.matmul %235, %236, %cst_340 {dimension_numbers = #tpu.dot_dimension_numbers<[1], [0], [0], [1], [0, 0, 1, 1], [], []>} : vector<16x288xf32>, vector<288x32xf32>, vector<16x32xf32> -> vector<16x32xf32>
    %c0_341 = arith.constant 0 : index
    %c0_342 = arith.constant 0 : index
    %238 = vector.load %arg13[%c0_341, %c0_342] : memref<1x32xf32, #tpu.memory_space<vmem>>, vector<1x32xf32>
    %239 = vector.broadcast %238 : vector<1x32xf32> to vector<16x32xf32>
    %240 = arith.addf %237, %239 : vector<16x32xf32>
    %cst_343 = arith.constant 0.000000e+00 : f32
    %241 = vector.broadcast %cst_343 : f32 to vector<16x32xf32>
    %242 = arith.maximumf %240, %241 : vector<16x32xf32>
    %243 = vector.shape_cast %242 : vector<16x32xf32> to vector<4x4x32xf32>
    %244 = vector.shape_cast %243 : vector<4x4x32xf32> to vector<16x32xf32>
    %cst_344 = arith.constant dense<0.000000e+00> : vector<32xf32>
    %245 = vector.multi_reduction <add>, %244, %cst_344 [0] : vector<16x32xf32> to vector<32xf32>
    %246 = vector.shape_cast %245 : vector<32xf32> to vector<1x32xf32>
    %cst_345 = arith.constant 6.250000e-02 : f32
    %247 = vector.broadcast %cst_345 : f32 to vector<1x32xf32>
    %248 = arith.mulf %246, %247 : vector<1x32xf32>
    %c0_346 = arith.constant 0 : index
    %c0_347 = arith.constant 0 : index
    %249 = vector.load %arg14[%c0_346, %c0_347] : memref<32x64xf32, #tpu.memory_space<vmem>>, vector<32x64xf32>
    %cst_348 = arith.constant dense<0.000000e+00> : vector<1x64xf32>
    %250 = tpu.matmul %248, %249, %cst_348 {dimension_numbers = #tpu.dot_dimension_numbers<[1], [0], [0], [1], [0, 0, 1, 1], [], []>} : vector<1x32xf32>, vector<32x64xf32>, vector<1x64xf32> -> vector<1x64xf32>
    %c0_349 = arith.constant 0 : index
    %c0_350 = arith.constant 0 : index
    %251 = vector.load %arg15[%c0_349, %c0_350] : memref<1x64xf32, #tpu.memory_space<vmem>>, vector<1x64xf32>
    %252 = arith.addf %250, %251 : vector<1x64xf32>
    %cst_351 = arith.constant 0.000000e+00 : f32
    %253 = vector.broadcast %cst_351 : f32 to vector<1x64xf32>
    %254 = arith.cmpf oge, %252, %253 : vector<1x64xf32>
    %cst_352 = arith.constant 0.000000e+00 : f32
    %255 = vector.broadcast %cst_352 : f32 to vector<1x64xf32>
    %256 = arith.mulf %255, %252 : vector<1x64xf32>
    %257 = arith.select %254, %252, %256 : vector<1x64xi1>, vector<1x64xf32>
    %c0_353 = arith.constant 0 : index
    %c0_354 = arith.constant 0 : index
    %258 = vector.load %arg16[%c0_353, %c0_354] : memref<64x32xf32, #tpu.memory_space<vmem>>, vector<64x32xf32>
    %cst_355 = arith.constant dense<0.000000e+00> : vector<1x32xf32>
    %259 = tpu.matmul %257, %258, %cst_355 {dimension_numbers = #tpu.dot_dimension_numbers<[1], [0], [0], [1], [0, 0, 1, 1], [], []>} : vector<1x64xf32>, vector<64x32xf32>, vector<1x32xf32> -> vector<1x32xf32>
    %c0_356 = arith.constant 0 : index
    %c0_357 = arith.constant 0 : index
    %260 = vector.load %arg17[%c0_356, %c0_357] : memref<1x32xf32, #tpu.memory_space<vmem>>, vector<1x32xf32>
    %261 = arith.addf %259, %260 : vector<1x32xf32>
    %262 = vector.shape_cast %261 : vector<1x32xf32> to vector<1x1x32xf32>
    %c0_358 = arith.constant 0 : index
    %c0_359 = arith.constant 0 : index
    %c0_360 = arith.constant 0 : index
    %263 = vector.load %arg18[%c0_358, %c0_359, %c0_360] : memref<1x1x32xf32, #tpu.memory_space<vmem>>, vector<1x1x32xf32>
    tpu.vector_store %arg18[%c0_358, %c0_359, %c0_360], %262 {strides = array<i32>} : memref<1x1x32xf32, #tpu.memory_space<vmem>>, vector<1x1x32xf32>,
    return
  }
  func.func @transform_0(%arg0: i32) -> (i32, i32, i32, i32) {
    %c0_i32 = arith.constant 0 : i32
    %c0_i32_0 = arith.constant 0 : i32
    %c0_i32_1 = arith.constant 0 : i32
    %c0_i32_2 = arith.constant 0 : i32
    return %arg0, %c0_i32, %c0_i32_0, %c0_i32_1 : i32, i32, i32, i32
  }
  func.func @transform_1(%arg0: i32) -> (i32, i32) {
    %c0_i32 = arith.constant 0 : i32
    %c0_i32_0 = arith.constant 0 : i32
    %c0_i32_1 = arith.constant 0 : i32
    return %c0_i32, %c0_i32_0 : i32, i32
  }
  func.func @transform_2(%arg0: i32) -> (i32, i32) {
    %c0_i32 = arith.constant 0 : i32
    %c0_i32_0 = arith.constant 0 : i32
    %c0_i32_1 = arith.constant 0 : i32
    return %c0_i32, %c0_i32_0 : i32, i32
  }
  func.func @transform_3(%arg0: i32) -> (i32, i32) {
    %c0_i32 = arith.constant 0 : i32
    %c0_i32_0 = arith.constant 0 : i32
    %c0_i32_1 = arith.constant 0 : i32
    return %c0_i32, %c0_i32_0 : i32, i32
  }
  func.func @transform_4(%arg0: i32) -> (i32, i32) {
    %c0_i32 = arith.constant 0 : i32
    %c0_i32_0 = arith.constant 0 : i32
    %c0_i32_1 = arith.constant 0 : i32
    return %c0_i32, %c0_i32_0 : i32, i32
  }
  func.func @transform_5(%arg0: i32) -> (i32, i32) {
    %c0_i32 = arith.constant 0 : i32
    %c0_i32_0 = arith.constant 0 : i32
    %c0_i32_1 = arith.constant 0 : i32
    return %c0_i32, %c0_i32_0 : i32, i32
  }
  func.func @transform_6(%arg0: i32) -> (i32, i32) {
    %c0_i32 = arith.constant 0 : i32
    %c0_i32_0 = arith.constant 0 : i32
    %c0_i32_1 = arith.constant 0 : i32
    return %c0_i32, %c0_i32_0 : i32, i32
  }
  func.func @transform_7(%arg0: i32) -> (i32, i32) {
    %c0_i32 = arith.constant 0 : i32
    %c0_i32_0 = arith.constant 0 : i32
    %c0_i32_1 = arith.constant 0 : i32
    return %c0_i32, %c0_i32_0 : i32, i32
  }
  func.func @transform_8(%arg0: i32) -> (i32, i32) {
    %c0_i32 = arith.constant 0 : i32
    %c0_i32_0 = arith.constant 0 : i32
    %c0_i32_1 = arith.constant 0 : i32
    return %c0_i32, %c0_i32_0 : i32, i32
  }
  func.func @transform_9(%arg0: i32) -> (i32, i32) {
    %c0_i32 = arith.constant 0 : i32
    %c0_i32_0 = arith.constant 0 : i32
    %c0_i32_1 = arith.constant 0 : i32
    return %c0_i32, %c0_i32_0 : i32, i32
  }
  func.func @transform_10(%arg0: i32) -> (i32, i32) {
    %c0_i32 = arith.constant 0 : i32
    %c0_i32_0 = arith.constant 0 : i32
    %c0_i32_1 = arith.constant 0 : i32
    return %c0_i32, %c0_i32_0 : i32, i32
  }
  func.func @transform_11(%arg0: i32) -> (i32, i32) {
    %c0_i32 = arith.constant 0 : i32
    %c0_i32_0 = arith.constant 0 : i32
    %c0_i32_1 = arith.constant 0 : i32
    return %c0_i32, %c0_i32_0 : i32, i32
  }
  func.func @transform_12(%arg0: i32) -> (i32, i32) {
    %c0_i32 = arith.constant 0 : i32
    %c0_i32_0 = arith.constant 0 : i32
    %c0_i32_1 = arith.constant 0 : i32
    return %c0_i32, %c0_i32_0 : i32, i32
  }
  func.func @transform_13(%arg0: i32) -> (i32, i32) {
    %c0_i32 = arith.constant 0 : i32
    %c0_i32_0 = arith.constant 0 : i32
    %c0_i32_1 = arith.constant 0 : i32
    return %c0_i32, %c0_i32_0 : i32, i32
  }
  func.func @transform_14(%arg0: i32) -> (i32, i32) {
    %c0_i32 = arith.constant 0 : i32
    %c0_i32_0 = arith.constant 0 : i32
    %c0_i32_1 = arith.constant 0 : i32
    return %c0_i32, %c0_i32_0 : i32, i32
  }
  func.func @transform_15(%arg0: i32) -> (i32, i32) {
    %c0_i32 = arith.constant 0 : i32
    %c0_i32_0 = arith.constant 0 : i32
    %c0_i32_1 = arith.constant 0 : i32
    return %c0_i32, %c0_i32_0 : i32, i32
  }
  func.func @transform_16(%arg0: i32) -> (i32, i32) {
    %c0_i32 = arith.constant 0 : i32
    %c0_i32_0 = arith.constant 0 : i32
    %c0_i32_1 = arith.constant 0 : i32
    return %c0_i32, %c0_i32_0 : i32, i32
  }
  func.func @transform_17(%arg0: i32) -> (i32, i32, i32) {
    %c0_i32 = arith.constant 0 : i32
    %c0_i32_0 = arith.constant 0 : i32
    %c0_i32_1 = arith.constant 0 : i32
    return %arg0, %c0_i32, %c0_i32_0 : i32, i32, i32
  }
}

</mosaic_0001>

<llo_original>
// kernel: tpu_custom_call.1
$region0: #{tpu_custom_call.1}
  #allocation0 [shape = 'u32[]', space=smem, size = 0x4, offset = 0x4, fixed_abs, tag = 'smem constant byte address 0x4 - core index']
  #allocation1 [shape = 'u32[144,128]{1,0:T(1,128)}', space=vmem, size = 0x12000, scoped, tag = 'internal scratch']
  #allocation2 [shape = 'f32[18,18,4]{2,1,0:T(8,128)}', space=vmem, size = 0x36000, scoped, tag = 'scratch operand']
  #allocation3 [shape = 'f32[256,36]{1,0:T(8,128)}', space=vmem, size = 0x20000, scoped, tag = 'scratch operand']
  #allocation4 [shape = 'f32[18,18,8]{2,1,0:T(8,128)}', space=vmem, size = 0x36000, scoped, tag = 'scratch operand']
  #allocation5 [shape = 'f32[256,72]{1,0:T(8,128)}', space=vmem, size = 0x20000, scoped, tag = 'scratch operand']
  #allocation6 [shape = 'f32[10,10,8]{2,1,0:T(8,128)}', space=vmem, size = 0x14000, scoped, tag = 'scratch operand']
  #allocation7 [shape = 'f32[64,72]{1,0:T(8,128)}', space=vmem, size = 0x8000, scoped, tag = 'scratch operand']
  #allocation8 [shape = 'f32[10,10,16]{2,1,0:T(8,128)}', space=vmem, size = 0x14000, scoped, tag = 'scratch operand']
  #allocation9 [shape = 'f32[64,144]{1,0:T(8,128)}', space=vmem, size = 0x10000, scoped, tag = 'scratch operand']
  #allocation10 [shape = 'f32[6,6,16]{2,1,0:T(8,128)}', space=vmem, size = 0x6000, scoped, tag = 'scratch operand']
  #allocation11 [shape = 'f32[16,144]{1,0:T(8,128)}', space=vmem, size = 0x4000, scoped, tag = 'scratch operand']
  #allocation12 [shape = 'f32[6,6,32]{2,1,0:T(8,128)}', space=vmem, size = 0x6000, scoped, tag = 'scratch operand']
  #allocation13 [shape = 'f32[16,288]{1,0:T(8,128)}', space=vmem, size = 0x6000, scoped, tag = 'scratch operand']
  %s0 = inlined_call_operand.vmem [shape: f32[2,16,16,4], index: 0, kind: input, shape index: {}]
  %s1 = inlined_call_operand.vmem [shape: f32[36,8], index: 1, kind: input, shape index: {}]
  %s2 = inlined_call_operand.vmem [shape: f32[1,8], index: 2, kind: input, shape index: {}]
  %s3 = inlined_call_operand.vmem [shape: f32[72,8], index: 3, kind: input, shape index: {}]
  %s4 = inlined_call_operand.vmem [shape: f32[1,8], index: 4, kind: input, shape index: {}]
  %s5 = inlined_call_operand.vmem [shape: f32[72,16], index: 5, kind: input, shape index: {}]
  %s6 = inlined_call_operand.vmem [shape: f32[1,16], index: 6, kind: input, shape index: {}]
  %s7 = inlined_call_operand.vmem [shape: f32[144,16], index: 7, kind: input, shape index: {}]
  %s8 = inlined_call_operand.vmem [shape: f32[1,16], index: 8, kind: input, shape index: {}]
  %s9 = inlined_call_operand.vmem [shape: f32[144,32], index: 9, kind: input, shape index: {}]
  %s10 = inlined_call_operand.vmem [shape: f32[1,32], index: 10, kind: input, shape index: {}]
  %s11 = inlined_call_operand.vmem [shape: f32[288,32], index: 11, kind: input, shape index: {}]
  %s12 = inlined_call_operand.vmem [shape: f32[1,32], index: 12, kind: input, shape index: {}]
  %s13 = inlined_call_operand.vmem [shape: f32[32,64], index: 13, kind: input, shape index: {}]
  %s14 = inlined_call_operand.vmem [shape: f32[1,64], index: 14, kind: input, shape index: {}]
  %s15 = inlined_call_operand.vmem [shape: f32[64,32], index: 15, kind: input, shape index: {}]
  %s16 = inlined_call_operand.vmem [shape: f32[1,32], index: 16, kind: input, shape index: {}]
  %s17 = inlined_call_operand.hbm [shape: f32[2,1,32], index: 17, kind: output, shape index: {}]
  %s18 = sld [smem:[#allocation0]]
  $region101: #{tpu_custom_call.1} parent=0
    _
  %s20 = ssub.s32 1, %s18
  %s21 = scalar_select 0, %s20, %s18
  $region1: #{tpu_custom_call.1} parent=0
    #allocation14 [shape = 'u8[1024]{0}', space=vmem, size = 0x400, scoped, tag = 'output window, operand 0']
    #allocation15 [shape = 's32[2]{0}', space=sflag, size = 0x8, scoped, tag = 'scoped memory for tpu_custom_call.1']
    %22 = vsyncpa [#allocation15], 0
    %s23 = scalar_lea.sflag [#allocation15], 1
    %24 = vsyncpa %s23, 0
    loop: start=0, step=1, limit=4
    $region2: #{tpu_custom_call.1} parent=1 // loop_pre_header
      _
    $region3: #{tpu_custom_call.1} parent=1 // loop_header
      %s26 = sphi 0, %s30
      %p27 = scmp.ge.s32.totalorder %s26, 4
      %s36 = sphi 0, %s38
      %s39 = sphi 0, %s36
      %s40 = sphi 0, %s39
      %s56 = sphi 0, %s40
      %s60 = sphi 0, %s60
      %s62 = sphi 0, %s60
      %s63 = sphi 0, %s62
      %s77 = sphi 0, %s63
      %s81 = sphi 0, %s81
      %s83 = sphi 0, %s81
      %s84 = sphi 0, %s83
      %s98 = sphi 0, %s84
      %s102 = sphi 0, %s102
      %s104 = sphi 0, %s102
      %s105 = sphi 0, %s104
      %s119 = sphi 0, %s105
      %s123 = sphi 0, %s123
      %s125 = sphi 0, %s123
      %s126 = sphi 0, %s125
      %s140 = sphi 0, %s126
      %s144 = sphi 0, %s144
      %s146 = sphi 0, %s144
      %s147 = sphi 0, %s146
      %s161 = sphi 0, %s147
      %s165 = sphi 0, %s165
      %s167 = sphi 0, %s165
      %s168 = sphi 0, %s167
      %s182 = sphi 0, %s168
      %s186 = sphi 0, %s186
      %s188 = sphi 0, %s186
      %s189 = sphi 0, %s188
      %s203 = sphi 0, %s189
      %s207 = sphi 0, %s207
      %s209 = sphi 0, %s207
      %s210 = sphi 0, %s209
      %s224 = sphi 0, %s210
      %s228 = sphi 0, %s228
      %s230 = sphi 0, %s228
      %s231 = sphi 0, %s230
      %s245 = sphi 0, %s231
      %s249 = sphi 0, %s249
      %s251 = sphi 0, %s249
      %s252 = sphi 0, %s251
      %s266 = sphi 0, %s252
      %s270 = sphi 0, %s270
      %s272 = sphi 0, %s270
      %s273 = sphi 0, %s272
      %s287 = sphi 0, %s273
      %s291 = sphi 0, %s291
      %s293 = sphi 0, %s291
      %s294 = sphi 0, %s293
      %s308 = sphi 0, %s294
      %s312 = sphi 0, %s312
      %s314 = sphi 0, %s312
      %s315 = sphi 0, %s314
      %s329 = sphi 0, %s315
      %s333 = sphi 0, %s333
      %s335 = sphi 0, %s333
      %s336 = sphi 0, %s335
      %s350 = sphi 0, %s336
      %s354 = sphi 0, %s354
      %s356 = sphi 0, %s354
      %s357 = sphi 0, %s356
      %s371 = sphi 0, %s357
      %s375 = sphi 0, %s375
      %s377 = sphi 0, %s375
      %s378 = sphi 0, %s377
      %s392 = sphi 0, %s378
      %s398 = sphi 0, %s400
      %s401 = sphi 0, %s398
      %s402 = sphi 0, %s401
      %s418 = sphi 0, %s402
    $region4: #{tpu_custom_call.1} parent=1 // loop_header_branch
      %29 = sbr.rel (%p27) target = $region8
    $region5: #{tpu_custom_call.1} parent=1 // loop_body
      %s31 = ssub.s32 %s26, 1
      %s32 = ssub.s32 %s26, 2
      %s33 = sadd.s32 %s26, 1
      %s34 = ssub.s32 %s26, %s33
      %p35 = scmp.eq.s32.totalorder %s34, 0
      %s37 = sadd.s32 %s36, 1
      %s38 = scalar_select %p35, %s36, %s37
      %p41 = pneg %p35
      %p42 = scmp.eq.s32.totalorder %s26, 1
      %p43 = por %p41, %p42
      %p44 = scmp.ne.s32.totalorder %s36, %s39
      %p45 = scmp.eq.s32.totalorder %s26, 0
      %p46 = por %p44, %p45
      %p47 = scmp.ne.s32.totalorder %s36, %s39
      %p48 = scmp.eq.s32.totalorder %s31, 1
      %p49 = por %p47, %p48
      %p50 = scmp.ne.s32.totalorder %s39, %s40
      %p51 = scmp.eq.s32.totalorder %s31, 0
      %p52 = por %p50, %p51
      %p53 = scmp.ne.s32.totalorder %s39, %s40
      %p54 = scmp.eq.s32.totalorder %s32, 1
      %p55 = por %p53, %p54
      %p57 = scmp.ne.s32.totalorder %s40, %s56
      %p58 = scmp.eq.s32.totalorder %s32, 0
      %p59 = por %p57, %p58
      %s61 = sadd.s32 %s60, 1
      %p64 = scmp.eq.s32.totalorder %s26, 1
      %p65 = scmp.ne.s32.totalorder %s60, %s62
      %p66 = scmp.eq.s32.totalorder %s26, 0
      %p67 = por %p65, %p66
      %p68 = scmp.ne.s32.totalorder %s60, %s62
      %p69 = scmp.eq.s32.totalorder %s31, 1
      %p70 = por %p68, %p69
      %p71 = scmp.ne.s32.totalorder %s62, %s63
      %p72 = scmp.eq.s32.totalorder %s31, 0
      %p73 = por %p71, %p72
      %p74 = scmp.ne.s32.totalorder %s62, %s63
      %p75 = scmp.eq.s32.totalorder %s32, 1
      %p76 = por %p74, %p75
      %p78 = scmp.ne.s32.totalorder %s63, %s77
      %p79 = scmp.eq.s32.totalorder %s32, 0
      %p80 = por %p78, %p79
      %s82 = sadd.s32 %s81, 1
      %p85 = scmp.eq.s32.totalorder %s26, 1
      %p86 = scmp.ne.s32.totalorder %s81, %s83
      %p87 = scmp.eq.s32.totalorder %s26, 0
      %p88 = por %p86, %p87
      %p89 = scmp.ne.s32.totalorder %s81, %s83
      %p90 = scmp.eq.s32.totalorder %s31, 1
      %p91 = por %p89, %p90
      %p92 = scmp.ne.s32.totalorder %s83, %s84
      %p93 = scmp.eq.s32.totalorder %s31, 0
      %p94 = por %p92, %p93
      %p95 = scmp.ne.s32.totalorder %s83, %s84
      %p96 = scmp.eq.s32.totalorder %s32, 1
      %p97 = por %p95, %p96
      %p99 = scmp.ne.s32.totalorder %s84, %s98
      %p100 = scmp.eq.s32.totalorder %s32, 0
      %p101 = por %p99, %p100
      %s103 = sadd.s32 %s102, 1
      %p106 = scmp.eq.s32.totalorder %s26, 1
      %p107 = scmp.ne.s32.totalorder %s102, %s104
      %p108 = scmp.eq.s32.totalorder %s26, 0
      %p109 = por %p107, %p108
      %p110 = scmp.ne.s32.totalorder %s102, %s104
      %p111 = scmp.eq.s32.totalorder %s31, 1
      %p112 = por %p110, %p111
      %p113 = scmp.ne.s32.totalorder %s104, %s105
      %p114 = scmp.eq.s32.totalorder %s31, 0
      %p115 = por %p113, %p114
      %p116 = scmp.ne.s32.totalorder %s104, %s105
      %p117 = scmp.eq.s32.totalorder %s32, 1
      %p118 = por %p116, %p117
      %p120 = scmp.ne.s32.totalorder %s105, %s119
      %p121 = scmp.eq.s32.totalorder %s32, 0
      %p122 = por %p120, %p121
      %s124 = sadd.s32 %s123, 1
      %p127 = scmp.eq.s32.totalorder %s26, 1
      %p128 = scmp.ne.s32.totalorder %s123, %s125
      %p129 = scmp.eq.s32.totalorder %s26, 0
      %p130 = por %p128, %p129
      %p131 = scmp.ne.s32.totalorder %s123, %s125
      %p132 = scmp.eq.s32.totalorder %s31, 1
      %p133 = por %p131, %p132
      %p134 = scmp.ne.s32.totalorder %s125, %s126
      %p135 = scmp.eq.s32.totalorder %s31, 0
      %p136 = por %p134, %p135
      %p137 = scmp.ne.s32.totalorder %s125, %s126
      %p138 = scmp.eq.s32.totalorder %s32, 1
      %p139 = por %p137, %p138
      %p141 = scmp.ne.s32.totalorder %s126, %s140
      %p142 = scmp.eq.s32.totalorder %s32, 0
      %p143 = por %p141, %p142
      %s145 = sadd.s32 %s144, 1
      %p148 = scmp.eq.s32.totalorder %s26, 1
      %p149 = scmp.ne.s32.totalorder %s144, %s146
      %p150 = scmp.eq.s32.totalorder %s26, 0
      %p151 = por %p149, %p150
      %p152 = scmp.ne.s32.totalorder %s144, %s146
      %p153 = scmp.eq.s32.totalorder %s31, 1
      %p154 = por %p152, %p153
      %p155 = scmp.ne.s32.totalorder %s146, %s147
      %p156 = scmp.eq.s32.totalorder %s31, 0
      %p157 = por %p155, %p156
      %p158 = scmp.ne.s32.totalorder %s146, %s147
      %p159 = scmp.eq.s32.totalorder %s32, 1
      %p160 = por %p158, %p159
      %p162 = scmp.ne.s32.totalorder %s147, %s161
      %p163 = scmp.eq.s32.totalorder %s32, 0
      %p164 = por %p162, %p163
      %s166 = sadd.s32 %s165, 1
      %p169 = scmp.eq.s32.totalorder %s26, 1
      %p170 = scmp.ne.s32.totalorder %s165, %s167
      %p171 = scmp.eq.s32.totalorder %s26, 0
      %p172 = por %p170, %p171
      %p173 = scmp.ne.s32.totalorder %s165, %s167
      %p174 = scmp.eq.s32.totalorder %s31, 1
      %p175 = por %p173, %p174
      %p176 = scmp.ne.s32.totalorder %s167, %s168
      %p177 = scmp.eq.s32.totalorder %s31, 0
      %p178 = por %p176, %p177
      %p179 = scmp.ne.s32.totalorder %s167, %s168
      %p180 = scmp.eq.s32.totalorder %s32, 1
      %p181 = por %p179, %p180
      %p183 = scmp.ne.s32.totalorder %s168, %s182
      %p184 = scmp.eq.s32.totalorder %s32, 0
      %p185 = por %p183, %p184
      %s187 = sadd.s32 %s186, 1
      %p190 = scmp.eq.s32.totalorder %s26, 1
      %p191 = scmp.ne.s32.totalorder %s186, %s188
      %p192 = scmp.eq.s32.totalorder %s26, 0
      %p193 = por %p191, %p192
      %p194 = scmp.ne.s32.totalorder %s186, %s188
      %p195 = scmp.eq.s32.totalorder %s31, 1
      %p196 = por %p194, %p195
      %p197 = scmp.ne.s32.totalorder %s188, %s189
      %p198 = scmp.eq.s32.totalorder %s31, 0
      %p199 = por %p197, %p198
      %p200 = scmp.ne.s32.totalorder %s188, %s189
      %p201 = scmp.eq.s32.totalorder %s32, 1
      %p202 = por %p200, %p201
      %p204 = scmp.ne.s32.totalorder %s189, %s203
      %p205 = scmp.eq.s32.totalorder %s32, 0
      %p206 = por %p204, %p205
      %s208 = sadd.s32 %s207, 1
      %p211 = scmp.eq.s32.totalorder %s26, 1
      %p212 = scmp.ne.s32.totalorder %s207, %s209
      %p213 = scmp.eq.s32.totalorder %s26, 0
      %p214 = por %p212, %p213
      %p215 = scmp.ne.s32.totalorder %s207, %s209
      %p216 = scmp.eq.s32.totalorder %s31, 1
      %p217 = por %p215, %p216
      %p218 = scmp.ne.s32.totalorder %s209, %s210
      %p219 = scmp.eq.s32.totalorder %s31, 0
      %p220 = por %p218, %p219
      %p221 = scmp.ne.s32.totalorder %s209, %s210
      %p222 = scmp.eq.s32.totalorder %s32, 1
      %p223 = por %p221, %p222
      %p225 = scmp.ne.s32.totalorder %s210, %s224
      %p226 = scmp.eq.s32.totalorder %s32, 0
      %p227 = por %p225, %p226
      %s229 = sadd.s32 %s228, 1
      %p232 = scmp.eq.s32.totalorder %s26, 1
      %p233 = scmp.ne.s32.totalorder %s228, %s230
      %p234 = scmp.eq.s32.totalorder %s26, 0
      %p235 = por %p233, %p234
      %p236 = scmp.ne.s32.totalorder %s228, %s230
      %p237 = scmp.eq.s32.totalorder %s31, 1
      %p238 = por %p236, %p237
      %p239 = scmp.ne.s32.totalorder %s230, %s231
      %p240 = scmp.eq.s32.totalorder %s31, 0
      %p241 = por %p239, %p240
      %p242 = scmp.ne.s32.totalorder %s230, %s231
      %p243 = scmp.eq.s32.totalorder %s32, 1
      %p244 = por %p242, %p243
      %p246 = scmp.ne.s32.totalorder %s231, %s245
      %p247 = scmp.eq.s32.totalorder %s32, 0
      %p248 = por %p246, %p247
      %s250 = sadd.s32 %s249, 1
      %p253 = scmp.eq.s32.totalorder %s26, 1
      %p254 = scmp.ne.s32.totalorder %s249, %s251
      %p255 = scmp.eq.s32.totalorder %s26, 0
      %p256 = por %p254, %p255
      %p257 = scmp.ne.s32.totalorder %s249, %s251
      %p258 = scmp.eq.s32.totalorder %s31, 1
      %p259 = por %p257, %p258
      %p260 = scmp.ne.s32.totalorder %s251, %s252
      %p261 = scmp.eq.s32.totalorder %s31, 0
      %p262 = por %p260, %p261
      %p263 = scmp.ne.s32.totalorder %s251, %s252
      %p264 = scmp.eq.s32.totalorder %s32, 1
      %p265 = por %p263, %p264
      %p267 = scmp.ne.s32.totalorder %s252, %s266
      %p268 = scmp.eq.s32.totalorder %s32, 0
      %p269 = por %p267, %p268
      %s271 = sadd.s32 %s270, 1
      %p274 = scmp.eq.s32.totalorder %s26, 1
      %p275 = scmp.ne.s32.totalorder %s270, %s272
      %p276 = scmp.eq.s32.totalorder %s26, 0
      %p277 = por %p275, %p276
      %p278 = scmp.ne.s32.totalorder %s270, %s272
      %p279 = scmp.eq.s32.totalorder %s31, 1
      %p280 = por %p278, %p279
      %p281 = scmp.ne.s32.totalorder %s272, %s273
      %p282 = scmp.eq.s32.totalorder %s31, 0
      %p283 = por %p281, %p282
      %p284 = scmp.ne.s32.totalorder %s272, %s273
      %p285 = scmp.eq.s32.totalorder %s32, 1
      %p286 = por %p284, %p285
      %p288 = scmp.ne.s32.totalorder %s273, %s287
      %p289 = scmp.eq.s32.totalorder %s32, 0
      %p290 = por %p288, %p289
      %s292 = sadd.s32 %s291, 1
      %p295 = scmp.eq.s32.totalorder %s26, 1
      %p296 = scmp.ne.s32.totalorder %s291, %s293
      %p297 = scmp.eq.s32.totalorder %s26, 0
      %p298 = por %p296, %p297
      %p299 = scmp.ne.s32.totalorder %s291, %s293
      %p300 = scmp.eq.s32.totalorder %s31, 1
      %p301 = por %p299, %p300
      %p302 = scmp.ne.s32.totalorder %s293, %s294
      %p303 = scmp.eq.s32.totalorder %s31, 0
      %p304 = por %p302, %p303
      %p305 = scmp.ne.s32.totalorder %s293, %s294
      %p306 = scmp.eq.s32.totalorder %s32, 1
      %p307 = por %p305, %p306
      %p309 = scmp.ne.s32.totalorder %s294, %s308
      %p310 = scmp.eq.s32.totalorder %s32, 0
      %p311 = por %p309, %p310
      %s313 = sadd.s32 %s312, 1
      %p316 = scmp.eq.s32.totalorder %s26, 1
      %p317 = scmp.ne.s32.totalorder %s312, %s314
      %p318 = scmp.eq.s32.totalorder %s26, 0
      %p319 = por %p317, %p318
      %p320 = scmp.ne.s32.totalorder %s312, %s314
      %p321 = scmp.eq.s32.totalorder %s31, 1
      %p322 = por %p320, %p321
      %p323 = scmp.ne.s32.totalorder %s314, %s315
      %p324 = scmp.eq.s32.totalorder %s31, 0
      %p325 = por %p323, %p324
      %p326 = scmp.ne.s32.totalorder %s314, %s315
      %p327 = scmp.eq.s32.totalorder %s32, 1
      %p328 = por %p326, %p327
      %p330 = scmp.ne.s32.totalorder %s315, %s329
      %p331 = scmp.eq.s32.totalorder %s32, 0
      %p332 = por %p330, %p331
      %s334 = sadd.s32 %s333, 1
      %p337 = scmp.eq.s32.totalorder %s26, 1
      %p338 = scmp.ne.s32.totalorder %s333, %s335
      %p339 = scmp.eq.s32.totalorder %s26, 0
      %p340 = por %p338, %p339
      %p341 = scmp.ne.s32.totalorder %s333, %s335
      %p342 = scmp.eq.s32.totalorder %s31, 1
      %p343 = por %p341, %p342
      %p344 = scmp.ne.s32.totalorder %s335, %s336
      %p345 = scmp.eq.s32.totalorder %s31, 0
      %p346 = por %p344, %p345
      %p347 = scmp.ne.s32.totalorder %s335, %s336
      %p348 = scmp.eq.s32.totalorder %s32, 1
      %p349 = por %p347, %p348
      %p351 = scmp.ne.s32.totalorder %s336, %s350
      %p352 = scmp.eq.s32.totalorder %s32, 0
      %p353 = por %p351, %p352
      %s355 = sadd.s32 %s354, 1
      %p358 = scmp.eq.s32.totalorder %s26, 1
      %p359 = scmp.ne.s32.totalorder %s354, %s356
      %p360 = scmp.eq.s32.totalorder %s26, 0
      %p361 = por %p359, %p360
      %p362 = scmp.ne.s32.totalorder %s354, %s356
      %p363 = scmp.eq.s32.totalorder %s31, 1
      %p364 = por %p362, %p363
      %p365 = scmp.ne.s32.totalorder %s356, %s357
      %p366 = scmp.eq.s32.totalorder %s31, 0
      %p367 = por %p365, %p366
      %p368 = scmp.ne.s32.totalorder %s356, %s357
      %p369 = scmp.eq.s32.totalorder %s32, 1
      %p370 = por %p368, %p369
      %p372 = scmp.ne.s32.totalorder %s357, %s371
      %p373 = scmp.eq.s32.totalorder %s32, 0
      %p374 = por %p372, %p373
      %s376 = sadd.s32 %s375, 1
      %p379 = scmp.eq.s32.totalorder %s26, 1
      %p380 = scmp.ne.s32.totalorder %s375, %s377
      %p381 = scmp.eq.s32.totalorder %s26, 0
      %p382 = por %p380, %p381
      %p383 = scmp.ne.s32.totalorder %s375, %s377
      %p384 = scmp.eq.s32.totalorder %s31, 1
      %p385 = por %p383, %p384
      %p386 = scmp.ne.s32.totalorder %s377, %s378
      %p387 = scmp.eq.s32.totalorder %s31, 0
      %p388 = por %p386, %p387
      %p389 = scmp.ne.s32.totalorder %s377, %s378
      %p390 = scmp.eq.s32.totalorder %s32, 1
      %p391 = por %p389, %p390
      %p393 = scmp.ne.s32.totalorder %s378, %s392
      %p394 = scmp.eq.s32.totalorder %s32, 0
      %p395 = por %p393, %p394
      %s396 = ssub.s32 %s26, %s33
      %p397 = scmp.eq.s32.totalorder %s396, 0
      %s399 = sadd.s32 %s398, 1
      %s400 = scalar_select %p397, %s398, %s399
      %p403 = pneg %p397
      %p404 = scmp.eq.s32.totalorder %s26, 1
      %p405 = por %p403, %p404
      %p406 = scmp.ne.s32.totalorder %s398, %s401
      %p407 = scmp.eq.s32.totalorder %s26, 0
      %p408 = por %p406, %p407
      %p409 = scmp.ne.s32.totalorder %s398, %s401
      %p410 = scmp.eq.s32.totalorder %s31, 1
      %p411 = por %p409, %p410
      %p412 = scmp.ne.s32.totalorder %s401, %s402
      %p413 = scmp.eq.s32.totalorder %s31, 0
      %p414 = por %p412, %p413
      %p415 = scmp.ne.s32.totalorder %s401, %s402
      %p416 = scmp.eq.s32.totalorder %s32, 1
      %p417 = por %p415, %p416
      %p419 = scmp.ne.s32.totalorder %s402, %s418
      %p420 = scmp.eq.s32.totalorder %s32, 0
      %p421 = por %p419, %p420
      %p422 = scmp.le.s32.totalorder 1, %s26
      %p423 = scmp.lt.s32.totalorder %s26, 3
      %p424 = pnand %p422, %p423
      %p425 = pneg %p424
      // Predicated region
      $region9: #{tpu_custom_call.1} parent=5 // pred_check
        _
      $region10: #{tpu_custom_call.1} parent=5 // pred_check_branch
        %427 = sbr.rel (%p424) target = $region12
      $region11: #{tpu_custom_call.1} parent=5 // pred_region
        %s428 = ssub.s32 %s26, 1
        // Predicated region
        $region13: #{tpu_custom_call.1} parent=11 // pred_check
          %p429 = pneg %p73
        $region14: #{tpu_custom_call.1} parent=11 // pred_check_branch
          %431 = sbr.rel (%p429) target = $region16
        $region15: #{tpu_custom_call.1} parent=11 // pred_region
          _
        $region16: #{tpu_custom_call.1} parent=11 // pred_fallthru
          _
        // Predicated region
        $region17: #{tpu_custom_call.1} parent=11 // pred_check
          %p432 = pneg %p94
        $region18: #{tpu_custom_call.1} parent=11 // pred_check_branch
          %434 = sbr.rel (%p432) target = $region20
        $region19: #{tpu_custom_call.1} parent=11 // pred_region
          _
        $region20: #{tpu_custom_call.1} parent=11 // pred_fallthru
          _
        // Predicated region
        $region21: #{tpu_custom_call.1} parent=11 // pred_check
          %p435 = pneg %p115
        $region22: #{tpu_custom_call.1} parent=11 // pred_check_branch
          %437 = sbr.rel (%p435) target = $region24
        $region23: #{tpu_custom_call.1} parent=11 // pred_region
          _
        $region24: #{tpu_custom_call.1} parent=11 // pred_fallthru
          _
        // Predicated region
        $region25: #{tpu_custom_call.1} parent=11 // pred_check
          %p438 = pneg %p136
        $region26: #{tpu_custom_call.1} parent=11 // pred_check_branch
          %440 = sbr.rel (%p438) target = $region28
        $region27: #{tpu_custom_call.1} parent=11 // pred_region
          _
        $region28: #{tpu_custom_call.1} parent=11 // pred_fallthru
          _
        // Predicated region
        $region29: #{tpu_custom_call.1} parent=11 // pred_check
          %p441 = pneg %p157
        $region30: #{tpu_custom_call.1} parent=11 // pred_check_branch
          %443 = sbr.rel (%p441) target = $region32
        $region31: #{tpu_custom_call.1} parent=11 // pred_region
          _
        $region32: #{tpu_custom_call.1} parent=11 // pred_fallthru
          _
        // Predicated region
        $region33: #{tpu_custom_call.1} parent=11 // pred_check
          %p444 = pneg %p178
        $region34: #{tpu_custom_call.1} parent=11 // pred_check_branch
          %446 = sbr.rel (%p444) target = $region36
        $region35: #{tpu_custom_call.1} parent=11 // pred_region
          _
        $region36: #{tpu_custom_call.1} parent=11 // pred_fallthru
          _
        // Predicated region
        $region37: #{tpu_custom_call.1} parent=11 // pred_check
          %p447 = pneg %p199
        $region38: #{tpu_custom_call.1} parent=11 // pred_check_branch
          %449 = sbr.rel (%p447) target = $region40
        $region39: #{tpu_custom_call.1} parent=11 // pred_region
          _
        $region40: #{tpu_custom_call.1} parent=11 // pred_fallthru
          _
        // Predicated region
        $region41: #{tpu_custom_call.1} parent=11 // pred_check
          %p450 = pneg %p220
        $region42: #{tpu_custom_call.1} parent=11 // pred_check_branch
          %452 = sbr.rel (%p450) target = $region44
        $region43: #{tpu_custom_call.1} parent=11 // pred_region
          _
        $region44: #{tpu_custom_call.1} parent=11 // pred_fallthru
          _
        // Predicated region
        $region45: #{tpu_custom_call.1} parent=11 // pred_check
          %p453 = pneg %p241
        $region46: #{tpu_custom_call.1} parent=11 // pred_check_branch
          %455 = sbr.rel (%p453) target = $region48
        $region47: #{tpu_custom_call.1} parent=11 // pred_region
          _
        $region48: #{tpu_custom_call.1} parent=11 // pred_fallthru
          _
        // Predicated region
        $region49: #{tpu_custom_call.1} parent=11 // pred_check
          %p456 = pneg %p262
        $region50: #{tpu_custom_call.1} parent=11 // pred_check_branch
          %458 = sbr.rel (%p456) target = $region52
        $region51: #{tpu_custom_call.1} parent=11 // pred_region
          _
        $region52: #{tpu_custom_call.1} parent=11 // pred_fallthru
          _
        // Predicated region
        $region53: #{tpu_custom_call.1} parent=11 // pred_check
          %p459 = pneg %p283
        $region54: #{tpu_custom_call.1} parent=11 // pred_check_branch
          %461 = sbr.rel (%p459) target = $region56
        $region55: #{tpu_custom_call.1} parent=11 // pred_region
          _
        $region56: #{tpu_custom_call.1} parent=11 // pred_fallthru
          _
        // Predicated region
        $region57: #{tpu_custom_call.1} parent=11 // pred_check
          %p462 = pneg %p304
        $region58: #{tpu_custom_call.1} parent=11 // pred_check_branch
          %464 = sbr.rel (%p462) target = $region60
        $region59: #{tpu_custom_call.1} parent=11 // pred_region
          _
        $region60: #{tpu_custom_call.1} parent=11 // pred_fallthru
          _
        // Predicated region
        $region61: #{tpu_custom_call.1} parent=11 // pred_check
          %p465 = pneg %p325
        $region62: #{tpu_custom_call.1} parent=11 // pred_check_branch
          %467 = sbr.rel (%p465) target = $region64
        $region63: #{tpu_custom_call.1} parent=11 // pred_region
          _
        $region64: #{tpu_custom_call.1} parent=11 // pred_fallthru
          _
        // Predicated region
        $region65: #{tpu_custom_call.1} parent=11 // pred_check
          %p468 = pneg %p346
        $region66: #{tpu_custom_call.1} parent=11 // pred_check_branch
          %470 = sbr.rel (%p468) target = $region68
        $region67: #{tpu_custom_call.1} parent=11 // pred_region
          _
        $region68: #{tpu_custom_call.1} parent=11 // pred_fallthru
          _
        // Predicated region
        $region69: #{tpu_custom_call.1} parent=11 // pred_check
          %p471 = pneg %p367
        $region70: #{tpu_custom_call.1} parent=11 // pred_check_branch
          %473 = sbr.rel (%p471) target = $region72
        $region71: #{tpu_custom_call.1} parent=11 // pred_region
          _
        $region72: #{tpu_custom_call.1} parent=11 // pred_fallthru
          _
        // Predicated region
        $region73: #{tpu_custom_call.1} parent=11 // pred_check
          %p474 = pneg %p388
        $region74: #{tpu_custom_call.1} parent=11 // pred_check_branch
          %476 = sbr.rel (%p474) target = $region76
        $region75: #{tpu_custom_call.1} parent=11 // pred_region
          _
        $region76: #{tpu_custom_call.1} parent=11 // pred_fallthru
          _
      $region12: #{tpu_custom_call.1} parent=5 // pred_fallthru
        _
      %p477 = scmp.lt.s32.totalorder %s26, 2
      // Predicated region
      $region77: #{tpu_custom_call.1} parent=5 // pred_check
        %p478 = pneg %p477
      $region78: #{tpu_custom_call.1} parent=5 // pred_check_branch
        %480 = sbr.rel (%p478) target = $region80
      $region79: #{tpu_custom_call.1} parent=5 // pred_region
        // Predicated region
        $region81: #{tpu_custom_call.1} parent=79 // pred_check
          %p481 = pneg %p46
        $region82: #{tpu_custom_call.1} parent=79 // pred_check_branch
          %483 = sbr.rel (%p481) target = $region84
        $region83: #{tpu_custom_call.1} parent=79 // pred_region
          %p484 = scmp.lt.s32.totalorder %s26, 1
          %s485 = scalar_select %p484, %s26, 1
          %s486 = smul.addr %s485, 32
          %s487 = smul.addr %s486, 8
          %s488 = scalar_lea.vmem %s0, %s487
        $region84: #{tpu_custom_call.1} parent=79 // pred_fallthru
          _
      $region80: #{tpu_custom_call.1} parent=5 // pred_fallthru
        _
      %p489 = scmp.le.s32.totalorder 1, %s26
      %p490 = scmp.lt.s32.totalorder %s26, 3
      %p491 = pnand %p489, %p490
      %p492 = pneg %p491
      // Predicated region
      $region85: #{tpu_custom_call.1} parent=5 // pred_check
        _
      $region86: #{tpu_custom_call.1} parent=5 // pred_check_branch
        %494 = sbr.rel (%p491) target = $region88
      $region87: #{tpu_custom_call.1} parent=5 // pred_region
        %s495 = ssub.s32 %s26, 1
        %p496 = scmp.lt.s32.totalorder %s31, 1
        %s497 = scalar_select %p496, %s31, 1
        %s498 = smul.addr %s497, 32
        %s499 = smul.addr %s498, 8
        %s500 = scalar_lea.vmem %s0, %s499
        %p501 = pneg %p52
        %p502 = pneg %p49
        %p503 = pneg %p73
        %p504 = pneg %p70
        %p505 = pneg %p94
        %p506 = pneg %p91
        %p507 = pneg %p115
        %p508 = pneg %p112
        %p509 = pneg %p136
        %p510 = pneg %p133
        %p511 = pneg %p157
        %p512 = pneg %p154
        %p513 = pneg %p178
        %p514 = pneg %p175
        %p515 = pneg %p199
        %p516 = pneg %p196
        %p517 = pneg %p220
        %p518 = pneg %p217
        %p519 = pneg %p241
        %p520 = pneg %p238
        %p521 = pneg %p262
        %p522 = pneg %p259
        %p523 = pneg %p283
        %p524 = pneg %p280
        %p525 = pneg %p304
        %p526 = pneg %p301
        %p527 = pneg %p325
        %p528 = pneg %p322
        %p529 = pneg %p346
        %p530 = pneg %p343
        %p531 = pneg %p367
        %p532 = pneg %p364
        %p533 = pneg %p388
        %p534 = pneg %p385
        %p535 = pneg %p414
        %p536 = pneg %p411
        %s537 = sand.u32 %s401, 1
        %s538 = scalar_lea.sflag [#allocation15], %s537
        %s539 = sand.u32 %s401, 1
        %s540 = scalar_lea.vmem [#allocation14], %s539
        %p541 = scmp.lt.s32.totalorder %s31, 1
        %s542 = scalar_select %p541, %s31, 1
        %s543 = smul.addr %s542, 32
        %s544 = smul.addr %s543, 8
        %s545 = scalar_lea.vmem %s0, %s544
        %v546 = vld [vmem:[%s545] sm:$0xff]
        %v547 = vld [vmem:[%s545 + $0x8] sm:$0xff]
        %v548 = vld [vmem:[%s545 + $0x10] sm:$0xff]
        %v549 = vld [vmem:[%s545 + $0x18] sm:$0xff]
        %v550 = vld [vmem:[%s545 + $0x20] sm:$0xff]
        %v551 = vld [vmem:[%s545 + $0x28] sm:$0xff]
        %v552 = vld [vmem:[%s545 + $0x30] sm:$0xff]
        %v553 = vld [vmem:[%s545 + $0x38] sm:$0xff]
        %v554 = vld [vmem:[%s545 + $0x40] sm:$0xff]
        %v555 = vld [vmem:[%s545 + $0x48] sm:$0xff]
        %v556 = vld [vmem:[%s545 + $0x50] sm:$0xff]
        %v557 = vld [vmem:[%s545 + $0x58] sm:$0xff]
        %v558 = vld [vmem:[%s545 + $0x60] sm:$0xff]
        %v559 = vld [vmem:[%s545 + $0x68] sm:$0xff]
        %v560 = vld [vmem:[%s545 + $0x70] sm:$0xff]
        %v561 = vld [vmem:[%s545 + $0x78] sm:$0xff]
        %v562 = vld [vmem:[%s545 + $0x80] sm:$0xff]
        %v563 = vld [vmem:[%s545 + $0x88] sm:$0xff]
        %v564 = vld [vmem:[%s545 + $0x90] sm:$0xff]
        %v565 = vld [vmem:[%s545 + $0x98] sm:$0xff]
        %v566 = vld [vmem:[%s545 + $0xa0] sm:$0xff]
        %v567 = vld [vmem:[%s545 + $0xa8] sm:$0xff]
        %v568 = vld [vmem:[%s545 + $0xb0] sm:$0xff]
        %v569 = vld [vmem:[%s545 + $0xb8] sm:$0xff]
        %v570 = vld [vmem:[%s545 + $0xc0] sm:$0xff]
        %v571 = vld [vmem:[%s545 + $0xc8] sm:$0xff]
        %v572 = vld [vmem:[%s545 + $0xd0] sm:$0xff]
        %v573 = vld [vmem:[%s545 + $0xd8] sm:$0xff]
        %v574 = vld [vmem:[%s545 + $0xe0] sm:$0xff]
        %v575 = vld [vmem:[%s545 + $0xe8] sm:$0xff]
        %v576 = vld [vmem:[%s545 + $0xf0] sm:$0xff]
        %v577 = vld [vmem:[%s545 + $0xf8] sm:$0xff]
        %vm578 = vcmask 31744
        %579 = vst.msk [vmem:[#allocation2] sm:$0xff] %vm578, 0.0
        %580 = vst.msk [vmem:[#allocation2 + $0x8] sm:$0xff] %vm578, 0.0
        %vm581 = vcmask 25600
        %582 = vst.msk [vmem:[#allocation2 + $0x10] sm:$0x3] %vm581, 0.0
        %583 = vst.msk [vmem:[#allocation2 + $0x18] sm:$0xff] %vm578, 0.0
        %584 = vst.msk [vmem:[#allocation2 + $0x20] sm:$0xff] %vm578, 0.0
        %585 = vst.msk [vmem:[#allocation2 + $0x28] sm:$0x3] %vm581, 0.0
        %586 = vst.msk [vmem:[#allocation2 + $0x30] sm:$0xff] %vm578, 0.0
        %587 = vst.msk [vmem:[#allocation2 + $0x38] sm:$0xff] %vm578, 0.0
        %588 = vst.msk [vmem:[#allocation2 + $0x40] sm:$0x3] %vm581, 0.0
        %589 = vst.msk [vmem:[#allocation2 + $0x48] sm:$0xff] %vm578, 0.0
        %590 = vst.msk [vmem:[#allocation2 + $0x50] sm:$0xff] %vm578, 0.0
        %591 = vst.msk [vmem:[#allocation2 + $0x58] sm:$0x3] %vm581, 0.0
        %592 = vst.msk [vmem:[#allocation2 + $0x60] sm:$0xff] %vm578, 0.0
        %593 = vst.msk [vmem:[#allocation2 + $0x68] sm:$0xff] %vm578, 0.0
        %594 = vst.msk [vmem:[#allocation2 + $0x70] sm:$0x3] %vm581, 0.0
        %595 = vst.msk [vmem:[#allocation2 + $0x78] sm:$0xff] %vm578, 0.0
        %596 = vst.msk [vmem:[#allocation2 + $0x80] sm:$0xff] %vm578, 0.0
        %597 = vst.msk [vmem:[#allocation2 + $0x88] sm:$0x3] %vm581, 0.0
        %598 = vst.msk [vmem:[#allocation2 + $0x90] sm:$0xff] %vm578, 0.0
        %599 = vst.msk [vmem:[#allocation2 + $0x98] sm:$0xff] %vm578, 0.0
        %600 = vst.msk [vmem:[#allocation2 + $0xa0] sm:$0x3] %vm581, 0.0
        %601 = vst.msk [vmem:[#allocation2 + $0xa8] sm:$0xff] %vm578, 0.0
        %602 = vst.msk [vmem:[#allocation2 + $0xb0] sm:$0xff] %vm578, 0.0
        %603 = vst.msk [vmem:[#allocation2 + $0xb8] sm:$0x3] %vm581, 0.0
        %604 = vst.msk [vmem:[#allocation2 + $0xc0] sm:$0xff] %vm578, 0.0
        %605 = vst.msk [vmem:[#allocation2 + $0xc8] sm:$0xff] %vm578, 0.0
        %606 = vst.msk [vmem:[#allocation2 + $0xd0] sm:$0x3] %vm581, 0.0
        %607 = vst.msk [vmem:[#allocation2 + $0xd8] sm:$0xff] %vm578, 0.0
        %608 = vst.msk [vmem:[#allocation2 + $0xe0] sm:$0xff] %vm578, 0.0
        %609 = vst.msk [vmem:[#allocation2 + $0xe8] sm:$0x3] %vm581, 0.0
        %610 = vst.msk [vmem:[#allocation2 + $0xf0] sm:$0xff] %vm578, 0.0
        %611 = vst.msk [vmem:[#allocation2 + $0xf8] sm:$0xff] %vm578, 0.0
        %612 = vst.msk [vmem:[#allocation2 + $0x100] sm:$0x3] %vm581, 0.0
        %613 = vst.msk [vmem:[#allocation2 + $0x108] sm:$0xff] %vm578, 0.0
        %614 = vst.msk [vmem:[#allocation2 + $0x110] sm:$0xff] %vm578, 0.0
        %615 = vst.msk [vmem:[#allocation2 + $0x118] sm:$0x3] %vm581, 0.0
        %616 = vst.msk [vmem:[#allocation2 + $0x120] sm:$0xff] %vm578, 0.0
        %617 = vst.msk [vmem:[#allocation2 + $0x128] sm:$0xff] %vm578, 0.0
        %618 = vst.msk [vmem:[#allocation2 + $0x130] sm:$0x3] %vm581, 0.0
        %619 = vst.msk [vmem:[#allocation2 + $0x138] sm:$0xff] %vm578, 0.0
        %620 = vst.msk [vmem:[#allocation2 + $0x140] sm:$0xff] %vm578, 0.0
        %621 = vst.msk [vmem:[#allocation2 + $0x148] sm:$0x3] %vm581, 0.0
        %622 = vst.msk [vmem:[#allocation2 + $0x150] sm:$0xff] %vm578, 0.0
        %623 = vst.msk [vmem:[#allocation2 + $0x158] sm:$0xff] %vm578, 0.0
        %624 = vst.msk [vmem:[#allocation2 + $0x160] sm:$0x3] %vm581, 0.0
        %625 = vst.msk [vmem:[#allocation2 + $0x168] sm:$0xff] %vm578, 0.0
        %626 = vst.msk [vmem:[#allocation2 + $0x170] sm:$0xff] %vm578, 0.0
        %627 = vst.msk [vmem:[#allocation2 + $0x178] sm:$0x3] %vm581, 0.0
        %628 = vst.msk [vmem:[#allocation2 + $0x180] sm:$0xff] %vm578, 0.0
        %629 = vst.msk [vmem:[#allocation2 + $0x188] sm:$0xff] %vm578, 0.0
        %630 = vst.msk [vmem:[#allocation2 + $0x190] sm:$0x3] %vm581, 0.0
        %631 = vst.msk [vmem:[#allocation2 + $0x198] sm:$0xff] %vm578, 0.0
        %632 = vst.msk [vmem:[#allocation2 + $0x1a0] sm:$0xff] %vm578, 0.0
        %633 = vst.msk [vmem:[#allocation2 + $0x1a8] sm:$0x3] %vm581, 0.0
        %s634 = scalar_lea.vmem [#allocation2], 24
        %635 = vst.msk [vmem:[%s634 + $0x1] sm:$0xff] %vm578, %v546
        %636 = vst.msk [vmem:[%s634 + $0x9] sm:$0xff] %vm578, %v547
        %637 = vst.msk [vmem:[%s634 + $0x19] sm:$0xff] %vm578, %v548
        %638 = vst.msk [vmem:[%s634 + $0x21] sm:$0xff] %vm578, %v549
        %639 = vst.msk [vmem:[%s634 + $0x31] sm:$0xff] %vm578, %v550
        %640 = vst.msk [vmem:[%s634 + $0x39] sm:$0xff] %vm578, %v551
        %641 = vst.msk [vmem:[%s634 + $0x49] sm:$0xff] %vm578, %v552
        %642 = vst.msk [vmem:[%s634 + $0x51] sm:$0xff] %vm578, %v553
        %643 = vst.msk [vmem:[%s634 + $0x61] sm:$0xff] %vm578, %v554
        %644 = vst.msk [vmem:[%s634 + $0x69] sm:$0xff] %vm578, %v555
        %645 = vst.msk [vmem:[%s634 + $0x79] sm:$0xff] %vm578, %v556
        %646 = vst.msk [vmem:[%s634 + $0x81] sm:$0xff] %vm578, %v557
        %647 = vst.msk [vmem:[%s634 + $0x91] sm:$0xff] %vm578, %v558
        %648 = vst.msk [vmem:[%s634 + $0x99] sm:$0xff] %vm578, %v559
        %649 = vst.msk [vmem:[%s634 + $0xa9] sm:$0xff] %vm578, %v560
        %650 = vst.msk [vmem:[%s634 + $0xb1] sm:$0xff] %vm578, %v561
        %651 = vst.msk [vmem:[%s634 + $0xc1] sm:$0xff] %vm578, %v562
        %652 = vst.msk [vmem:[%s634 + $0xc9] sm:$0xff] %vm578, %v563
        %653 = vst.msk [vmem:[%s634 + $0xd9] sm:$0xff] %vm578, %v564
        %654 = vst.msk [vmem:[%s634 + $0xe1] sm:$0xff] %vm578, %v565
        %655 = vst.msk [vmem:[%s634 + $0xf1] sm:$0xff] %vm578, %v566
        %656 = vst.msk [vmem:[%s634 + $0xf9] sm:$0xff] %vm578, %v567
        %657 = vst.msk [vmem:[%s634 + $0x109] sm:$0xff] %vm578, %v568
        %658 = vst.msk [vmem:[%s634 + $0x111] sm:$0xff] %vm578, %v569
        %659 = vst.msk [vmem:[%s634 + $0x121] sm:$0xff] %vm578, %v570
        %660 = vst.msk [vmem:[%s634 + $0x129] sm:$0xff] %vm578, %v571
        %661 = vst.msk [vmem:[%s634 + $0x139] sm:$0xff] %vm578, %v572
        %662 = vst.msk [vmem:[%s634 + $0x141] sm:$0xff] %vm578, %v573
        %663 = vst.msk [vmem:[%s634 + $0x151] sm:$0xff] %vm578, %v574
        %664 = vst.msk [vmem:[%s634 + $0x159] sm:$0xff] %vm578, %v575
        %665 = vst.msk [vmem:[%s634 + $0x169] sm:$0xff] %vm578, %v576
        %666 = vst.msk [vmem:[%s634 + $0x171] sm:$0xff] %vm578, %v577
        %v667 = vld [vmem:[#allocation2] sm:$0xff]
        %v668 = vld [vmem:[#allocation2 + $0x8] sm:$0xff]
        %v669 = vld [vmem:[#allocation2 + $0x18] sm:$0xff]
        %v670 = vld [vmem:[#allocation2 + $0x20] sm:$0xff]
        %v671 = vld [vmem:[#allocation2 + $0x30] sm:$0xff]
        %v672 = vld [vmem:[#allocation2 + $0x38] sm:$0xff]
        %v673 = vld [vmem:[#allocation2 + $0x48] sm:$0xff]
        %v674 = vld [vmem:[#allocation2 + $0x50] sm:$0xff]
        %v675 = vld [vmem:[#allocation2 + $0x60] sm:$0xff]
        %v676 = vld [vmem:[#allocation2 + $0x68] sm:$0xff]
        %v677 = vld [vmem:[#allocation2 + $0x78] sm:$0xff]
        %v678 = vld [vmem:[#allocation2 + $0x80] sm:$0xff]
        %v679 = vld [vmem:[#allocation2 + $0x90] sm:$0xff]
        %v680 = vld [vmem:[#allocation2 + $0x98] sm:$0xff]
        %v681 = vld [vmem:[#allocation2 + $0xa8] sm:$0xff]
        %v682 = vld [vmem:[#allocation2 + $0xb0] sm:$0xff]
        %v683 = vld [vmem:[#allocation2 + $0xc0] sm:$0xff]
        %v684 = vld [vmem:[#allocation2 + $0xc8] sm:$0xff]
        %v685 = vld [vmem:[#allocation2 + $0xd8] sm:$0xff]
        %v686 = vld [vmem:[#allocation2 + $0xe0] sm:$0xff]
        %v687 = vld [vmem:[#allocation2 + $0xf0] sm:$0xff]
        %v688 = vld [vmem:[#allocation2 + $0xf8] sm:$0xff]
        %v689 = vld [vmem:[#allocation2 + $0x108] sm:$0xff]
        %v690 = vld [vmem:[#allocation2 + $0x110] sm:$0xff]
        %v691 = vld [vmem:[#allocation2 + $0x120] sm:$0xff]
        %v692 = vld [vmem:[#allocation2 + $0x128] sm:$0xff]
        %v693 = vld [vmem:[#allocation2 + $0x138] sm:$0xff]
        %v694 = vld [vmem:[#allocation2 + $0x140] sm:$0xff]
        %v695 = vld [vmem:[#allocation2 + $0x150] sm:$0xff]
        %v696 = vld [vmem:[#allocation2 + $0x158] sm:$0xff]
        %v697 = vld [vmem:[#allocation2 + $0x168] sm:$0xff]
        %v698 = vld [vmem:[#allocation2 + $0x170] sm:$0xff]
        %699 = vst.msk [vmem:[#allocation3] sm:$0xff] %vm578, %v667
        %700 = vst.msk [vmem:[#allocation3 + $0x8] sm:$0xff] %vm578, %v668
        %701 = vst.msk [vmem:[#allocation3 + $0x10] sm:$0xff] %vm578, %v669
        %702 = vst.msk [vmem:[#allocation3 + $0x18] sm:$0xff] %vm578, %v670
        %703 = vst.msk [vmem:[#allocation3 + $0x20] sm:$0xff] %vm578, %v671
        %704 = vst.msk [vmem:[#allocation3 + $0x28] sm:$0xff] %vm578, %v672
        %705 = vst.msk [vmem:[#allocation3 + $0x30] sm:$0xff] %vm578, %v673
        %706 = vst.msk [vmem:[#allocation3 + $0x38] sm:$0xff] %vm578, %v674
        %707 = vst.msk [vmem:[#allocation3 + $0x40] sm:$0xff] %vm578, %v675
        %708 = vst.msk [vmem:[#allocation3 + $0x48] sm:$0xff] %vm578, %v676
        %709 = vst.msk [vmem:[#allocation3 + $0x50] sm:$0xff] %vm578, %v677
        %710 = vst.msk [vmem:[#allocation3 + $0x58] sm:$0xff] %vm578, %v678
        %711 = vst.msk [vmem:[#allocation3 + $0x60] sm:$0xff] %vm578, %v679
        %712 = vst.msk [vmem:[#allocation3 + $0x68] sm:$0xff] %vm578, %v680
        %713 = vst.msk [vmem:[#allocation3 + $0x70] sm:$0xff] %vm578, %v681
        %714 = vst.msk [vmem:[#allocation3 + $0x78] sm:$0xff] %vm578, %v682
        %715 = vst.msk [vmem:[#allocation3 + $0x80] sm:$0xff] %vm578, %v683
        %716 = vst.msk [vmem:[#allocation3 + $0x88] sm:$0xff] %vm578, %v684
        %717 = vst.msk [vmem:[#allocation3 + $0x90] sm:$0xff] %vm578, %v685
        %718 = vst.msk [vmem:[#allocation3 + $0x98] sm:$0xff] %vm578, %v686
        %719 = vst.msk [vmem:[#allocation3 + $0xa0] sm:$0xff] %vm578, %v687
        %720 = vst.msk [vmem:[#allocation3 + $0xa8] sm:$0xff] %vm578, %v688
        %721 = vst.msk [vmem:[#allocation3 + $0xb0] sm:$0xff] %vm578, %v689
        %722 = vst.msk [vmem:[#allocation3 + $0xb8] sm:$0xff] %vm578, %v690
        %723 = vst.msk [vmem:[#allocation3 + $0xc0] sm:$0xff] %vm578, %v691
        %724 = vst.msk [vmem:[#allocation3 + $0xc8] sm:$0xff] %vm578, %v692
        %725 = vst.msk [vmem:[#allocation3 + $0xd0] sm:$0xff] %vm578, %v693
        %726 = vst.msk [vmem:[#allocation3 + $0xd8] sm:$0xff] %vm578, %v694
        %727 = vst.msk [vmem:[#allocation3 + $0xe0] sm:$0xff] %vm578, %v695
        %728 = vst.msk [vmem:[#allocation3 + $0xe8] sm:$0xff] %vm578, %v696
        %729 = vst.msk [vmem:[#allocation3 + $0xf0] sm:$0xff] %vm578, %v697
        %730 = vst.msk [vmem:[#allocation3 + $0xf8] sm:$0xff] %vm578, %v698
        %v731 = vld [vmem:[#allocation2 + $0x1] sm:$0xff]
        %v732 = vld [vmem:[#allocation2 + $0x9] sm:$0xff]
        %v733 = vld [vmem:[#allocation2 + $0x19] sm:$0xff]
        %v734 = vld [vmem:[#allocation2 + $0x21] sm:$0xff]
        %v735 = vld [vmem:[#allocation2 + $0x31] sm:$0xff]
        %v736 = vld [vmem:[#allocation2 + $0x39] sm:$0xff]
        %v737 = vld [vmem:[#allocation2 + $0x49] sm:$0xff]
        %v738 = vld [vmem:[#allocation2 + $0x51] sm:$0xff]
        %v739 = vld [vmem:[#allocation2 + $0x61] sm:$0xff]
        %v740 = vld [vmem:[#allocation2 + $0x69] sm:$0xff]
        %v741 = vld [vmem:[#allocation2 + $0x79] sm:$0xff]
        %v742 = vld [vmem:[#allocation2 + $0x81] sm:$0xff]
        %v743 = vld [vmem:[#allocation2 + $0x91] sm:$0xff]
        %v744 = vld [vmem:[#allocation2 + $0x99] sm:$0xff]
        %v745 = vld [vmem:[#allocation2 + $0xa9] sm:$0xff]
        %v746 = vld [vmem:[#allocation2 + $0xb1] sm:$0xff]
        %v747 = vld [vmem:[#allocation2 + $0xc1] sm:$0xff]
        %v748 = vld [vmem:[#allocation2 + $0xc9] sm:$0xff]
        %v749 = vld [vmem:[#allocation2 + $0xd9] sm:$0xff]
        %v750 = vld [vmem:[#allocation2 + $0xe1] sm:$0xff]
        %v751 = vld [vmem:[#allocation2 + $0xf1] sm:$0xff]
        %v752 = vld [vmem:[#allocation2 + $0xf9] sm:$0xff]
        %v753 = vld [vmem:[#allocation2 + $0x109] sm:$0xff]
        %v754 = vld [vmem:[#allocation2 + $0x111] sm:$0xff]
        %v755 = vld [vmem:[#allocation2 + $0x121] sm:$0xff]
        %v756 = vld [vmem:[#allocation2 + $0x129] sm:$0xff]
        %v757 = vld [vmem:[#allocation2 + $0x139] sm:$0xff]
        %v758 = vld [vmem:[#allocation2 + $0x141] sm:$0xff]
        %v759 = vld [vmem:[#allocation2 + $0x151] sm:$0xff]
        %v760 = vld [vmem:[#allocation2 + $0x159] sm:$0xff]
        %v761 = vld [vmem:[#allocation2 + $0x169] sm:$0xff]
        %v762 = vld [vmem:[#allocation2 + $0x171] sm:$0xff]
        %795 = vrot.lane.b32.xlu0 %v731, 4
        %v796 = vpop.permute.xlu0 %795
        %797 = vrot.lane.b32.xlu0 %v732, 4
        %v798 = vpop.permute.xlu0 %797
        %799 = vrot.lane.b32.xlu0 %v733, 4
        %v800 = vpop.permute.xlu0 %799
        %801 = vrot.lane.b32.xlu0 %v734, 4
        %v802 = vpop.permute.xlu0 %801
        %803 = vrot.lane.b32.xlu0 %v735, 4
        %v804 = vpop.permute.xlu0 %803
        %805 = vrot.lane.b32.xlu0 %v736, 4
        %v806 = vpop.permute.xlu0 %805
        %807 = vrot.lane.b32.xlu0 %v737, 4
        %v808 = vpop.permute.xlu0 %807
        %809 = vrot.lane.b32.xlu0 %v738, 4
        %v810 = vpop.permute.xlu0 %809
        %811 = vrot.lane.b32.xlu0 %v739, 4
        %v812 = vpop.permute.xlu0 %811
        %813 = vrot.lane.b32.xlu0 %v740, 4
        %v814 = vpop.permute.xlu0 %813
        %815 = vrot.lane.b32.xlu0 %v741, 4
        %v816 = vpop.permute.xlu0 %815
        %817 = vrot.lane.b32.xlu0 %v742, 4
        %v818 = vpop.permute.xlu0 %817
        %819 = vrot.lane.b32.xlu0 %v743, 4
        %v820 = vpop.permute.xlu0 %819
        %821 = vrot.lane.b32.xlu0 %v744, 4
        %v822 = vpop.permute.xlu0 %821
        %823 = vrot.lane.b32.xlu0 %v745, 4
        %v824 = vpop.permute.xlu0 %823
        %825 = vrot.lane.b32.xlu0 %v746, 4
        %v826 = vpop.permute.xlu0 %825
        %827 = vrot.lane.b32.xlu0 %v747, 4
        %v828 = vpop.permute.xlu0 %827
        %829 = vrot.lane.b32.xlu0 %v748, 4
        %v830 = vpop.permute.xlu0 %829
        %831 = vrot.lane.b32.xlu0 %v749, 4
        %v832 = vpop.permute.xlu0 %831
        %833 = vrot.lane.b32.xlu0 %v750, 4
        %v834 = vpop.permute.xlu0 %833
        %835 = vrot.lane.b32.xlu0 %v751, 4
        %v836 = vpop.permute.xlu0 %835
        %837 = vrot.lane.b32.xlu0 %v752, 4
        %v838 = vpop.permute.xlu0 %837
        %839 = vrot.lane.b32.xlu0 %v753, 4
        %v840 = vpop.permute.xlu0 %839
        %841 = vrot.lane.b32.xlu0 %v754, 4
        %v842 = vpop.permute.xlu0 %841
        %843 = vrot.lane.b32.xlu0 %v755, 4
        %v844 = vpop.permute.xlu0 %843
        %845 = vrot.lane.b32.xlu0 %v756, 4
        %v846 = vpop.permute.xlu0 %845
        %847 = vrot.lane.b32.xlu0 %v757, 4
        %v848 = vpop.permute.xlu0 %847
        %849 = vrot.lane.b32.xlu0 %v758, 4
        %v850 = vpop.permute.xlu0 %849
        %851 = vrot.lane.b32.xlu0 %v759, 4
        %v852 = vpop.permute.xlu0 %851
        %853 = vrot.lane.b32.xlu0 %v760, 4
        %v854 = vpop.permute.xlu0 %853
        %855 = vrot.lane.b32.xlu0 %v761, 4
        %v856 = vpop.permute.xlu0 %855
        %857 = vrot.lane.b32.xlu0 %v762, 4
        %v858 = vpop.permute.xlu0 %857
        %vm891 = vcmask 64544
        %892 = vst.msk [vmem:[#allocation3] sm:$0xff] %vm891, %v796
        %893 = vst.msk [vmem:[#allocation3 + $0x8] sm:$0xff] %vm891, %v798
        %894 = vst.msk [vmem:[#allocation3 + $0x10] sm:$0xff] %vm891, %v800
        %895 = vst.msk [vmem:[#allocation3 + $0x18] sm:$0xff] %vm891, %v802
        %896 = vst.msk [vmem:[#allocation3 + $0x20] sm:$0xff] %vm891, %v804
        %897 = vst.msk [vmem:[#allocation3 + $0x28] sm:$0xff] %vm891, %v806
        %898 = vst.msk [vmem:[#allocation3 + $0x30] sm:$0xff] %vm891, %v808
        %899 = vst.msk [vmem:[#allocation3 + $0x38] sm:$0xff] %vm891, %v810
        %900 = vst.msk [vmem:[#allocation3 + $0x40] sm:$0xff] %vm891, %v812
        %901 = vst.msk [vmem:[#allocation3 + $0x48] sm:$0xff] %vm891, %v814
        %902 = vst.msk [vmem:[#allocation3 + $0x50] sm:$0xff] %vm891, %v816
        %903 = vst.msk [vmem:[#allocation3 + $0x58] sm:$0xff] %vm891, %v818
        %904 = vst.msk [vmem:[#allocation3 + $0x60] sm:$0xff] %vm891, %v820
        %905 = vst.msk [vmem:[#allocation3 + $0x68] sm:$0xff] %vm891, %v822
        %906 = vst.msk [vmem:[#allocation3 + $0x70] sm:$0xff] %vm891, %v824
        %907 = vst.msk [vmem:[#allocation3 + $0x78] sm:$0xff] %vm891, %v826
        %908 = vst.msk [vmem:[#allocation3 + $0x80] sm:$0xff] %vm891, %v828
        %909 = vst.msk [vmem:[#allocation3 + $0x88] sm:$0xff] %vm891, %v830
        %910 = vst.msk [vmem:[#allocation3 + $0x90] sm:$0xff] %vm891, %v832
        %911 = vst.msk [vmem:[#allocation3 + $0x98] sm:$0xff] %vm891, %v834
        %912 = vst.msk [vmem:[#allocation3 + $0xa0] sm:$0xff] %vm891, %v836
        %913 = vst.msk [vmem:[#allocation3 + $0xa8] sm:$0xff] %vm891, %v838
        %914 = vst.msk [vmem:[#allocation3 + $0xb0] sm:$0xff] %vm891, %v840
        %915 = vst.msk [vmem:[#allocation3 + $0xb8] sm:$0xff] %vm891, %v842
        %916 = vst.msk [vmem:[#allocation3 + $0xc0] sm:$0xff] %vm891, %v844
        %917 = vst.msk [vmem:[#allocation3 + $0xc8] sm:$0xff] %vm891, %v846
        %918 = vst.msk [vmem:[#allocation3 + $0xd0] sm:$0xff] %vm891, %v848
        %919 = vst.msk [vmem:[#allocation3 + $0xd8] sm:$0xff] %vm891, %v850
        %920 = vst.msk [vmem:[#allocation3 + $0xe0] sm:$0xff] %vm891, %v852
        %921 = vst.msk [vmem:[#allocation3 + $0xe8] sm:$0xff] %vm891, %v854
        %922 = vst.msk [vmem:[#allocation3 + $0xf0] sm:$0xff] %vm891, %v856
        %923 = vst.msk [vmem:[#allocation3 + $0xf8] sm:$0xff] %vm891, %v858
        %v924 = vld [vmem:[#allocation2 + $0x2] sm:$0xff]
        %v925 = vld [vmem:[#allocation2 + $0xa] sm:$0xff]
        %v926 = vld [vmem:[#allocation2 + $0x1a] sm:$0xff]
        %v927 = vld [vmem:[#allocation2 + $0x22] sm:$0xff]
        %v928 = vld [vmem:[#allocation2 + $0x32] sm:$0xff]
        %v929 = vld [vmem:[#allocation2 + $0x3a] sm:$0xff]
        %v930 = vld [vmem:[#allocation2 + $0x4a] sm:$0xff]
        %v931 = vld [vmem:[#allocation2 + $0x52] sm:$0xff]
        %v932 = vld [vmem:[#allocation2 + $0x62] sm:$0xff]
        %v933 = vld [vmem:[#allocation2 + $0x6a] sm:$0xff]
        %v934 = vld [vmem:[#allocation2 + $0x7a] sm:$0xff]
        %v935 = vld [vmem:[#allocation2 + $0x82] sm:$0xff]
        %v936 = vld [vmem:[#allocation2 + $0x92] sm:$0xff]
        %v937 = vld [vmem:[#allocation2 + $0x9a] sm:$0xff]
        %v938 = vld [vmem:[#allocation2 + $0xaa] sm:$0xff]
        %v939 = vld [vmem:[#allocation2 + $0xb2] sm:$0xff]
        %v940 = vld [vmem:[#allocation2 + $0xc2] sm:$0xff]
        %v941 = vld [vmem:[#allocation2 + $0xca] sm:$0xff]
        %v942 = vld [vmem:[#allocation2 + $0xda] sm:$0xff]
        %v943 = vld [vmem:[#allocation2 + $0xe2] sm:$0xff]
        %v944 = vld [vmem:[#allocation2 + $0xf2] sm:$0xff]
        %v945 = vld [vmem:[#allocation2 + $0xfa] sm:$0xff]
        %v946 = vld [vmem:[#allocation2 + $0x10a] sm:$0xff]
        %v947 = vld [vmem:[#allocation2 + $0x112] sm:$0xff]
        %v948 = vld [vmem:[#allocation2 + $0x122] sm:$0xff]
        %v949 = vld [vmem:[#allocation2 + $0x12a] sm:$0xff]
        %v950 = vld [vmem:[#allocation2 + $0x13a] sm:$0xff]
        %v951 = vld [vmem:[#allocation2 + $0x142] sm:$0xff]
        %v952 = vld [vmem:[#allocation2 + $0x152] sm:$0xff]
        %v953 = vld [vmem:[#allocation2 + $0x15a] sm:$0xff]
        %v954 = vld [vmem:[#allocation2 + $0x16a] sm:$0xff]
        %v955 = vld [vmem:[#allocation2 + $0x172] sm:$0xff]
        %988 = vrot.lane.b32.xlu0 %v924, 8
        %v989 = vpop.permute.xlu0 %988
        %990 = vrot.lane.b32.xlu0 %v925, 8
        %v991 = vpop.permute.xlu0 %990
        %992 = vrot.lane.b32.xlu0 %v926, 8
        %v993 = vpop.permute.xlu0 %992
        %994 = vrot.lane.b32.xlu0 %v927, 8
        %v995 = vpop.permute.xlu0 %994
        %996 = vrot.lane.b32.xlu0 %v928, 8
        %v997 = vpop.permute.xlu0 %996
        %998 = vrot.lane.b32.xlu0 %v929, 8
        %v999 = vpop.permute.xlu0 %998
        %1000 = vrot.lane.b32.xlu0 %v930, 8
        %v1001 = vpop.permute.xlu0 %1000
        %1002 = vrot.lane.b32.xlu0 %v931, 8
        %v1003 = vpop.permute.xlu0 %1002
        %1004 = vrot.lane.b32.xlu0 %v932, 8
        %v1005 = vpop.permute.xlu0 %1004
        %1006 = vrot.lane.b32.xlu0 %v933, 8
        %v1007 = vpop.permute.xlu0 %1006
        %1008 = vrot.lane.b32.xlu0 %v934, 8
        %v1009 = vpop.permute.xlu0 %1008
        %1010 = vrot.lane.b32.xlu0 %v935, 8
        %v1011 = vpop.permute.xlu0 %1010
        %1012 = vrot.lane.b32.xlu0 %v936, 8
        %v1013 = vpop.permute.xlu0 %1012
        %1014 = vrot.lane.b32.xlu0 %v937, 8
        %v1015 = vpop.permute.xlu0 %1014
        %1016 = vrot.lane.b32.xlu0 %v938, 8
        %v1017 = vpop.permute.xlu0 %1016
        %1018 = vrot.lane.b32.xlu0 %v939, 8
        %v1019 = vpop.permute.xlu0 %1018
        %1020 = vrot.lane.b32.xlu0 %v940, 8
        %v1021 = vpop.permute.xlu0 %1020
        %1022 = vrot.lane.b32.xlu0 %v941, 8
        %v1023 = vpop.permute.xlu0 %1022
        %1024 = vrot.lane.b32.xlu0 %v942, 8
        %v1025 = vpop.permute.xlu0 %1024
        %1026 = vrot.lane.b32.xlu0 %v943, 8
        %v1027 = vpop.permute.xlu0 %1026
        %1028 = vrot.lane.b32.xlu0 %v944, 8
        %v1029 = vpop.permute.xlu0 %1028
        %1030 = vrot.lane.b32.xlu0 %v945, 8
        %v1031 = vpop.permute.xlu0 %1030
        %1032 = vrot.lane.b32.xlu0 %v946, 8
        %v1033 = vpop.permute.xlu0 %1032
        %1034 = vrot.lane.b32.xlu0 %v947, 8
        %v1035 = vpop.permute.xlu0 %1034
        %1036 = vrot.lane.b32.xlu0 %v948, 8
        %v1037 = vpop.permute.xlu0 %1036
        %1038 = vrot.lane.b32.xlu0 %v949, 8
        %v1039 = vpop.permute.xlu0 %1038
        %1040 = vrot.lane.b32.xlu0 %v950, 8
        %v1041 = vpop.permute.xlu0 %1040
        %1042 = vrot.lane.b32.xlu0 %v951, 8
        %v1043 = vpop.permute.xlu0 %1042
        %1044 = vrot.lane.b32.xlu0 %v952, 8
        %v1045 = vpop.permute.xlu0 %1044
        %1046 = vrot.lane.b32.xlu0 %v953, 8
        %v1047 = vpop.permute.xlu0 %1046
        %1048 = vrot.lane.b32.xlu0 %v954, 8
        %v1049 = vpop.permute.xlu0 %1048
        %1050 = vrot.lane.b32.xlu0 %v955, 8
        %v1051 = vpop.permute.xlu0 %1050
        %vm1084 = vcmask 97344
        %1085 = vst.msk [vmem:[#allocation3] sm:$0xff] %vm1084, %v989
        %1086 = vst.msk [vmem:[#allocation3 + $0x8] sm:$0xff] %vm1084, %v991
        %1087 = vst.msk [vmem:[#allocation3 + $0x10] sm:$0xff] %vm1084, %v993
        %1088 = vst.msk [vmem:[#allocation3 + $0x18] sm:$0xff] %vm1084, %v995
        %1089 = vst.msk [vmem:[#allocation3 + $0x20] sm:$0xff] %vm1084, %v997
        %1090 = vst.msk [vmem:[#allocation3 + $0x28] sm:$0xff] %vm1084, %v999
        %1091 = vst.msk [vmem:[#allocation3 + $0x30] sm:$0xff] %vm1084, %v1001
        %1092 = vst.msk [vmem:[#allocation3 + $0x38] sm:$0xff] %vm1084, %v1003
        %1093 = vst.msk [vmem:[#allocation3 + $0x40] sm:$0xff] %vm1084, %v1005
        %1094 = vst.msk [vmem:[#allocation3 + $0x48] sm:$0xff] %vm1084, %v1007
        %1095 = vst.msk [vmem:[#allocation3 + $0x50] sm:$0xff] %vm1084, %v1009
        %1096 = vst.msk [vmem:[#allocation3 + $0x58] sm:$0xff] %vm1084, %v1011
        %1097 = vst.msk [vmem:[#allocation3 + $0x60] sm:$0xff] %vm1084, %v1013
        %1098 = vst.msk [vmem:[#allocation3 + $0x68] sm:$0xff] %vm1084, %v1015
        %1099 = vst.msk [vmem:[#allocation3 + $0x70] sm:$0xff] %vm1084, %v1017
        %1100 = vst.msk [vmem:[#allocation3 + $0x78] sm:$0xff] %vm1084, %v1019
        %1101 = vst.msk [vmem:[#allocation3 + $0x80] sm:$0xff] %vm1084, %v1021
        %1102 = vst.msk [vmem:[#allocation3 + $0x88] sm:$0xff] %vm1084, %v1023
        %1103 = vst.msk [vmem:[#allocation3 + $0x90] sm:$0xff] %vm1084, %v1025
        %1104 = vst.msk [vmem:[#allocation3 + $0x98] sm:$0xff] %vm1084, %v1027
        %1105 = vst.msk [vmem:[#allocation3 + $0xa0] sm:$0xff] %vm1084, %v1029
        %1106 = vst.msk [vmem:[#allocation3 + $0xa8] sm:$0xff] %vm1084, %v1031
        %1107 = vst.msk [vmem:[#allocation3 + $0xb0] sm:$0xff] %vm1084, %v1033
        %1108 = vst.msk [vmem:[#allocation3 + $0xb8] sm:$0xff] %vm1084, %v1035
        %1109 = vst.msk [vmem:[#allocation3 + $0xc0] sm:$0xff] %vm1084, %v1037
        %1110 = vst.msk [vmem:[#allocation3 + $0xc8] sm:$0xff] %vm1084, %v1039
        %1111 = vst.msk [vmem:[#allocation3 + $0xd0] sm:$0xff] %vm1084, %v1041
        %1112 = vst.msk [vmem:[#allocation3 + $0xd8] sm:$0xff] %vm1084, %v1043
        %1113 = vst.msk [vmem:[#allocation3 + $0xe0] sm:$0xff] %vm1084, %v1045
        %1114 = vst.msk [vmem:[#allocation3 + $0xe8] sm:$0xff] %vm1084, %v1047
        %1115 = vst.msk [vmem:[#allocation3 + $0xf0] sm:$0xff] %vm1084, %v1049
        %1116 = vst.msk [vmem:[#allocation3 + $0xf8] sm:$0xff] %vm1084, %v1051
        %v1117 = vld [vmem:[%s634] sm:$0xff]
        %v1118 = vld [vmem:[%s634 + $0x8] sm:$0xff]
        %v1119 = vld [vmem:[%s634 + $0x18] sm:$0xff]
        %v1120 = vld [vmem:[%s634 + $0x20] sm:$0xff]
        %v1121 = vld [vmem:[%s634 + $0x30] sm:$0xff]
        %v1122 = vld [vmem:[%s634 + $0x38] sm:$0xff]
        %v1123 = vld [vmem:[%s634 + $0x48] sm:$0xff]
        %v1124 = vld [vmem:[%s634 + $0x50] sm:$0xff]
        %v1125 = vld [vmem:[%s634 + $0x60] sm:$0xff]
        %v1126 = vld [vmem:[%s634 + $0x68] sm:$0xff]
        %v1127 = vld [vmem:[%s634 + $0x78] sm:$0xff]
        %v1128 = vld [vmem:[%s634 + $0x80] sm:$0xff]
        %v1129 = vld [vmem:[%s634 + $0x90] sm:$0xff]
        %v1130 = vld [vmem:[%s634 + $0x98] sm:$0xff]
        %v1131 = vld [vmem:[%s634 + $0xa8] sm:$0xff]
        %v1132 = vld [vmem:[%s634 + $0xb0] sm:$0xff]
        %v1133 = vld [vmem:[%s634 + $0xc0] sm:$0xff]
        %v1134 = vld [vmem:[%s634 + $0xc8] sm:$0xff]
        %v1135 = vld [vmem:[%s634 + $0xd8] sm:$0xff]
        %v1136 = vld [vmem:[%s634 + $0xe0] sm:$0xff]
        %v1137 = vld [vmem:[%s634 + $0xf0] sm:$0xff]
        %v1138 = vld [vmem:[%s634 + $0xf8] sm:$0xff]
        %v1139 = vld [vmem:[%s634 + $0x108] sm:$0xff]
        %v1140 = vld [vmem:[%s634 + $0x110] sm:$0xff]
        %v1141 = vld [vmem:[%s634 + $0x120] sm:$0xff]
        %v1142 = vld [vmem:[%s634 + $0x128] sm:$0xff]
        %v1143 = vld [vmem:[%s634 + $0x138] sm:$0xff]
        %v1144 = vld [vmem:[%s634 + $0x140] sm:$0xff]
        %v1145 = vld [vmem:[%s634 + $0x150] sm:$0xff]
        %v1146 = vld [vmem:[%s634 + $0x158] sm:$0xff]
        %v1147 = vld [vmem:[%s634 + $0x168] sm:$0xff]
        %v1148 = vld [vmem:[%s634 + $0x170] sm:$0xff]
        %1181 = vrot.lane.b32.xlu0 %v1117, 12
        %v1182 = vpop.permute.xlu0 %1181
        %1183 = vrot.lane.b32.xlu0 %v1118, 12
        %v1184 = vpop.permute.xlu0 %1183
        %1185 = vrot.lane.b32.xlu0 %v1119, 12
        %v1186 = vpop.permute.xlu0 %1185
        %1187 = vrot.lane.b32.xlu0 %v1120, 12
        %v1188 = vpop.permute.xlu0 %1187
        %1189 = vrot.lane.b32.xlu0 %v1121, 12
        %v1190 = vpop.permute.xlu0 %1189
        %1191 = vrot.lane.b32.xlu0 %v1122, 12
        %v1192 = vpop.permute.xlu0 %1191
        %1193 = vrot.lane.b32.xlu0 %v1123, 12
        %v1194 = vpop.permute.xlu0 %1193
        %1195 = vrot.lane.b32.xlu0 %v1124, 12
        %v1196 = vpop.permute.xlu0 %1195
        %1197 = vrot.lane.b32.xlu0 %v1125, 12
        %v1198 = vpop.permute.xlu0 %1197
        %1199 = vrot.lane.b32.xlu0 %v1126, 12
        %v1200 = vpop.permute.xlu0 %1199
        %1201 = vrot.lane.b32.xlu0 %v1127, 12
        %v1202 = vpop.permute.xlu0 %1201
        %1203 = vrot.lane.b32.xlu0 %v1128, 12
        %v1204 = vpop.permute.xlu0 %1203
        %1205 = vrot.lane.b32.xlu0 %v1129, 12
        %v1206 = vpop.permute.xlu0 %1205
        %1207 = vrot.lane.b32.xlu0 %v1130, 12
        %v1208 = vpop.permute.xlu0 %1207
        %1209 = vrot.lane.b32.xlu0 %v1131, 12
        %v1210 = vpop.permute.xlu0 %1209
        %1211 = vrot.lane.b32.xlu0 %v1132, 12
        %v1212 = vpop.permute.xlu0 %1211
        %1213 = vrot.lane.b32.xlu0 %v1133, 12
        %v1214 = vpop.permute.xlu0 %1213
        %1215 = vrot.lane.b32.xlu0 %v1134, 12
        %v1216 = vpop.permute.xlu0 %1215
        %1217 = vrot.lane.b32.xlu0 %v1135, 12
        %v1218 = vpop.permute.xlu0 %1217
        %1219 = vrot.lane.b32.xlu0 %v1136, 12
        %v1220 = vpop.permute.xlu0 %1219
        %1221 = vrot.lane.b32.xlu0 %v1137, 12
        %v1222 = vpop.permute.xlu0 %1221
        %1223 = vrot.lane.b32.xlu0 %v1138, 12
        %v1224 = vpop.permute.xlu0 %1223
        %1225 = vrot.lane.b32.xlu0 %v1139, 12
        %v1226 = vpop.permute.xlu0 %1225
        %1227 = vrot.lane.b32.xlu0 %v1140, 12
        %v1228 = vpop.permute.xlu0 %1227
        %1229 = vrot.lane.b32.xlu0 %v1141, 12
        %v1230 = vpop.permute.xlu0 %1229
        %1231 = vrot.lane.b32.xlu0 %v1142, 12
        %v1232 = vpop.permute.xlu0 %1231
        %1233 = vrot.lane.b32.xlu0 %v1143, 12
        %v1234 = vpop.permute.xlu0 %1233
        %1235 = vrot.lane.b32.xlu0 %v1144, 12
        %v1236 = vpop.permute.xlu0 %1235
        %1237 = vrot.lane.b32.xlu0 %v1145, 12
        %v1238 = vpop.permute.xlu0 %1237
        %1239 = vrot.lane.b32.xlu0 %v1146, 12
        %v1240 = vpop.permute.xlu0 %1239
        %1241 = vrot.lane.b32.xlu0 %v1147, 12
        %v1242 = vpop.permute.xlu0 %1241
        %1243 = vrot.lane.b32.xlu0 %v1148, 12
        %v1244 = vpop.permute.xlu0 %1243
        %vm1277 = vcmask 130144
        %1278 = vst.msk [vmem:[#allocation3] sm:$0xff] %vm1277, %v1182
        %1279 = vst.msk [vmem:[#allocation3 + $0x8] sm:$0xff] %vm1277, %v1184
        %1280 = vst.msk [vmem:[#allocation3 + $0x10] sm:$0xff] %vm1277, %v1186
        %1281 = vst.msk [vmem:[#allocation3 + $0x18] sm:$0xff] %vm1277, %v1188
        %1282 = vst.msk [vmem:[#allocation3 + $0x20] sm:$0xff] %vm1277, %v1190
        %1283 = vst.msk [vmem:[#allocation3 + $0x28] sm:$0xff] %vm1277, %v1192
        %1284 = vst.msk [vmem:[#allocation3 + $0x30] sm:$0xff] %vm1277, %v1194
        %1285 = vst.msk [vmem:[#allocation3 + $0x38] sm:$0xff] %vm1277, %v1196
        %1286 = vst.msk [vmem:[#allocation3 + $0x40] sm:$0xff] %vm1277, %v1198
        %1287 = vst.msk [vmem:[#allocation3 + $0x48] sm:$0xff] %vm1277, %v1200
        %1288 = vst.msk [vmem:[#allocation3 + $0x50] sm:$0xff] %vm1277, %v1202
        %1289 = vst.msk [vmem:[#allocation3 + $0x58] sm:$0xff] %vm1277, %v1204
        %1290 = vst.msk [vmem:[#allocation3 + $0x60] sm:$0xff] %vm1277, %v1206
        %1291 = vst.msk [vmem:[#allocation3 + $0x68] sm:$0xff] %vm1277, %v1208
        %1292 = vst.msk [vmem:[#allocation3 + $0x70] sm:$0xff] %vm1277, %v1210
        %1293 = vst.msk [vmem:[#allocation3 + $0x78] sm:$0xff] %vm1277, %v1212
        %1294 = vst.msk [vmem:[#allocation3 + $0x80] sm:$0xff] %vm1277, %v1214
        %1295 = vst.msk [vmem:[#allocation3 + $0x88] sm:$0xff] %vm1277, %v1216
        %1296 = vst.msk [vmem:[#allocation3 + $0x90] sm:$0xff] %vm1277, %v1218
        %1297 = vst.msk [vmem:[#allocation3 + $0x98] sm:$0xff] %vm1277, %v1220
        %1298 = vst.msk [vmem:[#allocation3 + $0xa0] sm:$0xff] %vm1277, %v1222
        %1299 = vst.msk [vmem:[#allocation3 + $0xa8] sm:$0xff] %vm1277, %v1224
        %1300 = vst.msk [vmem:[#allocation3 + $0xb0] sm:$0xff] %vm1277, %v1226
        %1301 = vst.msk [vmem:[#allocation3 + $0xb8] sm:$0xff] %vm1277, %v1228
        %1302 = vst.msk [vmem:[#allocation3 + $0xc0] sm:$0xff] %vm1277, %v1230
        %1303 = vst.msk [vmem:[#allocation3 + $0xc8] sm:$0xff] %vm1277, %v1232
        %1304 = vst.msk [vmem:[#allocation3 + $0xd0] sm:$0xff] %vm1277, %v1234
        %1305 = vst.msk [vmem:[#allocation3 + $0xd8] sm:$0xff] %vm1277, %v1236
        %1306 = vst.msk [vmem:[#allocation3 + $0xe0] sm:$0xff] %vm1277, %v1238
        %1307 = vst.msk [vmem:[#allocation3 + $0xe8] sm:$0xff] %vm1277, %v1240
        %1308 = vst.msk [vmem:[#allocation3 + $0xf0] sm:$0xff] %vm1277, %v1242
        %1309 = vst.msk [vmem:[#allocation3 + $0xf8] sm:$0xff] %vm1277, %v1244
        %v1310 = vld [vmem:[%s634 + $0x1] sm:$0xff]
        %v1311 = vld [vmem:[%s634 + $0x9] sm:$0xff]
        %v1312 = vld [vmem:[%s634 + $0x19] sm:$0xff]
        %v1313 = vld [vmem:[%s634 + $0x21] sm:$0xff]
        %v1314 = vld [vmem:[%s634 + $0x31] sm:$0xff]
        %v1315 = vld [vmem:[%s634 + $0x39] sm:$0xff]
        %v1316 = vld [vmem:[%s634 + $0x49] sm:$0xff]
        %v1317 = vld [vmem:[%s634 + $0x51] sm:$0xff]
        %v1318 = vld [vmem:[%s634 + $0x61] sm:$0xff]
        %v1319 = vld [vmem:[%s634 + $0x69] sm:$0xff]
        %v1320 = vld [vmem:[%s634 + $0x79] sm:$0xff]
        %v1321 = vld [vmem:[%s634 + $0x81] sm:$0xff]
        %v1322 = vld [vmem:[%s634 + $0x91] sm:$0xff]
        %v1323 = vld [vmem:[%s634 + $0x99] sm:$0xff]
        %v1324 = vld [vmem:[%s634 + $0xa9] sm:$0xff]
        %v1325 = vld [vmem:[%s634 + $0xb1] sm:$0xff]
        %v1326 = vld [vmem:[%s634 + $0xc1] sm:$0xff]
        %v1327 = vld [vmem:[%s634 + $0xc9] sm:$0xff]
        %v1328 = vld [vmem:[%s634 + $0xd9] sm:$0xff]
        %v1329 = vld [vmem:[%s634 + $0xe1] sm:$0xff]
        %v1330 = vld [vmem:[%s634 + $0xf1] sm:$0xff]
        %v1331 = vld [vmem:[%s634 + $0xf9] sm:$0xff]
        %v1332 = vld [vmem:[%s634 + $0x109] sm:$0xff]
        %v1333 = vld [vmem:[%s634 + $0x111] sm:$0xff]
        %v1334 = vld [vmem:[%s634 + $0x121] sm:$0xff]
        %v1335 = vld [vmem:[%s634 + $0x129] sm:$0xff]
        %v1336 = vld [vmem:[%s634 + $0x139] sm:$0xff]
        %v1337 = vld [vmem:[%s634 + $0x141] sm:$0xff]
        %v1338 = vld [vmem:[%s634 + $0x151] sm:$0xff]
        %v1339 = vld [vmem:[%s634 + $0x159] sm:$0xff]
        %v1340 = vld [vmem:[%s634 + $0x169] sm:$0xff]
        %v1341 = vld [vmem:[%s634 + $0x171] sm:$0xff]
        %1374 = vrot.lane.b32.xlu0 %v1310, 16
        %v1375 = vpop.permute.xlu0 %1374
        %1376 = vrot.lane.b32.xlu0 %v1311, 16
        %v1377 = vpop.permute.xlu0 %1376
        %1378 = vrot.lane.b32.xlu0 %v1312, 16
        %v1379 = vpop.permute.xlu0 %1378
        %1380 = vrot.lane.b32.xlu0 %v1313, 16
        %v1381 = vpop.permute.xlu0 %1380
        %1382 = vrot.lane.b32.xlu0 %v1314, 16
        %v1383 = vpop.permute.xlu0 %1382
        %1384 = vrot.lane.b32.xlu0 %v1315, 16
        %v1385 = vpop.permute.xlu0 %1384
        %1386 = vrot.lane.b32.xlu0 %v1316, 16
        %v1387 = vpop.permute.xlu0 %1386
        %1388 = vrot.lane.b32.xlu0 %v1317, 16
        %v1389 = vpop.permute.xlu0 %1388
        %1390 = vrot.lane.b32.xlu0 %v1318, 16
        %v1391 = vpop.permute.xlu0 %1390
        %1392 = vrot.lane.b32.xlu0 %v1319, 16
        %v1393 = vpop.permute.xlu0 %1392
        %1394 = vrot.lane.b32.xlu0 %v1320, 16
        %v1395 = vpop.permute.xlu0 %1394
        %1396 = vrot.lane.b32.xlu0 %v1321, 16
        %v1397 = vpop.permute.xlu0 %1396
        %1398 = vrot.lane.b32.xlu0 %v1322, 16
        %v1399 = vpop.permute.xlu0 %1398
        %1400 = vrot.lane.b32.xlu0 %v1323, 16
        %v1401 = vpop.permute.xlu0 %1400
        %1402 = vrot.lane.b32.xlu0 %v1324, 16
        %v1403 = vpop.permute.xlu0 %1402
        %1404 = vrot.lane.b32.xlu0 %v1325, 16
        %v1405 = vpop.permute.xlu0 %1404
        %1406 = vrot.lane.b32.xlu0 %v1326, 16
        %v1407 = vpop.permute.xlu0 %1406
        %1408 = vrot.lane.b32.xlu0 %v1327, 16
        %v1409 = vpop.permute.xlu0 %1408
        %1410 = vrot.lane.b32.xlu0 %v1328, 16
        %v1411 = vpop.permute.xlu0 %1410
        %1412 = vrot.lane.b32.xlu0 %v1329, 16
        %v1413 = vpop.permute.xlu0 %1412
        %1414 = vrot.lane.b32.xlu0 %v1330, 16
        %v1415 = vpop.permute.xlu0 %1414
        %1416 = vrot.lane.b32.xlu0 %v1331, 16
        %v1417 = vpop.permute.xlu0 %1416
        %1418 = vrot.lane.b32.xlu0 %v1332, 16
        %v1419 = vpop.permute.xlu0 %1418
        %1420 = vrot.lane.b32.xlu0 %v1333, 16
        %v1421 = vpop.permute.xlu0 %1420
        %1422 = vrot.lane.b32.xlu0 %v1334, 16
        %v1423 = vpop.permute.xlu0 %1422
        %1424 = vrot.lane.b32.xlu0 %v1335, 16
        %v1425 = vpop.permute.xlu0 %1424
        %1426 = vrot.lane.b32.xlu0 %v1336, 16
        %v1427 = vpop.permute.xlu0 %1426
        %1428 = vrot.lane.b32.xlu0 %v1337, 16
        %v1429 = vpop.permute.xlu0 %1428
        %1430 = vrot.lane.b32.xlu0 %v1338, 16
        %v1431 = vpop.permute.xlu0 %1430
        %1432 = vrot.lane.b32.xlu0 %v1339, 16
        %v1433 = vpop.permute.xlu0 %1432
        %1434 = vrot.lane.b32.xlu0 %v1340, 16
        %v1435 = vpop.permute.xlu0 %1434
        %1436 = vrot.lane.b32.xlu0 %v1341, 16
        %v1437 = vpop.permute.xlu0 %1436
        %vm1470 = vcmask 162944
        %1471 = vst.msk [vmem:[#allocation3] sm:$0xff] %vm1470, %v1375
        %1472 = vst.msk [vmem:[#allocation3 + $0x8] sm:$0xff] %vm1470, %v1377
        %1473 = vst.msk [vmem:[#allocation3 + $0x10] sm:$0xff] %vm1470, %v1379
        %1474 = vst.msk [vmem:[#allocation3 + $0x18] sm:$0xff] %vm1470, %v1381
        %1475 = vst.msk [vmem:[#allocation3 + $0x20] sm:$0xff] %vm1470, %v1383
        %1476 = vst.msk [vmem:[#allocation3 + $0x28] sm:$0xff] %vm1470, %v1385
        %1477 = vst.msk [vmem:[#allocation3 + $0x30] sm:$0xff] %vm1470, %v1387
        %1478 = vst.msk [vmem:[#allocation3 + $0x38] sm:$0xff] %vm1470, %v1389
        %1479 = vst.msk [vmem:[#allocation3 + $0x40] sm:$0xff] %vm1470, %v1391
        %1480 = vst.msk [vmem:[#allocation3 + $0x48] sm:$0xff] %vm1470, %v1393
        %1481 = vst.msk [vmem:[#allocation3 + $0x50] sm:$0xff] %vm1470, %v1395
        %1482 = vst.msk [vmem:[#allocation3 + $0x58] sm:$0xff] %vm1470, %v1397
        %1483 = vst.msk [vmem:[#allocation3 + $0x60] sm:$0xff] %vm1470, %v1399
        %1484 = vst.msk [vmem:[#allocation3 + $0x68] sm:$0xff] %vm1470, %v1401
        %1485 = vst.msk [vmem:[#allocation3 + $0x70] sm:$0xff] %vm1470, %v1403
        %1486 = vst.msk [vmem:[#allocation3 + $0x78] sm:$0xff] %vm1470, %v1405
        %1487 = vst.msk [vmem:[#allocation3 + $0x80] sm:$0xff] %vm1470, %v1407
        %1488 = vst.msk [vmem:[#allocation3 + $0x88] sm:$0xff] %vm1470, %v1409
        %1489 = vst.msk [vmem:[#allocation3 + $0x90] sm:$0xff] %vm1470, %v1411
        %1490 = vst.msk [vmem:[#allocation3 + $0x98] sm:$0xff] %vm1470, %v1413
        %1491 = vst.msk [vmem:[#allocation3 + $0xa0] sm:$0xff] %vm1470, %v1415
        %1492 = vst.msk [vmem:[#allocation3 + $0xa8] sm:$0xff] %vm1470, %v1417
        %1493 = vst.msk [vmem:[#allocation3 + $0xb0] sm:$0xff] %vm1470, %v1419
        %1494 = vst.msk [vmem:[#allocation3 + $0xb8] sm:$0xff] %vm1470, %v1421
        %1495 = vst.msk [vmem:[#allocation3 + $0xc0] sm:$0xff] %vm1470, %v1423
        %1496 = vst.msk [vmem:[#allocation3 + $0xc8] sm:$0xff] %vm1470, %v1425
        %1497 = vst.msk [vmem:[#allocation3 + $0xd0] sm:$0xff] %vm1470, %v1427
        %1498 = vst.msk [vmem:[#allocation3 + $0xd8] sm:$0xff] %vm1470, %v1429
        %1499 = vst.msk [vmem:[#allocation3 + $0xe0] sm:$0xff] %vm1470, %v1431
        %1500 = vst.msk [vmem:[#allocation3 + $0xe8] sm:$0xff] %vm1470, %v1433
        %1501 = vst.msk [vmem:[#allocation3 + $0xf0] sm:$0xff] %vm1470, %v1435
        %1502 = vst.msk [vmem:[#allocation3 + $0xf8] sm:$0xff] %vm1470, %v1437
        %v1503 = vld [vmem:[%s634 + $0x2] sm:$0xff]
        %v1504 = vld [vmem:[%s634 + $0xa] sm:$0xff]
        %v1505 = vld [vmem:[%s634 + $0x1a] sm:$0xff]
        %v1506 = vld [vmem:[%s634 + $0x22] sm:$0xff]
        %v1507 = vld [vmem:[%s634 + $0x32] sm:$0xff]
        %v1508 = vld [vmem:[%s634 + $0x3a] sm:$0xff]
        %v1509 = vld [vmem:[%s634 + $0x4a] sm:$0xff]
        %v1510 = vld [vmem:[%s634 + $0x52] sm:$0xff]
        %v1511 = vld [vmem:[%s634 + $0x62] sm:$0xff]
        %v1512 = vld [vmem:[%s634 + $0x6a] sm:$0xff]
        %v1513 = vld [vmem:[%s634 + $0x7a] sm:$0xff]
        %v1514 = vld [vmem:[%s634 + $0x82] sm:$0xff]
        %v1515 = vld [vmem:[%s634 + $0x92] sm:$0xff]
        %v1516 = vld [vmem:[%s634 + $0x9a] sm:$0xff]
        %v1517 = vld [vmem:[%s634 + $0xaa] sm:$0xff]
        %v1518 = vld [vmem:[%s634 + $0xb2] sm:$0xff]
        %v1519 = vld [vmem:[%s634 + $0xc2] sm:$0xff]
        %v1520 = vld [vmem:[%s634 + $0xca] sm:$0xff]
        %v1521 = vld [vmem:[%s634 + $0xda] sm:$0xff]
        %v1522 = vld [vmem:[%s634 + $0xe2] sm:$0xff]
        %v1523 = vld [vmem:[%s634 + $0xf2] sm:$0xff]
        %v1524 = vld [vmem:[%s634 + $0xfa] sm:$0xff]
        %v1525 = vld [vmem:[%s634 + $0x10a] sm:$0xff]
        %v1526 = vld [vmem:[%s634 + $0x112] sm:$0xff]
        %v1527 = vld [vmem:[%s634 + $0x122] sm:$0xff]
        %v1528 = vld [vmem:[%s634 + $0x12a] sm:$0xff]
        %v1529 = vld [vmem:[%s634 + $0x13a] sm:$0xff]
        %v1530 = vld [vmem:[%s634 + $0x142] sm:$0xff]
        %v1531 = vld [vmem:[%s634 + $0x152] sm:$0xff]
        %v1532 = vld [vmem:[%s634 + $0x15a] sm:$0xff]
        %v1533 = vld [vmem:[%s634 + $0x16a] sm:$0xff]
        %v1534 = vld [vmem:[%s634 + $0x172] sm:$0xff]
        %1567 = vrot.lane.b32.xlu0 %v1503, 20
        %v1568 = vpop.permute.xlu0 %1567
        %1569 = vrot.lane.b32.xlu0 %v1504, 20
        %v1570 = vpop.permute.xlu0 %1569
        %1571 = vrot.lane.b32.xlu0 %v1505, 20
        %v1572 = vpop.permute.xlu0 %1571
        %1573 = vrot.lane.b32.xlu0 %v1506, 20
        %v1574 = vpop.permute.xlu0 %1573
        %1575 = vrot.lane.b32.xlu0 %v1507, 20
        %v1576 = vpop.permute.xlu0 %1575
        %1577 = vrot.lane.b32.xlu0 %v1508, 20
        %v1578 = vpop.permute.xlu0 %1577
        %1579 = vrot.lane.b32.xlu0 %v1509, 20
        %v1580 = vpop.permute.xlu0 %1579
        %1581 = vrot.lane.b32.xlu0 %v1510, 20
        %v1582 = vpop.permute.xlu0 %1581
        %1583 = vrot.lane.b32.xlu0 %v1511, 20
        %v1584 = vpop.permute.xlu0 %1583
        %1585 = vrot.lane.b32.xlu0 %v1512, 20
        %v1586 = vpop.permute.xlu0 %1585
        %1587 = vrot.lane.b32.xlu0 %v1513, 20
        %v1588 = vpop.permute.xlu0 %1587
        %1589 = vrot.lane.b32.xlu0 %v1514, 20
        %v1590 = vpop.permute.xlu0 %1589
        %1591 = vrot.lane.b32.xlu0 %v1515, 20
        %v1592 = vpop.permute.xlu0 %1591
        %1593 = vrot.lane.b32.xlu0 %v1516, 20
        %v1594 = vpop.permute.xlu0 %1593
        %1595 = vrot.lane.b32.xlu0 %v1517, 20
        %v1596 = vpop.permute.xlu0 %1595
        %1597 = vrot.lane.b32.xlu0 %v1518, 20
        %v1598 = vpop.permute.xlu0 %1597
        %1599 = vrot.lane.b32.xlu0 %v1519, 20
        %v1600 = vpop.permute.xlu0 %1599
        %1601 = vrot.lane.b32.xlu0 %v1520, 20
        %v1602 = vpop.permute.xlu0 %1601
        %1603 = vrot.lane.b32.xlu0 %v1521, 20
        %v1604 = vpop.permute.xlu0 %1603
        %1605 = vrot.lane.b32.xlu0 %v1522, 20
        %v1606 = vpop.permute.xlu0 %1605
        %1607 = vrot.lane.b32.xlu0 %v1523, 20
        %v1608 = vpop.permute.xlu0 %1607
        %1609 = vrot.lane.b32.xlu0 %v1524, 20
        %v1610 = vpop.permute.xlu0 %1609
        %1611 = vrot.lane.b32.xlu0 %v1525, 20
        %v1612 = vpop.permute.xlu0 %1611
        %1613 = vrot.lane.b32.xlu0 %v1526, 20
        %v1614 = vpop.permute.xlu0 %1613
        %1615 = vrot.lane.b32.xlu0 %v1527, 20
        %v1616 = vpop.permute.xlu0 %1615
        %1617 = vrot.lane.b32.xlu0 %v1528, 20
        %v1618 = vpop.permute.xlu0 %1617
        %1619 = vrot.lane.b32.xlu0 %v1529, 20
        %v1620 = vpop.permute.xlu0 %1619
        %1621 = vrot.lane.b32.xlu0 %v1530, 20
        %v1622 = vpop.permute.xlu0 %1621
        %1623 = vrot.lane.b32.xlu0 %v1531, 20
        %v1624 = vpop.permute.xlu0 %1623
        %1625 = vrot.lane.b32.xlu0 %v1532, 20
        %v1626 = vpop.permute.xlu0 %1625
        %1627 = vrot.lane.b32.xlu0 %v1533, 20
        %v1628 = vpop.permute.xlu0 %1627
        %1629 = vrot.lane.b32.xlu0 %v1534, 20
        %v1630 = vpop.permute.xlu0 %1629
        %vm1663 = vcmask 195744
        %1664 = vst.msk [vmem:[#allocation3] sm:$0xff] %vm1663, %v1568
        %1665 = vst.msk [vmem:[#allocation3 + $0x8] sm:$0xff] %vm1663, %v1570
        %1666 = vst.msk [vmem:[#allocation3 + $0x10] sm:$0xff] %vm1663, %v1572
        %1667 = vst.msk [vmem:[#allocation3 + $0x18] sm:$0xff] %vm1663, %v1574
        %1668 = vst.msk [vmem:[#allocation3 + $0x20] sm:$0xff] %vm1663, %v1576
        %1669 = vst.msk [vmem:[#allocation3 + $0x28] sm:$0xff] %vm1663, %v1578
        %1670 = vst.msk [vmem:[#allocation3 + $0x30] sm:$0xff] %vm1663, %v1580
        %1671 = vst.msk [vmem:[#allocation3 + $0x38] sm:$0xff] %vm1663, %v1582
        %1672 = vst.msk [vmem:[#allocation3 + $0x40] sm:$0xff] %vm1663, %v1584
        %1673 = vst.msk [vmem:[#allocation3 + $0x48] sm:$0xff] %vm1663, %v1586
        %1674 = vst.msk [vmem:[#allocation3 + $0x50] sm:$0xff] %vm1663, %v1588
        %1675 = vst.msk [vmem:[#allocation3 + $0x58] sm:$0xff] %vm1663, %v1590
        %1676 = vst.msk [vmem:[#allocation3 + $0x60] sm:$0xff] %vm1663, %v1592
        %1677 = vst.msk [vmem:[#allocation3 + $0x68] sm:$0xff] %vm1663, %v1594
        %1678 = vst.msk [vmem:[#allocation3 + $0x70] sm:$0xff] %vm1663, %v1596
        %1679 = vst.msk [vmem:[#allocation3 + $0x78] sm:$0xff] %vm1663, %v1598
        %1680 = vst.msk [vmem:[#allocation3 + $0x80] sm:$0xff] %vm1663, %v1600
        %1681 = vst.msk [vmem:[#allocation3 + $0x88] sm:$0xff] %vm1663, %v1602
        %1682 = vst.msk [vmem:[#allocation3 + $0x90] sm:$0xff] %vm1663, %v1604
        %1683 = vst.msk [vmem:[#allocation3 + $0x98] sm:$0xff] %vm1663, %v1606
        %1684 = vst.msk [vmem:[#allocation3 + $0xa0] sm:$0xff] %vm1663, %v1608
        %1685 = vst.msk [vmem:[#allocation3 + $0xa8] sm:$0xff] %vm1663, %v1610
        %1686 = vst.msk [vmem:[#allocation3 + $0xb0] sm:$0xff] %vm1663, %v1612
        %1687 = vst.msk [vmem:[#allocation3 + $0xb8] sm:$0xff] %vm1663, %v1614
        %1688 = vst.msk [vmem:[#allocation3 + $0xc0] sm:$0xff] %vm1663, %v1616
        %1689 = vst.msk [vmem:[#allocation3 + $0xc8] sm:$0xff] %vm1663, %v1618
        %1690 = vst.msk [vmem:[#allocation3 + $0xd0] sm:$0xff] %vm1663, %v1620
        %1691 = vst.msk [vmem:[#allocation3 + $0xd8] sm:$0xff] %vm1663, %v1622
        %1692 = vst.msk [vmem:[#allocation3 + $0xe0] sm:$0xff] %vm1663, %v1624
        %1693 = vst.msk [vmem:[#allocation3 + $0xe8] sm:$0xff] %vm1663, %v1626
        %1694 = vst.msk [vmem:[#allocation3 + $0xf0] sm:$0xff] %vm1663, %v1628
        %1695 = vst.msk [vmem:[#allocation3 + $0xf8] sm:$0xff] %vm1663, %v1630
        %s1696 = scalar_lea.vmem [#allocation2], 48
        %v1697 = vld [vmem:[%s1696] sm:$0xff]
        %v1698 = vld [vmem:[%s1696 + $0x8] sm:$0xff]
        %v1699 = vld [vmem:[%s1696 + $0x18] sm:$0xff]
        %v1700 = vld [vmem:[%s1696 + $0x20] sm:$0xff]
        %v1701 = vld [vmem:[%s1696 + $0x30] sm:$0xff]
        %v1702 = vld [vmem:[%s1696 + $0x38] sm:$0xff]
        %v1703 = vld [vmem:[%s1696 + $0x48] sm:$0xff]
        %v1704 = vld [vmem:[%s1696 + $0x50] sm:$0xff]
        %v1705 = vld [vmem:[%s1696 + $0x60] sm:$0xff]
        %v1706 = vld [vmem:[%s1696 + $0x68] sm:$0xff]
        %v1707 = vld [vmem:[%s1696 + $0x78] sm:$0xff]
        %v1708 = vld [vmem:[%s1696 + $0x80] sm:$0xff]
        %v1709 = vld [vmem:[%s1696 + $0x90] sm:$0xff]
        %v1710 = vld [vmem:[%s1696 + $0x98] sm:$0xff]
        %v1711 = vld [vmem:[%s1696 + $0xa8] sm:$0xff]
        %v1712 = vld [vmem:[%s1696 + $0xb0] sm:$0xff]
        %v1713 = vld [vmem:[%s1696 + $0xc0] sm:$0xff]
        %v1714 = vld [vmem:[%s1696 + $0xc8] sm:$0xff]
        %v1715 = vld [vmem:[%s1696 + $0xd8] sm:$0xff]
        %v1716 = vld [vmem:[%s1696 + $0xe0] sm:$0xff]
        %v1717 = vld [vmem:[%s1696 + $0xf0] sm:$0xff]
        %v1718 = vld [vmem:[%s1696 + $0xf8] sm:$0xff]
        %v1719 = vld [vmem:[%s1696 + $0x108] sm:$0xff]
        %v1720 = vld [vmem:[%s1696 + $0x110] sm:$0xff]
        %v1721 = vld [vmem:[%s1696 + $0x120] sm:$0xff]
        %v1722 = vld [vmem:[%s1696 + $0x128] sm:$0xff]
        %v1723 = vld [vmem:[%s1696 + $0x138] sm:$0xff]
        %v1724 = vld [vmem:[%s1696 + $0x140] sm:$0xff]
        %v1725 = vld [vmem:[%s1696 + $0x150] sm:$0xff]
        %v1726 = vld [vmem:[%s1696 + $0x158] sm:$0xff]
        %v1727 = vld [vmem:[%s1696 + $0x168] sm:$0xff]
        %v1728 = vld [vmem:[%s1696 + $0x170] sm:$0xff]
        %1761 = vrot.lane.b32.xlu0 %v1697, 24
        %v1762 = vpop.permute.xlu0 %1761
        %1763 = vrot.lane.b32.xlu0 %v1698, 24
        %v1764 = vpop.permute.xlu0 %1763
        %1765 = vrot.lane.b32.xlu0 %v1699, 24
        %v1766 = vpop.permute.xlu0 %1765
        %1767 = vrot.lane.b32.xlu0 %v1700, 24
        %v1768 = vpop.permute.xlu0 %1767
        %1769 = vrot.lane.b32.xlu0 %v1701, 24
        %v1770 = vpop.permute.xlu0 %1769
        %1771 = vrot.lane.b32.xlu0 %v1702, 24
        %v1772 = vpop.permute.xlu0 %1771
        %1773 = vrot.lane.b32.xlu0 %v1703, 24
        %v1774 = vpop.permute.xlu0 %1773
        %1775 = vrot.lane.b32.xlu0 %v1704, 24
        %v1776 = vpop.permute.xlu0 %1775
        %1777 = vrot.lane.b32.xlu0 %v1705, 24
        %v1778 = vpop.permute.xlu0 %1777
        %1779 = vrot.lane.b32.xlu0 %v1706, 24
        %v1780 = vpop.permute.xlu0 %1779
        %1781 = vrot.lane.b32.xlu0 %v1707, 24
        %v1782 = vpop.permute.xlu0 %1781
        %1783 = vrot.lane.b32.xlu0 %v1708, 24
        %v1784 = vpop.permute.xlu0 %1783
        %1785 = vrot.lane.b32.xlu0 %v1709, 24
        %v1786 = vpop.permute.xlu0 %1785
        %1787 = vrot.lane.b32.xlu0 %v1710, 24
        %v1788 = vpop.permute.xlu0 %1787
        %1789 = vrot.lane.b32.xlu0 %v1711, 24
        %v1790 = vpop.permute.xlu0 %1789
        %1791 = vrot.lane.b32.xlu0 %v1712, 24
        %v1792 = vpop.permute.xlu0 %1791
        %1793 = vrot.lane.b32.xlu0 %v1713, 24
        %v1794 = vpop.permute.xlu0 %1793
        %1795 = vrot.lane.b32.xlu0 %v1714, 24
        %v1796 = vpop.permute.xlu0 %1795
        %1797 = vrot.lane.b32.xlu0 %v1715, 24
        %v1798 = vpop.permute.xlu0 %1797
        %1799 = vrot.lane.b32.xlu0 %v1716, 24
        %v1800 = vpop.permute.xlu0 %1799
        %1801 = vrot.lane.b32.xlu0 %v1717, 24
        %v1802 = vpop.permute.xlu0 %1801
        %1803 = vrot.lane.b32.xlu0 %v1718, 24
        %v1804 = vpop.permute.xlu0 %1803
        %1805 = vrot.lane.b32.xlu0 %v1719, 24
        %v1806 = vpop.permute.xlu0 %1805
        %1807 = vrot.lane.b32.xlu0 %v1720, 24
        %v1808 = vpop.permute.xlu0 %1807
        %1809 = vrot.lane.b32.xlu0 %v1721, 24
        %v1810 = vpop.permute.xlu0 %1809
        %1811 = vrot.lane.b32.xlu0 %v1722, 24
        %v1812 = vpop.permute.xlu0 %1811
        %1813 = vrot.lane.b32.xlu0 %v1723, 24
        %v1814 = vpop.permute.xlu0 %1813
        %1815 = vrot.lane.b32.xlu0 %v1724, 24
        %v1816 = vpop.permute.xlu0 %1815
        %1817 = vrot.lane.b32.xlu0 %v1725, 24
        %v1818 = vpop.permute.xlu0 %1817
        %1819 = vrot.lane.b32.xlu0 %v1726, 24
        %v1820 = vpop.permute.xlu0 %1819
        %1821 = vrot.lane.b32.xlu0 %v1727, 24
        %v1822 = vpop.permute.xlu0 %1821
        %1823 = vrot.lane.b32.xlu0 %v1728, 24
        %v1824 = vpop.permute.xlu0 %1823
        %vm1857 = vcmask 228544
        %1858 = vst.msk [vmem:[#allocation3] sm:$0xff] %vm1857, %v1762
        %1859 = vst.msk [vmem:[#allocation3 + $0x8] sm:$0xff] %vm1857, %v1764
        %1860 = vst.msk [vmem:[#allocation3 + $0x10] sm:$0xff] %vm1857, %v1766
        %1861 = vst.msk [vmem:[#allocation3 + $0x18] sm:$0xff] %vm1857, %v1768
        %1862 = vst.msk [vmem:[#allocation3 + $0x20] sm:$0xff] %vm1857, %v1770
        %1863 = vst.msk [vmem:[#allocation3 + $0x28] sm:$0xff] %vm1857, %v1772
        %1864 = vst.msk [vmem:[#allocation3 + $0x30] sm:$0xff] %vm1857, %v1774
        %1865 = vst.msk [vmem:[#allocation3 + $0x38] sm:$0xff] %vm1857, %v1776
        %1866 = vst.msk [vmem:[#allocation3 + $0x40] sm:$0xff] %vm1857, %v1778
        %1867 = vst.msk [vmem:[#allocation3 + $0x48] sm:$0xff] %vm1857, %v1780
        %1868 = vst.msk [vmem:[#allocation3 + $0x50] sm:$0xff] %vm1857, %v1782
        %1869 = vst.msk [vmem:[#allocation3 + $0x58] sm:$0xff] %vm1857, %v1784
        %1870 = vst.msk [vmem:[#allocation3 + $0x60] sm:$0xff] %vm1857, %v1786
        %1871 = vst.msk [vmem:[#allocation3 + $0x68] sm:$0xff] %vm1857, %v1788
        %1872 = vst.msk [vmem:[#allocation3 + $0x70] sm:$0xff] %vm1857, %v1790
        %1873 = vst.msk [vmem:[#allocation3 + $0x78] sm:$0xff] %vm1857, %v1792
        %1874 = vst.msk [vmem:[#allocation3 + $0x80] sm:$0xff] %vm1857, %v1794
        %1875 = vst.msk [vmem:[#allocation3 + $0x88] sm:$0xff] %vm1857, %v1796
        %1876 = vst.msk [vmem:[#allocation3 + $0x90] sm:$0xff] %vm1857, %v1798
        %1877 = vst.msk [vmem:[#allocation3 + $0x98] sm:$0xff] %vm1857, %v1800
        %1878 = vst.msk [vmem:[#allocation3 + $0xa0] sm:$0xff] %vm1857, %v1802
        %1879 = vst.msk [vmem:[#allocation3 + $0xa8] sm:$0xff] %vm1857, %v1804
        %1880 = vst.msk [vmem:[#allocation3 + $0xb0] sm:$0xff] %vm1857, %v1806
        %1881 = vst.msk [vmem:[#allocation3 + $0xb8] sm:$0xff] %vm1857, %v1808
        %1882 = vst.msk [vmem:[#allocation3 + $0xc0] sm:$0xff] %vm1857, %v1810
        %1883 = vst.msk [vmem:[#allocation3 + $0xc8] sm:$0xff] %vm1857, %v1812
        %1884 = vst.msk [vmem:[#allocation3 + $0xd0] sm:$0xff] %vm1857, %v1814
        %1885 = vst.msk [vmem:[#allocation3 + $0xd8] sm:$0xff] %vm1857, %v1816
        %1886 = vst.msk [vmem:[#allocation3 + $0xe0] sm:$0xff] %vm1857, %v1818
        %1887 = vst.msk [vmem:[#allocation3 + $0xe8] sm:$0xff] %vm1857, %v1820
        %1888 = vst.msk [vmem:[#allocation3 + $0xf0] sm:$0xff] %vm1857, %v1822
        %1889 = vst.msk [vmem:[#allocation3 + $0xf8] sm:$0xff] %vm1857, %v1824
        %v1890 = vld [vmem:[%s1696 + $0x1] sm:$0xff]
        %v1891 = vld [vmem:[%s1696 + $0x9] sm:$0xff]
        %v1892 = vld [vmem:[%s1696 + $0x19] sm:$0xff]
        %v1893 = vld [vmem:[%s1696 + $0x21] sm:$0xff]
        %v1894 = vld [vmem:[%s1696 + $0x31] sm:$0xff]
        %v1895 = vld [vmem:[%s1696 + $0x39] sm:$0xff]
        %v1896 = vld [vmem:[%s1696 + $0x49] sm:$0xff]
        %v1897 = vld [vmem:[%s1696 + $0x51] sm:$0xff]
        %v1898 = vld [vmem:[%s1696 + $0x61] sm:$0xff]
        %v1899 = vld [vmem:[%s1696 + $0x69] sm:$0xff]
        %v1900 = vld [vmem:[%s1696 + $0x79] sm:$0xff]
        %v1901 = vld [vmem:[%s1696 + $0x81] sm:$0xff]
        %v1902 = vld [vmem:[%s1696 + $0x91] sm:$0xff]
        %v1903 = vld [vmem:[%s1696 + $0x99] sm:$0xff]
        %v1904 = vld [vmem:[%s1696 + $0xa9] sm:$0xff]
        %v1905 = vld [vmem:[%s1696 + $0xb1] sm:$0xff]
        %v1906 = vld [vmem:[%s1696 + $0xc1] sm:$0xff]
        %v1907 = vld [vmem:[%s1696 + $0xc9] sm:$0xff]
        %v1908 = vld [vmem:[%s1696 + $0xd9] sm:$0xff]
        %v1909 = vld [vmem:[%s1696 + $0xe1] sm:$0xff]
        %v1910 = vld [vmem:[%s1696 + $0xf1] sm:$0xff]
        %v1911 = vld [vmem:[%s1696 + $0xf9] sm:$0xff]
        %v1912 = vld [vmem:[%s1696 + $0x109] sm:$0xff]
        %v1913 = vld [vmem:[%s1696 + $0x111] sm:$0xff]
        %v1914 = vld [vmem:[%s1696 + $0x121] sm:$0xff]
        %v1915 = vld [vmem:[%s1696 + $0x129] sm:$0xff]
        %v1916 = vld [vmem:[%s1696 + $0x139] sm:$0xff]
        %v1917 = vld [vmem:[%s1696 + $0x141] sm:$0xff]
        %v1918 = vld [vmem:[%s1696 + $0x151] sm:$0xff]
        %v1919 = vld [vmem:[%s1696 + $0x159] sm:$0xff]
        %v1920 = vld [vmem:[%s1696 + $0x169] sm:$0xff]
        %v1921 = vld [vmem:[%s1696 + $0x171] sm:$0xff]
        %1954 = vrot.lane.b32.xlu0 %v1890, 28
        %v1955 = vpop.permute.xlu0 %1954
        %1956 = vrot.lane.b32.xlu0 %v1891, 28
        %v1957 = vpop.permute.xlu0 %1956
        %1958 = vrot.lane.b32.xlu0 %v1892, 28
        %v1959 = vpop.permute.xlu0 %1958
        %1960 = vrot.lane.b32.xlu0 %v1893, 28
        %v1961 = vpop.permute.xlu0 %1960
        %1962 = vrot.lane.b32.xlu0 %v1894, 28
        %v1963 = vpop.permute.xlu0 %1962
        %1964 = vrot.lane.b32.xlu0 %v1895, 28
        %v1965 = vpop.permute.xlu0 %1964
        %1966 = vrot.lane.b32.xlu0 %v1896, 28
        %v1967 = vpop.permute.xlu0 %1966
        %1968 = vrot.lane.b32.xlu0 %v1897, 28
        %v1969 = vpop.permute.xlu0 %1968
        %1970 = vrot.lane.b32.xlu0 %v1898, 28
        %v1971 = vpop.permute.xlu0 %1970
        %1972 = vrot.lane.b32.xlu0 %v1899, 28
        %v1973 = vpop.permute.xlu0 %1972
        %1974 = vrot.lane.b32.xlu0 %v1900, 28
        %v1975 = vpop.permute.xlu0 %1974
        %1976 = vrot.lane.b32.xlu0 %v1901, 28
        %v1977 = vpop.permute.xlu0 %1976
        %1978 = vrot.lane.b32.xlu0 %v1902, 28
        %v1979 = vpop.permute.xlu0 %1978
        %1980 = vrot.lane.b32.xlu0 %v1903, 28
        %v1981 = vpop.permute.xlu0 %1980
        %1982 = vrot.lane.b32.xlu0 %v1904, 28
        %v1983 = vpop.permute.xlu0 %1982
        %1984 = vrot.lane.b32.xlu0 %v1905, 28
        %v1985 = vpop.permute.xlu0 %1984
        %1986 = vrot.lane.b32.xlu0 %v1906, 28
        %v1987 = vpop.permute.xlu0 %1986
        %1988 = vrot.lane.b32.xlu0 %v1907, 28
        %v1989 = vpop.permute.xlu0 %1988
        %1990 = vrot.lane.b32.xlu0 %v1908, 28
        %v1991 = vpop.permute.xlu0 %1990
        %1992 = vrot.lane.b32.xlu0 %v1909, 28
        %v1993 = vpop.permute.xlu0 %1992
        %1994 = vrot.lane.b32.xlu0 %v1910, 28
        %v1995 = vpop.permute.xlu0 %1994
        %1996 = vrot.lane.b32.xlu0 %v1911, 28
        %v1997 = vpop.permute.xlu0 %1996
        %1998 = vrot.lane.b32.xlu0 %v1912, 28
        %v1999 = vpop.permute.xlu0 %1998
        %2000 = vrot.lane.b32.xlu0 %v1913, 28
        %v2001 = vpop.permute.xlu0 %2000
        %2002 = vrot.lane.b32.xlu0 %v1914, 28
        %v2003 = vpop.permute.xlu0 %2002
        %2004 = vrot.lane.b32.xlu0 %v1915, 28
        %v2005 = vpop.permute.xlu0 %2004
        %2006 = vrot.lane.b32.xlu0 %v1916, 28
        %v2007 = vpop.permute.xlu0 %2006
        %2008 = vrot.lane.b32.xlu0 %v1917, 28
        %v2009 = vpop.permute.xlu0 %2008
        %2010 = vrot.lane.b32.xlu0 %v1918, 28
        %v2011 = vpop.permute.xlu0 %2010
        %2012 = vrot.lane.b32.xlu0 %v1919, 28
        %v2013 = vpop.permute.xlu0 %2012
        %2014 = vrot.lane.b32.xlu0 %v1920, 28
        %v2015 = vpop.permute.xlu0 %2014
        %2016 = vrot.lane.b32.xlu0 %v1921, 28
        %v2017 = vpop.permute.xlu0 %2016
        %vm2050 = vcmask 261344
        %2051 = vst.msk [vmem:[#allocation3] sm:$0xff] %vm2050, %v1955
        %2052 = vst.msk [vmem:[#allocation3 + $0x8] sm:$0xff] %vm2050, %v1957
        %2053 = vst.msk [vmem:[#allocation3 + $0x10] sm:$0xff] %vm2050, %v1959
        %2054 = vst.msk [vmem:[#allocation3 + $0x18] sm:$0xff] %vm2050, %v1961
        %2055 = vst.msk [vmem:[#allocation3 + $0x20] sm:$0xff] %vm2050, %v1963
        %2056 = vst.msk [vmem:[#allocation3 + $0x28] sm:$0xff] %vm2050, %v1965
        %2057 = vst.msk [vmem:[#allocation3 + $0x30] sm:$0xff] %vm2050, %v1967
        %2058 = vst.msk [vmem:[#allocation3 + $0x38] sm:$0xff] %vm2050, %v1969
        %2059 = vst.msk [vmem:[#allocation3 + $0x40] sm:$0xff] %vm2050, %v1971
        %2060 = vst.msk [vmem:[#allocation3 + $0x48] sm:$0xff] %vm2050, %v1973
        %2061 = vst.msk [vmem:[#allocation3 + $0x50] sm:$0xff] %vm2050, %v1975
        %2062 = vst.msk [vmem:[#allocation3 + $0x58] sm:$0xff] %vm2050, %v1977
        %2063 = vst.msk [vmem:[#allocation3 + $0x60] sm:$0xff] %vm2050, %v1979
        %2064 = vst.msk [vmem:[#allocation3 + $0x68] sm:$0xff] %vm2050, %v1981
        %2065 = vst.msk [vmem:[#allocation3 + $0x70] sm:$0xff] %vm2050, %v1983
        %2066 = vst.msk [vmem:[#allocation3 + $0x78] sm:$0xff] %vm2050, %v1985
        %2067 = vst.msk [vmem:[#allocation3 + $0x80] sm:$0xff] %vm2050, %v1987
        %2068 = vst.msk [vmem:[#allocation3 + $0x88] sm:$0xff] %vm2050, %v1989
        %2069 = vst.msk [vmem:[#allocation3 + $0x90] sm:$0xff] %vm2050, %v1991
        %2070 = vst.msk [vmem:[#allocation3 + $0x98] sm:$0xff] %vm2050, %v1993
        %2071 = vst.msk [vmem:[#allocation3 + $0xa0] sm:$0xff] %vm2050, %v1995
        %2072 = vst.msk [vmem:[#allocation3 + $0xa8] sm:$0xff] %vm2050, %v1997
        %2073 = vst.msk [vmem:[#allocation3 + $0xb0] sm:$0xff] %vm2050, %v1999
        %2074 = vst.msk [vmem:[#allocation3 + $0xb8] sm:$0xff] %vm2050, %v2001
        %2075 = vst.msk [vmem:[#allocation3 + $0xc0] sm:$0xff] %vm2050, %v2003
        %2076 = vst.msk [vmem:[#allocation3 + $0xc8] sm:$0xff] %vm2050, %v2005
        %2077 = vst.msk [vmem:[#allocation3 + $0xd0] sm:$0xff] %vm2050, %v2007
        %2078 = vst.msk [vmem:[#allocation3 + $0xd8] sm:$0xff] %vm2050, %v2009
        %2079 = vst.msk [vmem:[#allocation3 + $0xe0] sm:$0xff] %vm2050, %v2011
        %2080 = vst.msk [vmem:[#allocation3 + $0xe8] sm:$0xff] %vm2050, %v2013
        %2081 = vst.msk [vmem:[#allocation3 + $0xf0] sm:$0xff] %vm2050, %v2015
        %2082 = vst.msk [vmem:[#allocation3 + $0xf8] sm:$0xff] %vm2050, %v2017
        %v2083 = vld [vmem:[%s1696 + $0x2] sm:$0xff]
        %v2084 = vld [vmem:[%s1696 + $0xa] sm:$0xff]
        %v2085 = vld [vmem:[%s1696 + $0x1a] sm:$0xff]
        %v2086 = vld [vmem:[%s1696 + $0x22] sm:$0xff]
        %v2087 = vld [vmem:[%s1696 + $0x32] sm:$0xff]
        %v2088 = vld [vmem:[%s1696 + $0x3a] sm:$0xff]
        %v2089 = vld [vmem:[%s1696 + $0x4a] sm:$0xff]
        %v2090 = vld [vmem:[%s1696 + $0x52] sm:$0xff]
        %v2091 = vld [vmem:[%s1696 + $0x62] sm:$0xff]
        %v2092 = vld [vmem:[%s1696 + $0x6a] sm:$0xff]
        %v2093 = vld [vmem:[%s1696 + $0x7a] sm:$0xff]
        %v2094 = vld [vmem:[%s1696 + $0x82] sm:$0xff]
        %v2095 = vld [vmem:[%s1696 + $0x92] sm:$0xff]
        %v2096 = vld [vmem:[%s1696 + $0x9a] sm:$0xff]
        %v2097 = vld [vmem:[%s1696 + $0xaa] sm:$0xff]
        %v2098 = vld [vmem:[%s1696 + $0xb2] sm:$0xff]
        %v2099 = vld [vmem:[%s1696 + $0xc2] sm:$0xff]
        %v2100 = vld [vmem:[%s1696 + $0xca] sm:$0xff]
        %v2101 = vld [vmem:[%s1696 + $0xda] sm:$0xff]
        %v2102 = vld [vmem:[%s1696 + $0xe2] sm:$0xff]
        %v2103 = vld [vmem:[%s1696 + $0xf2] sm:$0xff]
        %v2104 = vld [vmem:[%s1696 + $0xfa] sm:$0xff]
        %v2105 = vld [vmem:[%s1696 + $0x10a] sm:$0xff]
        %v2106 = vld [vmem:[%s1696 + $0x112] sm:$0xff]
        %v2107 = vld [vmem:[%s1696 + $0x122] sm:$0xff]
        %v2108 = vld [vmem:[%s1696 + $0x12a] sm:$0xff]
        %v2109 = vld [vmem:[%s1696 + $0x13a] sm:$0xff]
        %v2110 = vld [vmem:[%s1696 + $0x142] sm:$0xff]
        %v2111 = vld [vmem:[%s1696 + $0x152] sm:$0xff]
        %v2112 = vld [vmem:[%s1696 + $0x15a] sm:$0xff]
        %v2113 = vld [vmem:[%s1696 + $0x16a] sm:$0xff]
        %v2114 = vld [vmem:[%s1696 + $0x172] sm:$0xff]
        %2147 = vrot.lane.b32.xlu0 %v2083, 32
        %v2148 = vpop.permute.xlu0 %2147
        %2149 = vrot.lane.b32.xlu0 %v2084, 32
        %v2150 = vpop.permute.xlu0 %2149
        %2151 = vrot.lane.b32.xlu0 %v2085, 32
        %v2152 = vpop.permute.xlu0 %2151
        %2153 = vrot.lane.b32.xlu0 %v2086, 32
        %v2154 = vpop.permute.xlu0 %2153
        %2155 = vrot.lane.b32.xlu0 %v2087, 32
        %v2156 = vpop.permute.xlu0 %2155
        %2157 = vrot.lane.b32.xlu0 %v2088, 32
        %v2158 = vpop.permute.xlu0 %2157
        %2159 = vrot.lane.b32.xlu0 %v2089, 32
        %v2160 = vpop.permute.xlu0 %2159
        %2161 = vrot.lane.b32.xlu0 %v2090, 32
        %v2162 = vpop.permute.xlu0 %2161
        %2163 = vrot.lane.b32.xlu0 %v2091, 32
        %v2164 = vpop.permute.xlu0 %2163
        %2165 = vrot.lane.b32.xlu0 %v2092, 32
        %v2166 = vpop.permute.xlu0 %2165
        %2167 = vrot.lane.b32.xlu0 %v2093, 32
        %v2168 = vpop.permute.xlu0 %2167
        %2169 = vrot.lane.b32.xlu0 %v2094, 32
        %v2170 = vpop.permute.xlu0 %2169
        %2171 = vrot.lane.b32.xlu0 %v2095, 32
        %v2172 = vpop.permute.xlu0 %2171
        %2173 = vrot.lane.b32.xlu0 %v2096, 32
        %v2174 = vpop.permute.xlu0 %2173
        %2175 = vrot.lane.b32.xlu0 %v2097, 32
        %v2176 = vpop.permute.xlu0 %2175
        %2177 = vrot.lane.b32.xlu0 %v2098, 32
        %v2178 = vpop.permute.xlu0 %2177
        %2179 = vrot.lane.b32.xlu0 %v2099, 32
        %v2180 = vpop.permute.xlu0 %2179
        %2181 = vrot.lane.b32.xlu0 %v2100, 32
        %v2182 = vpop.permute.xlu0 %2181
        %2183 = vrot.lane.b32.xlu0 %v2101, 32
        %v2184 = vpop.permute.xlu0 %2183
        %2185 = vrot.lane.b32.xlu0 %v2102, 32
        %v2186 = vpop.permute.xlu0 %2185
        %2187 = vrot.lane.b32.xlu0 %v2103, 32
        %v2188 = vpop.permute.xlu0 %2187
        %2189 = vrot.lane.b32.xlu0 %v2104, 32
        %v2190 = vpop.permute.xlu0 %2189
        %2191 = vrot.lane.b32.xlu0 %v2105, 32
        %v2192 = vpop.permute.xlu0 %2191
        %2193 = vrot.lane.b32.xlu0 %v2106, 32
        %v2194 = vpop.permute.xlu0 %2193
        %2195 = vrot.lane.b32.xlu0 %v2107, 32
        %v2196 = vpop.permute.xlu0 %2195
        %2197 = vrot.lane.b32.xlu0 %v2108, 32
        %v2198 = vpop.permute.xlu0 %2197
        %2199 = vrot.lane.b32.xlu0 %v2109, 32
        %v2200 = vpop.permute.xlu0 %2199
        %2201 = vrot.lane.b32.xlu0 %v2110, 32
        %v2202 = vpop.permute.xlu0 %2201
        %2203 = vrot.lane.b32.xlu0 %v2111, 32
        %v2204 = vpop.permute.xlu0 %2203
        %2205 = vrot.lane.b32.xlu0 %v2112, 32
        %v2206 = vpop.permute.xlu0 %2205
        %2207 = vrot.lane.b32.xlu0 %v2113, 32
        %v2208 = vpop.permute.xlu0 %2207
        %2209 = vrot.lane.b32.xlu0 %v2114, 32
        %v2210 = vpop.permute.xlu0 %2209
        %vm2243 = vcmask 294144
        %2244 = vst.msk [vmem:[#allocation3] sm:$0xff] %vm2243, %v2148
        %2245 = vst.msk [vmem:[#allocation3 + $0x8] sm:$0xff] %vm2243, %v2150
        %2246 = vst.msk [vmem:[#allocation3 + $0x10] sm:$0xff] %vm2243, %v2152
        %2247 = vst.msk [vmem:[#allocation3 + $0x18] sm:$0xff] %vm2243, %v2154
        %2248 = vst.msk [vmem:[#allocation3 + $0x20] sm:$0xff] %vm2243, %v2156
        %2249 = vst.msk [vmem:[#allocation3 + $0x28] sm:$0xff] %vm2243, %v2158
        %2250 = vst.msk [vmem:[#allocation3 + $0x30] sm:$0xff] %vm2243, %v2160
        %2251 = vst.msk [vmem:[#allocation3 + $0x38] sm:$0xff] %vm2243, %v2162
        %2252 = vst.msk [vmem:[#allocation3 + $0x40] sm:$0xff] %vm2243, %v2164
        %2253 = vst.msk [vmem:[#allocation3 + $0x48] sm:$0xff] %vm2243, %v2166
        %2254 = vst.msk [vmem:[#allocation3 + $0x50] sm:$0xff] %vm2243, %v2168
        %2255 = vst.msk [vmem:[#allocation3 + $0x58] sm:$0xff] %vm2243, %v2170
        %2256 = vst.msk [vmem:[#allocation3 + $0x60] sm:$0xff] %vm2243, %v2172
        %2257 = vst.msk [vmem:[#allocation3 + $0x68] sm:$0xff] %vm2243, %v2174
        %2258 = vst.msk [vmem:[#allocation3 + $0x70] sm:$0xff] %vm2243, %v2176
        %2259 = vst.msk [vmem:[#allocation3 + $0x78] sm:$0xff] %vm2243, %v2178
        %2260 = vst.msk [vmem:[#allocation3 + $0x80] sm:$0xff] %vm2243, %v2180
        %2261 = vst.msk [vmem:[#allocation3 + $0x88] sm:$0xff] %vm2243, %v2182
        %2262 = vst.msk [vmem:[#allocation3 + $0x90] sm:$0xff] %vm2243, %v2184
        %2263 = vst.msk [vmem:[#allocation3 + $0x98] sm:$0xff] %vm2243, %v2186
        %2264 = vst.msk [vmem:[#allocation3 + $0xa0] sm:$0xff] %vm2243, %v2188
        %2265 = vst.msk [vmem:[#allocation3 + $0xa8] sm:$0xff] %vm2243, %v2190
        %2266 = vst.msk [vmem:[#allocation3 + $0xb0] sm:$0xff] %vm2243, %v2192
        %2267 = vst.msk [vmem:[#allocation3 + $0xb8] sm:$0xff] %vm2243, %v2194
        %2268 = vst.msk [vmem:[#allocation3 + $0xc0] sm:$0xff] %vm2243, %v2196
        %2269 = vst.msk [vmem:[#allocation3 + $0xc8] sm:$0xff] %vm2243, %v2198
        %2270 = vst.msk [vmem:[#allocation3 + $0xd0] sm:$0xff] %vm2243, %v2200
        %2271 = vst.msk [vmem:[#allocation3 + $0xd8] sm:$0xff] %vm2243, %v2202
        %2272 = vst.msk [vmem:[#allocation3 + $0xe0] sm:$0xff] %vm2243, %v2204
        %2273 = vst.msk [vmem:[#allocation3 + $0xe8] sm:$0xff] %vm2243, %v2206
        %2274 = vst.msk [vmem:[#allocation3 + $0xf0] sm:$0xff] %vm2243, %v2208
        %2275 = vst.msk [vmem:[#allocation3 + $0xf8] sm:$0xff] %vm2243, %v2210
        %v2276 = vld [vmem:[#allocation3] sm:$0xff]
        %v2277 = vld [vmem:[#allocation3 + $0x8] sm:$0xff]
        %v2278 = vld [vmem:[#allocation3 + $0x10] sm:$0xff]
        %v2279 = vld [vmem:[#allocation3 + $0x18] sm:$0xff]
        %v2280 = vld [vmem:[#allocation3 + $0x20] sm:$0xff]
        %v2281 = vld [vmem:[#allocation3 + $0x28] sm:$0xff]
        %v2282 = vld [vmem:[#allocation3 + $0x30] sm:$0xff]
        %v2283 = vld [vmem:[#allocation3 + $0x38] sm:$0xff]
        %v2284 = vld [vmem:[#allocation3 + $0x40] sm:$0xff]
        %v2285 = vld [vmem:[#allocation3 + $0x48] sm:$0xff]
        %v2286 = vld [vmem:[#allocation3 + $0x50] sm:$0xff]
        %v2287 = vld [vmem:[#allocation3 + $0x58] sm:$0xff]
        %v2288 = vld [vmem:[#allocation3 + $0x60] sm:$0xff]
        %v2289 = vld [vmem:[#allocation3 + $0x68] sm:$0xff]
        %v2290 = vld [vmem:[#allocation3 + $0x70] sm:$0xff]
        %v2291 = vld [vmem:[#allocation3 + $0x78] sm:$0xff]
        %v2292 = vld [vmem:[#allocation3 + $0x80] sm:$0xff]
        %v2293 = vld [vmem:[#allocation3 + $0x88] sm:$0xff]
        %v2294 = vld [vmem:[#allocation3 + $0x90] sm:$0xff]
        %v2295 = vld [vmem:[#allocation3 + $0x98] sm:$0xff]
        %v2296 = vld [vmem:[#allocation3 + $0xa0] sm:$0xff]
        %v2297 = vld [vmem:[#allocation3 + $0xa8] sm:$0xff]
        %v2298 = vld [vmem:[#allocation3 + $0xb0] sm:$0xff]
        %v2299 = vld [vmem:[#allocation3 + $0xb8] sm:$0xff]
        %v2300 = vld [vmem:[#allocation3 + $0xc0] sm:$0xff]
        %v2301 = vld [vmem:[#allocation3 + $0xc8] sm:$0xff]
        %v2302 = vld [vmem:[#allocation3 + $0xd0] sm:$0xff]
        %v2303 = vld [vmem:[#allocation3 + $0xd8] sm:$0xff]
        %v2304 = vld [vmem:[#allocation3 + $0xe0] sm:$0xff]
        %v2305 = vld [vmem:[#allocation3 + $0xe8] sm:$0xff]
        %v2306 = vld [vmem:[#allocation3 + $0xf0] sm:$0xff]
        %v2307 = vld [vmem:[#allocation3 + $0xf8] sm:$0xff]
        %v2308 = vld [vmem:[%s1] sm:$0xff]
        %v2309 = vld [vmem:[%s1 + $0x8] sm:$0xff]
        %v2310 = vld [vmem:[%s1 + $0x10] sm:$0xff]
        %v2311 = vld [vmem:[%s1 + $0x18] sm:$0xff]
        %v2312 = vld [vmem:[%s1 + $0x20] sm:$0xf]
        %v2313 = vld [vmem:[%s2] sm:$0x1]
        %v2315 = vlaneseq
        %v2316 = vshrl.u32 %v2315, 7
        %v2317 = vsub.s32 0, %v2316
        %v2318 = vrot.slane %v2313, %v2317
        %vm2320 = vcmask 293888
        %v2322 = vsel %vm2320, %v2276, 0
        %v2325 = vsel %vm2320, %v2277, 0
        %v2328 = vsel %vm2320, %v2278, 0
        %v2331 = vsel %vm2320, %v2279, 0
        %v2334 = vsel %vm2320, %v2280, 0
        %v2337 = vsel %vm2320, %v2281, 0
        %v2340 = vsel %vm2320, %v2282, 0
        %v2343 = vsel %vm2320, %v2283, 0
        %v2346 = vsel %vm2320, %v2284, 0
        %v2349 = vsel %vm2320, %v2285, 0
        %v2352 = vsel %vm2320, %v2286, 0
        %v2355 = vsel %vm2320, %v2287, 0
        %v2358 = vsel %vm2320, %v2288, 0
        %v2361 = vsel %vm2320, %v2289, 0
        %v2364 = vsel %vm2320, %v2290, 0
        %v2367 = vsel %vm2320, %v2291, 0
        %v2370 = vsel %vm2320, %v2292, 0
        %v2373 = vsel %vm2320, %v2293, 0
        %v2376 = vsel %vm2320, %v2294, 0
        %v2379 = vsel %vm2320, %v2295, 0
        %v2382 = vsel %vm2320, %v2296, 0
        %v2385 = vsel %vm2320, %v2297, 0
        %v2388 = vsel %vm2320, %v2298, 0
        %v2391 = vsel %vm2320, %v2299, 0
        %v2394 = vsel %vm2320, %v2300, 0
        %v2397 = vsel %vm2320, %v2301, 0
        %v2400 = vsel %vm2320, %v2302, 0
        %v2403 = vsel %vm2320, %v2303, 0
        %v2406 = vsel %vm2320, %v2304, 0
        %v2409 = vsel %vm2320, %v2305, 0
        %v2412 = vsel %vm2320, %v2306, 0
        %v2415 = vsel %vm2320, %v2307, 0
        %vm2417 = vcmask 1043456
        %v2419 = vsel %vm2417, %v2312, 0
        %2421 = vmatprep.subr.mxu0 0.0
        %2422 = vmatpush1.msra.mxu0 0.0
        %2423 = vmatprep.subr.mxu0 0.0
        %2424 = vmatpush1.msra.mxu0 0.0
        %2425 = vmatprep.subr.mxu0 0.0
        %2426 = vmatpush1.msra.mxu0 0.0
        %2427 = vmatprep.subr.mxu0 0.0
        %2428 = vmatpush1.msra.mxu0 0.0
        %2429 = vmatprep.subr.mxu0 0.0
        %2430 = vmatpush1.msra.mxu0 0.0
        %2431 = vmatprep.subr.mxu0 0.0
        %2432 = vmatpush1.msra.mxu0 0.0
        %2433 = vmatprep.subr.mxu0 0.0
        %2434 = vmatpush1.msra.mxu0 0.0
        %2435 = vmatprep.subr.mxu0 0.0
        %2436 = vmatpush1.msra.mxu0 0.0
        %2437 = vmatprep.subr.mxu0 0.0
        %2438 = vmatpush1.msra.mxu0 0.0
        %2439 = vmatprep.subr.mxu0 0.0
        %2440 = vmatpush1.msra.mxu0 0.0
        %2441 = vmatprep.subr.mxu0 0.0
        %2442 = vmatpush1.msra.mxu0 0.0
        %2443 = vmatprep.subr.mxu0 0.0
        %2444 = vmatpush1.msra.mxu0 %v2419
        %2445 = vmatprep.subr.mxu0 0.0
        %2446 = vmatpush1.msra.mxu0 %v2311
        %2447 = vmatprep.subr.mxu0 0.0
        %2448 = vmatpush1.msra.mxu0 %v2310
        %2449 = vmatprep.subr.mxu0 0.0
        %2450 = vmatpush1.msra.mxu0 %v2309
        %2451 = vmatprep.subr.mxu0 0.0
        %2452 = vmatpush1.msra.mxu0 %v2308
        %2453 = vmatprep.subr.mxu0 0.0
        %2454 = vmatpush2.msra.mxu0 0.0
        %2455 = vmatprep.subr.mxu0 0.0
        %2456 = vmatpush2.msra.mxu0 0.0
        %2457 = vmatprep.subr.mxu0 0.0
        %2458 = vmatpush2.msra.mxu0 0.0
        %2459 = vmatprep.subr.mxu0 0.0
        %2460 = vmatpush2.msra.mxu0 0.0
        %2461 = vmatprep.subr.mxu0 0.0
        %2462 = vmatpush2.msra.mxu0 0.0
        %2463 = vmatprep.subr.mxu0 0.0
        %2464 = vmatpush2.msra.mxu0 0.0
        %2465 = vmatprep.subr.mxu0 0.0
        %2466 = vmatpush2.msra.mxu0 0.0
        %2467 = vmatprep.subr.mxu0 0.0
        %2468 = vmatpush2.msra.mxu0 0.0
        %2469 = vmatprep.subr.mxu0 0.0
        %2470 = vmatpush2.msra.mxu0 0.0
        %2471 = vmatprep.subr.mxu0 0.0
        %2472 = vmatpush2.msra.mxu0 0.0
        %2473 = vmatprep.subr.mxu0 0.0
        %2474 = vmatpush2.msra.mxu0 0.0
        %2475 = vmatprep.subr.mxu0 0.0
        %2476 = vmatpush2.msra.mxu0 0.0
        %2477 = vmatprep.subr.mxu0 0.0
        %2478 = vmatpush2.msra.mxu0 0.0
        %2479 = vmatprep.subr.mxu0 0.0
        %2480 = vmatpush2.msra.mxu0 0.0
        %2481 = vmatprep.subr.mxu0 0.0
        %2482 = vmatpush2.msra.mxu0 0.0
        %2483 = vmatprep.subr.mxu0 0.0
        %2484 = vmatpush2.msra.mxu0 0.0
        %2485 = vmatprep.mubr.f32.mxu0 0.0
        %2486 = vmatmul.mubr.f32.gmra.mxu0 %v2322
        %v2487 = vpop.f32.mrf.mxu0
        %v2488 = vadd.f32 %v2318, %v2487
        %v2489 = vpop.f32.mrf.mxu0
        %2490 = vmatprep.mubr.f32.mxu0 0.0
        %2491 = vmatmul.mubr.f32.gmra.mxu0 %v2325
        %v2492 = vpop.f32.mrf.mxu0
        %v2493 = vadd.f32 %v2318, %v2492
        %v2494 = vpop.f32.mrf.mxu0
        %2495 = vmatprep.mubr.f32.mxu0 0.0
        %2496 = vmatmul.mubr.f32.gmra.mxu0 %v2328
        %v2497 = vpop.f32.mrf.mxu0
        %v2498 = vadd.f32 %v2318, %v2497
        %v2499 = vpop.f32.mrf.mxu0
        %2500 = vmatprep.mubr.f32.mxu0 0.0
        %2501 = vmatmul.mubr.f32.gmra.mxu0 %v2331
        %v2502 = vpop.f32.mrf.mxu0
        %v2503 = vadd.f32 %v2318, %v2502
        %v2504 = vpop.f32.mrf.mxu0
        %2505 = vmatprep.mubr.f32.mxu0 0.0
        %2506 = vmatmul.mubr.f32.gmra.mxu0 %v2334
        %v2507 = vpop.f32.mrf.mxu0
        %v2508 = vadd.f32 %v2318, %v2507
        %v2509 = vpop.f32.mrf.mxu0
        %2510 = vmatprep.mubr.f32.mxu0 0.0
        %2511 = vmatmul.mubr.f32.gmra.mxu0 %v2337
        %v2512 = vpop.f32.mrf.mxu0
        %v2513 = vadd.f32 %v2318, %v2512
        %v2514 = vpop.f32.mrf.mxu0
        %2515 = vmatprep.mubr.f32.mxu0 0.0
        %2516 = vmatmul.mubr.f32.gmra.mxu0 %v2340
        %v2517 = vpop.f32.mrf.mxu0
        %v2518 = vadd.f32 %v2318, %v2517
        %v2519 = vpop.f32.mrf.mxu0
        %2520 = vmatprep.mubr.f32.mxu0 0.0
        %2521 = vmatmul.mubr.f32.gmra.mxu0 %v2343
        %v2522 = vpop.f32.mrf.mxu0
        %v2523 = vadd.f32 %v2318, %v2522
        %v2524 = vpop.f32.mrf.mxu0
        %2525 = vmatprep.mubr.f32.mxu0 0.0
        %2526 = vmatmul.mubr.f32.gmra.mxu0 %v2346
        %v2527 = vpop.f32.mrf.mxu0
        %v2528 = vadd.f32 %v2318, %v2527
        %v2529 = vpop.f32.mrf.mxu0
        %2530 = vmatprep.mubr.f32.mxu0 0.0
        %2531 = vmatmul.mubr.f32.gmra.mxu0 %v2349
        %v2532 = vpop.f32.mrf.mxu0
        %v2533 = vadd.f32 %v2318, %v2532
        %v2534 = vpop.f32.mrf.mxu0
        %2535 = vmatprep.mubr.f32.mxu0 0.0
        %2536 = vmatmul.mubr.f32.gmra.mxu0 %v2352
        %v2537 = vpop.f32.mrf.mxu0
        %v2538 = vadd.f32 %v2318, %v2537
        %v2539 = vpop.f32.mrf.mxu0
        %2540 = vmatprep.mubr.f32.mxu0 0.0
        %2541 = vmatmul.mubr.f32.gmra.mxu0 %v2355
        %v2542 = vpop.f32.mrf.mxu0
        %v2543 = vadd.f32 %v2318, %v2542
        %v2544 = vpop.f32.mrf.mxu0
        %2545 = vmatprep.mubr.f32.mxu0 0.0
        %2546 = vmatmul.mubr.f32.gmra.mxu0 %v2358
        %v2547 = vpop.f32.mrf.mxu0
        %v2548 = vadd.f32 %v2318, %v2547
        %v2549 = vpop.f32.mrf.mxu0
        %2550 = vmatprep.mubr.f32.mxu0 0.0
        %2551 = vmatmul.mubr.f32.gmra.mxu0 %v2361
        %v2552 = vpop.f32.mrf.mxu0
        %v2553 = vadd.f32 %v2318, %v2552
        %v2554 = vpop.f32.mrf.mxu0
        %2555 = vmatprep.mubr.f32.mxu0 0.0
        %2556 = vmatmul.mubr.f32.gmra.mxu0 %v2364
        %v2557 = vpop.f32.mrf.mxu0
        %v2558 = vadd.f32 %v2318, %v2557
        %v2559 = vpop.f32.mrf.mxu0
        %2560 = vmatprep.mubr.f32.mxu0 0.0
        %2561 = vmatmul.mubr.f32.gmra.mxu0 %v2367
        %v2562 = vpop.f32.mrf.mxu0
        %v2563 = vadd.f32 %v2318, %v2562
        %v2564 = vpop.f32.mrf.mxu0
        %2565 = vmatprep.mubr.f32.mxu0 0.0
        %2566 = vmatmul.mubr.f32.gmra.mxu0 %v2370
        %v2567 = vpop.f32.mrf.mxu0
        %v2568 = vadd.f32 %v2318, %v2567
        %v2569 = vpop.f32.mrf.mxu0
        %2570 = vmatprep.mubr.f32.mxu0 0.0
        %2571 = vmatmul.mubr.f32.gmra.mxu0 %v2373
        %v2572 = vpop.f32.mrf.mxu0
        %v2573 = vadd.f32 %v2318, %v2572
        %v2574 = vpop.f32.mrf.mxu0
        %2575 = vmatprep.mubr.f32.mxu0 0.0
        %2576 = vmatmul.mubr.f32.gmra.mxu0 %v2376
        %v2577 = vpop.f32.mrf.mxu0
        %v2578 = vadd.f32 %v2318, %v2577
        %v2579 = vpop.f32.mrf.mxu0
        %2580 = vmatprep.mubr.f32.mxu0 0.0
        %2581 = vmatmul.mubr.f32.gmra.mxu0 %v2379
        %v2582 = vpop.f32.mrf.mxu0
        %v2583 = vadd.f32 %v2318, %v2582
        %v2584 = vpop.f32.mrf.mxu0
        %2585 = vmatprep.mubr.f32.mxu0 0.0
        %2586 = vmatmul.mubr.f32.gmra.mxu0 %v2382
        %v2587 = vpop.f32.mrf.mxu0
        %v2588 = vadd.f32 %v2318, %v2587
        %v2589 = vpop.f32.mrf.mxu0
        %2590 = vmatprep.mubr.f32.mxu0 0.0
        %2591 = vmatmul.mubr.f32.gmra.mxu0 %v2385
        %v2592 = vpop.f32.mrf.mxu0
        %v2593 = vadd.f32 %v2318, %v2592
        %v2594 = vpop.f32.mrf.mxu0
        %2595 = vmatprep.mubr.f32.mxu0 0.0
        %2596 = vmatmul.mubr.f32.gmra.mxu0 %v2388
        %v2597 = vpop.f32.mrf.mxu0
        %v2598 = vadd.f32 %v2318, %v2597
        %v2599 = vpop.f32.mrf.mxu0
        %2600 = vmatprep.mubr.f32.mxu0 0.0
        %2601 = vmatmul.mubr.f32.gmra.mxu0 %v2391
        %v2602 = vpop.f32.mrf.mxu0
        %v2603 = vadd.f32 %v2318, %v2602
        %v2604 = vpop.f32.mrf.mxu0
        %2605 = vmatprep.mubr.f32.mxu0 0.0
        %2606 = vmatmul.mubr.f32.gmra.mxu0 %v2394
        %v2607 = vpop.f32.mrf.mxu0
        %v2608 = vadd.f32 %v2318, %v2607
        %v2609 = vpop.f32.mrf.mxu0
        %2610 = vmatprep.mubr.f32.mxu0 0.0
        %2611 = vmatmul.mubr.f32.gmra.mxu0 %v2397
        %v2612 = vpop.f32.mrf.mxu0
        %v2613 = vadd.f32 %v2318, %v2612
        %v2614 = vpop.f32.mrf.mxu0
        %2615 = vmatprep.mubr.f32.mxu0 0.0
        %2616 = vmatmul.mubr.f32.gmra.mxu0 %v2400
        %v2617 = vpop.f32.mrf.mxu0
        %v2618 = vadd.f32 %v2318, %v2617
        %v2619 = vpop.f32.mrf.mxu0
        %2620 = vmatprep.mubr.f32.mxu0 0.0
        %2621 = vmatmul.mubr.f32.gmra.mxu0 %v2403
        %v2622 = vpop.f32.mrf.mxu0
        %v2623 = vadd.f32 %v2318, %v2622
        %v2624 = vpop.f32.mrf.mxu0
        %2625 = vmatprep.mubr.f32.mxu0 0.0
        %2626 = vmatmul.mubr.f32.gmra.mxu0 %v2406
        %v2627 = vpop.f32.mrf.mxu0
        %v2628 = vadd.f32 %v2318, %v2627
        %v2629 = vpop.f32.mrf.mxu0
        %2630 = vmatprep.mubr.f32.mxu0 0.0
        %2631 = vmatmul.mubr.f32.gmra.mxu0 %v2409
        %v2632 = vpop.f32.mrf.mxu0
        %v2633 = vadd.f32 %v2318, %v2632
        %v2634 = vpop.f32.mrf.mxu0
        %2635 = vmatprep.mubr.f32.mxu0 0.0
        %2636 = vmatmul.mubr.f32.gmra.mxu0 %v2412
        %v2637 = vpop.f32.mrf.mxu0
        %v2638 = vadd.f32 %v2318, %v2637
        %v2639 = vpop.f32.mrf.mxu0
        %2640 = vmatprep.mubr.f32.mxu0 0.0
        %2641 = vmatmul.mubr.f32.gmra.mxu0 %v2415
        %v2642 = vpop.f32.mrf.mxu0
        %v2643 = vadd.f32 %v2318, %v2642
        %v2644 = vpop.f32.mrf.mxu0
        %2645 = vdwg.mxu0
        %v2646 = vmax.f32 %v2488, 0.0
        %v2647 = vmax.f32 %v2493, 0.0
        %v2648 = vmax.f32 %v2498, 0.0
        %v2649 = vmax.f32 %v2503, 0.0
        %v2650 = vmax.f32 %v2508, 0.0
        %v2651 = vmax.f32 %v2513, 0.0
        %v2652 = vmax.f32 %v2518, 0.0
        %v2653 = vmax.f32 %v2523, 0.0
        %v2654 = vmax.f32 %v2528, 0.0
        %v2655 = vmax.f32 %v2533, 0.0
        %v2656 = vmax.f32 %v2538, 0.0
        %v2657 = vmax.f32 %v2543, 0.0
        %v2658 = vmax.f32 %v2548, 0.0
        %v2659 = vmax.f32 %v2553, 0.0
        %v2660 = vmax.f32 %v2558, 0.0
        %v2661 = vmax.f32 %v2563, 0.0
        %v2662 = vmax.f32 %v2568, 0.0
        %v2663 = vmax.f32 %v2573, 0.0
        %v2664 = vmax.f32 %v2578, 0.0
        %v2665 = vmax.f32 %v2583, 0.0
        %v2666 = vmax.f32 %v2588, 0.0
        %v2667 = vmax.f32 %v2593, 0.0
        %v2668 = vmax.f32 %v2598, 0.0
        %v2669 = vmax.f32 %v2603, 0.0
        %v2670 = vmax.f32 %v2608, 0.0
        %v2671 = vmax.f32 %v2613, 0.0
        %v2672 = vmax.f32 %v2618, 0.0
        %v2673 = vmax.f32 %v2623, 0.0
        %v2674 = vmax.f32 %v2628, 0.0
        %v2675 = vmax.f32 %v2633, 0.0
        %v2676 = vmax.f32 %v2638, 0.0
        %v2677 = vmax.f32 %v2643, 0.0
        %vm2678 = vcmask 64512
        %2679 = vst.msk [vmem:[#allocation4] sm:$0xff] %vm2678, 0.0
        %2680 = vst.msk [vmem:[#allocation4 + $0x8] sm:$0xff] %vm2678, 0.0
        %vm2681 = vcmask 58368
        %2682 = vst.msk [vmem:[#allocation4 + $0x10] sm:$0x3] %vm2681, 0.0
        %2683 = vst.msk [vmem:[#allocation4 + $0x18] sm:$0xff] %vm2678, 0.0
        %2684 = vst.msk [vmem:[#allocation4 + $0x20] sm:$0xff] %vm2678, 0.0
        %2685 = vst.msk [vmem:[#allocation4 + $0x28] sm:$0x3] %vm2681, 0.0
        %2686 = vst.msk [vmem:[#allocation4 + $0x30] sm:$0xff] %vm2678, 0.0
        %2687 = vst.msk [vmem:[#allocation4 + $0x38] sm:$0xff] %vm2678, 0.0
        %2688 = vst.msk [vmem:[#allocation4 + $0x40] sm:$0x3] %vm2681, 0.0
        %2689 = vst.msk [vmem:[#allocation4 + $0x48] sm:$0xff] %vm2678, 0.0
        %2690 = vst.msk [vmem:[#allocation4 + $0x50] sm:$0xff] %vm2678, 0.0
        %2691 = vst.msk [vmem:[#allocation4 + $0x58] sm:$0x3] %vm2681, 0.0
        %2692 = vst.msk [vmem:[#allocation4 + $0x60] sm:$0xff] %vm2678, 0.0
        %2693 = vst.msk [vmem:[#allocation4 + $0x68] sm:$0xff] %vm2678, 0.0
        %2694 = vst.msk [vmem:[#allocation4 + $0x70] sm:$0x3] %vm2681, 0.0
        %2695 = vst.msk [vmem:[#allocation4 + $0x78] sm:$0xff] %vm2678, 0.0
        %2696 = vst.msk [vmem:[#allocation4 + $0x80] sm:$0xff] %vm2678, 0.0
        %2697 = vst.msk [vmem:[#allocation4 + $0x88] sm:$0x3] %vm2681, 0.0
        %2698 = vst.msk [vmem:[#allocation4 + $0x90] sm:$0xff] %vm2678, 0.0
        %2699 = vst.msk [vmem:[#allocation4 + $0x98] sm:$0xff] %vm2678, 0.0
        %2700 = vst.msk [vmem:[#allocation4 + $0xa0] sm:$0x3] %vm2681, 0.0
        %2701 = vst.msk [vmem:[#allocation4 + $0xa8] sm:$0xff] %vm2678, 0.0
        %2702 = vst.msk [vmem:[#allocation4 + $0xb0] sm:$0xff] %vm2678, 0.0
        %2703 = vst.msk [vmem:[#allocation4 + $0xb8] sm:$0x3] %vm2681, 0.0
        %2704 = vst.msk [vmem:[#allocation4 + $0xc0] sm:$0xff] %vm2678, 0.0
        %2705 = vst.msk [vmem:[#allocation4 + $0xc8] sm:$0xff] %vm2678, 0.0
        %2706 = vst.msk [vmem:[#allocation4 + $0xd0] sm:$0x3] %vm2681, 0.0
        %2707 = vst.msk [vmem:[#allocation4 + $0xd8] sm:$0xff] %vm2678, 0.0
        %2708 = vst.msk [vmem:[#allocation4 + $0xe0] sm:$0xff] %vm2678, 0.0
        %2709 = vst.msk [vmem:[#allocation4 + $0xe8] sm:$0x3] %vm2681, 0.0
        %2710 = vst.msk [vmem:[#allocation4 + $0xf0] sm:$0xff] %vm2678, 0.0
        %2711 = vst.msk [vmem:[#allocation4 + $0xf8] sm:$0xff] %vm2678, 0.0
        %2712 = vst.msk [vmem:[#allocation4 + $0x100] sm:$0x3] %vm2681, 0.0
        %2713 = vst.msk [vmem:[#allocation4 + $0x108] sm:$0xff] %vm2678, 0.0
        %2714 = vst.msk [vmem:[#allocation4 + $0x110] sm:$0xff] %vm2678, 0.0
        %2715 = vst.msk [vmem:[#allocation4 + $0x118] sm:$0x3] %vm2681, 0.0
        %2716 = vst.msk [vmem:[#allocation4 + $0x120] sm:$0xff] %vm2678, 0.0
        %2717 = vst.msk [vmem:[#allocation4 + $0x128] sm:$0xff] %vm2678, 0.0
        %2718 = vst.msk [vmem:[#allocation4 + $0x130] sm:$0x3] %vm2681, 0.0
        %2719 = vst.msk [vmem:[#allocation4 + $0x138] sm:$0xff] %vm2678, 0.0
        %2720 = vst.msk [vmem:[#allocation4 + $0x140] sm:$0xff] %vm2678, 0.0
        %2721 = vst.msk [vmem:[#allocation4 + $0x148] sm:$0x3] %vm2681, 0.0
        %2722 = vst.msk [vmem:[#allocation4 + $0x150] sm:$0xff] %vm2678, 0.0
        %2723 = vst.msk [vmem:[#allocation4 + $0x158] sm:$0xff] %vm2678, 0.0
        %2724 = vst.msk [vmem:[#allocation4 + $0x160] sm:$0x3] %vm2681, 0.0
        %2725 = vst.msk [vmem:[#allocation4 + $0x168] sm:$0xff] %vm2678, 0.0
        %2726 = vst.msk [vmem:[#allocation4 + $0x170] sm:$0xff] %vm2678, 0.0
        %2727 = vst.msk [vmem:[#allocation4 + $0x178] sm:$0x3] %vm2681, 0.0
        %2728 = vst.msk [vmem:[#allocation4 + $0x180] sm:$0xff] %vm2678, 0.0
        %2729 = vst.msk [vmem:[#allocation4 + $0x188] sm:$0xff] %vm2678, 0.0
        %2730 = vst.msk [vmem:[#allocation4 + $0x190] sm:$0x3] %vm2681, 0.0
        %2731 = vst.msk [vmem:[#allocation4 + $0x198] sm:$0xff] %vm2678, 0.0
        %2732 = vst.msk [vmem:[#allocation4 + $0x1a0] sm:$0xff] %vm2678, 0.0
        %2733 = vst.msk [vmem:[#allocation4 + $0x1a8] sm:$0x3] %vm2681, 0.0
        %s2734 = scalar_lea.vmem [#allocation4], 24
        %2735 = vst.msk [vmem:[%s2734 + $0x1] sm:$0xff] %vm2678, %v2646
        %2736 = vst.msk [vmem:[%s2734 + $0x9] sm:$0xff] %vm2678, %v2647
        %2737 = vst.msk [vmem:[%s2734 + $0x19] sm:$0xff] %vm2678, %v2648
        %2738 = vst.msk [vmem:[%s2734 + $0x21] sm:$0xff] %vm2678, %v2649
        %2739 = vst.msk [vmem:[%s2734 + $0x31] sm:$0xff] %vm2678, %v2650
        %2740 = vst.msk [vmem:[%s2734 + $0x39] sm:$0xff] %vm2678, %v2651
        %2741 = vst.msk [vmem:[%s2734 + $0x49] sm:$0xff] %vm2678, %v2652
        %2742 = vst.msk [vmem:[%s2734 + $0x51] sm:$0xff] %vm2678, %v2653
        %2743 = vst.msk [vmem:[%s2734 + $0x61] sm:$0xff] %vm2678, %v2654
        %2744 = vst.msk [vmem:[%s2734 + $0x69] sm:$0xff] %vm2678, %v2655
        %2745 = vst.msk [vmem:[%s2734 + $0x79] sm:$0xff] %vm2678, %v2656
        %2746 = vst.msk [vmem:[%s2734 + $0x81] sm:$0xff] %vm2678, %v2657
        %2747 = vst.msk [vmem:[%s2734 + $0x91] sm:$0xff] %vm2678, %v2658
        %2748 = vst.msk [vmem:[%s2734 + $0x99] sm:$0xff] %vm2678, %v2659
        %2749 = vst.msk [vmem:[%s2734 + $0xa9] sm:$0xff] %vm2678, %v2660
        %2750 = vst.msk [vmem:[%s2734 + $0xb1] sm:$0xff] %vm2678, %v2661
        %2751 = vst.msk [vmem:[%s2734 + $0xc1] sm:$0xff] %vm2678, %v2662
        %2752 = vst.msk [vmem:[%s2734 + $0xc9] sm:$0xff] %vm2678, %v2663
        %2753 = vst.msk [vmem:[%s2734 + $0xd9] sm:$0xff] %vm2678, %v2664
        %2754 = vst.msk [vmem:[%s2734 + $0xe1] sm:$0xff] %vm2678, %v2665
        %2755 = vst.msk [vmem:[%s2734 + $0xf1] sm:$0xff] %vm2678, %v2666
        %2756 = vst.msk [vmem:[%s2734 + $0xf9] sm:$0xff] %vm2678, %v2667
        %2757 = vst.msk [vmem:[%s2734 + $0x109] sm:$0xff] %vm2678, %v2668
        %2758 = vst.msk [vmem:[%s2734 + $0x111] sm:$0xff] %vm2678, %v2669
        %2759 = vst.msk [vmem:[%s2734 + $0x121] sm:$0xff] %vm2678, %v2670
        %2760 = vst.msk [vmem:[%s2734 + $0x129] sm:$0xff] %vm2678, %v2671
        %2761 = vst.msk [vmem:[%s2734 + $0x139] sm:$0xff] %vm2678, %v2672
        %2762 = vst.msk [vmem:[%s2734 + $0x141] sm:$0xff] %vm2678, %v2673
        %2763 = vst.msk [vmem:[%s2734 + $0x151] sm:$0xff] %vm2678, %v2674
        %2764 = vst.msk [vmem:[%s2734 + $0x159] sm:$0xff] %vm2678, %v2675
        %2765 = vst.msk [vmem:[%s2734 + $0x169] sm:$0xff] %vm2678, %v2676
        %2766 = vst.msk [vmem:[%s2734 + $0x171] sm:$0xff] %vm2678, %v2677
        %v2767 = vld [vmem:[#allocation4] sm:$0xff]
        %v2768 = vld [vmem:[#allocation4 + $0x8] sm:$0xff]
        %v2769 = vld [vmem:[#allocation4 + $0x18] sm:$0xff]
        %v2770 = vld [vmem:[#allocation4 + $0x20] sm:$0xff]
        %v2771 = vld [vmem:[#allocation4 + $0x30] sm:$0xff]
        %v2772 = vld [vmem:[#allocation4 + $0x38] sm:$0xff]
        %v2773 = vld [vmem:[#allocation4 + $0x48] sm:$0xff]
        %v2774 = vld [vmem:[#allocation4 + $0x50] sm:$0xff]
        %v2775 = vld [vmem:[#allocation4 + $0x60] sm:$0xff]
        %v2776 = vld [vmem:[#allocation4 + $0x68] sm:$0xff]
        %v2777 = vld [vmem:[#allocation4 + $0x78] sm:$0xff]
        %v2778 = vld [vmem:[#allocation4 + $0x80] sm:$0xff]
        %v2779 = vld [vmem:[#allocation4 + $0x90] sm:$0xff]
        %v2780 = vld [vmem:[#allocation4 + $0x98] sm:$0xff]
        %v2781 = vld [vmem:[#allocation4 + $0xa8] sm:$0xff]
        %v2782 = vld [vmem:[#allocation4 + $0xb0] sm:$0xff]
        %v2783 = vld [vmem:[#allocation4 + $0xc0] sm:$0xff]
        %v2784 = vld [vmem:[#allocation4 + $0xc8] sm:$0xff]
        %v2785 = vld [vmem:[#allocation4 + $0xd8] sm:$0xff]
        %v2786 = vld [vmem:[#allocation4 + $0xe0] sm:$0xff]
        %v2787 = vld [vmem:[#allocation4 + $0xf0] sm:$0xff]
        %v2788 = vld [vmem:[#allocation4 + $0xf8] sm:$0xff]
        %v2789 = vld [vmem:[#allocation4 + $0x108] sm:$0xff]
        %v2790 = vld [vmem:[#allocation4 + $0x110] sm:$0xff]
        %v2791 = vld [vmem:[#allocation4 + $0x120] sm:$0xff]
        %v2792 = vld [vmem:[#allocation4 + $0x128] sm:$0xff]
        %v2793 = vld [vmem:[#allocation4 + $0x138] sm:$0xff]
        %v2794 = vld [vmem:[#allocation4 + $0x140] sm:$0xff]
        %v2795 = vld [vmem:[#allocation4 + $0x150] sm:$0xff]
        %v2796 = vld [vmem:[#allocation4 + $0x158] sm:$0xff]
        %v2797 = vld [vmem:[#allocation4 + $0x168] sm:$0xff]
        %v2798 = vld [vmem:[#allocation4 + $0x170] sm:$0xff]
        %2799 = vst.msk [vmem:[#allocation5] sm:$0xff] %vm2678, %v2767
        %2800 = vst.msk [vmem:[#allocation5 + $0x8] sm:$0xff] %vm2678, %v2768
        %2801 = vst.msk [vmem:[#allocation5 + $0x10] sm:$0xff] %vm2678, %v2769
        %2802 = vst.msk [vmem:[#allocation5 + $0x18] sm:$0xff] %vm2678, %v2770
        %2803 = vst.msk [vmem:[#allocation5 + $0x20] sm:$0xff] %vm2678, %v2771
        %2804 = vst.msk [vmem:[#allocation5 + $0x28] sm:$0xff] %vm2678, %v2772
        %2805 = vst.msk [vmem:[#allocation5 + $0x30] sm:$0xff] %vm2678, %v2773
        %2806 = vst.msk [vmem:[#allocation5 + $0x38] sm:$0xff] %vm2678, %v2774
        %2807 = vst.msk [vmem:[#allocation5 + $0x40] sm:$0xff] %vm2678, %v2775
        %2808 = vst.msk [vmem:[#allocation5 + $0x48] sm:$0xff] %vm2678, %v2776
        %2809 = vst.msk [vmem:[#allocation5 + $0x50] sm:$0xff] %vm2678, %v2777
        %2810 = vst.msk [vmem:[#allocation5 + $0x58] sm:$0xff] %vm2678, %v2778
        %2811 = vst.msk [vmem:[#allocation5 + $0x60] sm:$0xff] %vm2678, %v2779
        %2812 = vst.msk [vmem:[#allocation5 + $0x68] sm:$0xff] %vm2678, %v2780
        %2813 = vst.msk [vmem:[#allocation5 + $0x70] sm:$0xff] %vm2678, %v2781
        %2814 = vst.msk [vmem:[#allocation5 + $0x78] sm:$0xff] %vm2678, %v2782
        %2815 = vst.msk [vmem:[#allocation5 + $0x80] sm:$0xff] %vm2678, %v2783
        %2816 = vst.msk [vmem:[#allocation5 + $0x88] sm:$0xff] %vm2678, %v2784
        %2817 = vst.msk [vmem:[#allocation5 + $0x90] sm:$0xff] %vm2678, %v2785
        %2818 = vst.msk [vmem:[#allocation5 + $0x98] sm:$0xff] %vm2678, %v2786
        %2819 = vst.msk [vmem:[#allocation5 + $0xa0] sm:$0xff] %vm2678, %v2787
        %2820 = vst.msk [vmem:[#allocation5 + $0xa8] sm:$0xff] %vm2678, %v2788
        %2821 = vst.msk [vmem:[#allocation5 + $0xb0] sm:$0xff] %vm2678, %v2789
        %2822 = vst.msk [vmem:[#allocation5 + $0xb8] sm:$0xff] %vm2678, %v2790
        %2823 = vst.msk [vmem:[#allocation5 + $0xc0] sm:$0xff] %vm2678, %v2791
        %2824 = vst.msk [vmem:[#allocation5 + $0xc8] sm:$0xff] %vm2678, %v2792
        %2825 = vst.msk [vmem:[#allocation5 + $0xd0] sm:$0xff] %vm2678, %v2793
        %2826 = vst.msk [vmem:[#allocation5 + $0xd8] sm:$0xff] %vm2678, %v2794
        %2827 = vst.msk [vmem:[#allocation5 + $0xe0] sm:$0xff] %vm2678, %v2795
        %2828 = vst.msk [vmem:[#allocation5 + $0xe8] sm:$0xff] %vm2678, %v2796
        %2829 = vst.msk [vmem:[#allocation5 + $0xf0] sm:$0xff] %vm2678, %v2797
        %2830 = vst.msk [vmem:[#allocation5 + $0xf8] sm:$0xff] %vm2678, %v2798
        %v2831 = vld [vmem:[#allocation4 + $0x1] sm:$0xff]
        %v2832 = vld [vmem:[#allocation4 + $0x9] sm:$0xff]
        %v2833 = vld [vmem:[#allocation4 + $0x19] sm:$0xff]
        %v2834 = vld [vmem:[#allocation4 + $0x21] sm:$0xff]
        %v2835 = vld [vmem:[#allocation4 + $0x31] sm:$0xff]
        %v2836 = vld [vmem:[#allocation4 + $0x39] sm:$0xff]
        %v2837 = vld [vmem:[#allocation4 + $0x49] sm:$0xff]
        %v2838 = vld [vmem:[#allocation4 + $0x51] sm:$0xff]
        %v2839 = vld [vmem:[#allocation4 + $0x61] sm:$0xff]
        %v2840 = vld [vmem:[#allocation4 + $0x69] sm:$0xff]
        %v2841 = vld [vmem:[#allocation4 + $0x79] sm:$0xff]
        %v2842 = vld [vmem:[#allocation4 + $0x81] sm:$0xff]
        %v2843 = vld [vmem:[#allocation4 + $0x91] sm:$0xff]
        %v2844 = vld [vmem:[#allocation4 + $0x99] sm:$0xff]
        %v2845 = vld [vmem:[#allocation4 + $0xa9] sm:$0xff]
        %v2846 = vld [vmem:[#allocation4 + $0xb1] sm:$0xff]
        %v2847 = vld [vmem:[#allocation4 + $0xc1] sm:$0xff]
        %v2848 = vld [vmem:[#allocation4 + $0xc9] sm:$0xff]
        %v2849 = vld [vmem:[#allocation4 + $0xd9] sm:$0xff]
        %v2850 = vld [vmem:[#allocation4 + $0xe1] sm:$0xff]
        %v2851 = vld [vmem:[#allocation4 + $0xf1] sm:$0xff]
        %v2852 = vld [vmem:[#allocation4 + $0xf9] sm:$0xff]
        %v2853 = vld [vmem:[#allocation4 + $0x109] sm:$0xff]
        %v2854 = vld [vmem:[#allocation4 + $0x111] sm:$0xff]
        %v2855 = vld [vmem:[#allocation4 + $0x121] sm:$0xff]
        %v2856 = vld [vmem:[#allocation4 + $0x129] sm:$0xff]
        %v2857 = vld [vmem:[#allocation4 + $0x139] sm:$0xff]
        %v2858 = vld [vmem:[#allocation4 + $0x141] sm:$0xff]
        %v2859 = vld [vmem:[#allocation4 + $0x151] sm:$0xff]
        %v2860 = vld [vmem:[#allocation4 + $0x159] sm:$0xff]
        %v2861 = vld [vmem:[#allocation4 + $0x169] sm:$0xff]
        %v2862 = vld [vmem:[#allocation4 + $0x171] sm:$0xff]
        %2895 = vrot.lane.b32.xlu0 %v2831, 8
        %v2896 = vpop.permute.xlu0 %2895
        %2897 = vrot.lane.b32.xlu0 %v2832, 8
        %v2898 = vpop.permute.xlu0 %2897
        %2899 = vrot.lane.b32.xlu0 %v2833, 8
        %v2900 = vpop.permute.xlu0 %2899
        %2901 = vrot.lane.b32.xlu0 %v2834, 8
        %v2902 = vpop.permute.xlu0 %2901
        %2903 = vrot.lane.b32.xlu0 %v2835, 8
        %v2904 = vpop.permute.xlu0 %2903
        %2905 = vrot.lane.b32.xlu0 %v2836, 8
        %v2906 = vpop.permute.xlu0 %2905
        %2907 = vrot.lane.b32.xlu0 %v2837, 8
        %v2908 = vpop.permute.xlu0 %2907
        %2909 = vrot.lane.b32.xlu0 %v2838, 8
        %v2910 = vpop.permute.xlu0 %2909
        %2911 = vrot.lane.b32.xlu0 %v2839, 8
        %v2912 = vpop.permute.xlu0 %2911
        %2913 = vrot.lane.b32.xlu0 %v2840, 8
        %v2914 = vpop.permute.xlu0 %2913
        %2915 = vrot.lane.b32.xlu0 %v2841, 8
        %v2916 = vpop.permute.xlu0 %2915
        %2917 = vrot.lane.b32.xlu0 %v2842, 8
        %v2918 = vpop.permute.xlu0 %2917
        %2919 = vrot.lane.b32.xlu0 %v2843, 8
        %v2920 = vpop.permute.xlu0 %2919
        %2921 = vrot.lane.b32.xlu0 %v2844, 8
        %v2922 = vpop.permute.xlu0 %2921
        %2923 = vrot.lane.b32.xlu0 %v2845, 8
        %v2924 = vpop.permute.xlu0 %2923
        %2925 = vrot.lane.b32.xlu0 %v2846, 8
        %v2926 = vpop.permute.xlu0 %2925
        %2927 = vrot.lane.b32.xlu0 %v2847, 8
        %v2928 = vpop.permute.xlu0 %2927
        %2929 = vrot.lane.b32.xlu0 %v2848, 8
        %v2930 = vpop.permute.xlu0 %2929
        %2931 = vrot.lane.b32.xlu0 %v2849, 8
        %v2932 = vpop.permute.xlu0 %2931
        %2933 = vrot.lane.b32.xlu0 %v2850, 8
        %v2934 = vpop.permute.xlu0 %2933
        %2935 = vrot.lane.b32.xlu0 %v2851, 8
        %v2936 = vpop.permute.xlu0 %2935
        %2937 = vrot.lane.b32.xlu0 %v2852, 8
        %v2938 = vpop.permute.xlu0 %2937
        %2939 = vrot.lane.b32.xlu0 %v2853, 8
        %v2940 = vpop.permute.xlu0 %2939
        %2941 = vrot.lane.b32.xlu0 %v2854, 8
        %v2942 = vpop.permute.xlu0 %2941
        %2943 = vrot.lane.b32.xlu0 %v2855, 8
        %v2944 = vpop.permute.xlu0 %2943
        %2945 = vrot.lane.b32.xlu0 %v2856, 8
        %v2946 = vpop.permute.xlu0 %2945
        %2947 = vrot.lane.b32.xlu0 %v2857, 8
        %v2948 = vpop.permute.xlu0 %2947
        %2949 = vrot.lane.b32.xlu0 %v2858, 8
        %v2950 = vpop.permute.xlu0 %2949
        %2951 = vrot.lane.b32.xlu0 %v2859, 8
        %v2952 = vpop.permute.xlu0 %2951
        %2953 = vrot.lane.b32.xlu0 %v2860, 8
        %v2954 = vpop.permute.xlu0 %2953
        %2955 = vrot.lane.b32.xlu0 %v2861, 8
        %v2956 = vpop.permute.xlu0 %2955
        %2957 = vrot.lane.b32.xlu0 %v2862, 8
        %v2958 = vpop.permute.xlu0 %2957
        %vm2991 = vcmask 130112
        %2992 = vst.msk [vmem:[#allocation5] sm:$0xff] %vm2991, %v2896
        %2993 = vst.msk [vmem:[#allocation5 + $0x8] sm:$0xff] %vm2991, %v2898
        %2994 = vst.msk [vmem:[#allocation5 + $0x10] sm:$0xff] %vm2991, %v2900
        %2995 = vst.msk [vmem:[#allocation5 + $0x18] sm:$0xff] %vm2991, %v2902
        %2996 = vst.msk [vmem:[#allocation5 + $0x20] sm:$0xff] %vm2991, %v2904
        %2997 = vst.msk [vmem:[#allocation5 + $0x28] sm:$0xff] %vm2991, %v2906
        %2998 = vst.msk [vmem:[#allocation5 + $0x30] sm:$0xff] %vm2991, %v2908
        %2999 = vst.msk [vmem:[#allocation5 + $0x38] sm:$0xff] %vm2991, %v2910
        %3000 = vst.msk [vmem:[#allocation5 + $0x40] sm:$0xff] %vm2991, %v2912
        %3001 = vst.msk [vmem:[#allocation5 + $0x48] sm:$0xff] %vm2991, %v2914
        %3002 = vst.msk [vmem:[#allocation5 + $0x50] sm:$0xff] %vm2991, %v2916
        %3003 = vst.msk [vmem:[#allocation5 + $0x58] sm:$0xff] %vm2991, %v2918
        %3004 = vst.msk [vmem:[#allocation5 + $0x60] sm:$0xff] %vm2991, %v2920
        %3005 = vst.msk [vmem:[#allocation5 + $0x68] sm:$0xff] %vm2991, %v2922
        %3006 = vst.msk [vmem:[#allocation5 + $0x70] sm:$0xff] %vm2991, %v2924
        %3007 = vst.msk [vmem:[#allocation5 + $0x78] sm:$0xff] %vm2991, %v2926
        %3008 = vst.msk [vmem:[#allocation5 + $0x80] sm:$0xff] %vm2991, %v2928
        %3009 = vst.msk [vmem:[#allocation5 + $0x88] sm:$0xff] %vm2991, %v2930
        %3010 = vst.msk [vmem:[#allocation5 + $0x90] sm:$0xff] %vm2991, %v2932
        %3011 = vst.msk [vmem:[#allocation5 + $0x98] sm:$0xff] %vm2991, %v2934
        %3012 = vst.msk [vmem:[#allocation5 + $0xa0] sm:$0xff] %vm2991, %v2936
        %3013 = vst.msk [vmem:[#allocation5 + $0xa8] sm:$0xff] %vm2991, %v2938
        %3014 = vst.msk [vmem:[#allocation5 + $0xb0] sm:$0xff] %vm2991, %v2940
        %3015 = vst.msk [vmem:[#allocation5 + $0xb8] sm:$0xff] %vm2991, %v2942
        %3016 = vst.msk [vmem:[#allocation5 + $0xc0] sm:$0xff] %vm2991, %v2944
        %3017 = vst.msk [vmem:[#allocation5 + $0xc8] sm:$0xff] %vm2991, %v2946
        %3018 = vst.msk [vmem:[#allocation5 + $0xd0] sm:$0xff] %vm2991, %v2948
        %3019 = vst.msk [vmem:[#allocation5 + $0xd8] sm:$0xff] %vm2991, %v2950
        %3020 = vst.msk [vmem:[#allocation5 + $0xe0] sm:$0xff] %vm2991, %v2952
        %3021 = vst.msk [vmem:[#allocation5 + $0xe8] sm:$0xff] %vm2991, %v2954
        %3022 = vst.msk [vmem:[#allocation5 + $0xf0] sm:$0xff] %vm2991, %v2956
        %3023 = vst.msk [vmem:[#allocation5 + $0xf8] sm:$0xff] %vm2991, %v2958
        %v3024 = vld [vmem:[#allocation4 + $0x2] sm:$0xff]
        %v3025 = vld [vmem:[#allocation4 + $0xa] sm:$0xff]
        %v3026 = vld [vmem:[#allocation4 + $0x1a] sm:$0xff]
        %v3027 = vld [vmem:[#allocation4 + $0x22] sm:$0xff]
        %v3028 = vld [vmem:[#allocation4 + $0x32] sm:$0xff]
        %v3029 = vld [vmem:[#allocation4 + $0x3a] sm:$0xff]
        %v3030 = vld [vmem:[#allocation4 + $0x4a] sm:$0xff]
        %v3031 = vld [vmem:[#allocation4 + $0x52] sm:$0xff]
        %v3032 = vld [vmem:[#allocation4 + $0x62] sm:$0xff]
        %v3033 = vld [vmem:[#allocation4 + $0x6a] sm:$0xff]
        %v3034 = vld [vmem:[#allocation4 + $0x7a] sm:$0xff]
        %v3035 = vld [vmem:[#allocation4 + $0x82] sm:$0xff]
        %v3036 = vld [vmem:[#allocation4 + $0x92] sm:$0xff]
        %v3037 = vld [vmem:[#allocation4 + $0x9a] sm:$0xff]
        %v3038 = vld [vmem:[#allocation4 + $0xaa] sm:$0xff]
        %v3039 = vld [vmem:[#allocation4 + $0xb2] sm:$0xff]
        %v3040 = vld [vmem:[#allocation4 + $0xc2] sm:$0xff]
        %v3041 = vld [vmem:[#allocation4 + $0xca] sm:$0xff]
        %v3042 = vld [vmem:[#allocation4 + $0xda] sm:$0xff]
        %v3043 = vld [vmem:[#allocation4 + $0xe2] sm:$0xff]
        %v3044 = vld [vmem:[#allocation4 + $0xf2] sm:$0xff]
        %v3045 = vld [vmem:[#allocation4 + $0xfa] sm:$0xff]
        %v3046 = vld [vmem:[#allocation4 + $0x10a] sm:$0xff]
        %v3047 = vld [vmem:[#allocation4 + $0x112] sm:$0xff]
        %v3048 = vld [vmem:[#allocation4 + $0x122] sm:$0xff]
        %v3049 = vld [vmem:[#allocation4 + $0x12a] sm:$0xff]
        %v3050 = vld [vmem:[#allocation4 + $0x13a] sm:$0xff]
        %v3051 = vld [vmem:[#allocation4 + $0x142] sm:$0xff]
        %v3052 = vld [vmem:[#allocation4 + $0x152] sm:$0xff]
        %v3053 = vld [vmem:[#allocation4 + $0x15a] sm:$0xff]
        %v3054 = vld [vmem:[#allocation4 + $0x16a] sm:$0xff]
        %v3055 = vld [vmem:[#allocation4 + $0x172] sm:$0xff]
        %3088 = vrot.lane.b32.xlu0 %v3024, 16
        %v3089 = vpop.permute.xlu0 %3088
        %3090 = vrot.lane.b32.xlu0 %v3025, 16
        %v3091 = vpop.permute.xlu0 %3090
        %3092 = vrot.lane.b32.xlu0 %v3026, 16
        %v3093 = vpop.permute.xlu0 %3092
        %3094 = vrot.lane.b32.xlu0 %v3027, 16
        %v3095 = vpop.permute.xlu0 %3094
        %3096 = vrot.lane.b32.xlu0 %v3028, 16
        %v3097 = vpop.permute.xlu0 %3096
        %3098 = vrot.lane.b32.xlu0 %v3029, 16
        %v3099 = vpop.permute.xlu0 %3098
        %3100 = vrot.lane.b32.xlu0 %v3030, 16
        %v3101 = vpop.permute.xlu0 %3100
        %3102 = vrot.lane.b32.xlu0 %v3031, 16
        %v3103 = vpop.permute.xlu0 %3102
        %3104 = vrot.lane.b32.xlu0 %v3032, 16
        %v3105 = vpop.permute.xlu0 %3104
        %3106 = vrot.lane.b32.xlu0 %v3033, 16
        %v3107 = vpop.permute.xlu0 %3106
        %3108 = vrot.lane.b32.xlu0 %v3034, 16
        %v3109 = vpop.permute.xlu0 %3108
        %3110 = vrot.lane.b32.xlu0 %v3035, 16
        %v3111 = vpop.permute.xlu0 %3110
        %3112 = vrot.lane.b32.xlu0 %v3036, 16
        %v3113 = vpop.permute.xlu0 %3112
        %3114 = vrot.lane.b32.xlu0 %v3037, 16
        %v3115 = vpop.permute.xlu0 %3114
        %3116 = vrot.lane.b32.xlu0 %v3038, 16
        %v3117 = vpop.permute.xlu0 %3116
        %3118 = vrot.lane.b32.xlu0 %v3039, 16
        %v3119 = vpop.permute.xlu0 %3118
        %3120 = vrot.lane.b32.xlu0 %v3040, 16
        %v3121 = vpop.permute.xlu0 %3120
        %3122 = vrot.lane.b32.xlu0 %v3041, 16
        %v3123 = vpop.permute.xlu0 %3122
        %3124 = vrot.lane.b32.xlu0 %v3042, 16
        %v3125 = vpop.permute.xlu0 %3124
        %3126 = vrot.lane.b32.xlu0 %v3043, 16
        %v3127 = vpop.permute.xlu0 %3126
        %3128 = vrot.lane.b32.xlu0 %v3044, 16
        %v3129 = vpop.permute.xlu0 %3128
        %3130 = vrot.lane.b32.xlu0 %v3045, 16
        %v3131 = vpop.permute.xlu0 %3130
        %3132 = vrot.lane.b32.xlu0 %v3046, 16
        %v3133 = vpop.permute.xlu0 %3132
        %3134 = vrot.lane.b32.xlu0 %v3047, 16
        %v3135 = vpop.permute.xlu0 %3134
        %3136 = vrot.lane.b32.xlu0 %v3048, 16
        %v3137 = vpop.permute.xlu0 %3136
        %3138 = vrot.lane.b32.xlu0 %v3049, 16
        %v3139 = vpop.permute.xlu0 %3138
        %3140 = vrot.lane.b32.xlu0 %v3050, 16
        %v3141 = vpop.permute.xlu0 %3140
        %3142 = vrot.lane.b32.xlu0 %v3051, 16
        %v3143 = vpop.permute.xlu0 %3142
        %3144 = vrot.lane.b32.xlu0 %v3052, 16
        %v3145 = vpop.permute.xlu0 %3144
        %3146 = vrot.lane.b32.xlu0 %v3053, 16
        %v3147 = vpop.permute.xlu0 %3146
        %3148 = vrot.lane.b32.xlu0 %v3054, 16
        %v3149 = vpop.permute.xlu0 %3148
        %3150 = vrot.lane.b32.xlu0 %v3055, 16
        %v3151 = vpop.permute.xlu0 %3150
        %vm3184 = vcmask 195712
        %3185 = vst.msk [vmem:[#allocation5] sm:$0xff] %vm3184, %v3089
        %3186 = vst.msk [vmem:[#allocation5 + $0x8] sm:$0xff] %vm3184, %v3091
        %3187 = vst.msk [vmem:[#allocation5 + $0x10] sm:$0xff] %vm3184, %v3093
        %3188 = vst.msk [vmem:[#allocation5 + $0x18] sm:$0xff] %vm3184, %v3095
        %3189 = vst.msk [vmem:[#allocation5 + $0x20] sm:$0xff] %vm3184, %v3097
        %3190 = vst.msk [vmem:[#allocation5 + $0x28] sm:$0xff] %vm3184, %v3099
        %3191 = vst.msk [vmem:[#allocation5 + $0x30] sm:$0xff] %vm3184, %v3101
        %3192 = vst.msk [vmem:[#allocation5 + $0x38] sm:$0xff] %vm3184, %v3103
        %3193 = vst.msk [vmem:[#allocation5 + $0x40] sm:$0xff] %vm3184, %v3105
        %3194 = vst.msk [vmem:[#allocation5 + $0x48] sm:$0xff] %vm3184, %v3107
        %3195 = vst.msk [vmem:[#allocation5 + $0x50] sm:$0xff] %vm3184, %v3109
        %3196 = vst.msk [vmem:[#allocation5 + $0x58] sm:$0xff] %vm3184, %v3111
        %3197 = vst.msk [vmem:[#allocation5 + $0x60] sm:$0xff] %vm3184, %v3113
        %3198 = vst.msk [vmem:[#allocation5 + $0x68] sm:$0xff] %vm3184, %v3115
        %3199 = vst.msk [vmem:[#allocation5 + $0x70] sm:$0xff] %vm3184, %v3117
        %3200 = vst.msk [vmem:[#allocation5 + $0x78] sm:$0xff] %vm3184, %v3119
        %3201 = vst.msk [vmem:[#allocation5 + $0x80] sm:$0xff] %vm3184, %v3121
        %3202 = vst.msk [vmem:[#allocation5 + $0x88] sm:$0xff] %vm3184, %v3123
        %3203 = vst.msk [vmem:[#allocation5 + $0x90] sm:$0xff] %vm3184, %v3125
        %3204 = vst.msk [vmem:[#allocation5 + $0x98] sm:$0xff] %vm3184, %v3127
        %3205 = vst.msk [vmem:[#allocation5 + $0xa0] sm:$0xff] %vm3184, %v3129
        %3206 = vst.msk [vmem:[#allocation5 + $0xa8] sm:$0xff] %vm3184, %v3131
        %3207 = vst.msk [vmem:[#allocation5 + $0xb0] sm:$0xff] %vm3184, %v3133
        %3208 = vst.msk [vmem:[#allocation5 + $0xb8] sm:$0xff] %vm3184, %v3135
        %3209 = vst.msk [vmem:[#allocation5 + $0xc0] sm:$0xff] %vm3184, %v3137
        %3210 = vst.msk [vmem:[#allocation5 + $0xc8] sm:$0xff] %vm3184, %v3139
        %3211 = vst.msk [vmem:[#allocation5 + $0xd0] sm:$0xff] %vm3184, %v3141
        %3212 = vst.msk [vmem:[#allocation5 + $0xd8] sm:$0xff] %vm3184, %v3143
        %3213 = vst.msk [vmem:[#allocation5 + $0xe0] sm:$0xff] %vm3184, %v3145
        %3214 = vst.msk [vmem:[#allocation5 + $0xe8] sm:$0xff] %vm3184, %v3147
        %3215 = vst.msk [vmem:[#allocation5 + $0xf0] sm:$0xff] %vm3184, %v3149
        %3216 = vst.msk [vmem:[#allocation5 + $0xf8] sm:$0xff] %vm3184, %v3151
        %v3217 = vld [vmem:[%s2734] sm:$0xff]
        %v3218 = vld [vmem:[%s2734 + $0x8] sm:$0xff]
        %v3219 = vld [vmem:[%s2734 + $0x18] sm:$0xff]
        %v3220 = vld [vmem:[%s2734 + $0x20] sm:$0xff]
        %v3221 = vld [vmem:[%s2734 + $0x30] sm:$0xff]
        %v3222 = vld [vmem:[%s2734 + $0x38] sm:$0xff]
        %v3223 = vld [vmem:[%s2734 + $0x48] sm:$0xff]
        %v3224 = vld [vmem:[%s2734 + $0x50] sm:$0xff]
        %v3225 = vld [vmem:[%s2734 + $0x60] sm:$0xff]
        %v3226 = vld [vmem:[%s2734 + $0x68] sm:$0xff]
        %v3227 = vld [vmem:[%s2734 + $0x78] sm:$0xff]
        %v3228 = vld [vmem:[%s2734 + $0x80] sm:$0xff]
        %v3229 = vld [vmem:[%s2734 + $0x90] sm:$0xff]
        %v3230 = vld [vmem:[%s2734 + $0x98] sm:$0xff]
        %v3231 = vld [vmem:[%s2734 + $0xa8] sm:$0xff]
        %v3232 = vld [vmem:[%s2734 + $0xb0] sm:$0xff]
        %v3233 = vld [vmem:[%s2734 + $0xc0] sm:$0xff]
        %v3234 = vld [vmem:[%s2734 + $0xc8] sm:$0xff]
        %v3235 = vld [vmem:[%s2734 + $0xd8] sm:$0xff]
        %v3236 = vld [vmem:[%s2734 + $0xe0] sm:$0xff]
        %v3237 = vld [vmem:[%s2734 + $0xf0] sm:$0xff]
        %v3238 = vld [vmem:[%s2734 + $0xf8] sm:$0xff]
        %v3239 = vld [vmem:[%s2734 + $0x108] sm:$0xff]
        %v3240 = vld [vmem:[%s2734 + $0x110] sm:$0xff]
        %v3241 = vld [vmem:[%s2734 + $0x120] sm:$0xff]
        %v3242 = vld [vmem:[%s2734 + $0x128] sm:$0xff]
        %v3243 = vld [vmem:[%s2734 + $0x138] sm:$0xff]
        %v3244 = vld [vmem:[%s2734 + $0x140] sm:$0xff]
        %v3245 = vld [vmem:[%s2734 + $0x150] sm:$0xff]
        %v3246 = vld [vmem:[%s2734 + $0x158] sm:$0xff]
        %v3247 = vld [vmem:[%s2734 + $0x168] sm:$0xff]
        %v3248 = vld [vmem:[%s2734 + $0x170] sm:$0xff]
        %3281 = vrot.lane.b32.xlu0 %v3217, 24
        %v3282 = vpop.permute.xlu0 %3281
        %3283 = vrot.lane.b32.xlu0 %v3218, 24
        %v3284 = vpop.permute.xlu0 %3283
        %3285 = vrot.lane.b32.xlu0 %v3219, 24
        %v3286 = vpop.permute.xlu0 %3285
        %3287 = vrot.lane.b32.xlu0 %v3220, 24
        %v3288 = vpop.permute.xlu0 %3287
        %3289 = vrot.lane.b32.xlu0 %v3221, 24
        %v3290 = vpop.permute.xlu0 %3289
        %3291 = vrot.lane.b32.xlu0 %v3222, 24
        %v3292 = vpop.permute.xlu0 %3291
        %3293 = vrot.lane.b32.xlu0 %v3223, 24
        %v3294 = vpop.permute.xlu0 %3293
        %3295 = vrot.lane.b32.xlu0 %v3224, 24
        %v3296 = vpop.permute.xlu0 %3295
        %3297 = vrot.lane.b32.xlu0 %v3225, 24
        %v3298 = vpop.permute.xlu0 %3297
        %3299 = vrot.lane.b32.xlu0 %v3226, 24
        %v3300 = vpop.permute.xlu0 %3299
        %3301 = vrot.lane.b32.xlu0 %v3227, 24
        %v3302 = vpop.permute.xlu0 %3301
        %3303 = vrot.lane.b32.xlu0 %v3228, 24
        %v3304 = vpop.permute.xlu0 %3303
        %3305 = vrot.lane.b32.xlu0 %v3229, 24
        %v3306 = vpop.permute.xlu0 %3305
        %3307 = vrot.lane.b32.xlu0 %v3230, 24
        %v3308 = vpop.permute.xlu0 %3307
        %3309 = vrot.lane.b32.xlu0 %v3231, 24
        %v3310 = vpop.permute.xlu0 %3309
        %3311 = vrot.lane.b32.xlu0 %v3232, 24
        %v3312 = vpop.permute.xlu0 %3311
        %3313 = vrot.lane.b32.xlu0 %v3233, 24
        %v3314 = vpop.permute.xlu0 %3313
        %3315 = vrot.lane.b32.xlu0 %v3234, 24
        %v3316 = vpop.permute.xlu0 %3315
        %3317 = vrot.lane.b32.xlu0 %v3235, 24
        %v3318 = vpop.permute.xlu0 %3317
        %3319 = vrot.lane.b32.xlu0 %v3236, 24
        %v3320 = vpop.permute.xlu0 %3319
        %3321 = vrot.lane.b32.xlu0 %v3237, 24
        %v3322 = vpop.permute.xlu0 %3321
        %3323 = vrot.lane.b32.xlu0 %v3238, 24
        %v3324 = vpop.permute.xlu0 %3323
        %3325 = vrot.lane.b32.xlu0 %v3239, 24
        %v3326 = vpop.permute.xlu0 %3325
        %3327 = vrot.lane.b32.xlu0 %v3240, 24
        %v3328 = vpop.permute.xlu0 %3327
        %3329 = vrot.lane.b32.xlu0 %v3241, 24
        %v3330 = vpop.permute.xlu0 %3329
        %3331 = vrot.lane.b32.xlu0 %v3242, 24
        %v3332 = vpop.permute.xlu0 %3331
        %3333 = vrot.lane.b32.xlu0 %v3243, 24
        %v3334 = vpop.permute.xlu0 %3333
        %3335 = vrot.lane.b32.xlu0 %v3244, 24
        %v3336 = vpop.permute.xlu0 %3335
        %3337 = vrot.lane.b32.xlu0 %v3245, 24
        %v3338 = vpop.permute.xlu0 %3337
        %3339 = vrot.lane.b32.xlu0 %v3246, 24
        %v3340 = vpop.permute.xlu0 %3339
        %3341 = vrot.lane.b32.xlu0 %v3247, 24
        %v3342 = vpop.permute.xlu0 %3341
        %3343 = vrot.lane.b32.xlu0 %v3248, 24
        %v3344 = vpop.permute.xlu0 %3343
        %vm3377 = vcmask 261312
        %3378 = vst.msk [vmem:[#allocation5] sm:$0xff] %vm3377, %v3282
        %3379 = vst.msk [vmem:[#allocation5 + $0x8] sm:$0xff] %vm3377, %v3284
        %3380 = vst.msk [vmem:[#allocation5 + $0x10] sm:$0xff] %vm3377, %v3286
        %3381 = vst.msk [vmem:[#allocation5 + $0x18] sm:$0xff] %vm3377, %v3288
        %3382 = vst.msk [vmem:[#allocation5 + $0x20] sm:$0xff] %vm3377, %v3290
        %3383 = vst.msk [vmem:[#allocation5 + $0x28] sm:$0xff] %vm3377, %v3292
        %3384 = vst.msk [vmem:[#allocation5 + $0x30] sm:$0xff] %vm3377, %v3294
        %3385 = vst.msk [vmem:[#allocation5 + $0x38] sm:$0xff] %vm3377, %v3296
        %3386 = vst.msk [vmem:[#allocation5 + $0x40] sm:$0xff] %vm3377, %v3298
        %3387 = vst.msk [vmem:[#allocation5 + $0x48] sm:$0xff] %vm3377, %v3300
        %3388 = vst.msk [vmem:[#allocation5 + $0x50] sm:$0xff] %vm3377, %v3302
        %3389 = vst.msk [vmem:[#allocation5 + $0x58] sm:$0xff] %vm3377, %v3304
        %3390 = vst.msk [vmem:[#allocation5 + $0x60] sm:$0xff] %vm3377, %v3306
        %3391 = vst.msk [vmem:[#allocation5 + $0x68] sm:$0xff] %vm3377, %v3308
        %3392 = vst.msk [vmem:[#allocation5 + $0x70] sm:$0xff] %vm3377, %v3310
        %3393 = vst.msk [vmem:[#allocation5 + $0x78] sm:$0xff] %vm3377, %v3312
        %3394 = vst.msk [vmem:[#allocation5 + $0x80] sm:$0xff] %vm3377, %v3314
        %3395 = vst.msk [vmem:[#allocation5 + $0x88] sm:$0xff] %vm3377, %v3316
        %3396 = vst.msk [vmem:[#allocation5 + $0x90] sm:$0xff] %vm3377, %v3318
        %3397 = vst.msk [vmem:[#allocation5 + $0x98] sm:$0xff] %vm3377, %v3320
        %3398 = vst.msk [vmem:[#allocation5 + $0xa0] sm:$0xff] %vm3377, %v3322
        %3399 = vst.msk [vmem:[#allocation5 + $0xa8] sm:$0xff] %vm3377, %v3324
        %3400 = vst.msk [vmem:[#allocation5 + $0xb0] sm:$0xff] %vm3377, %v3326
        %3401 = vst.msk [vmem:[#allocation5 + $0xb8] sm:$0xff] %vm3377, %v3328
        %3402 = vst.msk [vmem:[#allocation5 + $0xc0] sm:$0xff] %vm3377, %v3330
        %3403 = vst.msk [vmem:[#allocation5 + $0xc8] sm:$0xff] %vm3377, %v3332
        %3404 = vst.msk [vmem:[#allocation5 + $0xd0] sm:$0xff] %vm3377, %v3334
        %3405 = vst.msk [vmem:[#allocation5 + $0xd8] sm:$0xff] %vm3377, %v3336
        %3406 = vst.msk [vmem:[#allocation5 + $0xe0] sm:$0xff] %vm3377, %v3338
        %3407 = vst.msk [vmem:[#allocation5 + $0xe8] sm:$0xff] %vm3377, %v3340
        %3408 = vst.msk [vmem:[#allocation5 + $0xf0] sm:$0xff] %vm3377, %v3342
        %3409 = vst.msk [vmem:[#allocation5 + $0xf8] sm:$0xff] %vm3377, %v3344
        %v3410 = vld [vmem:[%s2734 + $0x1] sm:$0xff]
        %v3411 = vld [vmem:[%s2734 + $0x9] sm:$0xff]
        %v3412 = vld [vmem:[%s2734 + $0x19] sm:$0xff]
        %v3413 = vld [vmem:[%s2734 + $0x21] sm:$0xff]
        %v3414 = vld [vmem:[%s2734 + $0x31] sm:$0xff]
        %v3415 = vld [vmem:[%s2734 + $0x39] sm:$0xff]
        %v3416 = vld [vmem:[%s2734 + $0x49] sm:$0xff]
        %v3417 = vld [vmem:[%s2734 + $0x51] sm:$0xff]
        %v3418 = vld [vmem:[%s2734 + $0x61] sm:$0xff]
        %v3419 = vld [vmem:[%s2734 + $0x69] sm:$0xff]
        %v3420 = vld [vmem:[%s2734 + $0x79] sm:$0xff]
        %v3421 = vld [vmem:[%s2734 + $0x81] sm:$0xff]
        %v3422 = vld [vmem:[%s2734 + $0x91] sm:$0xff]
        %v3423 = vld [vmem:[%s2734 + $0x99] sm:$0xff]
        %v3424 = vld [vmem:[%s2734 + $0xa9] sm:$0xff]
        %v3425 = vld [vmem:[%s2734 + $0xb1] sm:$0xff]
        %v3426 = vld [vmem:[%s2734 + $0xc1] sm:$0xff]
        %v3427 = vld [vmem:[%s2734 + $0xc9] sm:$0xff]
        %v3428 = vld [vmem:[%s2734 + $0xd9] sm:$0xff]
        %v3429 = vld [vmem:[%s2734 + $0xe1] sm:$0xff]
        %v3430 = vld [vmem:[%s2734 + $0xf1] sm:$0xff]
        %v3431 = vld [vmem:[%s2734 + $0xf9] sm:$0xff]
        %v3432 = vld [vmem:[%s2734 + $0x109] sm:$0xff]
        %v3433 = vld [vmem:[%s2734 + $0x111] sm:$0xff]
        %v3434 = vld [vmem:[%s2734 + $0x121] sm:$0xff]
        %v3435 = vld [vmem:[%s2734 + $0x129] sm:$0xff]
        %v3436 = vld [vmem:[%s2734 + $0x139] sm:$0xff]
        %v3437 = vld [vmem:[%s2734 + $0x141] sm:$0xff]
        %v3438 = vld [vmem:[%s2734 + $0x151] sm:$0xff]
        %v3439 = vld [vmem:[%s2734 + $0x159] sm:$0xff]
        %v3440 = vld [vmem:[%s2734 + $0x169] sm:$0xff]
        %v3441 = vld [vmem:[%s2734 + $0x171] sm:$0xff]
        %3474 = vrot.lane.b32.xlu0 %v3410, 32
        %v3475 = vpop.permute.xlu0 %3474
        %3476 = vrot.lane.b32.xlu0 %v3411, 32
        %v3477 = vpop.permute.xlu0 %3476
        %3478 = vrot.lane.b32.xlu0 %v3412, 32
        %v3479 = vpop.permute.xlu0 %3478
        %3480 = vrot.lane.b32.xlu0 %v3413, 32
        %v3481 = vpop.permute.xlu0 %3480
        %3482 = vrot.lane.b32.xlu0 %v3414, 32
        %v3483 = vpop.permute.xlu0 %3482
        %3484 = vrot.lane.b32.xlu0 %v3415, 32
        %v3485 = vpop.permute.xlu0 %3484
        %3486 = vrot.lane.b32.xlu0 %v3416, 32
        %v3487 = vpop.permute.xlu0 %3486
        %3488 = vrot.lane.b32.xlu0 %v3417, 32
        %v3489 = vpop.permute.xlu0 %3488
        %3490 = vrot.lane.b32.xlu0 %v3418, 32
        %v3491 = vpop.permute.xlu0 %3490
        %3492 = vrot.lane.b32.xlu0 %v3419, 32
        %v3493 = vpop.permute.xlu0 %3492
        %3494 = vrot.lane.b32.xlu0 %v3420, 32
        %v3495 = vpop.permute.xlu0 %3494
        %3496 = vrot.lane.b32.xlu0 %v3421, 32
        %v3497 = vpop.permute.xlu0 %3496
        %3498 = vrot.lane.b32.xlu0 %v3422, 32
        %v3499 = vpop.permute.xlu0 %3498
        %3500 = vrot.lane.b32.xlu0 %v3423, 32
        %v3501 = vpop.permute.xlu0 %3500
        %3502 = vrot.lane.b32.xlu0 %v3424, 32
        %v3503 = vpop.permute.xlu0 %3502
        %3504 = vrot.lane.b32.xlu0 %v3425, 32
        %v3505 = vpop.permute.xlu0 %3504
        %3506 = vrot.lane.b32.xlu0 %v3426, 32
        %v3507 = vpop.permute.xlu0 %3506
        %3508 = vrot.lane.b32.xlu0 %v3427, 32
        %v3509 = vpop.permute.xlu0 %3508
        %3510 = vrot.lane.b32.xlu0 %v3428, 32
        %v3511 = vpop.permute.xlu0 %3510
        %3512 = vrot.lane.b32.xlu0 %v3429, 32
        %v3513 = vpop.permute.xlu0 %3512
        %3514 = vrot.lane.b32.xlu0 %v3430, 32
        %v3515 = vpop.permute.xlu0 %3514
        %3516 = vrot.lane.b32.xlu0 %v3431, 32
        %v3517 = vpop.permute.xlu0 %3516
        %3518 = vrot.lane.b32.xlu0 %v3432, 32
        %v3519 = vpop.permute.xlu0 %3518
        %3520 = vrot.lane.b32.xlu0 %v3433, 32
        %v3521 = vpop.permute.xlu0 %3520
        %3522 = vrot.lane.b32.xlu0 %v3434, 32
        %v3523 = vpop.permute.xlu0 %3522
        %3524 = vrot.lane.b32.xlu0 %v3435, 32
        %v3525 = vpop.permute.xlu0 %3524
        %3526 = vrot.lane.b32.xlu0 %v3436, 32
        %v3527 = vpop.permute.xlu0 %3526
        %3528 = vrot.lane.b32.xlu0 %v3437, 32
        %v3529 = vpop.permute.xlu0 %3528
        %3530 = vrot.lane.b32.xlu0 %v3438, 32
        %v3531 = vpop.permute.xlu0 %3530
        %3532 = vrot.lane.b32.xlu0 %v3439, 32
        %v3533 = vpop.permute.xlu0 %3532
        %3534 = vrot.lane.b32.xlu0 %v3440, 32
        %v3535 = vpop.permute.xlu0 %3534
        %3536 = vrot.lane.b32.xlu0 %v3441, 32
        %v3537 = vpop.permute.xlu0 %3536
        %vm3570 = vcmask 326912
        %3571 = vst.msk [vmem:[#allocation5] sm:$0xff] %vm3570, %v3475
        %3572 = vst.msk [vmem:[#allocation5 + $0x8] sm:$0xff] %vm3570, %v3477
        %3573 = vst.msk [vmem:[#allocation5 + $0x10] sm:$0xff] %vm3570, %v3479
        %3574 = vst.msk [vmem:[#allocation5 + $0x18] sm:$0xff] %vm3570, %v3481
        %3575 = vst.msk [vmem:[#allocation5 + $0x20] sm:$0xff] %vm3570, %v3483
        %3576 = vst.msk [vmem:[#allocation5 + $0x28] sm:$0xff] %vm3570, %v3485
        %3577 = vst.msk [vmem:[#allocation5 + $0x30] sm:$0xff] %vm3570, %v3487
        %3578 = vst.msk [vmem:[#allocation5 + $0x38] sm:$0xff] %vm3570, %v3489
        %3579 = vst.msk [vmem:[#allocation5 + $0x40] sm:$0xff] %vm3570, %v3491
        %3580 = vst.msk [vmem:[#allocation5 + $0x48] sm:$0xff] %vm3570, %v3493
        %3581 = vst.msk [vmem:[#allocation5 + $0x50] sm:$0xff] %vm3570, %v3495
        %3582 = vst.msk [vmem:[#allocation5 + $0x58] sm:$0xff] %vm3570, %v3497
        %3583 = vst.msk [vmem:[#allocation5 + $0x60] sm:$0xff] %vm3570, %v3499
        %3584 = vst.msk [vmem:[#allocation5 + $0x68] sm:$0xff] %vm3570, %v3501
        %3585 = vst.msk [vmem:[#allocation5 + $0x70] sm:$0xff] %vm3570, %v3503
        %3586 = vst.msk [vmem:[#allocation5 + $0x78] sm:$0xff] %vm3570, %v3505
        %3587 = vst.msk [vmem:[#allocation5 + $0x80] sm:$0xff] %vm3570, %v3507
        %3588 = vst.msk [vmem:[#allocation5 + $0x88] sm:$0xff] %vm3570, %v3509
        %3589 = vst.msk [vmem:[#allocation5 + $0x90] sm:$0xff] %vm3570, %v3511
        %3590 = vst.msk [vmem:[#allocation5 + $0x98] sm:$0xff] %vm3570, %v3513
        %3591 = vst.msk [vmem:[#allocation5 + $0xa0] sm:$0xff] %vm3570, %v3515
        %3592 = vst.msk [vmem:[#allocation5 + $0xa8] sm:$0xff] %vm3570, %v3517
        %3593 = vst.msk [vmem:[#allocation5 + $0xb0] sm:$0xff] %vm3570, %v3519
        %3594 = vst.msk [vmem:[#allocation5 + $0xb8] sm:$0xff] %vm3570, %v3521
        %3595 = vst.msk [vmem:[#allocation5 + $0xc0] sm:$0xff] %vm3570, %v3523
        %3596 = vst.msk [vmem:[#allocation5 + $0xc8] sm:$0xff] %vm3570, %v3525
        %3597 = vst.msk [vmem:[#allocation5 + $0xd0] sm:$0xff] %vm3570, %v3527
        %3598 = vst.msk [vmem:[#allocation5 + $0xd8] sm:$0xff] %vm3570, %v3529
        %3599 = vst.msk [vmem:[#allocation5 + $0xe0] sm:$0xff] %vm3570, %v3531
        %3600 = vst.msk [vmem:[#allocation5 + $0xe8] sm:$0xff] %vm3570, %v3533
        %3601 = vst.msk [vmem:[#allocation5 + $0xf0] sm:$0xff] %vm3570, %v3535
        %3602 = vst.msk [vmem:[#allocation5 + $0xf8] sm:$0xff] %vm3570, %v3537
        %v3603 = vld [vmem:[%s2734 + $0x2] sm:$0xff]
        %v3604 = vld [vmem:[%s2734 + $0xa] sm:$0xff]
        %v3605 = vld [vmem:[%s2734 + $0x1a] sm:$0xff]
        %v3606 = vld [vmem:[%s2734 + $0x22] sm:$0xff]
        %v3607 = vld [vmem:[%s2734 + $0x32] sm:$0xff]
        %v3608 = vld [vmem:[%s2734 + $0x3a] sm:$0xff]
        %v3609 = vld [vmem:[%s2734 + $0x4a] sm:$0xff]
        %v3610 = vld [vmem:[%s2734 + $0x52] sm:$0xff]
        %v3611 = vld [vmem:[%s2734 + $0x62] sm:$0xff]
        %v3612 = vld [vmem:[%s2734 + $0x6a] sm:$0xff]
        %v3613 = vld [vmem:[%s2734 + $0x7a] sm:$0xff]
        %v3614 = vld [vmem:[%s2734 + $0x82] sm:$0xff]
        %v3615 = vld [vmem:[%s2734 + $0x92] sm:$0xff]
        %v3616 = vld [vmem:[%s2734 + $0x9a] sm:$0xff]
        %v3617 = vld [vmem:[%s2734 + $0xaa] sm:$0xff]
        %v3618 = vld [vmem:[%s2734 + $0xb2] sm:$0xff]
        %v3619 = vld [vmem:[%s2734 + $0xc2] sm:$0xff]
        %v3620 = vld [vmem:[%s2734 + $0xca] sm:$0xff]
        %v3621 = vld [vmem:[%s2734 + $0xda] sm:$0xff]
        %v3622 = vld [vmem:[%s2734 + $0xe2] sm:$0xff]
        %v3623 = vld [vmem:[%s2734 + $0xf2] sm:$0xff]
        %v3624 = vld [vmem:[%s2734 + $0xfa] sm:$0xff]
        %v3625 = vld [vmem:[%s2734 + $0x10a] sm:$0xff]
        %v3626 = vld [vmem:[%s2734 + $0x112] sm:$0xff]
        %v3627 = vld [vmem:[%s2734 + $0x122] sm:$0xff]
        %v3628 = vld [vmem:[%s2734 + $0x12a] sm:$0xff]
        %v3629 = vld [vmem:[%s2734 + $0x13a] sm:$0xff]
        %v3630 = vld [vmem:[%s2734 + $0x142] sm:$0xff]
        %v3631 = vld [vmem:[%s2734 + $0x152] sm:$0xff]
        %v3632 = vld [vmem:[%s2734 + $0x15a] sm:$0xff]
        %v3633 = vld [vmem:[%s2734 + $0x16a] sm:$0xff]
        %v3634 = vld [vmem:[%s2734 + $0x172] sm:$0xff]
        %3667 = vrot.lane.b32.xlu0 %v3603, 40
        %v3668 = vpop.permute.xlu0 %3667
        %3669 = vrot.lane.b32.xlu0 %v3604, 40
        %v3670 = vpop.permute.xlu0 %3669
        %3671 = vrot.lane.b32.xlu0 %v3605, 40
        %v3672 = vpop.permute.xlu0 %3671
        %3673 = vrot.lane.b32.xlu0 %v3606, 40
        %v3674 = vpop.permute.xlu0 %3673
        %3675 = vrot.lane.b32.xlu0 %v3607, 40
        %v3676 = vpop.permute.xlu0 %3675
        %3677 = vrot.lane.b32.xlu0 %v3608, 40
        %v3678 = vpop.permute.xlu0 %3677
        %3679 = vrot.lane.b32.xlu0 %v3609, 40
        %v3680 = vpop.permute.xlu0 %3679
        %3681 = vrot.lane.b32.xlu0 %v3610, 40
        %v3682 = vpop.permute.xlu0 %3681
        %3683 = vrot.lane.b32.xlu0 %v3611, 40
        %v3684 = vpop.permute.xlu0 %3683
        %3685 = vrot.lane.b32.xlu0 %v3612, 40
        %v3686 = vpop.permute.xlu0 %3685
        %3687 = vrot.lane.b32.xlu0 %v3613, 40
        %v3688 = vpop.permute.xlu0 %3687
        %3689 = vrot.lane.b32.xlu0 %v3614, 40
        %v3690 = vpop.permute.xlu0 %3689
        %3691 = vrot.lane.b32.xlu0 %v3615, 40
        %v3692 = vpop.permute.xlu0 %3691
        %3693 = vrot.lane.b32.xlu0 %v3616, 40
        %v3694 = vpop.permute.xlu0 %3693
        %3695 = vrot.lane.b32.xlu0 %v3617, 40
        %v3696 = vpop.permute.xlu0 %3695
        %3697 = vrot.lane.b32.xlu0 %v3618, 40
        %v3698 = vpop.permute.xlu0 %3697
        %3699 = vrot.lane.b32.xlu0 %v3619, 40
        %v3700 = vpop.permute.xlu0 %3699
        %3701 = vrot.lane.b32.xlu0 %v3620, 40
        %v3702 = vpop.permute.xlu0 %3701
        %3703 = vrot.lane.b32.xlu0 %v3621, 40
        %v3704 = vpop.permute.xlu0 %3703
        %3705 = vrot.lane.b32.xlu0 %v3622, 40
        %v3706 = vpop.permute.xlu0 %3705
        %3707 = vrot.lane.b32.xlu0 %v3623, 40
        %v3708 = vpop.permute.xlu0 %3707
        %3709 = vrot.lane.b32.xlu0 %v3624, 40
        %v3710 = vpop.permute.xlu0 %3709
        %3711 = vrot.lane.b32.xlu0 %v3625, 40
        %v3712 = vpop.permute.xlu0 %3711
        %3713 = vrot.lane.b32.xlu0 %v3626, 40
        %v3714 = vpop.permute.xlu0 %3713
        %3715 = vrot.lane.b32.xlu0 %v3627, 40
        %v3716 = vpop.permute.xlu0 %3715
        %3717 = vrot.lane.b32.xlu0 %v3628, 40
        %v3718 = vpop.permute.xlu0 %3717
        %3719 = vrot.lane.b32.xlu0 %v3629, 40
        %v3720 = vpop.permute.xlu0 %3719
        %3721 = vrot.lane.b32.xlu0 %v3630, 40
        %v3722 = vpop.permute.xlu0 %3721
        %3723 = vrot.lane.b32.xlu0 %v3631, 40
        %v3724 = vpop.permute.xlu0 %3723
        %3725 = vrot.lane.b32.xlu0 %v3632, 40
        %v3726 = vpop.permute.xlu0 %3725
        %3727 = vrot.lane.b32.xlu0 %v3633, 40
        %v3728 = vpop.permute.xlu0 %3727
        %3729 = vrot.lane.b32.xlu0 %v3634, 40
        %v3730 = vpop.permute.xlu0 %3729
        %vm3763 = vcmask 392512
        %3764 = vst.msk [vmem:[#allocation5] sm:$0xff] %vm3763, %v3668
        %3765 = vst.msk [vmem:[#allocation5 + $0x8] sm:$0xff] %vm3763, %v3670
        %3766 = vst.msk [vmem:[#allocation5 + $0x10] sm:$0xff] %vm3763, %v3672
        %3767 = vst.msk [vmem:[#allocation5 + $0x18] sm:$0xff] %vm3763, %v3674
        %3768 = vst.msk [vmem:[#allocation5 + $0x20] sm:$0xff] %vm3763, %v3676
        %3769 = vst.msk [vmem:[#allocation5 + $0x28] sm:$0xff] %vm3763, %v3678
        %3770 = vst.msk [vmem:[#allocation5 + $0x30] sm:$0xff] %vm3763, %v3680
        %3771 = vst.msk [vmem:[#allocation5 + $0x38] sm:$0xff] %vm3763, %v3682
        %3772 = vst.msk [vmem:[#allocation5 + $0x40] sm:$0xff] %vm3763, %v3684
        %3773 = vst.msk [vmem:[#allocation5 + $0x48] sm:$0xff] %vm3763, %v3686
        %3774 = vst.msk [vmem:[#allocation5 + $0x50] sm:$0xff] %vm3763, %v3688
        %3775 = vst.msk [vmem:[#allocation5 + $0x58] sm:$0xff] %vm3763, %v3690
        %3776 = vst.msk [vmem:[#allocation5 + $0x60] sm:$0xff] %vm3763, %v3692
        %3777 = vst.msk [vmem:[#allocation5 + $0x68] sm:$0xff] %vm3763, %v3694
        %3778 = vst.msk [vmem:[#allocation5 + $0x70] sm:$0xff] %vm3763, %v3696
        %3779 = vst.msk [vmem:[#allocation5 + $0x78] sm:$0xff] %vm3763, %v3698
        %3780 = vst.msk [vmem:[#allocation5 + $0x80] sm:$0xff] %vm3763, %v3700
        %3781 = vst.msk [vmem:[#allocation5 + $0x88] sm:$0xff] %vm3763, %v3702
        %3782 = vst.msk [vmem:[#allocation5 + $0x90] sm:$0xff] %vm3763, %v3704
        %3783 = vst.msk [vmem:[#allocation5 + $0x98] sm:$0xff] %vm3763, %v3706
        %3784 = vst.msk [vmem:[#allocation5 + $0xa0] sm:$0xff] %vm3763, %v3708
        %3785 = vst.msk [vmem:[#allocation5 + $0xa8] sm:$0xff] %vm3763, %v3710
        %3786 = vst.msk [vmem:[#allocation5 + $0xb0] sm:$0xff] %vm3763, %v3712
        %3787 = vst.msk [vmem:[#allocation5 + $0xb8] sm:$0xff] %vm3763, %v3714
        %3788 = vst.msk [vmem:[#allocation5 + $0xc0] sm:$0xff] %vm3763, %v3716
        %3789 = vst.msk [vmem:[#allocation5 + $0xc8] sm:$0xff] %vm3763, %v3718
        %3790 = vst.msk [vmem:[#allocation5 + $0xd0] sm:$0xff] %vm3763, %v3720
        %3791 = vst.msk [vmem:[#allocation5 + $0xd8] sm:$0xff] %vm3763, %v3722
        %3792 = vst.msk [vmem:[#allocation5 + $0xe0] sm:$0xff] %vm3763, %v3724
        %3793 = vst.msk [vmem:[#allocation5 + $0xe8] sm:$0xff] %vm3763, %v3726
        %3794 = vst.msk [vmem:[#allocation5 + $0xf0] sm:$0xff] %vm3763, %v3728
        %3795 = vst.msk [vmem:[#allocation5 + $0xf8] sm:$0xff] %vm3763, %v3730
        %s3796 = scalar_lea.vmem [#allocation4], 48
        %v3797 = vld [vmem:[%s3796] sm:$0xff]
        %v3798 = vld [vmem:[%s3796 + $0x8] sm:$0xff]
        %v3799 = vld [vmem:[%s3796 + $0x18] sm:$0xff]
        %v3800 = vld [vmem:[%s3796 + $0x20] sm:$0xff]
        %v3801 = vld [vmem:[%s3796 + $0x30] sm:$0xff]
        %v3802 = vld [vmem:[%s3796 + $0x38] sm:$0xff]
        %v3803 = vld [vmem:[%s3796 + $0x48] sm:$0xff]
        %v3804 = vld [vmem:[%s3796 + $0x50] sm:$0xff]
        %v3805 = vld [vmem:[%s3796 + $0x60] sm:$0xff]
        %v3806 = vld [vmem:[%s3796 + $0x68] sm:$0xff]
        %v3807 = vld [vmem:[%s3796 + $0x78] sm:$0xff]
        %v3808 = vld [vmem:[%s3796 + $0x80] sm:$0xff]
        %v3809 = vld [vmem:[%s3796 + $0x90] sm:$0xff]
        %v3810 = vld [vmem:[%s3796 + $0x98] sm:$0xff]
        %v3811 = vld [vmem:[%s3796 + $0xa8] sm:$0xff]
        %v3812 = vld [vmem:[%s3796 + $0xb0] sm:$0xff]
        %v3813 = vld [vmem:[%s3796 + $0xc0] sm:$0xff]
        %v3814 = vld [vmem:[%s3796 + $0xc8] sm:$0xff]
        %v3815 = vld [vmem:[%s3796 + $0xd8] sm:$0xff]
        %v3816 = vld [vmem:[%s3796 + $0xe0] sm:$0xff]
        %v3817 = vld [vmem:[%s3796 + $0xf0] sm:$0xff]
        %v3818 = vld [vmem:[%s3796 + $0xf8] sm:$0xff]
        %v3819 = vld [vmem:[%s3796 + $0x108] sm:$0xff]
        %v3820 = vld [vmem:[%s3796 + $0x110] sm:$0xff]
        %v3821 = vld [vmem:[%s3796 + $0x120] sm:$0xff]
        %v3822 = vld [vmem:[%s3796 + $0x128] sm:$0xff]
        %v3823 = vld [vmem:[%s3796 + $0x138] sm:$0xff]
        %v3824 = vld [vmem:[%s3796 + $0x140] sm:$0xff]
        %v3825 = vld [vmem:[%s3796 + $0x150] sm:$0xff]
        %v3826 = vld [vmem:[%s3796 + $0x158] sm:$0xff]
        %v3827 = vld [vmem:[%s3796 + $0x168] sm:$0xff]
        %v3828 = vld [vmem:[%s3796 + $0x170] sm:$0xff]
        %3861 = vrot.lane.b32.xlu0 %v3797, 48
        %v3862 = vpop.permute.xlu0 %3861
        %3863 = vrot.lane.b32.xlu0 %v3798, 48
        %v3864 = vpop.permute.xlu0 %3863
        %3865 = vrot.lane.b32.xlu0 %v3799, 48
        %v3866 = vpop.permute.xlu0 %3865
        %3867 = vrot.lane.b32.xlu0 %v3800, 48
        %v3868 = vpop.permute.xlu0 %3867
        %3869 = vrot.lane.b32.xlu0 %v3801, 48
        %v3870 = vpop.permute.xlu0 %3869
        %3871 = vrot.lane.b32.xlu0 %v3802, 48
        %v3872 = vpop.permute.xlu0 %3871
        %3873 = vrot.lane.b32.xlu0 %v3803, 48
        %v3874 = vpop.permute.xlu0 %3873
        %3875 = vrot.lane.b32.xlu0 %v3804, 48
        %v3876 = vpop.permute.xlu0 %3875
        %3877 = vrot.lane.b32.xlu0 %v3805, 48
        %v3878 = vpop.permute.xlu0 %3877
        %3879 = vrot.lane.b32.xlu0 %v3806, 48
        %v3880 = vpop.permute.xlu0 %3879
        %3881 = vrot.lane.b32.xlu0 %v3807, 48
        %v3882 = vpop.permute.xlu0 %3881
        %3883 = vrot.lane.b32.xlu0 %v3808, 48
        %v3884 = vpop.permute.xlu0 %3883
        %3885 = vrot.lane.b32.xlu0 %v3809, 48
        %v3886 = vpop.permute.xlu0 %3885
        %3887 = vrot.lane.b32.xlu0 %v3810, 48
        %v3888 = vpop.permute.xlu0 %3887
        %3889 = vrot.lane.b32.xlu0 %v3811, 48
        %v3890 = vpop.permute.xlu0 %3889
        %3891 = vrot.lane.b32.xlu0 %v3812, 48
        %v3892 = vpop.permute.xlu0 %3891
        %3893 = vrot.lane.b32.xlu0 %v3813, 48
        %v3894 = vpop.permute.xlu0 %3893
        %3895 = vrot.lane.b32.xlu0 %v3814, 48
        %v3896 = vpop.permute.xlu0 %3895
        %3897 = vrot.lane.b32.xlu0 %v3815, 48
        %v3898 = vpop.permute.xlu0 %3897
        %3899 = vrot.lane.b32.xlu0 %v3816, 48
        %v3900 = vpop.permute.xlu0 %3899
        %3901 = vrot.lane.b32.xlu0 %v3817, 48
        %v3902 = vpop.permute.xlu0 %3901
        %3903 = vrot.lane.b32.xlu0 %v3818, 48
        %v3904 = vpop.permute.xlu0 %3903
        %3905 = vrot.lane.b32.xlu0 %v3819, 48
        %v3906 = vpop.permute.xlu0 %3905
        %3907 = vrot.lane.b32.xlu0 %v3820, 48
        %v3908 = vpop.permute.xlu0 %3907
        %3909 = vrot.lane.b32.xlu0 %v3821, 48
        %v3910 = vpop.permute.xlu0 %3909
        %3911 = vrot.lane.b32.xlu0 %v3822, 48
        %v3912 = vpop.permute.xlu0 %3911
        %3913 = vrot.lane.b32.xlu0 %v3823, 48
        %v3914 = vpop.permute.xlu0 %3913
        %3915 = vrot.lane.b32.xlu0 %v3824, 48
        %v3916 = vpop.permute.xlu0 %3915
        %3917 = vrot.lane.b32.xlu0 %v3825, 48
        %v3918 = vpop.permute.xlu0 %3917
        %3919 = vrot.lane.b32.xlu0 %v3826, 48
        %v3920 = vpop.permute.xlu0 %3919
        %3921 = vrot.lane.b32.xlu0 %v3827, 48
        %v3922 = vpop.permute.xlu0 %3921
        %3923 = vrot.lane.b32.xlu0 %v3828, 48
        %v3924 = vpop.permute.xlu0 %3923
        %vm3957 = vcmask 458112
        %3958 = vst.msk [vmem:[#allocation5] sm:$0xff] %vm3957, %v3862
        %3959 = vst.msk [vmem:[#allocation5 + $0x8] sm:$0xff] %vm3957, %v3864
        %3960 = vst.msk [vmem:[#allocation5 + $0x10] sm:$0xff] %vm3957, %v3866
        %3961 = vst.msk [vmem:[#allocation5 + $0x18] sm:$0xff] %vm3957, %v3868
        %3962 = vst.msk [vmem:[#allocation5 + $0x20] sm:$0xff] %vm3957, %v3870
        %3963 = vst.msk [vmem:[#allocation5 + $0x28] sm:$0xff] %vm3957, %v3872
        %3964 = vst.msk [vmem:[#allocation5 + $0x30] sm:$0xff] %vm3957, %v3874
        %3965 = vst.msk [vmem:[#allocation5 + $0x38] sm:$0xff] %vm3957, %v3876
        %3966 = vst.msk [vmem:[#allocation5 + $0x40] sm:$0xff] %vm3957, %v3878
        %3967 = vst.msk [vmem:[#allocation5 + $0x48] sm:$0xff] %vm3957, %v3880
        %3968 = vst.msk [vmem:[#allocation5 + $0x50] sm:$0xff] %vm3957, %v3882
        %3969 = vst.msk [vmem:[#allocation5 + $0x58] sm:$0xff] %vm3957, %v3884
        %3970 = vst.msk [vmem:[#allocation5 + $0x60] sm:$0xff] %vm3957, %v3886
        %3971 = vst.msk [vmem:[#allocation5 + $0x68] sm:$0xff] %vm3957, %v3888
        %3972 = vst.msk [vmem:[#allocation5 + $0x70] sm:$0xff] %vm3957, %v3890
        %3973 = vst.msk [vmem:[#allocation5 + $0x78] sm:$0xff] %vm3957, %v3892
        %3974 = vst.msk [vmem:[#allocation5 + $0x80] sm:$0xff] %vm3957, %v3894
        %3975 = vst.msk [vmem:[#allocation5 + $0x88] sm:$0xff] %vm3957, %v3896
        %3976 = vst.msk [vmem:[#allocation5 + $0x90] sm:$0xff] %vm3957, %v3898
        %3977 = vst.msk [vmem:[#allocation5 + $0x98] sm:$0xff] %vm3957, %v3900
        %3978 = vst.msk [vmem:[#allocation5 + $0xa0] sm:$0xff] %vm3957, %v3902
        %3979 = vst.msk [vmem:[#allocation5 + $0xa8] sm:$0xff] %vm3957, %v3904
        %3980 = vst.msk [vmem:[#allocation5 + $0xb0] sm:$0xff] %vm3957, %v3906
        %3981 = vst.msk [vmem:[#allocation5 + $0xb8] sm:$0xff] %vm3957, %v3908
        %3982 = vst.msk [vmem:[#allocation5 + $0xc0] sm:$0xff] %vm3957, %v3910
        %3983 = vst.msk [vmem:[#allocation5 + $0xc8] sm:$0xff] %vm3957, %v3912
        %3984 = vst.msk [vmem:[#allocation5 + $0xd0] sm:$0xff] %vm3957, %v3914
        %3985 = vst.msk [vmem:[#allocation5 + $0xd8] sm:$0xff] %vm3957, %v3916
        %3986 = vst.msk [vmem:[#allocation5 + $0xe0] sm:$0xff] %vm3957, %v3918
        %3987 = vst.msk [vmem:[#allocation5 + $0xe8] sm:$0xff] %vm3957, %v3920
        %3988 = vst.msk [vmem:[#allocation5 + $0xf0] sm:$0xff] %vm3957, %v3922
        %3989 = vst.msk [vmem:[#allocation5 + $0xf8] sm:$0xff] %vm3957, %v3924
        %v3990 = vld [vmem:[%s3796 + $0x1] sm:$0xff]
        %v3991 = vld [vmem:[%s3796 + $0x9] sm:$0xff]
        %v3992 = vld [vmem:[%s3796 + $0x19] sm:$0xff]
        %v3993 = vld [vmem:[%s3796 + $0x21] sm:$0xff]
        %v3994 = vld [vmem:[%s3796 + $0x31] sm:$0xff]
        %v3995 = vld [vmem:[%s3796 + $0x39] sm:$0xff]
        %v3996 = vld [vmem:[%s3796 + $0x49] sm:$0xff]
        %v3997 = vld [vmem:[%s3796 + $0x51] sm:$0xff]
        %v3998 = vld [vmem:[%s3796 + $0x61] sm:$0xff]
        %v3999 = vld [vmem:[%s3796 + $0x69] sm:$0xff]
        %v4000 = vld [vmem:[%s3796 + $0x79] sm:$0xff]
        %v4001 = vld [vmem:[%s3796 + $0x81] sm:$0xff]
        %v4002 = vld [vmem:[%s3796 + $0x91] sm:$0xff]
        %v4003 = vld [vmem:[%s3796 + $0x99] sm:$0xff]
        %v4004 = vld [vmem:[%s3796 + $0xa9] sm:$0xff]
        %v4005 = vld [vmem:[%s3796 + $0xb1] sm:$0xff]
        %v4006 = vld [vmem:[%s3796 + $0xc1] sm:$0xff]
        %v4007 = vld [vmem:[%s3796 + $0xc9] sm:$0xff]
        %v4008 = vld [vmem:[%s3796 + $0xd9] sm:$0xff]
        %v4009 = vld [vmem:[%s3796 + $0xe1] sm:$0xff]
        %v4010 = vld [vmem:[%s3796 + $0xf1] sm:$0xff]
        %v4011 = vld [vmem:[%s3796 + $0xf9] sm:$0xff]
        %v4012 = vld [vmem:[%s3796 + $0x109] sm:$0xff]
        %v4013 = vld [vmem:[%s3796 + $0x111] sm:$0xff]
        %v4014 = vld [vmem:[%s3796 + $0x121] sm:$0xff]
        %v4015 = vld [vmem:[%s3796 + $0x129] sm:$0xff]
        %v4016 = vld [vmem:[%s3796 + $0x139] sm:$0xff]
        %v4017 = vld [vmem:[%s3796 + $0x141] sm:$0xff]
        %v4018 = vld [vmem:[%s3796 + $0x151] sm:$0xff]
        %v4019 = vld [vmem:[%s3796 + $0x159] sm:$0xff]
        %v4020 = vld [vmem:[%s3796 + $0x169] sm:$0xff]
        %v4021 = vld [vmem:[%s3796 + $0x171] sm:$0xff]
        %4054 = vrot.lane.b32.xlu0 %v3990, 56
        %v4055 = vpop.permute.xlu0 %4054
        %4056 = vrot.lane.b32.xlu0 %v3991, 56
        %v4057 = vpop.permute.xlu0 %4056
        %4058 = vrot.lane.b32.xlu0 %v3992, 56
        %v4059 = vpop.permute.xlu0 %4058
        %4060 = vrot.lane.b32.xlu0 %v3993, 56
        %v4061 = vpop.permute.xlu0 %4060
        %4062 = vrot.lane.b32.xlu0 %v3994, 56
        %v4063 = vpop.permute.xlu0 %4062
        %4064 = vrot.lane.b32.xlu0 %v3995, 56
        %v4065 = vpop.permute.xlu0 %4064
        %4066 = vrot.lane.b32.xlu0 %v3996, 56
        %v4067 = vpop.permute.xlu0 %4066
        %4068 = vrot.lane.b32.xlu0 %v3997, 56
        %v4069 = vpop.permute.xlu0 %4068
        %4070 = vrot.lane.b32.xlu0 %v3998, 56
        %v4071 = vpop.permute.xlu0 %4070
        %4072 = vrot.lane.b32.xlu0 %v3999, 56
        %v4073 = vpop.permute.xlu0 %4072
        %4074 = vrot.lane.b32.xlu0 %v4000, 56
        %v4075 = vpop.permute.xlu0 %4074
        %4076 = vrot.lane.b32.xlu0 %v4001, 56
        %v4077 = vpop.permute.xlu0 %4076
        %4078 = vrot.lane.b32.xlu0 %v4002, 56
        %v4079 = vpop.permute.xlu0 %4078
        %4080 = vrot.lane.b32.xlu0 %v4003, 56
        %v4081 = vpop.permute.xlu0 %4080
        %4082 = vrot.lane.b32.xlu0 %v4004, 56
        %v4083 = vpop.permute.xlu0 %4082
        %4084 = vrot.lane.b32.xlu0 %v4005, 56
        %v4085 = vpop.permute.xlu0 %4084
        %4086 = vrot.lane.b32.xlu0 %v4006, 56
        %v4087 = vpop.permute.xlu0 %4086
        %4088 = vrot.lane.b32.xlu0 %v4007, 56
        %v4089 = vpop.permute.xlu0 %4088
        %4090 = vrot.lane.b32.xlu0 %v4008, 56
        %v4091 = vpop.permute.xlu0 %4090
        %4092 = vrot.lane.b32.xlu0 %v4009, 56
        %v4093 = vpop.permute.xlu0 %4092
        %4094 = vrot.lane.b32.xlu0 %v4010, 56
        %v4095 = vpop.permute.xlu0 %4094
        %4096 = vrot.lane.b32.xlu0 %v4011, 56
        %v4097 = vpop.permute.xlu0 %4096
        %4098 = vrot.lane.b32.xlu0 %v4012, 56
        %v4099 = vpop.permute.xlu0 %4098
        %4100 = vrot.lane.b32.xlu0 %v4013, 56
        %v4101 = vpop.permute.xlu0 %4100
        %4102 = vrot.lane.b32.xlu0 %v4014, 56
        %v4103 = vpop.permute.xlu0 %4102
        %4104 = vrot.lane.b32.xlu0 %v4015, 56
        %v4105 = vpop.permute.xlu0 %4104
        %4106 = vrot.lane.b32.xlu0 %v4016, 56
        %v4107 = vpop.permute.xlu0 %4106
        %4108 = vrot.lane.b32.xlu0 %v4017, 56
        %v4109 = vpop.permute.xlu0 %4108
        %4110 = vrot.lane.b32.xlu0 %v4018, 56
        %v4111 = vpop.permute.xlu0 %4110
        %4112 = vrot.lane.b32.xlu0 %v4019, 56
        %v4113 = vpop.permute.xlu0 %4112
        %4114 = vrot.lane.b32.xlu0 %v4020, 56
        %v4115 = vpop.permute.xlu0 %4114
        %4116 = vrot.lane.b32.xlu0 %v4021, 56
        %v4117 = vpop.permute.xlu0 %4116
        %vm4150 = vcmask 523712
        %4151 = vst.msk [vmem:[#allocation5] sm:$0xff] %vm4150, %v4055
        %4152 = vst.msk [vmem:[#allocation5 + $0x8] sm:$0xff] %vm4150, %v4057
        %4153 = vst.msk [vmem:[#allocation5 + $0x10] sm:$0xff] %vm4150, %v4059
        %4154 = vst.msk [vmem:[#allocation5 + $0x18] sm:$0xff] %vm4150, %v4061
        %4155 = vst.msk [vmem:[#allocation5 + $0x20] sm:$0xff] %vm4150, %v4063
        %4156 = vst.msk [vmem:[#allocation5 + $0x28] sm:$0xff] %vm4150, %v4065
        %4157 = vst.msk [vmem:[#allocation5 + $0x30] sm:$0xff] %vm4150, %v4067
        %4158 = vst.msk [vmem:[#allocation5 + $0x38] sm:$0xff] %vm4150, %v4069
        %4159 = vst.msk [vmem:[#allocation5 + $0x40] sm:$0xff] %vm4150, %v4071
        %4160 = vst.msk [vmem:[#allocation5 + $0x48] sm:$0xff] %vm4150, %v4073
        %4161 = vst.msk [vmem:[#allocation5 + $0x50] sm:$0xff] %vm4150, %v4075
        %4162 = vst.msk [vmem:[#allocation5 + $0x58] sm:$0xff] %vm4150, %v4077
        %4163 = vst.msk [vmem:[#allocation5 + $0x60] sm:$0xff] %vm4150, %v4079
        %4164 = vst.msk [vmem:[#allocation5 + $0x68] sm:$0xff] %vm4150, %v4081
        %4165 = vst.msk [vmem:[#allocation5 + $0x70] sm:$0xff] %vm4150, %v4083
        %4166 = vst.msk [vmem:[#allocation5 + $0x78] sm:$0xff] %vm4150, %v4085
        %4167 = vst.msk [vmem:[#allocation5 + $0x80] sm:$0xff] %vm4150, %v4087
        %4168 = vst.msk [vmem:[#allocation5 + $0x88] sm:$0xff] %vm4150, %v4089
        %4169 = vst.msk [vmem:[#allocation5 + $0x90] sm:$0xff] %vm4150, %v4091
        %4170 = vst.msk [vmem:[#allocation5 + $0x98] sm:$0xff] %vm4150, %v4093
        %4171 = vst.msk [vmem:[#allocation5 + $0xa0] sm:$0xff] %vm4150, %v4095
        %4172 = vst.msk [vmem:[#allocation5 + $0xa8] sm:$0xff] %vm4150, %v4097
        %4173 = vst.msk [vmem:[#allocation5 + $0xb0] sm:$0xff] %vm4150, %v4099
        %4174 = vst.msk [vmem:[#allocation5 + $0xb8] sm:$0xff] %vm4150, %v4101
        %4175 = vst.msk [vmem:[#allocation5 + $0xc0] sm:$0xff] %vm4150, %v4103
        %4176 = vst.msk [vmem:[#allocation5 + $0xc8] sm:$0xff] %vm4150, %v4105
        %4177 = vst.msk [vmem:[#allocation5 + $0xd0] sm:$0xff] %vm4150, %v4107
        %4178 = vst.msk [vmem:[#allocation5 + $0xd8] sm:$0xff] %vm4150, %v4109
        %4179 = vst.msk [vmem:[#allocation5 + $0xe0] sm:$0xff] %vm4150, %v4111
        %4180 = vst.msk [vmem:[#allocation5 + $0xe8] sm:$0xff] %vm4150, %v4113
        %4181 = vst.msk [vmem:[#allocation5 + $0xf0] sm:$0xff] %vm4150, %v4115
        %4182 = vst.msk [vmem:[#allocation5 + $0xf8] sm:$0xff] %vm4150, %v4117
        %v4183 = vld [vmem:[%s3796 + $0x2] sm:$0xff]
        %v4184 = vld [vmem:[%s3796 + $0xa] sm:$0xff]
        %v4185 = vld [vmem:[%s3796 + $0x1a] sm:$0xff]
        %v4186 = vld [vmem:[%s3796 + $0x22] sm:$0xff]
        %v4187 = vld [vmem:[%s3796 + $0x32] sm:$0xff]
        %v4188 = vld [vmem:[%s3796 + $0x3a] sm:$0xff]
        %v4189 = vld [vmem:[%s3796 + $0x4a] sm:$0xff]
        %v4190 = vld [vmem:[%s3796 + $0x52] sm:$0xff]
        %v4191 = vld [vmem:[%s3796 + $0x62] sm:$0xff]
        %v4192 = vld [vmem:[%s3796 + $0x6a] sm:$0xff]
        %v4193 = vld [vmem:[%s3796 + $0x7a] sm:$0xff]
        %v4194 = vld [vmem:[%s3796 + $0x82] sm:$0xff]
        %v4195 = vld [vmem:[%s3796 + $0x92] sm:$0xff]
        %v4196 = vld [vmem:[%s3796 + $0x9a] sm:$0xff]
        %v4197 = vld [vmem:[%s3796 + $0xaa] sm:$0xff]
        %v4198 = vld [vmem:[%s3796 + $0xb2] sm:$0xff]
        %v4199 = vld [vmem:[%s3796 + $0xc2] sm:$0xff]
        %v4200 = vld [vmem:[%s3796 + $0xca] sm:$0xff]
        %v4201 = vld [vmem:[%s3796 + $0xda] sm:$0xff]
        %v4202 = vld [vmem:[%s3796 + $0xe2] sm:$0xff]
        %v4203 = vld [vmem:[%s3796 + $0xf2] sm:$0xff]
        %v4204 = vld [vmem:[%s3796 + $0xfa] sm:$0xff]
        %v4205 = vld [vmem:[%s3796 + $0x10a] sm:$0xff]
        %v4206 = vld [vmem:[%s3796 + $0x112] sm:$0xff]
        %v4207 = vld [vmem:[%s3796 + $0x122] sm:$0xff]
        %v4208 = vld [vmem:[%s3796 + $0x12a] sm:$0xff]
        %v4209 = vld [vmem:[%s3796 + $0x13a] sm:$0xff]
        %v4210 = vld [vmem:[%s3796 + $0x142] sm:$0xff]
        %v4211 = vld [vmem:[%s3796 + $0x152] sm:$0xff]
        %v4212 = vld [vmem:[%s3796 + $0x15a] sm:$0xff]
        %v4213 = vld [vmem:[%s3796 + $0x16a] sm:$0xff]
        %v4214 = vld [vmem:[%s3796 + $0x172] sm:$0xff]
        %4247 = vrot.lane.b32.xlu0 %v4183, 64
        %v4248 = vpop.permute.xlu0 %4247
        %4249 = vrot.lane.b32.xlu0 %v4184, 64
        %v4250 = vpop.permute.xlu0 %4249
        %4251 = vrot.lane.b32.xlu0 %v4185, 64
        %v4252 = vpop.permute.xlu0 %4251
        %4253 = vrot.lane.b32.xlu0 %v4186, 64
        %v4254 = vpop.permute.xlu0 %4253
        %4255 = vrot.lane.b32.xlu0 %v4187, 64
        %v4256 = vpop.permute.xlu0 %4255
        %4257 = vrot.lane.b32.xlu0 %v4188, 64
        %v4258 = vpop.permute.xlu0 %4257
        %4259 = vrot.lane.b32.xlu0 %v4189, 64
        %v4260 = vpop.permute.xlu0 %4259
        %4261 = vrot.lane.b32.xlu0 %v4190, 64
        %v4262 = vpop.permute.xlu0 %4261
        %4263 = vrot.lane.b32.xlu0 %v4191, 64
        %v4264 = vpop.permute.xlu0 %4263
        %4265 = vrot.lane.b32.xlu0 %v4192, 64
        %v4266 = vpop.permute.xlu0 %4265
        %4267 = vrot.lane.b32.xlu0 %v4193, 64
        %v4268 = vpop.permute.xlu0 %4267
        %4269 = vrot.lane.b32.xlu0 %v4194, 64
        %v4270 = vpop.permute.xlu0 %4269
        %4271 = vrot.lane.b32.xlu0 %v4195, 64
        %v4272 = vpop.permute.xlu0 %4271
        %4273 = vrot.lane.b32.xlu0 %v4196, 64
        %v4274 = vpop.permute.xlu0 %4273
        %4275 = vrot.lane.b32.xlu0 %v4197, 64
        %v4276 = vpop.permute.xlu0 %4275
        %4277 = vrot.lane.b32.xlu0 %v4198, 64
        %v4278 = vpop.permute.xlu0 %4277
        %4279 = vrot.lane.b32.xlu0 %v4199, 64
        %v4280 = vpop.permute.xlu0 %4279
        %4281 = vrot.lane.b32.xlu0 %v4200, 64
        %v4282 = vpop.permute.xlu0 %4281
        %4283 = vrot.lane.b32.xlu0 %v4201, 64
        %v4284 = vpop.permute.xlu0 %4283
        %4285 = vrot.lane.b32.xlu0 %v4202, 64
        %v4286 = vpop.permute.xlu0 %4285
        %4287 = vrot.lane.b32.xlu0 %v4203, 64
        %v4288 = vpop.permute.xlu0 %4287
        %4289 = vrot.lane.b32.xlu0 %v4204, 64
        %v4290 = vpop.permute.xlu0 %4289
        %4291 = vrot.lane.b32.xlu0 %v4205, 64
        %v4292 = vpop.permute.xlu0 %4291
        %4293 = vrot.lane.b32.xlu0 %v4206, 64
        %v4294 = vpop.permute.xlu0 %4293
        %4295 = vrot.lane.b32.xlu0 %v4207, 64
        %v4296 = vpop.permute.xlu0 %4295
        %4297 = vrot.lane.b32.xlu0 %v4208, 64
        %v4298 = vpop.permute.xlu0 %4297
        %4299 = vrot.lane.b32.xlu0 %v4209, 64
        %v4300 = vpop.permute.xlu0 %4299
        %4301 = vrot.lane.b32.xlu0 %v4210, 64
        %v4302 = vpop.permute.xlu0 %4301
        %4303 = vrot.lane.b32.xlu0 %v4211, 64
        %v4304 = vpop.permute.xlu0 %4303
        %4305 = vrot.lane.b32.xlu0 %v4212, 64
        %v4306 = vpop.permute.xlu0 %4305
        %4307 = vrot.lane.b32.xlu0 %v4213, 64
        %v4308 = vpop.permute.xlu0 %4307
        %4309 = vrot.lane.b32.xlu0 %v4214, 64
        %v4310 = vpop.permute.xlu0 %4309
        %vm4343 = vcmask 589312
        %4344 = vst.msk [vmem:[#allocation5] sm:$0xff] %vm4343, %v4248
        %4345 = vst.msk [vmem:[#allocation5 + $0x8] sm:$0xff] %vm4343, %v4250
        %4346 = vst.msk [vmem:[#allocation5 + $0x10] sm:$0xff] %vm4343, %v4252
        %4347 = vst.msk [vmem:[#allocation5 + $0x18] sm:$0xff] %vm4343, %v4254
        %4348 = vst.msk [vmem:[#allocation5 + $0x20] sm:$0xff] %vm4343, %v4256
        %4349 = vst.msk [vmem:[#allocation5 + $0x28] sm:$0xff] %vm4343, %v4258
        %4350 = vst.msk [vmem:[#allocation5 + $0x30] sm:$0xff] %vm4343, %v4260
        %4351 = vst.msk [vmem:[#allocation5 + $0x38] sm:$0xff] %vm4343, %v4262
        %4352 = vst.msk [vmem:[#allocation5 + $0x40] sm:$0xff] %vm4343, %v4264
        %4353 = vst.msk [vmem:[#allocation5 + $0x48] sm:$0xff] %vm4343, %v4266
        %4354 = vst.msk [vmem:[#allocation5 + $0x50] sm:$0xff] %vm4343, %v4268
        %4355 = vst.msk [vmem:[#allocation5 + $0x58] sm:$0xff] %vm4343, %v4270
        %4356 = vst.msk [vmem:[#allocation5 + $0x60] sm:$0xff] %vm4343, %v4272
        %4357 = vst.msk [vmem:[#allocation5 + $0x68] sm:$0xff] %vm4343, %v4274
        %4358 = vst.msk [vmem:[#allocation5 + $0x70] sm:$0xff] %vm4343, %v4276
        %4359 = vst.msk [vmem:[#allocation5 + $0x78] sm:$0xff] %vm4343, %v4278
        %4360 = vst.msk [vmem:[#allocation5 + $0x80] sm:$0xff] %vm4343, %v4280
        %4361 = vst.msk [vmem:[#allocation5 + $0x88] sm:$0xff] %vm4343, %v4282
        %4362 = vst.msk [vmem:[#allocation5 + $0x90] sm:$0xff] %vm4343, %v4284
        %4363 = vst.msk [vmem:[#allocation5 + $0x98] sm:$0xff] %vm4343, %v4286
        %4364 = vst.msk [vmem:[#allocation5 + $0xa0] sm:$0xff] %vm4343, %v4288
        %4365 = vst.msk [vmem:[#allocation5 + $0xa8] sm:$0xff] %vm4343, %v4290
        %4366 = vst.msk [vmem:[#allocation5 + $0xb0] sm:$0xff] %vm4343, %v4292
        %4367 = vst.msk [vmem:[#allocation5 + $0xb8] sm:$0xff] %vm4343, %v4294
        %4368 = vst.msk [vmem:[#allocation5 + $0xc0] sm:$0xff] %vm4343, %v4296
        %4369 = vst.msk [vmem:[#allocation5 + $0xc8] sm:$0xff] %vm4343, %v4298
        %4370 = vst.msk [vmem:[#allocation5 + $0xd0] sm:$0xff] %vm4343, %v4300
        %4371 = vst.msk [vmem:[#allocation5 + $0xd8] sm:$0xff] %vm4343, %v4302
        %4372 = vst.msk [vmem:[#allocation5 + $0xe0] sm:$0xff] %vm4343, %v4304
        %4373 = vst.msk [vmem:[#allocation5 + $0xe8] sm:$0xff] %vm4343, %v4306
        %4374 = vst.msk [vmem:[#allocation5 + $0xf0] sm:$0xff] %vm4343, %v4308
        %4375 = vst.msk [vmem:[#allocation5 + $0xf8] sm:$0xff] %vm4343, %v4310
        %v4376 = vld [vmem:[#allocation5] sm:$0xff]
        %v4377 = vld [vmem:[#allocation5 + $0x8] sm:$0xff]
        %v4378 = vld [vmem:[#allocation5 + $0x10] sm:$0xff]
        %v4379 = vld [vmem:[#allocation5 + $0x18] sm:$0xff]
        %v4380 = vld [vmem:[#allocation5 + $0x20] sm:$0xff]
        %v4381 = vld [vmem:[#allocation5 + $0x28] sm:$0xff]
        %v4382 = vld [vmem:[#allocation5 + $0x30] sm:$0xff]
        %v4383 = vld [vmem:[#allocation5 + $0x38] sm:$0xff]
        %v4384 = vld [vmem:[#allocation5 + $0x40] sm:$0xff]
        %v4385 = vld [vmem:[#allocation5 + $0x48] sm:$0xff]
        %v4386 = vld [vmem:[#allocation5 + $0x50] sm:$0xff]
        %v4387 = vld [vmem:[#allocation5 + $0x58] sm:$0xff]
        %v4388 = vld [vmem:[#allocation5 + $0x60] sm:$0xff]
        %v4389 = vld [vmem:[#allocation5 + $0x68] sm:$0xff]
        %v4390 = vld [vmem:[#allocation5 + $0x70] sm:$0xff]
        %v4391 = vld [vmem:[#allocation5 + $0x78] sm:$0xff]
        %v4392 = vld [vmem:[#allocation5 + $0x80] sm:$0xff]
        %v4393 = vld [vmem:[#allocation5 + $0x88] sm:$0xff]
        %v4394 = vld [vmem:[#allocation5 + $0x90] sm:$0xff]
        %v4395 = vld [vmem:[#allocation5 + $0x98] sm:$0xff]
        %v4396 = vld [vmem:[#allocation5 + $0xa0] sm:$0xff]
        %v4397 = vld [vmem:[#allocation5 + $0xa8] sm:$0xff]
        %v4398 = vld [vmem:[#allocation5 + $0xb0] sm:$0xff]
        %v4399 = vld [vmem:[#allocation5 + $0xb8] sm:$0xff]
        %v4400 = vld [vmem:[#allocation5 + $0xc0] sm:$0xff]
        %v4401 = vld [vmem:[#allocation5 + $0xc8] sm:$0xff]
        %v4402 = vld [vmem:[#allocation5 + $0xd0] sm:$0xff]
        %v4403 = vld [vmem:[#allocation5 + $0xd8] sm:$0xff]
        %v4404 = vld [vmem:[#allocation5 + $0xe0] sm:$0xff]
        %v4405 = vld [vmem:[#allocation5 + $0xe8] sm:$0xff]
        %v4406 = vld [vmem:[#allocation5 + $0xf0] sm:$0xff]
        %v4407 = vld [vmem:[#allocation5 + $0xf8] sm:$0xff]
        %v4408 = vld [vmem:[%s3] sm:$0xff]
        %v4409 = vld [vmem:[%s3 + $0x8] sm:$0xff]
        %v4410 = vld [vmem:[%s3 + $0x10] sm:$0xff]
        %v4411 = vld [vmem:[%s3 + $0x18] sm:$0xff]
        %v4412 = vld [vmem:[%s3 + $0x20] sm:$0xff]
        %v4413 = vld [vmem:[%s3 + $0x28] sm:$0xff]
        %v4414 = vld [vmem:[%s3 + $0x30] sm:$0xff]
        %v4415 = vld [vmem:[%s3 + $0x38] sm:$0xff]
        %v4416 = vld [vmem:[%s3 + $0x40] sm:$0xff]
        %v4417 = vld [vmem:[%s4] sm:$0x1]
        %v4419 = vlaneseq
        %v4420 = vshrl.u32 %v4419, 7
        %v4421 = vsub.s32 0, %v4420
        %v4422 = vrot.slane %v4417, %v4421
        %vm4424 = vcmask 588800
        %v4426 = vsel %vm4424, %v4376, 0
        %v4429 = vsel %vm4424, %v4377, 0
        %v4432 = vsel %vm4424, %v4378, 0
        %v4435 = vsel %vm4424, %v4379, 0
        %v4438 = vsel %vm4424, %v4380, 0
        %v4441 = vsel %vm4424, %v4381, 0
        %v4444 = vsel %vm4424, %v4382, 0
        %v4447 = vsel %vm4424, %v4383, 0
        %v4450 = vsel %vm4424, %v4384, 0
        %v4453 = vsel %vm4424, %v4385, 0
        %v4456 = vsel %vm4424, %v4386, 0
        %v4459 = vsel %vm4424, %v4387, 0
        %v4462 = vsel %vm4424, %v4388, 0
        %v4465 = vsel %vm4424, %v4389, 0
        %v4468 = vsel %vm4424, %v4390, 0
        %v4471 = vsel %vm4424, %v4391, 0
        %v4474 = vsel %vm4424, %v4392, 0
        %v4477 = vsel %vm4424, %v4393, 0
        %v4480 = vsel %vm4424, %v4394, 0
        %v4483 = vsel %vm4424, %v4395, 0
        %v4486 = vsel %vm4424, %v4396, 0
        %v4489 = vsel %vm4424, %v4397, 0
        %v4492 = vsel %vm4424, %v4398, 0
        %v4495 = vsel %vm4424, %v4399, 0
        %v4498 = vsel %vm4424, %v4400, 0
        %v4501 = vsel %vm4424, %v4401, 0
        %v4504 = vsel %vm4424, %v4402, 0
        %v4507 = vsel %vm4424, %v4403, 0
        %v4510 = vsel %vm4424, %v4404, 0
        %v4513 = vsel %vm4424, %v4405, 0
        %v4516 = vsel %vm4424, %v4406, 0
        %v4519 = vsel %vm4424, %v4407, 0
        %4521 = vmatprep.subr.mxu0 0.0
        %4522 = vmatpush1.msra.mxu0 0.0
        %4523 = vmatprep.subr.mxu0 0.0
        %4524 = vmatpush1.msra.mxu0 0.0
        %4525 = vmatprep.subr.mxu0 0.0
        %4526 = vmatpush1.msra.mxu0 0.0
        %4527 = vmatprep.subr.mxu0 0.0
        %4528 = vmatpush1.msra.mxu0 0.0
        %4529 = vmatprep.subr.mxu0 0.0
        %4530 = vmatpush1.msra.mxu0 0.0
        %4531 = vmatprep.subr.mxu0 0.0
        %4532 = vmatpush1.msra.mxu0 0.0
        %4533 = vmatprep.subr.mxu0 0.0
        %4534 = vmatpush1.msra.mxu0 0.0
        %4535 = vmatprep.subr.mxu0 0.0
        %4536 = vmatpush1.msra.mxu0 %v4416
        %4537 = vmatprep.subr.mxu0 0.0
        %4538 = vmatpush1.msra.mxu0 %v4415
        %4539 = vmatprep.subr.mxu0 0.0
        %4540 = vmatpush1.msra.mxu0 %v4414
        %4541 = vmatprep.subr.mxu0 0.0
        %4542 = vmatpush1.msra.mxu0 %v4413
        %4543 = vmatprep.subr.mxu0 0.0
        %4544 = vmatpush1.msra.mxu0 %v4412
        %4545 = vmatprep.subr.mxu0 0.0
        %4546 = vmatpush1.msra.mxu0 %v4411
        %4547 = vmatprep.subr.mxu0 0.0
        %4548 = vmatpush1.msra.mxu0 %v4410
        %4549 = vmatprep.subr.mxu0 0.0
        %4550 = vmatpush1.msra.mxu0 %v4409
        %4551 = vmatprep.subr.mxu0 0.0
        %4552 = vmatpush1.msra.mxu0 %v4408
        %4553 = vmatprep.subr.mxu0 0.0
        %4554 = vmatpush2.msra.mxu0 0.0
        %4555 = vmatprep.subr.mxu0 0.0
        %4556 = vmatpush2.msra.mxu0 0.0
        %4557 = vmatprep.subr.mxu0 0.0
        %4558 = vmatpush2.msra.mxu0 0.0
        %4559 = vmatprep.subr.mxu0 0.0
        %4560 = vmatpush2.msra.mxu0 0.0
        %4561 = vmatprep.subr.mxu0 0.0
        %4562 = vmatpush2.msra.mxu0 0.0
        %4563 = vmatprep.subr.mxu0 0.0
        %4564 = vmatpush2.msra.mxu0 0.0
        %4565 = vmatprep.subr.mxu0 0.0
        %4566 = vmatpush2.msra.mxu0 0.0
        %4567 = vmatprep.subr.mxu0 0.0
        %4568 = vmatpush2.msra.mxu0 0.0
        %4569 = vmatprep.subr.mxu0 0.0
        %4570 = vmatpush2.msra.mxu0 0.0
        %4571 = vmatprep.subr.mxu0 0.0
        %4572 = vmatpush2.msra.mxu0 0.0
        %4573 = vmatprep.subr.mxu0 0.0
        %4574 = vmatpush2.msra.mxu0 0.0
        %4575 = vmatprep.subr.mxu0 0.0
        %4576 = vmatpush2.msra.mxu0 0.0
        %4577 = vmatprep.subr.mxu0 0.0
        %4578 = vmatpush2.msra.mxu0 0.0
        %4579 = vmatprep.subr.mxu0 0.0
        %4580 = vmatpush2.msra.mxu0 0.0
        %4581 = vmatprep.subr.mxu0 0.0
        %4582 = vmatpush2.msra.mxu0 0.0
        %4583 = vmatprep.subr.mxu0 0.0
        %4584 = vmatpush2.msra.mxu0 0.0
        %4585 = vmatprep.mubr.f32.mxu0 0.0
        %4586 = vmatmul.mubr.f32.gmra.mxu0 %v4426
        %v4587 = vpop.f32.mrf.mxu0
        %v4588 = vadd.f32 %v4422, %v4587
        %v4589 = vpop.f32.mrf.mxu0
        %4590 = vmatprep.mubr.f32.mxu0 0.0
        %4591 = vmatmul.mubr.f32.gmra.mxu0 %v4429
        %v4592 = vpop.f32.mrf.mxu0
        %v4593 = vadd.f32 %v4422, %v4592
        %v4594 = vpop.f32.mrf.mxu0
        %4595 = vmatprep.mubr.f32.mxu0 0.0
        %4596 = vmatmul.mubr.f32.gmra.mxu0 %v4432
        %v4597 = vpop.f32.mrf.mxu0
        %v4598 = vadd.f32 %v4422, %v4597
        %v4599 = vpop.f32.mrf.mxu0
        %4600 = vmatprep.mubr.f32.mxu0 0.0
        %4601 = vmatmul.mubr.f32.gmra.mxu0 %v4435
        %v4602 = vpop.f32.mrf.mxu0
        %v4603 = vadd.f32 %v4422, %v4602
        %v4604 = vpop.f32.mrf.mxu0
        %4605 = vmatprep.mubr.f32.mxu0 0.0
        %4606 = vmatmul.mubr.f32.gmra.mxu0 %v4438
        %v4607 = vpop.f32.mrf.mxu0
        %v4608 = vadd.f32 %v4422, %v4607
        %v4609 = vpop.f32.mrf.mxu0
        %4610 = vmatprep.mubr.f32.mxu0 0.0
        %4611 = vmatmul.mubr.f32.gmra.mxu0 %v4441
        %v4612 = vpop.f32.mrf.mxu0
        %v4613 = vadd.f32 %v4422, %v4612
        %v4614 = vpop.f32.mrf.mxu0
        %4615 = vmatprep.mubr.f32.mxu0 0.0
        %4616 = vmatmul.mubr.f32.gmra.mxu0 %v4444
        %v4617 = vpop.f32.mrf.mxu0
        %v4618 = vadd.f32 %v4422, %v4617
        %v4619 = vpop.f32.mrf.mxu0
        %4620 = vmatprep.mubr.f32.mxu0 0.0
        %4621 = vmatmul.mubr.f32.gmra.mxu0 %v4447
        %v4622 = vpop.f32.mrf.mxu0
        %v4623 = vadd.f32 %v4422, %v4622
        %v4624 = vpop.f32.mrf.mxu0
        %4625 = vmatprep.mubr.f32.mxu0 0.0
        %4626 = vmatmul.mubr.f32.gmra.mxu0 %v4450
        %v4627 = vpop.f32.mrf.mxu0
        %v4628 = vadd.f32 %v4422, %v4627
        %v4629 = vpop.f32.mrf.mxu0
        %4630 = vmatprep.mubr.f32.mxu0 0.0
        %4631 = vmatmul.mubr.f32.gmra.mxu0 %v4453
        %v4632 = vpop.f32.mrf.mxu0
        %v4633 = vadd.f32 %v4422, %v4632
        %v4634 = vpop.f32.mrf.mxu0
        %4635 = vmatprep.mubr.f32.mxu0 0.0
        %4636 = vmatmul.mubr.f32.gmra.mxu0 %v4456
        %v4637 = vpop.f32.mrf.mxu0
        %v4638 = vadd.f32 %v4422, %v4637
        %v4639 = vpop.f32.mrf.mxu0
        %4640 = vmatprep.mubr.f32.mxu0 0.0
        %4641 = vmatmul.mubr.f32.gmra.mxu0 %v4459
        %v4642 = vpop.f32.mrf.mxu0
        %v4643 = vadd.f32 %v4422, %v4642
        %v4644 = vpop.f32.mrf.mxu0
        %4645 = vmatprep.mubr.f32.mxu0 0.0
        %4646 = vmatmul.mubr.f32.gmra.mxu0 %v4462
        %v4647 = vpop.f32.mrf.mxu0
        %v4648 = vadd.f32 %v4422, %v4647
        %v4649 = vpop.f32.mrf.mxu0
        %4650 = vmatprep.mubr.f32.mxu0 0.0
        %4651 = vmatmul.mubr.f32.gmra.mxu0 %v4465
        %v4652 = vpop.f32.mrf.mxu0
        %v4653 = vadd.f32 %v4422, %v4652
        %v4654 = vpop.f32.mrf.mxu0
        %4655 = vmatprep.mubr.f32.mxu0 0.0
        %4656 = vmatmul.mubr.f32.gmra.mxu0 %v4468
        %v4657 = vpop.f32.mrf.mxu0
        %v4658 = vadd.f32 %v4422, %v4657
        %v4659 = vpop.f32.mrf.mxu0
        %4660 = vmatprep.mubr.f32.mxu0 0.0
        %4661 = vmatmul.mubr.f32.gmra.mxu0 %v4471
        %v4662 = vpop.f32.mrf.mxu0
        %v4663 = vadd.f32 %v4422, %v4662
        %v4664 = vpop.f32.mrf.mxu0
        %4665 = vmatprep.mubr.f32.mxu0 0.0
        %4666 = vmatmul.mubr.f32.gmra.mxu0 %v4474
        %v4667 = vpop.f32.mrf.mxu0
        %v4668 = vadd.f32 %v4422, %v4667
        %v4669 = vpop.f32.mrf.mxu0
        %4670 = vmatprep.mubr.f32.mxu0 0.0
        %4671 = vmatmul.mubr.f32.gmra.mxu0 %v4477
        %v4672 = vpop.f32.mrf.mxu0
        %v4673 = vadd.f32 %v4422, %v4672
        %v4674 = vpop.f32.mrf.mxu0
        %4675 = vmatprep.mubr.f32.mxu0 0.0
        %4676 = vmatmul.mubr.f32.gmra.mxu0 %v4480
        %v4677 = vpop.f32.mrf.mxu0
        %v4678 = vadd.f32 %v4422, %v4677
        %v4679 = vpop.f32.mrf.mxu0
        %4680 = vmatprep.mubr.f32.mxu0 0.0
        %4681 = vmatmul.mubr.f32.gmra.mxu0 %v4483
        %v4682 = vpop.f32.mrf.mxu0
        %v4683 = vadd.f32 %v4422, %v4682
        %v4684 = vpop.f32.mrf.mxu0
        %4685 = vmatprep.mubr.f32.mxu0 0.0
        %4686 = vmatmul.mubr.f32.gmra.mxu0 %v4486
        %v4687 = vpop.f32.mrf.mxu0
        %v4688 = vadd.f32 %v4422, %v4687
        %v4689 = vpop.f32.mrf.mxu0
        %4690 = vmatprep.mubr.f32.mxu0 0.0
        %4691 = vmatmul.mubr.f32.gmra.mxu0 %v4489
        %v4692 = vpop.f32.mrf.mxu0
        %v4693 = vadd.f32 %v4422, %v4692
        %v4694 = vpop.f32.mrf.mxu0
        %4695 = vmatprep.mubr.f32.mxu0 0.0
        %4696 = vmatmul.mubr.f32.gmra.mxu0 %v4492
        %v4697 = vpop.f32.mrf.mxu0
        %v4698 = vadd.f32 %v4422, %v4697
        %v4699 = vpop.f32.mrf.mxu0
        %4700 = vmatprep.mubr.f32.mxu0 0.0
        %4701 = vmatmul.mubr.f32.gmra.mxu0 %v4495
        %v4702 = vpop.f32.mrf.mxu0
        %v4703 = vadd.f32 %v4422, %v4702
        %v4704 = vpop.f32.mrf.mxu0
        %4705 = vmatprep.mubr.f32.mxu0 0.0
        %4706 = vmatmul.mubr.f32.gmra.mxu0 %v4498
        %v4707 = vpop.f32.mrf.mxu0
        %v4708 = vadd.f32 %v4422, %v4707
        %v4709 = vpop.f32.mrf.mxu0
        %4710 = vmatprep.mubr.f32.mxu0 0.0
        %4711 = vmatmul.mubr.f32.gmra.mxu0 %v4501
        %v4712 = vpop.f32.mrf.mxu0
        %v4713 = vadd.f32 %v4422, %v4712
        %v4714 = vpop.f32.mrf.mxu0
        %4715 = vmatprep.mubr.f32.mxu0 0.0
        %4716 = vmatmul.mubr.f32.gmra.mxu0 %v4504
        %v4717 = vpop.f32.mrf.mxu0
        %v4718 = vadd.f32 %v4422, %v4717
        %v4719 = vpop.f32.mrf.mxu0
        %4720 = vmatprep.mubr.f32.mxu0 0.0
        %4721 = vmatmul.mubr.f32.gmra.mxu0 %v4507
        %v4722 = vpop.f32.mrf.mxu0
        %v4723 = vadd.f32 %v4422, %v4722
        %v4724 = vpop.f32.mrf.mxu0
        %4725 = vmatprep.mubr.f32.mxu0 0.0
        %4726 = vmatmul.mubr.f32.gmra.mxu0 %v4510
        %v4727 = vpop.f32.mrf.mxu0
        %v4728 = vadd.f32 %v4422, %v4727
        %v4729 = vpop.f32.mrf.mxu0
        %4730 = vmatprep.mubr.f32.mxu0 0.0
        %4731 = vmatmul.mubr.f32.gmra.mxu0 %v4513
        %v4732 = vpop.f32.mrf.mxu0
        %v4733 = vadd.f32 %v4422, %v4732
        %v4734 = vpop.f32.mrf.mxu0
        %4735 = vmatprep.mubr.f32.mxu0 0.0
        %4736 = vmatmul.mubr.f32.gmra.mxu0 %v4516
        %v4737 = vpop.f32.mrf.mxu0
        %v4738 = vadd.f32 %v4422, %v4737
        %v4739 = vpop.f32.mrf.mxu0
        %4740 = vmatprep.mubr.f32.mxu0 0.0
        %4741 = vmatmul.mubr.f32.gmra.mxu0 %v4519
        %v4742 = vpop.f32.mrf.mxu0
        %v4743 = vadd.f32 %v4422, %v4742
        %v4744 = vpop.f32.mrf.mxu0
        %4745 = vdwg.mxu0
        %v4746 = vmax.f32 %v4588, 0.0
        %v4747 = vmax.f32 %v4593, 0.0
        %v4748 = vmax.f32 %v4598, 0.0
        %v4749 = vmax.f32 %v4603, 0.0
        %v4750 = vmax.f32 %v4608, 0.0
        %v4751 = vmax.f32 %v4613, 0.0
        %v4752 = vmax.f32 %v4618, 0.0
        %v4753 = vmax.f32 %v4623, 0.0
        %v4754 = vmax.f32 %v4628, 0.0
        %v4755 = vmax.f32 %v4633, 0.0
        %v4756 = vmax.f32 %v4638, 0.0
        %v4757 = vmax.f32 %v4643, 0.0
        %v4758 = vmax.f32 %v4648, 0.0
        %v4759 = vmax.f32 %v4653, 0.0
        %v4760 = vmax.f32 %v4658, 0.0
        %v4761 = vmax.f32 %v4663, 0.0
        %v4762 = vmax.f32 %v4668, 0.0
        %v4763 = vmax.f32 %v4673, 0.0
        %v4764 = vmax.f32 %v4678, 0.0
        %v4765 = vmax.f32 %v4683, 0.0
        %v4766 = vmax.f32 %v4688, 0.0
        %v4767 = vmax.f32 %v4693, 0.0
        %v4768 = vmax.f32 %v4698, 0.0
        %v4769 = vmax.f32 %v4703, 0.0
        %v4770 = vmax.f32 %v4708, 0.0
        %v4771 = vmax.f32 %v4713, 0.0
        %v4772 = vmax.f32 %v4718, 0.0
        %v4773 = vmax.f32 %v4723, 0.0
        %v4774 = vmax.f32 %v4728, 0.0
        %v4775 = vmax.f32 %v4733, 0.0
        %v4776 = vmax.f32 %v4738, 0.0
        %v4777 = vmax.f32 %v4743, 0.0
        %v4778 = vsel %vm2678, %v4746, -inf
        %v4779 = vsel %vm2678, %v4748, -inf
        %v4780 = vmax.f32 %v4778, %v4779
        %v4781 = vsel %vm2678, %v4747, -inf
        %v4782 = vsel %vm2678, %v4749, -inf
        %v4783 = vmax.f32 %v4781, %v4782
        %v4784 = vsel %vm2678, %v4750, -inf
        %v4785 = vsel %vm2678, %v4752, -inf
        %v4786 = vmax.f32 %v4784, %v4785
        %v4787 = vsel %vm2678, %v4751, -inf
        %v4788 = vsel %vm2678, %v4753, -inf
        %v4789 = vmax.f32 %v4787, %v4788
        %v4790 = vsel %vm2678, %v4754, -inf
        %v4791 = vsel %vm2678, %v4756, -inf
        %v4792 = vmax.f32 %v4790, %v4791
        %v4793 = vsel %vm2678, %v4755, -inf
        %v4794 = vsel %vm2678, %v4757, -inf
        %v4795 = vmax.f32 %v4793, %v4794
        %v4796 = vsel %vm2678, %v4758, -inf
        %v4797 = vsel %vm2678, %v4760, -inf
        %v4798 = vmax.f32 %v4796, %v4797
        %v4799 = vsel %vm2678, %v4759, -inf
        %v4800 = vsel %vm2678, %v4761, -inf
        %v4801 = vmax.f32 %v4799, %v4800
        %v4802 = vsel %vm2678, %v4762, -inf
        %v4803 = vsel %vm2678, %v4764, -inf
        %v4804 = vmax.f32 %v4802, %v4803
        %v4805 = vsel %vm2678, %v4763, -inf
        %v4806 = vsel %vm2678, %v4765, -inf
        %v4807 = vmax.f32 %v4805, %v4806
        %v4808 = vsel %vm2678, %v4766, -inf
        %v4809 = vsel %vm2678, %v4768, -inf
        %v4810 = vmax.f32 %v4808, %v4809
        %v4811 = vsel %vm2678, %v4767, -inf
        %v4812 = vsel %vm2678, %v4769, -inf
        %v4813 = vmax.f32 %v4811, %v4812
        %v4814 = vsel %vm2678, %v4770, -inf
        %v4815 = vsel %vm2678, %v4772, -inf
        %v4816 = vmax.f32 %v4814, %v4815
        %v4817 = vsel %vm2678, %v4771, -inf
        %v4818 = vsel %vm2678, %v4773, -inf
        %v4819 = vmax.f32 %v4817, %v4818
        %v4820 = vsel %vm2678, %v4774, -inf
        %v4821 = vsel %vm2678, %v4776, -inf
        %v4822 = vmax.f32 %v4820, %v4821
        %v4823 = vsel %vm2678, %v4775, -inf
        %v4824 = vsel %vm2678, %v4777, -inf
        %v4825 = vmax.f32 %v4823, %v4824
        %v4842 = vcombine.high %v4780, %v4780
        %v4844 = vunpack.c.l.s4 1983009808
        %v4845 = vunpack.c.0.s8 %v4844
        %v4846 = vlaneseq
        %v4847 = vshrl.u32 %v4846, 7
        %v4848 = vsub.s32 %v4845, %v4847
        %v4849 = vrot.slane %v4780, %v4848
        %v4851 = vunpack.c.l.s4 1983009808
        %v4852 = vunpack.c.0.s8 %v4851
        %v4853 = vlaneseq
        %v4854 = vshrl.u32 %v4853, 7
        %v4855 = vsub.s32 %v4852, %v4854
        %v4856 = vrot.slane %v4842, %v4855
        %v4857 = vcombine.high %v4849, %v4849
        %v4858 = vcombine.high %v4856, %v4856
        %v4859 = vcombine.high %v4783, %v4783
        %v4861 = vunpack.c.l.s4 1983009808
        %v4862 = vunpack.c.0.s8 %v4861
        %v4863 = vlaneseq
        %v4864 = vshrl.u32 %v4863, 7
        %v4865 = vsub.s32 %v4862, %v4864
        %v4866 = vrot.slane %v4783, %v4865
        %v4868 = vunpack.c.l.s4 1983009808
        %v4869 = vunpack.c.0.s8 %v4868
        %v4870 = vlaneseq
        %v4871 = vshrl.u32 %v4870, 7
        %v4872 = vsub.s32 %v4869, %v4871
        %v4873 = vrot.slane %v4859, %v4872
        %v4874 = vcombine.high %v4866, %v4866
        %v4875 = vcombine.high %v4873, %v4873
        %v4876 = vcombine.high %v4786, %v4786
        %v4878 = vunpack.c.l.s4 1983009808
        %v4879 = vunpack.c.0.s8 %v4878
        %v4880 = vlaneseq
        %v4881 = vshrl.u32 %v4880, 7
        %v4882 = vsub.s32 %v4879, %v4881
        %v4883 = vrot.slane %v4786, %v4882
        %v4885 = vunpack.c.l.s4 1983009808
        %v4886 = vunpack.c.0.s8 %v4885
        %v4887 = vlaneseq
        %v4888 = vshrl.u32 %v4887, 7
        %v4889 = vsub.s32 %v4886, %v4888
        %v4890 = vrot.slane %v4876, %v4889
        %v4891 = vcombine.high %v4883, %v4883
        %v4892 = vcombine.high %v4890, %v4890
        %v4893 = vcombine.high %v4789, %v4789
        %v4895 = vunpack.c.l.s4 1983009808
        %v4896 = vunpack.c.0.s8 %v4895
        %v4897 = vlaneseq
        %v4898 = vshrl.u32 %v4897, 7
        %v4899 = vsub.s32 %v4896, %v4898
        %v4900 = vrot.slane %v4789, %v4899
        %v4902 = vunpack.c.l.s4 1983009808
        %v4903 = vunpack.c.0.s8 %v4902
        %v4904 = vlaneseq
        %v4905 = vshrl.u32 %v4904, 7
        %v4906 = vsub.s32 %v4903, %v4905
        %v4907 = vrot.slane %v4893, %v4906
        %v4908 = vcombine.high %v4900, %v4900
        %v4909 = vcombine.high %v4907, %v4907
        %v4910 = vcombine.high %v4792, %v4792
        %v4912 = vunpack.c.l.s4 1983009808
        %v4913 = vunpack.c.0.s8 %v4912
        %v4914 = vlaneseq
        %v4915 = vshrl.u32 %v4914, 7
        %v4916 = vsub.s32 %v4913, %v4915
        %v4917 = vrot.slane %v4792, %v4916
        %v4919 = vunpack.c.l.s4 1983009808
        %v4920 = vunpack.c.0.s8 %v4919
        %v4921 = vlaneseq
        %v4922 = vshrl.u32 %v4921, 7
        %v4923 = vsub.s32 %v4920, %v4922
        %v4924 = vrot.slane %v4910, %v4923
        %v4925 = vcombine.high %v4917, %v4917
        %v4926 = vcombine.high %v4924, %v4924
        %v4927 = vcombine.high %v4795, %v4795
        %v4929 = vunpack.c.l.s4 1983009808
        %v4930 = vunpack.c.0.s8 %v4929
        %v4931 = vlaneseq
        %v4932 = vshrl.u32 %v4931, 7
        %v4933 = vsub.s32 %v4930, %v4932
        %v4934 = vrot.slane %v4795, %v4933
        %v4936 = vunpack.c.l.s4 1983009808
        %v4937 = vunpack.c.0.s8 %v4936
        %v4938 = vlaneseq
        %v4939 = vshrl.u32 %v4938, 7
        %v4940 = vsub.s32 %v4937, %v4939
        %v4941 = vrot.slane %v4927, %v4940
        %v4942 = vcombine.high %v4934, %v4934
        %v4943 = vcombine.high %v4941, %v4941
        %v4944 = vcombine.high %v4798, %v4798
        %v4946 = vunpack.c.l.s4 1983009808
        %v4947 = vunpack.c.0.s8 %v4946
        %v4948 = vlaneseq
        %v4949 = vshrl.u32 %v4948, 7
        %v4950 = vsub.s32 %v4947, %v4949
        %v4951 = vrot.slane %v4798, %v4950
        %v4953 = vunpack.c.l.s4 1983009808
        %v4954 = vunpack.c.0.s8 %v4953
        %v4955 = vlaneseq
        %v4956 = vshrl.u32 %v4955, 7
        %v4957 = vsub.s32 %v4954, %v4956
        %v4958 = vrot.slane %v4944, %v4957
        %v4959 = vcombine.high %v4951, %v4951
        %v4960 = vcombine.high %v4958, %v4958
        %v4961 = vcombine.high %v4801, %v4801
        %v4963 = vunpack.c.l.s4 1983009808
        %v4964 = vunpack.c.0.s8 %v4963
        %v4965 = vlaneseq
        %v4966 = vshrl.u32 %v4965, 7
        %v4967 = vsub.s32 %v4964, %v4966
        %v4968 = vrot.slane %v4801, %v4967
        %v4970 = vunpack.c.l.s4 1983009808
        %v4971 = vunpack.c.0.s8 %v4970
        %v4972 = vlaneseq
        %v4973 = vshrl.u32 %v4972, 7
        %v4974 = vsub.s32 %v4971, %v4973
        %v4975 = vrot.slane %v4961, %v4974
        %v4976 = vcombine.high %v4968, %v4968
        %v4977 = vcombine.high %v4975, %v4975
        %v4978 = vcombine.high %v4804, %v4804
        %v4980 = vunpack.c.l.s4 1983009808
        %v4981 = vunpack.c.0.s8 %v4980
        %v4982 = vlaneseq
        %v4983 = vshrl.u32 %v4982, 7
        %v4984 = vsub.s32 %v4981, %v4983
        %v4985 = vrot.slane %v4804, %v4984
        %v4987 = vunpack.c.l.s4 1983009808
        %v4988 = vunpack.c.0.s8 %v4987
        %v4989 = vlaneseq
        %v4990 = vshrl.u32 %v4989, 7
        %v4991 = vsub.s32 %v4988, %v4990
        %v4992 = vrot.slane %v4978, %v4991
        %v4993 = vcombine.high %v4985, %v4985
        %v4994 = vcombine.high %v4992, %v4992
        %v4995 = vcombine.high %v4807, %v4807
        %v4997 = vunpack.c.l.s4 1983009808
        %v4998 = vunpack.c.0.s8 %v4997
        %v4999 = vlaneseq
        %v5000 = vshrl.u32 %v4999, 7
        %v5001 = vsub.s32 %v4998, %v5000
        %v5002 = vrot.slane %v4807, %v5001
        %v5004 = vunpack.c.l.s4 1983009808
        %v5005 = vunpack.c.0.s8 %v5004
        %v5006 = vlaneseq
        %v5007 = vshrl.u32 %v5006, 7
        %v5008 = vsub.s32 %v5005, %v5007
        %v5009 = vrot.slane %v4995, %v5008
        %v5010 = vcombine.high %v5002, %v5002
        %v5011 = vcombine.high %v5009, %v5009
        %v5012 = vcombine.high %v4810, %v4810
        %v5014 = vunpack.c.l.s4 1983009808
        %v5015 = vunpack.c.0.s8 %v5014
        %v5016 = vlaneseq
        %v5017 = vshrl.u32 %v5016, 7
        %v5018 = vsub.s32 %v5015, %v5017
        %v5019 = vrot.slane %v4810, %v5018
        %v5021 = vunpack.c.l.s4 1983009808
        %v5022 = vunpack.c.0.s8 %v5021
        %v5023 = vlaneseq
        %v5024 = vshrl.u32 %v5023, 7
        %v5025 = vsub.s32 %v5022, %v5024
        %v5026 = vrot.slane %v5012, %v5025
        %v5027 = vcombine.high %v5019, %v5019
        %v5028 = vcombine.high %v5026, %v5026
        %v5029 = vcombine.high %v4813, %v4813
        %v5031 = vunpack.c.l.s4 1983009808
        %v5032 = vunpack.c.0.s8 %v5031
        %v5033 = vlaneseq
        %v5034 = vshrl.u32 %v5033, 7
        %v5035 = vsub.s32 %v5032, %v5034
        %v5036 = vrot.slane %v4813, %v5035
        %v5038 = vunpack.c.l.s4 1983009808
        %v5039 = vunpack.c.0.s8 %v5038
        %v5040 = vlaneseq
        %v5041 = vshrl.u32 %v5040, 7
        %v5042 = vsub.s32 %v5039, %v5041
        %v5043 = vrot.slane %v5029, %v5042
        %v5044 = vcombine.high %v5036, %v5036
        %v5045 = vcombine.high %v5043, %v5043
        %v5046 = vcombine.high %v4816, %v4816
        %v5048 = vunpack.c.l.s4 1983009808
        %v5049 = vunpack.c.0.s8 %v5048
        %v5050 = vlaneseq
        %v5051 = vshrl.u32 %v5050, 7
        %v5052 = vsub.s32 %v5049, %v5051
        %v5053 = vrot.slane %v4816, %v5052
        %v5055 = vunpack.c.l.s4 1983009808
        %v5056 = vunpack.c.0.s8 %v5055
        %v5057 = vlaneseq
        %v5058 = vshrl.u32 %v5057, 7
        %v5059 = vsub.s32 %v5056, %v5058
        %v5060 = vrot.slane %v5046, %v5059
        %v5061 = vcombine.high %v5053, %v5053
        %v5062 = vcombine.high %v5060, %v5060
        %v5063 = vcombine.high %v4819, %v4819
        %v5065 = vunpack.c.l.s4 1983009808
        %v5066 = vunpack.c.0.s8 %v5065
        %v5067 = vlaneseq
        %v5068 = vshrl.u32 %v5067, 7
        %v5069 = vsub.s32 %v5066, %v5068
        %v5070 = vrot.slane %v4819, %v5069
        %v5072 = vunpack.c.l.s4 1983009808
        %v5073 = vunpack.c.0.s8 %v5072
        %v5074 = vlaneseq
        %v5075 = vshrl.u32 %v5074, 7
        %v5076 = vsub.s32 %v5073, %v5075
        %v5077 = vrot.slane %v5063, %v5076
        %v5078 = vcombine.high %v5070, %v5070
        %v5079 = vcombine.high %v5077, %v5077
        %v5080 = vcombine.high %v4822, %v4822
        %v5082 = vunpack.c.l.s4 1983009808
        %v5083 = vunpack.c.0.s8 %v5082
        %v5084 = vlaneseq
        %v5085 = vshrl.u32 %v5084, 7
        %v5086 = vsub.s32 %v5083, %v5085
        %v5087 = vrot.slane %v4822, %v5086
        %v5089 = vunpack.c.l.s4 1983009808
        %v5090 = vunpack.c.0.s8 %v5089
        %v5091 = vlaneseq
        %v5092 = vshrl.u32 %v5091, 7
        %v5093 = vsub.s32 %v5090, %v5092
        %v5094 = vrot.slane %v5080, %v5093
        %v5095 = vcombine.high %v5087, %v5087
        %v5096 = vcombine.high %v5094, %v5094
        %v5097 = vcombine.high %v4825, %v4825
        %v5099 = vunpack.c.l.s4 1983009808
        %v5100 = vunpack.c.0.s8 %v5099
        %v5101 = vlaneseq
        %v5102 = vshrl.u32 %v5101, 7
        %v5103 = vsub.s32 %v5100, %v5102
        %v5104 = vrot.slane %v4825, %v5103
        %v5106 = vunpack.c.l.s4 1983009808
        %v5107 = vunpack.c.0.s8 %v5106
        %v5108 = vlaneseq
        %v5109 = vshrl.u32 %v5108, 7
        %v5110 = vsub.s32 %v5107, %v5109
        %v5111 = vrot.slane %v5097, %v5110
        %v5112 = vcombine.high %v5104, %v5104
        %v5113 = vcombine.high %v5111, %v5111
        %v5178 = vsel %vm2681, %v4849, -inf
        %v5179 = vrot.slane %v5178, 4
        %v5180 = vmax.f32 %v5178, %v5179
        %v5181 = vrot.slane %v5180, 2
        %v5182 = vmax.f32 %v5180, %v5181
        %v5183 = vrot.slane %v5182, 1
        %v5184 = vmax.f32 %v5182, %v5183
        %v5185 = vsel %vm2681, %v4857, -inf
        %v5186 = vrot.slane %v5185, 4
        %v5187 = vmax.f32 %v5185, %v5186
        %v5188 = vrot.slane %v5187, 2
        %v5189 = vmax.f32 %v5187, %v5188
        %v5190 = vrot.slane %v5189, 1
        %v5191 = vmax.f32 %v5189, %v5190
        %v5192 = vsel %vm2681, %v4856, -inf
        %v5193 = vrot.slane %v5192, 4
        %v5194 = vmax.f32 %v5192, %v5193
        %v5195 = vrot.slane %v5194, 2
        %v5196 = vmax.f32 %v5194, %v5195
        %v5197 = vrot.slane %v5196, 1
        %v5198 = vmax.f32 %v5196, %v5197
        %v5199 = vsel %vm2681, %v4858, -inf
        %v5200 = vrot.slane %v5199, 4
        %v5201 = vmax.f32 %v5199, %v5200
        %v5202 = vrot.slane %v5201, 2
        %v5203 = vmax.f32 %v5201, %v5202
        %v5204 = vrot.slane %v5203, 1
        %v5205 = vmax.f32 %v5203, %v5204
        %v5206 = vsel %vm2681, %v4866, -inf
        %v5207 = vrot.slane %v5206, 4
        %v5208 = vmax.f32 %v5206, %v5207
        %v5209 = vrot.slane %v5208, 2
        %v5210 = vmax.f32 %v5208, %v5209
        %v5211 = vrot.slane %v5210, 1
        %v5212 = vmax.f32 %v5210, %v5211
        %v5213 = vsel %vm2681, %v4874, -inf
        %v5214 = vrot.slane %v5213, 4
        %v5215 = vmax.f32 %v5213, %v5214
        %v5216 = vrot.slane %v5215, 2
        %v5217 = vmax.f32 %v5215, %v5216
        %v5218 = vrot.slane %v5217, 1
        %v5219 = vmax.f32 %v5217, %v5218
        %v5220 = vsel %vm2681, %v4873, -inf
        %v5221 = vrot.slane %v5220, 4
        %v5222 = vmax.f32 %v5220, %v5221
        %v5223 = vrot.slane %v5222, 2
        %v5224 = vmax.f32 %v5222, %v5223
        %v5225 = vrot.slane %v5224, 1
        %v5226 = vmax.f32 %v5224, %v5225
        %v5227 = vsel %vm2681, %v4875, -inf
        %v5228 = vrot.slane %v5227, 4
        %v5229 = vmax.f32 %v5227, %v5228
        %v5230 = vrot.slane %v5229, 2
        %v5231 = vmax.f32 %v5229, %v5230
        %v5232 = vrot.slane %v5231, 1
        %v5233 = vmax.f32 %v5231, %v5232
        %v5234 = vsel %vm2681, %v4883, -inf
        %v5235 = vrot.slane %v5234, 4
        %v5236 = vmax.f32 %v5234, %v5235
        %v5237 = vrot.slane %v5236, 2
        %v5238 = vmax.f32 %v5236, %v5237
        %v5239 = vrot.slane %v5238, 1
        %v5240 = vmax.f32 %v5238, %v5239
        %v5241 = vsel %vm2681, %v4891, -inf
        %v5242 = vrot.slane %v5241, 4
        %v5243 = vmax.f32 %v5241, %v5242
        %v5244 = vrot.slane %v5243, 2
        %v5245 = vmax.f32 %v5243, %v5244
        %v5246 = vrot.slane %v5245, 1
        %v5247 = vmax.f32 %v5245, %v5246
        %v5248 = vsel %vm2681, %v4890, -inf
        %v5249 = vrot.slane %v5248, 4
        %v5250 = vmax.f32 %v5248, %v5249
        %v5251 = vrot.slane %v5250, 2
        %v5252 = vmax.f32 %v5250, %v5251
        %v5253 = vrot.slane %v5252, 1
        %v5254 = vmax.f32 %v5252, %v5253
        %v5255 = vsel %vm2681, %v4892, -inf
        %v5256 = vrot.slane %v5255, 4
        %v5257 = vmax.f32 %v5255, %v5256
        %v5258 = vrot.slane %v5257, 2
        %v5259 = vmax.f32 %v5257, %v5258
        %v5260 = vrot.slane %v5259, 1
        %v5261 = vmax.f32 %v5259, %v5260
        %v5262 = vsel %vm2681, %v4900, -inf
        %v5263 = vrot.slane %v5262, 4
        %v5264 = vmax.f32 %v5262, %v5263
        %v5265 = vrot.slane %v5264, 2
        %v5266 = vmax.f32 %v5264, %v5265
        %v5267 = vrot.slane %v5266, 1
        %v5268 = vmax.f32 %v5266, %v5267
        %v5269 = vsel %vm2681, %v4908, -inf
        %v5270 = vrot.slane %v5269, 4
        %v5271 = vmax.f32 %v5269, %v5270
        %v5272 = vrot.slane %v5271, 2
        %v5273 = vmax.f32 %v5271, %v5272
        %v5274 = vrot.slane %v5273, 1
        %v5275 = vmax.f32 %v5273, %v5274
        %v5276 = vsel %vm2681, %v4907, -inf
        %v5277 = vrot.slane %v5276, 4
        %v5278 = vmax.f32 %v5276, %v5277
        %v5279 = vrot.slane %v5278, 2
        %v5280 = vmax.f32 %v5278, %v5279
        %v5281 = vrot.slane %v5280, 1
        %v5282 = vmax.f32 %v5280, %v5281
        %v5283 = vsel %vm2681, %v4909, -inf
        %v5284 = vrot.slane %v5283, 4
        %v5285 = vmax.f32 %v5283, %v5284
        %v5286 = vrot.slane %v5285, 2
        %v5287 = vmax.f32 %v5285, %v5286
        %v5288 = vrot.slane %v5287, 1
        %v5289 = vmax.f32 %v5287, %v5288
        %v5290 = vsel %vm2681, %v4917, -inf
        %v5291 = vrot.slane %v5290, 4
        %v5292 = vmax.f32 %v5290, %v5291
        %v5293 = vrot.slane %v5292, 2
        %v5294 = vmax.f32 %v5292, %v5293
        %v5295 = vrot.slane %v5294, 1
        %v5296 = vmax.f32 %v5294, %v5295
        %v5297 = vsel %vm2681, %v4925, -inf
        %v5298 = vrot.slane %v5297, 4
        %v5299 = vmax.f32 %v5297, %v5298
        %v5300 = vrot.slane %v5299, 2
        %v5301 = vmax.f32 %v5299, %v5300
        %v5302 = vrot.slane %v5301, 1
        %v5303 = vmax.f32 %v5301, %v5302
        %v5304 = vsel %vm2681, %v4924, -inf
        %v5305 = vrot.slane %v5304, 4
        %v5306 = vmax.f32 %v5304, %v5305
        %v5307 = vrot.slane %v5306, 2
        %v5308 = vmax.f32 %v5306, %v5307
        %v5309 = vrot.slane %v5308, 1
        %v5310 = vmax.f32 %v5308, %v5309
        %v5311 = vsel %vm2681, %v4926, -inf
        %v5312 = vrot.slane %v5311, 4
        %v5313 = vmax.f32 %v5311, %v5312
        %v5314 = vrot.slane %v5313, 2
        %v5315 = vmax.f32 %v5313, %v5314
        %v5316 = vrot.slane %v5315, 1
        %v5317 = vmax.f32 %v5315, %v5316
        %v5318 = vsel %vm2681, %v4934, -inf
        %v5319 = vrot.slane %v5318, 4
        %v5320 = vmax.f32 %v5318, %v5319
        %v5321 = vrot.slane %v5320, 2
        %v5322 = vmax.f32 %v5320, %v5321
        %v5323 = vrot.slane %v5322, 1
        %v5324 = vmax.f32 %v5322, %v5323
        %v5325 = vsel %vm2681, %v4942, -inf
        %v5326 = vrot.slane %v5325, 4
        %v5327 = vmax.f32 %v5325, %v5326
        %v5328 = vrot.slane %v5327, 2
        %v5329 = vmax.f32 %v5327, %v5328
        %v5330 = vrot.slane %v5329, 1
        %v5331 = vmax.f32 %v5329, %v5330
        %v5332 = vsel %vm2681, %v4941, -inf
        %v5333 = vrot.slane %v5332, 4
        %v5334 = vmax.f32 %v5332, %v5333
        %v5335 = vrot.slane %v5334, 2
        %v5336 = vmax.f32 %v5334, %v5335
        %v5337 = vrot.slane %v5336, 1
        %v5338 = vmax.f32 %v5336, %v5337
        %v5339 = vsel %vm2681, %v4943, -inf
        %v5340 = vrot.slane %v5339, 4
        %v5341 = vmax.f32 %v5339, %v5340
        %v5342 = vrot.slane %v5341, 2
        %v5343 = vmax.f32 %v5341, %v5342
        %v5344 = vrot.slane %v5343, 1
        %v5345 = vmax.f32 %v5343, %v5344
        %v5346 = vsel %vm2681, %v4951, -inf
        %v5347 = vrot.slane %v5346, 4
        %v5348 = vmax.f32 %v5346, %v5347
        %v5349 = vrot.slane %v5348, 2
        %v5350 = vmax.f32 %v5348, %v5349
        %v5351 = vrot.slane %v5350, 1
        %v5352 = vmax.f32 %v5350, %v5351
        %v5353 = vsel %vm2681, %v4959, -inf
        %v5354 = vrot.slane %v5353, 4
        %v5355 = vmax.f32 %v5353, %v5354
        %v5356 = vrot.slane %v5355, 2
        %v5357 = vmax.f32 %v5355, %v5356
        %v5358 = vrot.slane %v5357, 1
        %v5359 = vmax.f32 %v5357, %v5358
        %v5360 = vsel %vm2681, %v4958, -inf
        %v5361 = vrot.slane %v5360, 4
        %v5362 = vmax.f32 %v5360, %v5361
        %v5363 = vrot.slane %v5362, 2
        %v5364 = vmax.f32 %v5362, %v5363
        %v5365 = vrot.slane %v5364, 1
        %v5366 = vmax.f32 %v5364, %v5365
        %v5367 = vsel %vm2681, %v4960, -inf
        %v5368 = vrot.slane %v5367, 4
        %v5369 = vmax.f32 %v5367, %v5368
        %v5370 = vrot.slane %v5369, 2
        %v5371 = vmax.f32 %v5369, %v5370
        %v5372 = vrot.slane %v5371, 1
        %v5373 = vmax.f32 %v5371, %v5372
        %v5374 = vsel %vm2681, %v4968, -inf
        %v5375 = vrot.slane %v5374, 4
        %v5376 = vmax.f32 %v5374, %v5375
        %v5377 = vrot.slane %v5376, 2
        %v5378 = vmax.f32 %v5376, %v5377
        %v5379 = vrot.slane %v5378, 1
        %v5380 = vmax.f32 %v5378, %v5379
        %v5381 = vsel %vm2681, %v4976, -inf
        %v5382 = vrot.slane %v5381, 4
        %v5383 = vmax.f32 %v5381, %v5382
        %v5384 = vrot.slane %v5383, 2
        %v5385 = vmax.f32 %v5383, %v5384
        %v5386 = vrot.slane %v5385, 1
        %v5387 = vmax.f32 %v5385, %v5386
        %v5388 = vsel %vm2681, %v4975, -inf
        %v5389 = vrot.slane %v5388, 4
        %v5390 = vmax.f32 %v5388, %v5389
        %v5391 = vrot.slane %v5390, 2
        %v5392 = vmax.f32 %v5390, %v5391
        %v5393 = vrot.slane %v5392, 1
        %v5394 = vmax.f32 %v5392, %v5393
        %v5395 = vsel %vm2681, %v4977, -inf
        %v5396 = vrot.slane %v5395, 4
        %v5397 = vmax.f32 %v5395, %v5396
        %v5398 = vrot.slane %v5397, 2
        %v5399 = vmax.f32 %v5397, %v5398
        %v5400 = vrot.slane %v5399, 1
        %v5401 = vmax.f32 %v5399, %v5400
        %v5402 = vsel %vm2681, %v4985, -inf
        %v5403 = vrot.slane %v5402, 4
        %v5404 = vmax.f32 %v5402, %v5403
        %v5405 = vrot.slane %v5404, 2
        %v5406 = vmax.f32 %v5404, %v5405
        %v5407 = vrot.slane %v5406, 1
        %v5408 = vmax.f32 %v5406, %v5407
        %v5409 = vsel %vm2681, %v4993, -inf
        %v5410 = vrot.slane %v5409, 4
        %v5411 = vmax.f32 %v5409, %v5410
        %v5412 = vrot.slane %v5411, 2
        %v5413 = vmax.f32 %v5411, %v5412
        %v5414 = vrot.slane %v5413, 1
        %v5415 = vmax.f32 %v5413, %v5414
        %v5416 = vsel %vm2681, %v4992, -inf
        %v5417 = vrot.slane %v5416, 4
        %v5418 = vmax.f32 %v5416, %v5417
        %v5419 = vrot.slane %v5418, 2
        %v5420 = vmax.f32 %v5418, %v5419
        %v5421 = vrot.slane %v5420, 1
        %v5422 = vmax.f32 %v5420, %v5421
        %v5423 = vsel %vm2681, %v4994, -inf
        %v5424 = vrot.slane %v5423, 4
        %v5425 = vmax.f32 %v5423, %v5424
        %v5426 = vrot.slane %v5425, 2
        %v5427 = vmax.f32 %v5425, %v5426
        %v5428 = vrot.slane %v5427, 1
        %v5429 = vmax.f32 %v5427, %v5428
        %v5430 = vsel %vm2681, %v5002, -inf
        %v5431 = vrot.slane %v5430, 4
        %v5432 = vmax.f32 %v5430, %v5431
        %v5433 = vrot.slane %v5432, 2
        %v5434 = vmax.f32 %v5432, %v5433
        %v5435 = vrot.slane %v5434, 1
        %v5436 = vmax.f32 %v5434, %v5435
        %v5437 = vsel %vm2681, %v5010, -inf
        %v5438 = vrot.slane %v5437, 4
        %v5439 = vmax.f32 %v5437, %v5438
        %v5440 = vrot.slane %v5439, 2
        %v5441 = vmax.f32 %v5439, %v5440
        %v5442 = vrot.slane %v5441, 1
        %v5443 = vmax.f32 %v5441, %v5442
        %v5444 = vsel %vm2681, %v5009, -inf
        %v5445 = vrot.slane %v5444, 4
        %v5446 = vmax.f32 %v5444, %v5445
        %v5447 = vrot.slane %v5446, 2
        %v5448 = vmax.f32 %v5446, %v5447
        %v5449 = vrot.slane %v5448, 1
        %v5450 = vmax.f32 %v5448, %v5449
        %v5451 = vsel %vm2681, %v5011, -inf
        %v5452 = vrot.slane %v5451, 4
        %v5453 = vmax.f32 %v5451, %v5452
        %v5454 = vrot.slane %v5453, 2
        %v5455 = vmax.f32 %v5453, %v5454
        %v5456 = vrot.slane %v5455, 1
        %v5457 = vmax.f32 %v5455, %v5456
        %v5458 = vsel %vm2681, %v5019, -inf
        %v5459 = vrot.slane %v5458, 4
        %v5460 = vmax.f32 %v5458, %v5459
        %v5461 = vrot.slane %v5460, 2
        %v5462 = vmax.f32 %v5460, %v5461
        %v5463 = vrot.slane %v5462, 1
        %v5464 = vmax.f32 %v5462, %v5463
        %v5465 = vsel %vm2681, %v5027, -inf
        %v5466 = vrot.slane %v5465, 4
        %v5467 = vmax.f32 %v5465, %v5466
        %v5468 = vrot.slane %v5467, 2
        %v5469 = vmax.f32 %v5467, %v5468
        %v5470 = vrot.slane %v5469, 1
        %v5471 = vmax.f32 %v5469, %v5470
        %v5472 = vsel %vm2681, %v5026, -inf
        %v5473 = vrot.slane %v5472, 4
        %v5474 = vmax.f32 %v5472, %v5473
        %v5475 = vrot.slane %v5474, 2
        %v5476 = vmax.f32 %v5474, %v5475
        %v5477 = vrot.slane %v5476, 1
        %v5478 = vmax.f32 %v5476, %v5477
        %v5479 = vsel %vm2681, %v5028, -inf
        %v5480 = vrot.slane %v5479, 4
        %v5481 = vmax.f32 %v5479, %v5480
        %v5482 = vrot.slane %v5481, 2
        %v5483 = vmax.f32 %v5481, %v5482
        %v5484 = vrot.slane %v5483, 1
        %v5485 = vmax.f32 %v5483, %v5484
        %v5486 = vsel %vm2681, %v5036, -inf
        %v5487 = vrot.slane %v5486, 4
        %v5488 = vmax.f32 %v5486, %v5487
        %v5489 = vrot.slane %v5488, 2
        %v5490 = vmax.f32 %v5488, %v5489
        %v5491 = vrot.slane %v5490, 1
        %v5492 = vmax.f32 %v5490, %v5491
        %v5493 = vsel %vm2681, %v5044, -inf
        %v5494 = vrot.slane %v5493, 4
        %v5495 = vmax.f32 %v5493, %v5494
        %v5496 = vrot.slane %v5495, 2
        %v5497 = vmax.f32 %v5495, %v5496
        %v5498 = vrot.slane %v5497, 1
        %v5499 = vmax.f32 %v5497, %v5498
        %v5500 = vsel %vm2681, %v5043, -inf
        %v5501 = vrot.slane %v5500, 4
        %v5502 = vmax.f32 %v5500, %v5501
        %v5503 = vrot.slane %v5502, 2
        %v5504 = vmax.f32 %v5502, %v5503
        %v5505 = vrot.slane %v5504, 1
        %v5506 = vmax.f32 %v5504, %v5505
        %v5507 = vsel %vm2681, %v5045, -inf
        %v5508 = vrot.slane %v5507, 4
        %v5509 = vmax.f32 %v5507, %v5508
        %v5510 = vrot.slane %v5509, 2
        %v5511 = vmax.f32 %v5509, %v5510
        %v5512 = vrot.slane %v5511, 1
        %v5513 = vmax.f32 %v5511, %v5512
        %v5514 = vsel %vm2681, %v5053, -inf
        %v5515 = vrot.slane %v5514, 4
        %v5516 = vmax.f32 %v5514, %v5515
        %v5517 = vrot.slane %v5516, 2
        %v5518 = vmax.f32 %v5516, %v5517
        %v5519 = vrot.slane %v5518, 1
        %v5520 = vmax.f32 %v5518, %v5519
        %v5521 = vsel %vm2681, %v5061, -inf
        %v5522 = vrot.slane %v5521, 4
        %v5523 = vmax.f32 %v5521, %v5522
        %v5524 = vrot.slane %v5523, 2
        %v5525 = vmax.f32 %v5523, %v5524
        %v5526 = vrot.slane %v5525, 1
        %v5527 = vmax.f32 %v5525, %v5526
        %v5528 = vsel %vm2681, %v5060, -inf
        %v5529 = vrot.slane %v5528, 4
        %v5530 = vmax.f32 %v5528, %v5529
        %v5531 = vrot.slane %v5530, 2
        %v5532 = vmax.f32 %v5530, %v5531
        %v5533 = vrot.slane %v5532, 1
        %v5534 = vmax.f32 %v5532, %v5533
        %v5535 = vsel %vm2681, %v5062, -inf
        %v5536 = vrot.slane %v5535, 4
        %v5537 = vmax.f32 %v5535, %v5536
        %v5538 = vrot.slane %v5537, 2
        %v5539 = vmax.f32 %v5537, %v5538
        %v5540 = vrot.slane %v5539, 1
        %v5541 = vmax.f32 %v5539, %v5540
        %v5542 = vsel %vm2681, %v5070, -inf
        %v5543 = vrot.slane %v5542, 4
        %v5544 = vmax.f32 %v5542, %v5543
        %v5545 = vrot.slane %v5544, 2
        %v5546 = vmax.f32 %v5544, %v5545
        %v5547 = vrot.slane %v5546, 1
        %v5548 = vmax.f32 %v5546, %v5547
        %v5549 = vsel %vm2681, %v5078, -inf
        %v5550 = vrot.slane %v5549, 4
        %v5551 = vmax.f32 %v5549, %v5550
        %v5552 = vrot.slane %v5551, 2
        %v5553 = vmax.f32 %v5551, %v5552
        %v5554 = vrot.slane %v5553, 1
        %v5555 = vmax.f32 %v5553, %v5554
        %v5556 = vsel %vm2681, %v5077, -inf
        %v5557 = vrot.slane %v5556, 4
        %v5558 = vmax.f32 %v5556, %v5557
        %v5559 = vrot.slane %v5558, 2
        %v5560 = vmax.f32 %v5558, %v5559
        %v5561 = vrot.slane %v5560, 1
        %v5562 = vmax.f32 %v5560, %v5561
        %v5563 = vsel %vm2681, %v5079, -inf
        %v5564 = vrot.slane %v5563, 4
        %v5565 = vmax.f32 %v5563, %v5564
        %v5566 = vrot.slane %v5565, 2
        %v5567 = vmax.f32 %v5565, %v5566
        %v5568 = vrot.slane %v5567, 1
        %v5569 = vmax.f32 %v5567, %v5568
        %v5570 = vsel %vm2681, %v5087, -inf
        %v5571 = vrot.slane %v5570, 4
        %v5572 = vmax.f32 %v5570, %v5571
        %v5573 = vrot.slane %v5572, 2
        %v5574 = vmax.f32 %v5572, %v5573
        %v5575 = vrot.slane %v5574, 1
        %v5576 = vmax.f32 %v5574, %v5575
        %v5577 = vsel %vm2681, %v5095, -inf
        %v5578 = vrot.slane %v5577, 4
        %v5579 = vmax.f32 %v5577, %v5578
        %v5580 = vrot.slane %v5579, 2
        %v5581 = vmax.f32 %v5579, %v5580
        %v5582 = vrot.slane %v5581, 1
        %v5583 = vmax.f32 %v5581, %v5582
        %v5584 = vsel %vm2681, %v5094, -inf
        %v5585 = vrot.slane %v5584, 4
        %v5586 = vmax.f32 %v5584, %v5585
        %v5587 = vrot.slane %v5586, 2
        %v5588 = vmax.f32 %v5586, %v5587
        %v5589 = vrot.slane %v5588, 1
        %v5590 = vmax.f32 %v5588, %v5589
        %v5591 = vsel %vm2681, %v5096, -inf
        %v5592 = vrot.slane %v5591, 4
        %v5593 = vmax.f32 %v5591, %v5592
        %v5594 = vrot.slane %v5593, 2
        %v5595 = vmax.f32 %v5593, %v5594
        %v5596 = vrot.slane %v5595, 1
        %v5597 = vmax.f32 %v5595, %v5596
        %v5598 = vsel %vm2681, %v5104, -inf
        %v5599 = vrot.slane %v5598, 4
        %v5600 = vmax.f32 %v5598, %v5599
        %v5601 = vrot.slane %v5600, 2
        %v5602 = vmax.f32 %v5600, %v5601
        %v5603 = vrot.slane %v5602, 1
        %v5604 = vmax.f32 %v5602, %v5603
        %v5605 = vsel %vm2681, %v5112, -inf
        %v5606 = vrot.slane %v5605, 4
        %v5607 = vmax.f32 %v5605, %v5606
        %v5608 = vrot.slane %v5607, 2
        %v5609 = vmax.f32 %v5607, %v5608
        %v5610 = vrot.slane %v5609, 1
        %v5611 = vmax.f32 %v5609, %v5610
        %v5612 = vsel %vm2681, %v5111, -inf
        %v5613 = vrot.slane %v5612, 4
        %v5614 = vmax.f32 %v5612, %v5613
        %v5615 = vrot.slane %v5614, 2
        %v5616 = vmax.f32 %v5614, %v5615
        %v5617 = vrot.slane %v5616, 1
        %v5618 = vmax.f32 %v5616, %v5617
        %v5619 = vsel %vm2681, %v5113, -inf
        %v5620 = vrot.slane %v5619, 4
        %v5621 = vmax.f32 %v5619, %v5620
        %v5622 = vrot.slane %v5621, 2
        %v5623 = vmax.f32 %v5621, %v5622
        %v5624 = vrot.slane %v5623, 1
        %v5625 = vmax.f32 %v5623, %v5624
        %5626 = vst.msk [vmem:[#allocation6] sm:$0xff] %vm2678, 0.0
        %5627 = vst.msk [vmem:[#allocation6 + $0x8] sm:$0x3] %vm2681, 0.0
        %5628 = vst.msk [vmem:[#allocation6 + $0x10] sm:$0xff] %vm2678, 0.0
        %5629 = vst.msk [vmem:[#allocation6 + $0x18] sm:$0x3] %vm2681, 0.0
        %5630 = vst.msk [vmem:[#allocation6 + $0x20] sm:$0xff] %vm2678, 0.0
        %5631 = vst.msk [vmem:[#allocation6 + $0x28] sm:$0x3] %vm2681, 0.0
        %5632 = vst.msk [vmem:[#allocation6 + $0x30] sm:$0xff] %vm2678, 0.0
        %5633 = vst.msk [vmem:[#allocation6 + $0x38] sm:$0x3] %vm2681, 0.0
        %5634 = vst.msk [vmem:[#allocation6 + $0x40] sm:$0xff] %vm2678, 0.0
        %5635 = vst.msk [vmem:[#allocation6 + $0x48] sm:$0x3] %vm2681, 0.0
        %5636 = vst.msk [vmem:[#allocation6 + $0x50] sm:$0xff] %vm2678, 0.0
        %5637 = vst.msk [vmem:[#allocation6 + $0x58] sm:$0x3] %vm2681, 0.0
        %5638 = vst.msk [vmem:[#allocation6 + $0x60] sm:$0xff] %vm2678, 0.0
        %5639 = vst.msk [vmem:[#allocation6 + $0x68] sm:$0x3] %vm2681, 0.0
        %5640 = vst.msk [vmem:[#allocation6 + $0x70] sm:$0xff] %vm2678, 0.0
        %5641 = vst.msk [vmem:[#allocation6 + $0x78] sm:$0x3] %vm2681, 0.0
        %5642 = vst.msk [vmem:[#allocation6 + $0x80] sm:$0xff] %vm2678, 0.0
        %5643 = vst.msk [vmem:[#allocation6 + $0x88] sm:$0x3] %vm2681, 0.0
        %5644 = vst.msk [vmem:[#allocation6 + $0x90] sm:$0xff] %vm2678, 0.0
        %5645 = vst.msk [vmem:[#allocation6 + $0x98] sm:$0x3] %vm2681, 0.0
        %vm5710 = vcmask 1041409
        %v5711 = vsel %vm5710, %v5191, %v5184
        %vm5712 = vcmask 1042434
        %v5713 = vsel %vm5712, %v5198, %v5711
        %vm5714 = vcmask 1043459
        %v5715 = vsel %vm5714, %v5205, %v5713
        %vm5716 = vcmask 1044484
        %v5717 = vsel %vm5716, %v5212, %v5715
        %vm5718 = vcmask 1045509
        %v5719 = vsel %vm5718, %v5219, %v5717
        %vm5720 = vcmask 1046534
        %v5721 = vsel %vm5720, %v5226, %v5719
        %vm5722 = vcmask 1047559
        %v5723 = vsel %vm5722, %v5233, %v5721
        %v5724 = vsel %vm5710, %v5247, %v5240
        %v5725 = vsel %vm5712, %v5254, %v5724
        %v5726 = vsel %vm5714, %v5261, %v5725
        %v5727 = vsel %vm5716, %v5268, %v5726
        %v5728 = vsel %vm5718, %v5275, %v5727
        %v5729 = vsel %vm5720, %v5282, %v5728
        %v5730 = vsel %vm5722, %v5289, %v5729
        %v5731 = vsel %vm5710, %v5303, %v5296
        %v5732 = vsel %vm5712, %v5310, %v5731
        %v5733 = vsel %vm5714, %v5317, %v5732
        %v5734 = vsel %vm5716, %v5324, %v5733
        %v5735 = vsel %vm5718, %v5331, %v5734
        %v5736 = vsel %vm5720, %v5338, %v5735
        %v5737 = vsel %vm5722, %v5345, %v5736
        %v5738 = vsel %vm5710, %v5359, %v5352
        %v5739 = vsel %vm5712, %v5366, %v5738
        %v5740 = vsel %vm5714, %v5373, %v5739
        %v5741 = vsel %vm5716, %v5380, %v5740
        %v5742 = vsel %vm5718, %v5387, %v5741
        %v5743 = vsel %vm5720, %v5394, %v5742
        %v5744 = vsel %vm5722, %v5401, %v5743
        %v5745 = vsel %vm5710, %v5415, %v5408
        %v5746 = vsel %vm5712, %v5422, %v5745
        %v5747 = vsel %vm5714, %v5429, %v5746
        %v5748 = vsel %vm5716, %v5436, %v5747
        %v5749 = vsel %vm5718, %v5443, %v5748
        %v5750 = vsel %vm5720, %v5450, %v5749
        %v5751 = vsel %vm5722, %v5457, %v5750
        %v5752 = vsel %vm5710, %v5471, %v5464
        %v5753 = vsel %vm5712, %v5478, %v5752
        %v5754 = vsel %vm5714, %v5485, %v5753
        %v5755 = vsel %vm5716, %v5492, %v5754
        %v5756 = vsel %vm5718, %v5499, %v5755
        %v5757 = vsel %vm5720, %v5506, %v5756
        %v5758 = vsel %vm5722, %v5513, %v5757
        %v5759 = vsel %vm5710, %v5527, %v5520
        %v5760 = vsel %vm5712, %v5534, %v5759
        %v5761 = vsel %vm5714, %v5541, %v5760
        %v5762 = vsel %vm5716, %v5548, %v5761
        %v5763 = vsel %vm5718, %v5555, %v5762
        %v5764 = vsel %vm5720, %v5562, %v5763
        %v5765 = vsel %vm5722, %v5569, %v5764
        %v5766 = vsel %vm5710, %v5583, %v5576
        %v5767 = vsel %vm5712, %v5590, %v5766
        %v5768 = vsel %vm5714, %v5597, %v5767
        %v5769 = vsel %vm5716, %v5604, %v5768
        %v5770 = vsel %vm5718, %v5611, %v5769
        %v5771 = vsel %vm5720, %v5618, %v5770
        %v5772 = vsel %vm5722, %v5625, %v5771
        %s5781 = scalar_lea.vmem [#allocation6], 16
        %5782 = vst.msk [vmem:[%s5781 + $0x1] sm:$0xff] %vm2678, %v5723
        %5783 = vst.msk [vmem:[%s5781 + $0x11] sm:$0xff] %vm2678, %v5730
        %5784 = vst.msk [vmem:[%s5781 + $0x21] sm:$0xff] %vm2678, %v5737
        %5785 = vst.msk [vmem:[%s5781 + $0x31] sm:$0xff] %vm2678, %v5744
        %5786 = vst.msk [vmem:[%s5781 + $0x41] sm:$0xff] %vm2678, %v5751
        %5787 = vst.msk [vmem:[%s5781 + $0x51] sm:$0xff] %vm2678, %v5758
        %5788 = vst.msk [vmem:[%s5781 + $0x61] sm:$0xff] %vm2678, %v5765
        %5789 = vst.msk [vmem:[%s5781 + $0x71] sm:$0xff] %vm2678, %v5772
        %v5790 = vld [vmem:[#allocation6] sm:$0xff]
        %v5791 = vld [vmem:[#allocation6 + $0x10] sm:$0xff]
        %v5792 = vld [vmem:[#allocation6 + $0x20] sm:$0xff]
        %v5793 = vld [vmem:[#allocation6 + $0x30] sm:$0xff]
        %v5794 = vld [vmem:[#allocation6 + $0x40] sm:$0xff]
        %v5795 = vld [vmem:[#allocation6 + $0x50] sm:$0xff]
        %v5796 = vld [vmem:[#allocation6 + $0x60] sm:$0xff]
        %v5797 = vld [vmem:[#allocation6 + $0x70] sm:$0xff]
        %5798 = vst.msk [vmem:[#allocation7] sm:$0xff] %vm2678, %v5790
        %5799 = vst.msk [vmem:[#allocation7 + $0x8] sm:$0xff] %vm2678, %v5791
        %5800 = vst.msk [vmem:[#allocation7 + $0x10] sm:$0xff] %vm2678, %v5792
        %5801 = vst.msk [vmem:[#allocation7 + $0x18] sm:$0xff] %vm2678, %v5793
        %5802 = vst.msk [vmem:[#allocation7 + $0x20] sm:$0xff] %vm2678, %v5794
        %5803 = vst.msk [vmem:[#allocation7 + $0x28] sm:$0xff] %vm2678, %v5795
        %5804 = vst.msk [vmem:[#allocation7 + $0x30] sm:$0xff] %vm2678, %v5796
        %5805 = vst.msk [vmem:[#allocation7 + $0x38] sm:$0xff] %vm2678, %v5797
        %v5806 = vld [vmem:[#allocation6 + $0x1] sm:$0xff]
        %v5807 = vld [vmem:[#allocation6 + $0x11] sm:$0xff]
        %v5808 = vld [vmem:[#allocation6 + $0x21] sm:$0xff]
        %v5809 = vld [vmem:[#allocation6 + $0x31] sm:$0xff]
        %v5810 = vld [vmem:[#allocation6 + $0x41] sm:$0xff]
        %v5811 = vld [vmem:[#allocation6 + $0x51] sm:$0xff]
        %v5812 = vld [vmem:[#allocation6 + $0x61] sm:$0xff]
        %v5813 = vld [vmem:[#allocation6 + $0x71] sm:$0xff]
        %5822 = vrot.lane.b32.xlu0 %v5806, 8
        %v5823 = vpop.permute.xlu0 %5822
        %5824 = vrot.lane.b32.xlu0 %v5807, 8
        %v5825 = vpop.permute.xlu0 %5824
        %5826 = vrot.lane.b32.xlu0 %v5808, 8
        %v5827 = vpop.permute.xlu0 %5826
        %5828 = vrot.lane.b32.xlu0 %v5809, 8
        %v5829 = vpop.permute.xlu0 %5828
        %5830 = vrot.lane.b32.xlu0 %v5810, 8
        %v5831 = vpop.permute.xlu0 %5830
        %5832 = vrot.lane.b32.xlu0 %v5811, 8
        %v5833 = vpop.permute.xlu0 %5832
        %5834 = vrot.lane.b32.xlu0 %v5812, 8
        %v5835 = vpop.permute.xlu0 %5834
        %5836 = vrot.lane.b32.xlu0 %v5813, 8
        %v5837 = vpop.permute.xlu0 %5836
        %5846 = vst.msk [vmem:[#allocation7] sm:$0xff] %vm2991, %v5823
        %5847 = vst.msk [vmem:[#allocation7 + $0x8] sm:$0xff] %vm2991, %v5825
        %5848 = vst.msk [vmem:[#allocation7 + $0x10] sm:$0xff] %vm2991, %v5827
        %5849 = vst.msk [vmem:[#allocation7 + $0x18] sm:$0xff] %vm2991, %v5829
        %5850 = vst.msk [vmem:[#allocation7 + $0x20] sm:$0xff] %vm2991, %v5831
        %5851 = vst.msk [vmem:[#allocation7 + $0x28] sm:$0xff] %vm2991, %v5833
        %5852 = vst.msk [vmem:[#allocation7 + $0x30] sm:$0xff] %vm2991, %v5835
        %5853 = vst.msk [vmem:[#allocation7 + $0x38] sm:$0xff] %vm2991, %v5837
        %v5854 = vld [vmem:[#allocation6 + $0x2] sm:$0xff]
        %v5855 = vld [vmem:[#allocation6 + $0x12] sm:$0xff]
        %v5856 = vld [vmem:[#allocation6 + $0x22] sm:$0xff]
        %v5857 = vld [vmem:[#allocation6 + $0x32] sm:$0xff]
        %v5858 = vld [vmem:[#allocation6 + $0x42] sm:$0xff]
        %v5859 = vld [vmem:[#allocation6 + $0x52] sm:$0xff]
        %v5860 = vld [vmem:[#allocation6 + $0x62] sm:$0xff]
        %v5861 = vld [vmem:[#allocation6 + $0x72] sm:$0xff]
        %5870 = vrot.lane.b32.xlu0 %v5854, 16
        %v5871 = vpop.permute.xlu0 %5870
        %5872 = vrot.lane.b32.xlu0 %v5855, 16
        %v5873 = vpop.permute.xlu0 %5872
        %5874 = vrot.lane.b32.xlu0 %v5856, 16
        %v5875 = vpop.permute.xlu0 %5874
        %5876 = vrot.lane.b32.xlu0 %v5857, 16
        %v5877 = vpop.permute.xlu0 %5876
        %5878 = vrot.lane.b32.xlu0 %v5858, 16
        %v5879 = vpop.permute.xlu0 %5878
        %5880 = vrot.lane.b32.xlu0 %v5859, 16
        %v5881 = vpop.permute.xlu0 %5880
        %5882 = vrot.lane.b32.xlu0 %v5860, 16
        %v5883 = vpop.permute.xlu0 %5882
        %5884 = vrot.lane.b32.xlu0 %v5861, 16
        %v5885 = vpop.permute.xlu0 %5884
        %5894 = vst.msk [vmem:[#allocation7] sm:$0xff] %vm3184, %v5871
        %5895 = vst.msk [vmem:[#allocation7 + $0x8] sm:$0xff] %vm3184, %v5873
        %5896 = vst.msk [vmem:[#allocation7 + $0x10] sm:$0xff] %vm3184, %v5875
        %5897 = vst.msk [vmem:[#allocation7 + $0x18] sm:$0xff] %vm3184, %v5877
        %5898 = vst.msk [vmem:[#allocation7 + $0x20] sm:$0xff] %vm3184, %v5879
        %5899 = vst.msk [vmem:[#allocation7 + $0x28] sm:$0xff] %vm3184, %v5881
        %5900 = vst.msk [vmem:[#allocation7 + $0x30] sm:$0xff] %vm3184, %v5883
        %5901 = vst.msk [vmem:[#allocation7 + $0x38] sm:$0xff] %vm3184, %v5885
        %v5902 = vld [vmem:[%s5781] sm:$0xff]
        %v5903 = vld [vmem:[%s5781 + $0x10] sm:$0xff]
        %v5904 = vld [vmem:[%s5781 + $0x20] sm:$0xff]
        %v5905 = vld [vmem:[%s5781 + $0x30] sm:$0xff]
        %v5906 = vld [vmem:[%s5781 + $0x40] sm:$0xff]
        %v5907 = vld [vmem:[%s5781 + $0x50] sm:$0xff]
        %v5908 = vld [vmem:[%s5781 + $0x60] sm:$0xff]
        %v5909 = vld [vmem:[%s5781 + $0x70] sm:$0xff]
        %5918 = vrot.lane.b32.xlu0 %v5902, 24
        %v5919 = vpop.permute.xlu0 %5918
        %5920 = vrot.lane.b32.xlu0 %v5903, 24
        %v5921 = vpop.permute.xlu0 %5920
        %5922 = vrot.lane.b32.xlu0 %v5904, 24
        %v5923 = vpop.permute.xlu0 %5922
        %5924 = vrot.lane.b32.xlu0 %v5905, 24
        %v5925 = vpop.permute.xlu0 %5924
        %5926 = vrot.lane.b32.xlu0 %v5906, 24
        %v5927 = vpop.permute.xlu0 %5926
        %5928 = vrot.lane.b32.xlu0 %v5907, 24
        %v5929 = vpop.permute.xlu0 %5928
        %5930 = vrot.lane.b32.xlu0 %v5908, 24
        %v5931 = vpop.permute.xlu0 %5930
        %5932 = vrot.lane.b32.xlu0 %v5909, 24
        %v5933 = vpop.permute.xlu0 %5932
        %5942 = vst.msk [vmem:[#allocation7] sm:$0xff] %vm3377, %v5919
        %5943 = vst.msk [vmem:[#allocation7 + $0x8] sm:$0xff] %vm3377, %v5921
        %5944 = vst.msk [vmem:[#allocation7 + $0x10] sm:$0xff] %vm3377, %v5923
        %5945 = vst.msk [vmem:[#allocation7 + $0x18] sm:$0xff] %vm3377, %v5925
        %5946 = vst.msk [vmem:[#allocation7 + $0x20] sm:$0xff] %vm3377, %v5927
        %5947 = vst.msk [vmem:[#allocation7 + $0x28] sm:$0xff] %vm3377, %v5929
        %5948 = vst.msk [vmem:[#allocation7 + $0x30] sm:$0xff] %vm3377, %v5931
        %5949 = vst.msk [vmem:[#allocation7 + $0x38] sm:$0xff] %vm3377, %v5933
        %v5950 = vld [vmem:[%s5781 + $0x1] sm:$0xff]
        %v5951 = vld [vmem:[%s5781 + $0x11] sm:$0xff]
        %v5952 = vld [vmem:[%s5781 + $0x21] sm:$0xff]
        %v5953 = vld [vmem:[%s5781 + $0x31] sm:$0xff]
        %v5954 = vld [vmem:[%s5781 + $0x41] sm:$0xff]
        %v5955 = vld [vmem:[%s5781 + $0x51] sm:$0xff]
        %v5956 = vld [vmem:[%s5781 + $0x61] sm:$0xff]
        %v5957 = vld [vmem:[%s5781 + $0x71] sm:$0xff]
        %5966 = vrot.lane.b32.xlu0 %v5950, 32
        %v5967 = vpop.permute.xlu0 %5966
        %5968 = vrot.lane.b32.xlu0 %v5951, 32
        %v5969 = vpop.permute.xlu0 %5968
        %5970 = vrot.lane.b32.xlu0 %v5952, 32
        %v5971 = vpop.permute.xlu0 %5970
        %5972 = vrot.lane.b32.xlu0 %v5953, 32
        %v5973 = vpop.permute.xlu0 %5972
        %5974 = vrot.lane.b32.xlu0 %v5954, 32
        %v5975 = vpop.permute.xlu0 %5974
        %5976 = vrot.lane.b32.xlu0 %v5955, 32
        %v5977 = vpop.permute.xlu0 %5976
        %5978 = vrot.lane.b32.xlu0 %v5956, 32
        %v5979 = vpop.permute.xlu0 %5978
        %5980 = vrot.lane.b32.xlu0 %v5957, 32
        %v5981 = vpop.permute.xlu0 %5980
        %5990 = vst.msk [vmem:[#allocation7] sm:$0xff] %vm3570, %v5967
        %5991 = vst.msk [vmem:[#allocation7 + $0x8] sm:$0xff] %vm3570, %v5969
        %5992 = vst.msk [vmem:[#allocation7 + $0x10] sm:$0xff] %vm3570, %v5971
        %5993 = vst.msk [vmem:[#allocation7 + $0x18] sm:$0xff] %vm3570, %v5973
        %5994 = vst.msk [vmem:[#allocation7 + $0x20] sm:$0xff] %vm3570, %v5975
        %5995 = vst.msk [vmem:[#allocation7 + $0x28] sm:$0xff] %vm3570, %v5977
        %5996 = vst.msk [vmem:[#allocation7 + $0x30] sm:$0xff] %vm3570, %v5979
        %5997 = vst.msk [vmem:[#allocation7 + $0x38] sm:$0xff] %vm3570, %v5981
        %v5998 = vld [vmem:[%s5781 + $0x2] sm:$0xff]
        %v5999 = vld [vmem:[%s5781 + $0x12] sm:$0xff]
        %v6000 = vld [vmem:[%s5781 + $0x22] sm:$0xff]
        %v6001 = vld [vmem:[%s5781 + $0x32] sm:$0xff]
        %v6002 = vld [vmem:[%s5781 + $0x42] sm:$0xff]
        %v6003 = vld [vmem:[%s5781 + $0x52] sm:$0xff]
        %v6004 = vld [vmem:[%s5781 + $0x62] sm:$0xff]
        %v6005 = vld [vmem:[%s5781 + $0x72] sm:$0xff]
        %6014 = vrot.lane.b32.xlu0 %v5998, 40
        %v6015 = vpop.permute.xlu0 %6014
        %6016 = vrot.lane.b32.xlu0 %v5999, 40
        %v6017 = vpop.permute.xlu0 %6016
        %6018 = vrot.lane.b32.xlu0 %v6000, 40
        %v6019 = vpop.permute.xlu0 %6018
        %6020 = vrot.lane.b32.xlu0 %v6001, 40
        %v6021 = vpop.permute.xlu0 %6020
        %6022 = vrot.lane.b32.xlu0 %v6002, 40
        %v6023 = vpop.permute.xlu0 %6022
        %6024 = vrot.lane.b32.xlu0 %v6003, 40
        %v6025 = vpop.permute.xlu0 %6024
        %6026 = vrot.lane.b32.xlu0 %v6004, 40
        %v6027 = vpop.permute.xlu0 %6026
        %6028 = vrot.lane.b32.xlu0 %v6005, 40
        %v6029 = vpop.permute.xlu0 %6028
        %6038 = vst.msk [vmem:[#allocation7] sm:$0xff] %vm3763, %v6015
        %6039 = vst.msk [vmem:[#allocation7 + $0x8] sm:$0xff] %vm3763, %v6017
        %6040 = vst.msk [vmem:[#allocation7 + $0x10] sm:$0xff] %vm3763, %v6019
        %6041 = vst.msk [vmem:[#allocation7 + $0x18] sm:$0xff] %vm3763, %v6021
        %6042 = vst.msk [vmem:[#allocation7 + $0x20] sm:$0xff] %vm3763, %v6023
        %6043 = vst.msk [vmem:[#allocation7 + $0x28] sm:$0xff] %vm3763, %v6025
        %6044 = vst.msk [vmem:[#allocation7 + $0x30] sm:$0xff] %vm3763, %v6027
        %6045 = vst.msk [vmem:[#allocation7 + $0x38] sm:$0xff] %vm3763, %v6029
        %s6046 = scalar_lea.vmem [#allocation6], 32
        %v6047 = vld [vmem:[%s6046] sm:$0xff]
        %v6048 = vld [vmem:[%s6046 + $0x10] sm:$0xff]
        %v6049 = vld [vmem:[%s6046 + $0x20] sm:$0xff]
        %v6050 = vld [vmem:[%s6046 + $0x30] sm:$0xff]
        %v6051 = vld [vmem:[%s6046 + $0x40] sm:$0xff]
        %v6052 = vld [vmem:[%s6046 + $0x50] sm:$0xff]
        %v6053 = vld [vmem:[%s6046 + $0x60] sm:$0xff]
        %v6054 = vld [vmem:[%s6046 + $0x70] sm:$0xff]
        %6063 = vrot.lane.b32.xlu0 %v6047, 48
        %v6064 = vpop.permute.xlu0 %6063
        %6065 = vrot.lane.b32.xlu0 %v6048, 48
        %v6066 = vpop.permute.xlu0 %6065
        %6067 = vrot.lane.b32.xlu0 %v6049, 48
        %v6068 = vpop.permute.xlu0 %6067
        %6069 = vrot.lane.b32.xlu0 %v6050, 48
        %v6070 = vpop.permute.xlu0 %6069
        %6071 = vrot.lane.b32.xlu0 %v6051, 48
        %v6072 = vpop.permute.xlu0 %6071
        %6073 = vrot.lane.b32.xlu0 %v6052, 48
        %v6074 = vpop.permute.xlu0 %6073
        %6075 = vrot.lane.b32.xlu0 %v6053, 48
        %v6076 = vpop.permute.xlu0 %6075
        %6077 = vrot.lane.b32.xlu0 %v6054, 48
        %v6078 = vpop.permute.xlu0 %6077
        %6087 = vst.msk [vmem:[#allocation7] sm:$0xff] %vm3957, %v6064
        %6088 = vst.msk [vmem:[#allocation7 + $0x8] sm:$0xff] %vm3957, %v6066
        %6089 = vst.msk [vmem:[#allocation7 + $0x10] sm:$0xff] %vm3957, %v6068
        %6090 = vst.msk [vmem:[#allocation7 + $0x18] sm:$0xff] %vm3957, %v6070
        %6091 = vst.msk [vmem:[#allocation7 + $0x20] sm:$0xff] %vm3957, %v6072
        %6092 = vst.msk [vmem:[#allocation7 + $0x28] sm:$0xff] %vm3957, %v6074
        %6093 = vst.msk [vmem:[#allocation7 + $0x30] sm:$0xff] %vm3957, %v6076
        %6094 = vst.msk [vmem:[#allocation7 + $0x38] sm:$0xff] %vm3957, %v6078
        %v6095 = vld [vmem:[%s6046 + $0x1] sm:$0xff]
        %v6096 = vld [vmem:[%s6046 + $0x11] sm:$0xff]
        %v6097 = vld [vmem:[%s6046 + $0x21] sm:$0xff]
        %v6098 = vld [vmem:[%s6046 + $0x31] sm:$0xff]
        %v6099 = vld [vmem:[%s6046 + $0x41] sm:$0xff]
        %v6100 = vld [vmem:[%s6046 + $0x51] sm:$0xff]
        %v6101 = vld [vmem:[%s6046 + $0x61] sm:$0xff]
        %v6102 = vld [vmem:[%s6046 + $0x71] sm:$0xff]
        %6111 = vrot.lane.b32.xlu0 %v6095, 56
        %v6112 = vpop.permute.xlu0 %6111
        %6113 = vrot.lane.b32.xlu0 %v6096, 56
        %v6114 = vpop.permute.xlu0 %6113
        %6115 = vrot.lane.b32.xlu0 %v6097, 56
        %v6116 = vpop.permute.xlu0 %6115
        %6117 = vrot.lane.b32.xlu0 %v6098, 56
        %v6118 = vpop.permute.xlu0 %6117
        %6119 = vrot.lane.b32.xlu0 %v6099, 56
        %v6120 = vpop.permute.xlu0 %6119
        %6121 = vrot.lane.b32.xlu0 %v6100, 56
        %v6122 = vpop.permute.xlu0 %6121
        %6123 = vrot.lane.b32.xlu0 %v6101, 56
        %v6124 = vpop.permute.xlu0 %6123
        %6125 = vrot.lane.b32.xlu0 %v6102, 56
        %v6126 = vpop.permute.xlu0 %6125
        %6135 = vst.msk [vmem:[#allocation7] sm:$0xff] %vm4150, %v6112
        %6136 = vst.msk [vmem:[#allocation7 + $0x8] sm:$0xff] %vm4150, %v6114
        %6137 = vst.msk [vmem:[#allocation7 + $0x10] sm:$0xff] %vm4150, %v6116
        %6138 = vst.msk [vmem:[#allocation7 + $0x18] sm:$0xff] %vm4150, %v6118
        %6139 = vst.msk [vmem:[#allocation7 + $0x20] sm:$0xff] %vm4150, %v6120
        %6140 = vst.msk [vmem:[#allocation7 + $0x28] sm:$0xff] %vm4150, %v6122
        %6141 = vst.msk [vmem:[#allocation7 + $0x30] sm:$0xff] %vm4150, %v6124
        %6142 = vst.msk [vmem:[#allocation7 + $0x38] sm:$0xff] %vm4150, %v6126
        %v6143 = vld [vmem:[%s6046 + $0x2] sm:$0xff]
        %v6144 = vld [vmem:[%s6046 + $0x12] sm:$0xff]
        %v6145 = vld [vmem:[%s6046 + $0x22] sm:$0xff]
        %v6146 = vld [vmem:[%s6046 + $0x32] sm:$0xff]
        %v6147 = vld [vmem:[%s6046 + $0x42] sm:$0xff]
        %v6148 = vld [vmem:[%s6046 + $0x52] sm:$0xff]
        %v6149 = vld [vmem:[%s6046 + $0x62] sm:$0xff]
        %v6150 = vld [vmem:[%s6046 + $0x72] sm:$0xff]
        %6159 = vrot.lane.b32.xlu0 %v6143, 64
        %v6160 = vpop.permute.xlu0 %6159
        %6161 = vrot.lane.b32.xlu0 %v6144, 64
        %v6162 = vpop.permute.xlu0 %6161
        %6163 = vrot.lane.b32.xlu0 %v6145, 64
        %v6164 = vpop.permute.xlu0 %6163
        %6165 = vrot.lane.b32.xlu0 %v6146, 64
        %v6166 = vpop.permute.xlu0 %6165
        %6167 = vrot.lane.b32.xlu0 %v6147, 64
        %v6168 = vpop.permute.xlu0 %6167
        %6169 = vrot.lane.b32.xlu0 %v6148, 64
        %v6170 = vpop.permute.xlu0 %6169
        %6171 = vrot.lane.b32.xlu0 %v6149, 64
        %v6172 = vpop.permute.xlu0 %6171
        %6173 = vrot.lane.b32.xlu0 %v6150, 64
        %v6174 = vpop.permute.xlu0 %6173
        %6183 = vst.msk [vmem:[#allocation7] sm:$0xff] %vm4343, %v6160
        %6184 = vst.msk [vmem:[#allocation7 + $0x8] sm:$0xff] %vm4343, %v6162
        %6185 = vst.msk [vmem:[#allocation7 + $0x10] sm:$0xff] %vm4343, %v6164
        %6186 = vst.msk [vmem:[#allocation7 + $0x18] sm:$0xff] %vm4343, %v6166
        %6187 = vst.msk [vmem:[#allocation7 + $0x20] sm:$0xff] %vm4343, %v6168
        %6188 = vst.msk [vmem:[#allocation7 + $0x28] sm:$0xff] %vm4343, %v6170
        %6189 = vst.msk [vmem:[#allocation7 + $0x30] sm:$0xff] %vm4343, %v6172
        %6190 = vst.msk [vmem:[#allocation7 + $0x38] sm:$0xff] %vm4343, %v6174
        %v6191 = vld [vmem:[#allocation7] sm:$0xff]
        %v6192 = vld [vmem:[#allocation7 + $0x8] sm:$0xff]
        %v6193 = vld [vmem:[#allocation7 + $0x10] sm:$0xff]
        %v6194 = vld [vmem:[#allocation7 + $0x18] sm:$0xff]
        %v6195 = vld [vmem:[#allocation7 + $0x20] sm:$0xff]
        %v6196 = vld [vmem:[#allocation7 + $0x28] sm:$0xff]
        %v6197 = vld [vmem:[#allocation7 + $0x30] sm:$0xff]
        %v6198 = vld [vmem:[#allocation7 + $0x38] sm:$0xff]
        %v6199 = vld [vmem:[%s5] sm:$0xff]
        %v6200 = vld [vmem:[%s5 + $0x8] sm:$0xff]
        %v6201 = vld [vmem:[%s5 + $0x10] sm:$0xff]
        %v6202 = vld [vmem:[%s5 + $0x18] sm:$0xff]
        %v6203 = vld [vmem:[%s5 + $0x20] sm:$0xff]
        %v6204 = vld [vmem:[%s5 + $0x28] sm:$0xff]
        %v6205 = vld [vmem:[%s5 + $0x30] sm:$0xff]
        %v6206 = vld [vmem:[%s5 + $0x38] sm:$0xff]
        %v6207 = vld [vmem:[%s5 + $0x40] sm:$0xff]
        %v6208 = vld [vmem:[%s6] sm:$0x1]
        %v6210 = vlaneseq
        %v6211 = vshrl.u32 %v6210, 7
        %v6212 = vsub.s32 0, %v6211
        %v6213 = vrot.slane %v6208, %v6212
        %v6216 = vsel %vm4424, %v6191, 0
        %v6219 = vsel %vm4424, %v6192, 0
        %v6222 = vsel %vm4424, %v6193, 0
        %v6225 = vsel %vm4424, %v6194, 0
        %v6228 = vsel %vm4424, %v6195, 0
        %v6231 = vsel %vm4424, %v6196, 0
        %v6234 = vsel %vm4424, %v6197, 0
        %v6237 = vsel %vm4424, %v6198, 0
        %6239 = vmatprep.subr.mxu0 0.0
        %6240 = vmatpush1.msra.mxu0 0.0
        %6241 = vmatprep.subr.mxu0 0.0
        %6242 = vmatpush1.msra.mxu0 0.0
        %6243 = vmatprep.subr.mxu0 0.0
        %6244 = vmatpush1.msra.mxu0 0.0
        %6245 = vmatprep.subr.mxu0 0.0
        %6246 = vmatpush1.msra.mxu0 0.0
        %6247 = vmatprep.subr.mxu0 0.0
        %6248 = vmatpush1.msra.mxu0 0.0
        %6249 = vmatprep.subr.mxu0 0.0
        %6250 = vmatpush1.msra.mxu0 0.0
        %6251 = vmatprep.subr.mxu0 0.0
        %6252 = vmatpush1.msra.mxu0 0.0
        %6253 = vmatprep.subr.mxu0 0.0
        %6254 = vmatpush1.msra.mxu0 %v6207
        %6255 = vmatprep.subr.mxu0 0.0
        %6256 = vmatpush1.msra.mxu0 %v6206
        %6257 = vmatprep.subr.mxu0 0.0
        %6258 = vmatpush1.msra.mxu0 %v6205
        %6259 = vmatprep.subr.mxu0 0.0
        %6260 = vmatpush1.msra.mxu0 %v6204
        %6261 = vmatprep.subr.mxu0 0.0
        %6262 = vmatpush1.msra.mxu0 %v6203
        %6263 = vmatprep.subr.mxu0 0.0
        %6264 = vmatpush1.msra.mxu0 %v6202
        %6265 = vmatprep.subr.mxu0 0.0
        %6266 = vmatpush1.msra.mxu0 %v6201
        %6267 = vmatprep.subr.mxu0 0.0
        %6268 = vmatpush1.msra.mxu0 %v6200
        %6269 = vmatprep.subr.mxu0 0.0
        %6270 = vmatpush1.msra.mxu0 %v6199
        %6271 = vmatprep.subr.mxu0 0.0
        %6272 = vmatpush2.msra.mxu0 0.0
        %6273 = vmatprep.subr.mxu0 0.0
        %6274 = vmatpush2.msra.mxu0 0.0
        %6275 = vmatprep.subr.mxu0 0.0
        %6276 = vmatpush2.msra.mxu0 0.0
        %6277 = vmatprep.subr.mxu0 0.0
        %6278 = vmatpush2.msra.mxu0 0.0
        %6279 = vmatprep.subr.mxu0 0.0
        %6280 = vmatpush2.msra.mxu0 0.0
        %6281 = vmatprep.subr.mxu0 0.0
        %6282 = vmatpush2.msra.mxu0 0.0
        %6283 = vmatprep.subr.mxu0 0.0
        %6284 = vmatpush2.msra.mxu0 0.0
        %6285 = vmatprep.subr.mxu0 0.0
        %6286 = vmatpush2.msra.mxu0 0.0
        %6287 = vmatprep.subr.mxu0 0.0
        %6288 = vmatpush2.msra.mxu0 0.0
        %6289 = vmatprep.subr.mxu0 0.0
        %6290 = vmatpush2.msra.mxu0 0.0
        %6291 = vmatprep.subr.mxu0 0.0
        %6292 = vmatpush2.msra.mxu0 0.0
        %6293 = vmatprep.subr.mxu0 0.0
        %6294 = vmatpush2.msra.mxu0 0.0
        %6295 = vmatprep.subr.mxu0 0.0
        %6296 = vmatpush2.msra.mxu0 0.0
        %6297 = vmatprep.subr.mxu0 0.0
        %6298 = vmatpush2.msra.mxu0 0.0
        %6299 = vmatprep.subr.mxu0 0.0
        %6300 = vmatpush2.msra.mxu0 0.0
        %6301 = vmatprep.subr.mxu0 0.0
        %6302 = vmatpush2.msra.mxu0 0.0
        %6303 = vmatprep.mubr.f32.mxu0 0.0
        %6304 = vmatmul.mubr.f32.gmra.mxu0 %v6216
        %v6305 = vpop.f32.mrf.mxu0
        %v6306 = vadd.f32 %v6213, %v6305
        %v6307 = vpop.f32.mrf.mxu0
        %6308 = vmatprep.mubr.f32.mxu0 0.0
        %6309 = vmatmul.mubr.f32.gmra.mxu0 %v6219
        %v6310 = vpop.f32.mrf.mxu0
        %v6311 = vadd.f32 %v6213, %v6310
        %v6312 = vpop.f32.mrf.mxu0
        %6313 = vmatprep.mubr.f32.mxu0 0.0
        %6314 = vmatmul.mubr.f32.gmra.mxu0 %v6222
        %v6315 = vpop.f32.mrf.mxu0
        %v6316 = vadd.f32 %v6213, %v6315
        %v6317 = vpop.f32.mrf.mxu0
        %6318 = vmatprep.mubr.f32.mxu0 0.0
        %6319 = vmatmul.mubr.f32.gmra.mxu0 %v6225
        %v6320 = vpop.f32.mrf.mxu0
        %v6321 = vadd.f32 %v6213, %v6320
        %v6322 = vpop.f32.mrf.mxu0
        %6323 = vmatprep.mubr.f32.mxu0 0.0
        %6324 = vmatmul.mubr.f32.gmra.mxu0 %v6228
        %v6325 = vpop.f32.mrf.mxu0
        %v6326 = vadd.f32 %v6213, %v6325
        %v6327 = vpop.f32.mrf.mxu0
        %6328 = vmatprep.mubr.f32.mxu0 0.0
        %6329 = vmatmul.mubr.f32.gmra.mxu0 %v6231
        %v6330 = vpop.f32.mrf.mxu0
        %v6331 = vadd.f32 %v6213, %v6330
        %v6332 = vpop.f32.mrf.mxu0
        %6333 = vmatprep.mubr.f32.mxu0 0.0
        %6334 = vmatmul.mubr.f32.gmra.mxu0 %v6234
        %v6335 = vpop.f32.mrf.mxu0
        %v6336 = vadd.f32 %v6213, %v6335
        %v6337 = vpop.f32.mrf.mxu0
        %6338 = vmatprep.mubr.f32.mxu0 0.0
        %6339 = vmatmul.mubr.f32.gmra.mxu0 %v6237
        %v6340 = vpop.f32.mrf.mxu0
        %v6341 = vadd.f32 %v6213, %v6340
        %v6342 = vpop.f32.mrf.mxu0
        %6343 = vdwg.mxu0
        %v6344 = vmax.f32 %v6306, 0.0
        %v6345 = vmax.f32 %v6311, 0.0
        %v6346 = vmax.f32 %v6316, 0.0
        %v6347 = vmax.f32 %v6321, 0.0
        %v6348 = vmax.f32 %v6326, 0.0
        %v6349 = vmax.f32 %v6331, 0.0
        %v6350 = vmax.f32 %v6336, 0.0
        %v6351 = vmax.f32 %v6341, 0.0
        %vm6352 = vcmask 130048
        %6353 = vst.msk [vmem:[#allocation8] sm:$0xff] %vm6352, 0.0
        %vm6354 = vcmask 123904
        %6355 = vst.msk [vmem:[#allocation8 + $0x8] sm:$0x3] %vm6354, 0.0
        %6356 = vst.msk [vmem:[#allocation8 + $0x10] sm:$0xff] %vm6352, 0.0
        %6357 = vst.msk [vmem:[#allocation8 + $0x18] sm:$0x3] %vm6354, 0.0
        %6358 = vst.msk [vmem:[#allocation8 + $0x20] sm:$0xff] %vm6352, 0.0
        %6359 = vst.msk [vmem:[#allocation8 + $0x28] sm:$0x3] %vm6354, 0.0
        %6360 = vst.msk [vmem:[#allocation8 + $0x30] sm:$0xff] %vm6352, 0.0
        %6361 = vst.msk [vmem:[#allocation8 + $0x38] sm:$0x3] %vm6354, 0.0
        %6362 = vst.msk [vmem:[#allocation8 + $0x40] sm:$0xff] %vm6352, 0.0
        %6363 = vst.msk [vmem:[#allocation8 + $0x48] sm:$0x3] %vm6354, 0.0
        %6364 = vst.msk [vmem:[#allocation8 + $0x50] sm:$0xff] %vm6352, 0.0
        %6365 = vst.msk [vmem:[#allocation8 + $0x58] sm:$0x3] %vm6354, 0.0
        %6366 = vst.msk [vmem:[#allocation8 + $0x60] sm:$0xff] %vm6352, 0.0
        %6367 = vst.msk [vmem:[#allocation8 + $0x68] sm:$0x3] %vm6354, 0.0
        %6368 = vst.msk [vmem:[#allocation8 + $0x70] sm:$0xff] %vm6352, 0.0
        %6369 = vst.msk [vmem:[#allocation8 + $0x78] sm:$0x3] %vm6354, 0.0
        %6370 = vst.msk [vmem:[#allocation8 + $0x80] sm:$0xff] %vm6352, 0.0
        %6371 = vst.msk [vmem:[#allocation8 + $0x88] sm:$0x3] %vm6354, 0.0
        %6372 = vst.msk [vmem:[#allocation8 + $0x90] sm:$0xff] %vm6352, 0.0
        %6373 = vst.msk [vmem:[#allocation8 + $0x98] sm:$0x3] %vm6354, 0.0
        %s6374 = scalar_lea.vmem [#allocation8], 16
        %6375 = vst.msk [vmem:[%s6374 + $0x1] sm:$0xff] %vm6352, %v6344
        %6376 = vst.msk [vmem:[%s6374 + $0x11] sm:$0xff] %vm6352, %v6345
        %6377 = vst.msk [vmem:[%s6374 + $0x21] sm:$0xff] %vm6352, %v6346
        %6378 = vst.msk [vmem:[%s6374 + $0x31] sm:$0xff] %vm6352, %v6347
        %6379 = vst.msk [vmem:[%s6374 + $0x41] sm:$0xff] %vm6352, %v6348
        %6380 = vst.msk [vmem:[%s6374 + $0x51] sm:$0xff] %vm6352, %v6349
        %6381 = vst.msk [vmem:[%s6374 + $0x61] sm:$0xff] %vm6352, %v6350
        %6382 = vst.msk [vmem:[%s6374 + $0x71] sm:$0xff] %vm6352, %v6351
        %v6383 = vld [vmem:[#allocation8] sm:$0xff]
        %v6384 = vld [vmem:[#allocation8 + $0x10] sm:$0xff]
        %v6385 = vld [vmem:[#allocation8 + $0x20] sm:$0xff]
        %v6386 = vld [vmem:[#allocation8 + $0x30] sm:$0xff]
        %v6387 = vld [vmem:[#allocation8 + $0x40] sm:$0xff]
        %v6388 = vld [vmem:[#allocation8 + $0x50] sm:$0xff]
        %v6389 = vld [vmem:[#allocation8 + $0x60] sm:$0xff]
        %v6390 = vld [vmem:[#allocation8 + $0x70] sm:$0xff]
        %6391 = vst.msk [vmem:[#allocation9] sm:$0xff] %vm6352, %v6383
        %6392 = vst.msk [vmem:[#allocation9 + $0x10] sm:$0xff] %vm6352, %v6384
        %6393 = vst.msk [vmem:[#allocation9 + $0x20] sm:$0xff] %vm6352, %v6385
        %6394 = vst.msk [vmem:[#allocation9 + $0x30] sm:$0xff] %vm6352, %v6386
        %6395 = vst.msk [vmem:[#allocation9 + $0x40] sm:$0xff] %vm6352, %v6387
        %6396 = vst.msk [vmem:[#allocation9 + $0x50] sm:$0xff] %vm6352, %v6388
        %6397 = vst.msk [vmem:[#allocation9 + $0x60] sm:$0xff] %vm6352, %v6389
        %6398 = vst.msk [vmem:[#allocation9 + $0x70] sm:$0xff] %vm6352, %v6390
        %v6399 = vld [vmem:[#allocation8 + $0x1] sm:$0xff]
        %v6400 = vld [vmem:[#allocation8 + $0x11] sm:$0xff]
        %v6401 = vld [vmem:[#allocation8 + $0x21] sm:$0xff]
        %v6402 = vld [vmem:[#allocation8 + $0x31] sm:$0xff]
        %v6403 = vld [vmem:[#allocation8 + $0x41] sm:$0xff]
        %v6404 = vld [vmem:[#allocation8 + $0x51] sm:$0xff]
        %v6405 = vld [vmem:[#allocation8 + $0x61] sm:$0xff]
        %v6406 = vld [vmem:[#allocation8 + $0x71] sm:$0xff]
        %6415 = vrot.lane.b32.xlu0 %v6399, 16
        %v6416 = vpop.permute.xlu0 %6415
        %6417 = vrot.lane.b32.xlu0 %v6400, 16
        %v6418 = vpop.permute.xlu0 %6417
        %6419 = vrot.lane.b32.xlu0 %v6401, 16
        %v6420 = vpop.permute.xlu0 %6419
        %6421 = vrot.lane.b32.xlu0 %v6402, 16
        %v6422 = vpop.permute.xlu0 %6421
        %6423 = vrot.lane.b32.xlu0 %v6403, 16
        %v6424 = vpop.permute.xlu0 %6423
        %6425 = vrot.lane.b32.xlu0 %v6404, 16
        %v6426 = vpop.permute.xlu0 %6425
        %6427 = vrot.lane.b32.xlu0 %v6405, 16
        %v6428 = vpop.permute.xlu0 %6427
        %6429 = vrot.lane.b32.xlu0 %v6406, 16
        %v6430 = vpop.permute.xlu0 %6429
        %vm6439 = vcmask 261248
        %6440 = vst.msk [vmem:[#allocation9] sm:$0xff] %vm6439, %v6416
        %6441 = vst.msk [vmem:[#allocation9 + $0x10] sm:$0xff] %vm6439, %v6418
        %6442 = vst.msk [vmem:[#allocation9 + $0x20] sm:$0xff] %vm6439, %v6420
        %6443 = vst.msk [vmem:[#allocation9 + $0x30] sm:$0xff] %vm6439, %v6422
        %6444 = vst.msk [vmem:[#allocation9 + $0x40] sm:$0xff] %vm6439, %v6424
        %6445 = vst.msk [vmem:[#allocation9 + $0x50] sm:$0xff] %vm6439, %v6426
        %6446 = vst.msk [vmem:[#allocation9 + $0x60] sm:$0xff] %vm6439, %v6428
        %6447 = vst.msk [vmem:[#allocation9 + $0x70] sm:$0xff] %vm6439, %v6430
        %v6448 = vld [vmem:[#allocation8 + $0x2] sm:$0xff]
        %v6449 = vld [vmem:[#allocation8 + $0x12] sm:$0xff]
        %v6450 = vld [vmem:[#allocation8 + $0x22] sm:$0xff]
        %v6451 = vld [vmem:[#allocation8 + $0x32] sm:$0xff]
        %v6452 = vld [vmem:[#allocation8 + $0x42] sm:$0xff]
        %v6453 = vld [vmem:[#allocation8 + $0x52] sm:$0xff]
        %v6454 = vld [vmem:[#allocation8 + $0x62] sm:$0xff]
        %v6455 = vld [vmem:[#allocation8 + $0x72] sm:$0xff]
        %6464 = vrot.lane.b32.xlu0 %v6448, 32
        %v6465 = vpop.permute.xlu0 %6464
        %6466 = vrot.lane.b32.xlu0 %v6449, 32
        %v6467 = vpop.permute.xlu0 %6466
        %6468 = vrot.lane.b32.xlu0 %v6450, 32
        %v6469 = vpop.permute.xlu0 %6468
        %6470 = vrot.lane.b32.xlu0 %v6451, 32
        %v6471 = vpop.permute.xlu0 %6470
        %6472 = vrot.lane.b32.xlu0 %v6452, 32
        %v6473 = vpop.permute.xlu0 %6472
        %6474 = vrot.lane.b32.xlu0 %v6453, 32
        %v6475 = vpop.permute.xlu0 %6474
        %6476 = vrot.lane.b32.xlu0 %v6454, 32
        %v6477 = vpop.permute.xlu0 %6476
        %6478 = vrot.lane.b32.xlu0 %v6455, 32
        %v6479 = vpop.permute.xlu0 %6478
        %vm6488 = vcmask 392448
        %6489 = vst.msk [vmem:[#allocation9] sm:$0xff] %vm6488, %v6465
        %6490 = vst.msk [vmem:[#allocation9 + $0x10] sm:$0xff] %vm6488, %v6467
        %6491 = vst.msk [vmem:[#allocation9 + $0x20] sm:$0xff] %vm6488, %v6469
        %6492 = vst.msk [vmem:[#allocation9 + $0x30] sm:$0xff] %vm6488, %v6471
        %6493 = vst.msk [vmem:[#allocation9 + $0x40] sm:$0xff] %vm6488, %v6473
        %6494 = vst.msk [vmem:[#allocation9 + $0x50] sm:$0xff] %vm6488, %v6475
        %6495 = vst.msk [vmem:[#allocation9 + $0x60] sm:$0xff] %vm6488, %v6477
        %6496 = vst.msk [vmem:[#allocation9 + $0x70] sm:$0xff] %vm6488, %v6479
        %v6497 = vld [vmem:[%s6374] sm:$0xff]
        %v6498 = vld [vmem:[%s6374 + $0x10] sm:$0xff]
        %v6499 = vld [vmem:[%s6374 + $0x20] sm:$0xff]
        %v6500 = vld [vmem:[%s6374 + $0x30] sm:$0xff]
        %v6501 = vld [vmem:[%s6374 + $0x40] sm:$0xff]
        %v6502 = vld [vmem:[%s6374 + $0x50] sm:$0xff]
        %v6503 = vld [vmem:[%s6374 + $0x60] sm:$0xff]
        %v6504 = vld [vmem:[%s6374 + $0x70] sm:$0xff]
        %6513 = vrot.lane.b32.xlu0 %v6497, 48
        %v6514 = vpop.permute.xlu0 %6513
        %6515 = vrot.lane.b32.xlu0 %v6498, 48
        %v6516 = vpop.permute.xlu0 %6515
        %6517 = vrot.lane.b32.xlu0 %v6499, 48
        %v6518 = vpop.permute.xlu0 %6517
        %6519 = vrot.lane.b32.xlu0 %v6500, 48
        %v6520 = vpop.permute.xlu0 %6519
        %6521 = vrot.lane.b32.xlu0 %v6501, 48
        %v6522 = vpop.permute.xlu0 %6521
        %6523 = vrot.lane.b32.xlu0 %v6502, 48
        %v6524 = vpop.permute.xlu0 %6523
        %6525 = vrot.lane.b32.xlu0 %v6503, 48
        %v6526 = vpop.permute.xlu0 %6525
        %6527 = vrot.lane.b32.xlu0 %v6504, 48
        %v6528 = vpop.permute.xlu0 %6527
        %vm6537 = vcmask 523648
        %6538 = vst.msk [vmem:[#allocation9] sm:$0xff] %vm6537, %v6514
        %6539 = vst.msk [vmem:[#allocation9 + $0x10] sm:$0xff] %vm6537, %v6516
        %6540 = vst.msk [vmem:[#allocation9 + $0x20] sm:$0xff] %vm6537, %v6518
        %6541 = vst.msk [vmem:[#allocation9 + $0x30] sm:$0xff] %vm6537, %v6520
        %6542 = vst.msk [vmem:[#allocation9 + $0x40] sm:$0xff] %vm6537, %v6522
        %6543 = vst.msk [vmem:[#allocation9 + $0x50] sm:$0xff] %vm6537, %v6524
        %6544 = vst.msk [vmem:[#allocation9 + $0x60] sm:$0xff] %vm6537, %v6526
        %6545 = vst.msk [vmem:[#allocation9 + $0x70] sm:$0xff] %vm6537, %v6528
        %v6546 = vld [vmem:[%s6374 + $0x1] sm:$0xff]
        %v6547 = vld [vmem:[%s6374 + $0x11] sm:$0xff]
        %v6548 = vld [vmem:[%s6374 + $0x21] sm:$0xff]
        %v6549 = vld [vmem:[%s6374 + $0x31] sm:$0xff]
        %v6550 = vld [vmem:[%s6374 + $0x41] sm:$0xff]
        %v6551 = vld [vmem:[%s6374 + $0x51] sm:$0xff]
        %v6552 = vld [vmem:[%s6374 + $0x61] sm:$0xff]
        %v6553 = vld [vmem:[%s6374 + $0x71] sm:$0xff]
        %6562 = vrot.lane.b32.xlu0 %v6546, 64
        %v6563 = vpop.permute.xlu0 %6562
        %6564 = vrot.lane.b32.xlu0 %v6547, 64
        %v6565 = vpop.permute.xlu0 %6564
        %6566 = vrot.lane.b32.xlu0 %v6548, 64
        %v6567 = vpop.permute.xlu0 %6566
        %6568 = vrot.lane.b32.xlu0 %v6549, 64
        %v6569 = vpop.permute.xlu0 %6568
        %6570 = vrot.lane.b32.xlu0 %v6550, 64
        %v6571 = vpop.permute.xlu0 %6570
        %6572 = vrot.lane.b32.xlu0 %v6551, 64
        %v6573 = vpop.permute.xlu0 %6572
        %6574 = vrot.lane.b32.xlu0 %v6552, 64
        %v6575 = vpop.permute.xlu0 %6574
        %6576 = vrot.lane.b32.xlu0 %v6553, 64
        %v6577 = vpop.permute.xlu0 %6576
        %vm6586 = vcmask 654848
        %6587 = vst.msk [vmem:[#allocation9] sm:$0xff] %vm6586, %v6563
        %6588 = vst.msk [vmem:[#allocation9 + $0x10] sm:$0xff] %vm6586, %v6565
        %6589 = vst.msk [vmem:[#allocation9 + $0x20] sm:$0xff] %vm6586, %v6567
        %6590 = vst.msk [vmem:[#allocation9 + $0x30] sm:$0xff] %vm6586, %v6569
        %6591 = vst.msk [vmem:[#allocation9 + $0x40] sm:$0xff] %vm6586, %v6571
        %6592 = vst.msk [vmem:[#allocation9 + $0x50] sm:$0xff] %vm6586, %v6573
        %6593 = vst.msk [vmem:[#allocation9 + $0x60] sm:$0xff] %vm6586, %v6575
        %6594 = vst.msk [vmem:[#allocation9 + $0x70] sm:$0xff] %vm6586, %v6577
        %v6595 = vld [vmem:[%s6374 + $0x2] sm:$0xff]
        %v6596 = vld [vmem:[%s6374 + $0x12] sm:$0xff]
        %v6597 = vld [vmem:[%s6374 + $0x22] sm:$0xff]
        %v6598 = vld [vmem:[%s6374 + $0x32] sm:$0xff]
        %v6599 = vld [vmem:[%s6374 + $0x42] sm:$0xff]
        %v6600 = vld [vmem:[%s6374 + $0x52] sm:$0xff]
        %v6601 = vld [vmem:[%s6374 + $0x62] sm:$0xff]
        %v6602 = vld [vmem:[%s6374 + $0x72] sm:$0xff]
        %6611 = vrot.lane.b32.xlu0 %v6595, 80
        %v6612 = vpop.permute.xlu0 %6611
        %6613 = vrot.lane.b32.xlu0 %v6596, 80
        %v6614 = vpop.permute.xlu0 %6613
        %6615 = vrot.lane.b32.xlu0 %v6597, 80
        %v6616 = vpop.permute.xlu0 %6615
        %6617 = vrot.lane.b32.xlu0 %v6598, 80
        %v6618 = vpop.permute.xlu0 %6617
        %6619 = vrot.lane.b32.xlu0 %v6599, 80
        %v6620 = vpop.permute.xlu0 %6619
        %6621 = vrot.lane.b32.xlu0 %v6600, 80
        %v6622 = vpop.permute.xlu0 %6621
        %6623 = vrot.lane.b32.xlu0 %v6601, 80
        %v6624 = vpop.permute.xlu0 %6623
        %6625 = vrot.lane.b32.xlu0 %v6602, 80
        %v6626 = vpop.permute.xlu0 %6625
        %vm6635 = vcmask 786048
        %6636 = vst.msk [vmem:[#allocation9] sm:$0xff] %vm6635, %v6612
        %6637 = vst.msk [vmem:[#allocation9 + $0x10] sm:$0xff] %vm6635, %v6614
        %6638 = vst.msk [vmem:[#allocation9 + $0x20] sm:$0xff] %vm6635, %v6616
        %6639 = vst.msk [vmem:[#allocation9 + $0x30] sm:$0xff] %vm6635, %v6618
        %6640 = vst.msk [vmem:[#allocation9 + $0x40] sm:$0xff] %vm6635, %v6620
        %6641 = vst.msk [vmem:[#allocation9 + $0x50] sm:$0xff] %vm6635, %v6622
        %6642 = vst.msk [vmem:[#allocation9 + $0x60] sm:$0xff] %vm6635, %v6624
        %6643 = vst.msk [vmem:[#allocation9 + $0x70] sm:$0xff] %vm6635, %v6626
        %s6644 = scalar_lea.vmem [#allocation8], 32
        %v6645 = vld [vmem:[%s6644] sm:$0xff]
        %v6646 = vld [vmem:[%s6644 + $0x10] sm:$0xff]
        %v6647 = vld [vmem:[%s6644 + $0x20] sm:$0xff]
        %v6648 = vld [vmem:[%s6644 + $0x30] sm:$0xff]
        %v6649 = vld [vmem:[%s6644 + $0x40] sm:$0xff]
        %v6650 = vld [vmem:[%s6644 + $0x50] sm:$0xff]
        %v6651 = vld [vmem:[%s6644 + $0x60] sm:$0xff]
        %v6652 = vld [vmem:[%s6644 + $0x70] sm:$0xff]
        %6661 = vrot.lane.b32.xlu0 %v6645, 96
        %v6662 = vpop.permute.xlu0 %6661
        %6663 = vrot.lane.b32.xlu0 %v6646, 96
        %v6664 = vpop.permute.xlu0 %6663
        %6665 = vrot.lane.b32.xlu0 %v6647, 96
        %v6666 = vpop.permute.xlu0 %6665
        %6667 = vrot.lane.b32.xlu0 %v6648, 96
        %v6668 = vpop.permute.xlu0 %6667
        %6669 = vrot.lane.b32.xlu0 %v6649, 96
        %v6670 = vpop.permute.xlu0 %6669
        %6671 = vrot.lane.b32.xlu0 %v6650, 96
        %v6672 = vpop.permute.xlu0 %6671
        %6673 = vrot.lane.b32.xlu0 %v6651, 96
        %v6674 = vpop.permute.xlu0 %6673
        %6675 = vrot.lane.b32.xlu0 %v6652, 96
        %v6676 = vpop.permute.xlu0 %6675
        %vm6685 = vcmask 917248
        %6686 = vst.msk [vmem:[#allocation9] sm:$0xff] %vm6685, %v6662
        %6687 = vst.msk [vmem:[#allocation9 + $0x10] sm:$0xff] %vm6685, %v6664
        %6688 = vst.msk [vmem:[#allocation9 + $0x20] sm:$0xff] %vm6685, %v6666
        %6689 = vst.msk [vmem:[#allocation9 + $0x30] sm:$0xff] %vm6685, %v6668
        %6690 = vst.msk [vmem:[#allocation9 + $0x40] sm:$0xff] %vm6685, %v6670
        %6691 = vst.msk [vmem:[#allocation9 + $0x50] sm:$0xff] %vm6685, %v6672
        %6692 = vst.msk [vmem:[#allocation9 + $0x60] sm:$0xff] %vm6685, %v6674
        %6693 = vst.msk [vmem:[#allocation9 + $0x70] sm:$0xff] %vm6685, %v6676
        %v6694 = vld [vmem:[%s6644 + $0x1] sm:$0xff]
        %v6695 = vld [vmem:[%s6644 + $0x11] sm:$0xff]
        %v6696 = vld [vmem:[%s6644 + $0x21] sm:$0xff]
        %v6697 = vld [vmem:[%s6644 + $0x31] sm:$0xff]
        %v6698 = vld [vmem:[%s6644 + $0x41] sm:$0xff]
        %v6699 = vld [vmem:[%s6644 + $0x51] sm:$0xff]
        %v6700 = vld [vmem:[%s6644 + $0x61] sm:$0xff]
        %v6701 = vld [vmem:[%s6644 + $0x71] sm:$0xff]
        %6710 = vrot.lane.b32.xlu0 %v6694, 112
        %v6711 = vpop.permute.xlu0 %6710
        %6712 = vrot.lane.b32.xlu0 %v6695, 112
        %v6713 = vpop.permute.xlu0 %6712
        %6714 = vrot.lane.b32.xlu0 %v6696, 112
        %v6715 = vpop.permute.xlu0 %6714
        %6716 = vrot.lane.b32.xlu0 %v6697, 112
        %v6717 = vpop.permute.xlu0 %6716
        %6718 = vrot.lane.b32.xlu0 %v6698, 112
        %v6719 = vpop.permute.xlu0 %6718
        %6720 = vrot.lane.b32.xlu0 %v6699, 112
        %v6721 = vpop.permute.xlu0 %6720
        %6722 = vrot.lane.b32.xlu0 %v6700, 112
        %v6723 = vpop.permute.xlu0 %6722
        %6724 = vrot.lane.b32.xlu0 %v6701, 112
        %v6725 = vpop.permute.xlu0 %6724
        %vm6734 = vcmask 1048448
        %6735 = vst.msk [vmem:[#allocation9] sm:$0xff] %vm6734, %v6711
        %6736 = vst.msk [vmem:[#allocation9 + $0x10] sm:$0xff] %vm6734, %v6713
        %6737 = vst.msk [vmem:[#allocation9 + $0x20] sm:$0xff] %vm6734, %v6715
        %6738 = vst.msk [vmem:[#allocation9 + $0x30] sm:$0xff] %vm6734, %v6717
        %6739 = vst.msk [vmem:[#allocation9 + $0x40] sm:$0xff] %vm6734, %v6719
        %6740 = vst.msk [vmem:[#allocation9 + $0x50] sm:$0xff] %vm6734, %v6721
        %6741 = vst.msk [vmem:[#allocation9 + $0x60] sm:$0xff] %vm6734, %v6723
        %6742 = vst.msk [vmem:[#allocation9 + $0x70] sm:$0xff] %vm6734, %v6725
        %v6743 = vld [vmem:[%s6644 + $0x2] sm:$0xff]
        %v6744 = vld [vmem:[%s6644 + $0x12] sm:$0xff]
        %v6745 = vld [vmem:[%s6644 + $0x22] sm:$0xff]
        %v6746 = vld [vmem:[%s6644 + $0x32] sm:$0xff]
        %v6747 = vld [vmem:[%s6644 + $0x42] sm:$0xff]
        %v6748 = vld [vmem:[%s6644 + $0x52] sm:$0xff]
        %v6749 = vld [vmem:[%s6644 + $0x62] sm:$0xff]
        %v6750 = vld [vmem:[%s6644 + $0x72] sm:$0xff]
        %6751 = vst.msk [vmem:[#allocation9 + $0x8] sm:$0xff] %vm6352, %v6743
        %6752 = vst.msk [vmem:[#allocation9 + $0x18] sm:$0xff] %vm6352, %v6744
        %6753 = vst.msk [vmem:[#allocation9 + $0x28] sm:$0xff] %vm6352, %v6745
        %6754 = vst.msk [vmem:[#allocation9 + $0x38] sm:$0xff] %vm6352, %v6746
        %6755 = vst.msk [vmem:[#allocation9 + $0x48] sm:$0xff] %vm6352, %v6747
        %6756 = vst.msk [vmem:[#allocation9 + $0x58] sm:$0xff] %vm6352, %v6748
        %6757 = vst.msk [vmem:[#allocation9 + $0x68] sm:$0xff] %vm6352, %v6749
        %6758 = vst.msk [vmem:[#allocation9 + $0x78] sm:$0xff] %vm6352, %v6750
        %v6759 = vld [vmem:[#allocation9] sm:$0xff]
        %v6760 = vld [vmem:[#allocation9 + $0x8] sm:$0xff]
        %v6761 = vld [vmem:[#allocation9 + $0x10] sm:$0xff]
        %v6762 = vld [vmem:[#allocation9 + $0x18] sm:$0xff]
        %v6763 = vld [vmem:[#allocation9 + $0x20] sm:$0xff]
        %v6764 = vld [vmem:[#allocation9 + $0x28] sm:$0xff]
        %v6765 = vld [vmem:[#allocation9 + $0x30] sm:$0xff]
        %v6766 = vld [vmem:[#allocation9 + $0x38] sm:$0xff]
        %v6767 = vld [vmem:[#allocation9 + $0x40] sm:$0xff]
        %v6768 = vld [vmem:[#allocation9 + $0x48] sm:$0xff]
        %v6769 = vld [vmem:[#allocation9 + $0x50] sm:$0xff]
        %v6770 = vld [vmem:[#allocation9 + $0x58] sm:$0xff]
        %v6771 = vld [vmem:[#allocation9 + $0x60] sm:$0xff]
        %v6772 = vld [vmem:[#allocation9 + $0x68] sm:$0xff]
        %v6773 = vld [vmem:[#allocation9 + $0x70] sm:$0xff]
        %v6774 = vld [vmem:[#allocation9 + $0x78] sm:$0xff]
        %v6775 = vld [vmem:[%s7] sm:$0xff]
        %v6776 = vld [vmem:[%s7 + $0x8] sm:$0xff]
        %v6777 = vld [vmem:[%s7 + $0x10] sm:$0xff]
        %v6778 = vld [vmem:[%s7 + $0x18] sm:$0xff]
        %v6779 = vld [vmem:[%s7 + $0x20] sm:$0xff]
        %v6780 = vld [vmem:[%s7 + $0x28] sm:$0xff]
        %v6781 = vld [vmem:[%s7 + $0x30] sm:$0xff]
        %v6782 = vld [vmem:[%s7 + $0x38] sm:$0xff]
        %v6783 = vld [vmem:[%s7 + $0x40] sm:$0xff]
        %v6784 = vld [vmem:[%s7 + $0x48] sm:$0xff]
        %v6785 = vld [vmem:[%s7 + $0x50] sm:$0xff]
        %v6786 = vld [vmem:[%s7 + $0x58] sm:$0xff]
        %v6787 = vld [vmem:[%s7 + $0x60] sm:$0xff]
        %v6788 = vld [vmem:[%s7 + $0x68] sm:$0xff]
        %v6789 = vld [vmem:[%s7 + $0x70] sm:$0xff]
        %v6790 = vld [vmem:[%s7 + $0x78] sm:$0xff]
        %v6791 = vld [vmem:[%s7 + $0x80] sm:$0xff]
        %v6792 = vld [vmem:[%s7 + $0x88] sm:$0xff]
        %v6793 = vld [vmem:[%s8] sm:$0x1]
        %v6795 = vlaneseq
        %v6796 = vshrl.u32 %v6795, 7
        %v6797 = vsub.s32 0, %v6796
        %v6798 = vrot.slane %v6793, %v6797
        %v6801 = vsel %vm6352, %v6760, 0
        %v6804 = vsel %vm6352, %v6762, 0
        %v6807 = vsel %vm6352, %v6764, 0
        %v6810 = vsel %vm6352, %v6766, 0
        %v6813 = vsel %vm6352, %v6768, 0
        %v6816 = vsel %vm6352, %v6770, 0
        %v6819 = vsel %vm6352, %v6772, 0
        %v6822 = vsel %vm6352, %v6774, 0
        %6824 = vmatprep.subr.mxu0 0.0
        %6825 = vmatpush1.msra.mxu0 %v6790
        %6826 = vmatprep.subr.mxu0 0.0
        %6827 = vmatpush1.msra.mxu0 %v6789
        %6828 = vmatprep.subr.mxu0 0.0
        %6829 = vmatpush1.msra.mxu0 %v6788
        %6830 = vmatprep.subr.mxu0 0.0
        %6831 = vmatpush1.msra.mxu0 %v6787
        %6832 = vmatprep.subr.mxu0 0.0
        %6833 = vmatpush1.msra.mxu0 %v6786
        %6834 = vmatprep.subr.mxu0 0.0
        %6835 = vmatpush1.msra.mxu0 %v6785
        %6836 = vmatprep.subr.mxu0 0.0
        %6837 = vmatpush1.msra.mxu0 %v6784
        %6838 = vmatprep.subr.mxu0 0.0
        %6839 = vmatpush1.msra.mxu0 %v6783
        %6840 = vmatprep.subr.mxu0 0.0
        %6841 = vmatpush1.msra.mxu0 %v6782
        %6842 = vmatprep.subr.mxu0 0.0
        %6843 = vmatpush1.msra.mxu0 %v6781
        %6844 = vmatprep.subr.mxu0 0.0
        %6845 = vmatpush1.msra.mxu0 %v6780
        %6846 = vmatprep.subr.mxu0 0.0
        %6847 = vmatpush1.msra.mxu0 %v6779
        %6848 = vmatprep.subr.mxu0 0.0
        %6849 = vmatpush1.msra.mxu0 %v6778
        %6850 = vmatprep.subr.mxu0 0.0
        %6851 = vmatpush1.msra.mxu0 %v6777
        %6852 = vmatprep.subr.mxu0 0.0
        %6853 = vmatpush1.msra.mxu0 %v6776
        %6854 = vmatprep.subr.mxu0 0.0
        %6855 = vmatpush1.msra.mxu0 %v6775
        %6856 = vmatprep.subr.mxu0 0.0
        %6857 = vmatpush2.msra.mxu0 0.0
        %6858 = vmatprep.subr.mxu0 0.0
        %6859 = vmatpush2.msra.mxu0 0.0
        %6860 = vmatprep.subr.mxu0 0.0
        %6861 = vmatpush2.msra.mxu0 0.0
        %6862 = vmatprep.subr.mxu0 0.0
        %6863 = vmatpush2.msra.mxu0 0.0
        %6864 = vmatprep.subr.mxu0 0.0
        %6865 = vmatpush2.msra.mxu0 0.0
        %6866 = vmatprep.subr.mxu0 0.0
        %6867 = vmatpush2.msra.mxu0 0.0
        %6868 = vmatprep.subr.mxu0 0.0
        %6869 = vmatpush2.msra.mxu0 0.0
        %6870 = vmatprep.subr.mxu0 0.0
        %6871 = vmatpush2.msra.mxu0 0.0
        %6872 = vmatprep.subr.mxu0 0.0
        %6873 = vmatpush2.msra.mxu0 0.0
        %6874 = vmatprep.subr.mxu0 0.0
        %6875 = vmatpush2.msra.mxu0 0.0
        %6876 = vmatprep.subr.mxu0 0.0
        %6877 = vmatpush2.msra.mxu0 0.0
        %6878 = vmatprep.subr.mxu0 0.0
        %6879 = vmatpush2.msra.mxu0 0.0
        %6880 = vmatprep.subr.mxu0 0.0
        %6881 = vmatpush2.msra.mxu0 0.0
        %6882 = vmatprep.subr.mxu0 0.0
        %6883 = vmatpush2.msra.mxu0 0.0
        %6884 = vmatprep.subr.mxu0 0.0
        %6885 = vmatpush2.msra.mxu0 %v6792
        %6886 = vmatprep.subr.mxu0 0.0
        %6887 = vmatpush2.msra.mxu0 %v6791
        %6888 = vmatprep.mubr.f32.mxu0 %v6801
        %6889 = vmatmul.mubr.f32.gmra.mxu0 %v6759
        %v6890 = vpop.f32.mrf.mxu0
        %v6891 = vadd.f32 %v6798, %v6890
        %v6892 = vpop.f32.mrf.mxu0
        %6893 = vmatprep.mubr.f32.mxu0 %v6804
        %6894 = vmatmul.mubr.f32.gmra.mxu0 %v6761
        %v6895 = vpop.f32.mrf.mxu0
        %v6896 = vadd.f32 %v6798, %v6895
        %v6897 = vpop.f32.mrf.mxu0
        %6898 = vmatprep.mubr.f32.mxu0 %v6807
        %6899 = vmatmul.mubr.f32.gmra.mxu0 %v6763
        %v6900 = vpop.f32.mrf.mxu0
        %v6901 = vadd.f32 %v6798, %v6900
        %v6902 = vpop.f32.mrf.mxu0
        %6903 = vmatprep.mubr.f32.mxu0 %v6810
        %6904 = vmatmul.mubr.f32.gmra.mxu0 %v6765
        %v6905 = vpop.f32.mrf.mxu0
        %v6906 = vadd.f32 %v6798, %v6905
        %v6907 = vpop.f32.mrf.mxu0
        %6908 = vmatprep.mubr.f32.mxu0 %v6813
        %6909 = vmatmul.mubr.f32.gmra.mxu0 %v6767
        %v6910 = vpop.f32.mrf.mxu0
        %v6911 = vadd.f32 %v6798, %v6910
        %v6912 = vpop.f32.mrf.mxu0
        %6913 = vmatprep.mubr.f32.mxu0 %v6816
        %6914 = vmatmul.mubr.f32.gmra.mxu0 %v6769
        %v6915 = vpop.f32.mrf.mxu0
        %v6916 = vadd.f32 %v6798, %v6915
        %v6917 = vpop.f32.mrf.mxu0
        %6918 = vmatprep.mubr.f32.mxu0 %v6819
        %6919 = vmatmul.mubr.f32.gmra.mxu0 %v6771
        %v6920 = vpop.f32.mrf.mxu0
        %v6921 = vadd.f32 %v6798, %v6920
        %v6922 = vpop.f32.mrf.mxu0
        %6923 = vmatprep.mubr.f32.mxu0 %v6822
        %6924 = vmatmul.mubr.f32.gmra.mxu0 %v6773
        %v6925 = vpop.f32.mrf.mxu0
        %v6926 = vadd.f32 %v6798, %v6925
        %v6927 = vpop.f32.mrf.mxu0
        %6928 = vdwg.mxu0
        %v6929 = vmax.f32 %v6891, 0.0
        %v6930 = vmax.f32 %v6896, 0.0
        %v6931 = vmax.f32 %v6901, 0.0
        %v6932 = vmax.f32 %v6906, 0.0
        %v6933 = vmax.f32 %v6911, 0.0
        %v6934 = vmax.f32 %v6916, 0.0
        %v6935 = vmax.f32 %v6921, 0.0
        %v6936 = vmax.f32 %v6926, 0.0
        %v6937 = vsel %vm6352, %v6929, -inf
        %v6938 = vsel %vm6352, %v6930, -inf
        %v6939 = vmax.f32 %v6937, %v6938
        %v6940 = vsel %vm6352, %v6931, -inf
        %v6941 = vsel %vm6352, %v6932, -inf
        %v6942 = vmax.f32 %v6940, %v6941
        %v6943 = vsel %vm6352, %v6933, -inf
        %v6944 = vsel %vm6352, %v6934, -inf
        %v6945 = vmax.f32 %v6943, %v6944
        %v6946 = vsel %vm6352, %v6935, -inf
        %v6947 = vsel %vm6352, %v6936, -inf
        %v6948 = vmax.f32 %v6946, %v6947
        %v6953 = vcombine.high %v6939, %v6939
        %v6955 = vunpack.c.l.s4 1983009808
        %v6956 = vunpack.c.0.s8 %v6955
        %v6957 = vlaneseq
        %v6958 = vshrl.u32 %v6957, 7
        %v6959 = vsub.s32 %v6956, %v6958
        %v6960 = vrot.slane %v6939, %v6959
        %v6962 = vunpack.c.l.s4 1983009808
        %v6963 = vunpack.c.0.s8 %v6962
        %v6964 = vlaneseq
        %v6965 = vshrl.u32 %v6964, 7
        %v6966 = vsub.s32 %v6963, %v6965
        %v6967 = vrot.slane %v6953, %v6966
        %v6968 = vcombine.high %v6960, %v6960
        %v6969 = vcombine.high %v6967, %v6967
        %v6970 = vcombine.high %v6942, %v6942
        %v6972 = vunpack.c.l.s4 1983009808
        %v6973 = vunpack.c.0.s8 %v6972
        %v6974 = vlaneseq
        %v6975 = vshrl.u32 %v6974, 7
        %v6976 = vsub.s32 %v6973, %v6975
        %v6977 = vrot.slane %v6942, %v6976
        %v6979 = vunpack.c.l.s4 1983009808
        %v6980 = vunpack.c.0.s8 %v6979
        %v6981 = vlaneseq
        %v6982 = vshrl.u32 %v6981, 7
        %v6983 = vsub.s32 %v6980, %v6982
        %v6984 = vrot.slane %v6970, %v6983
        %v6985 = vcombine.high %v6977, %v6977
        %v6986 = vcombine.high %v6984, %v6984
        %v6987 = vcombine.high %v6945, %v6945
        %v6989 = vunpack.c.l.s4 1983009808
        %v6990 = vunpack.c.0.s8 %v6989
        %v6991 = vlaneseq
        %v6992 = vshrl.u32 %v6991, 7
        %v6993 = vsub.s32 %v6990, %v6992
        %v6994 = vrot.slane %v6945, %v6993
        %v6996 = vunpack.c.l.s4 1983009808
        %v6997 = vunpack.c.0.s8 %v6996
        %v6998 = vlaneseq
        %v6999 = vshrl.u32 %v6998, 7
        %v7000 = vsub.s32 %v6997, %v6999
        %v7001 = vrot.slane %v6987, %v7000
        %v7002 = vcombine.high %v6994, %v6994
        %v7003 = vcombine.high %v7001, %v7001
        %v7004 = vcombine.high %v6948, %v6948
        %v7006 = vunpack.c.l.s4 1983009808
        %v7007 = vunpack.c.0.s8 %v7006
        %v7008 = vlaneseq
        %v7009 = vshrl.u32 %v7008, 7
        %v7010 = vsub.s32 %v7007, %v7009
        %v7011 = vrot.slane %v6948, %v7010
        %v7013 = vunpack.c.l.s4 1983009808
        %v7014 = vunpack.c.0.s8 %v7013
        %v7015 = vlaneseq
        %v7016 = vshrl.u32 %v7015, 7
        %v7017 = vsub.s32 %v7014, %v7016
        %v7018 = vrot.slane %v7004, %v7017
        %v7019 = vcombine.high %v7011, %v7011
        %v7020 = vcombine.high %v7018, %v7018
        %v7037 = vsel %vm6354, %v6960, -inf
        %v7038 = vrot.slane %v7037, 4
        %v7039 = vmax.f32 %v7037, %v7038
        %v7040 = vrot.slane %v7039, 2
        %v7041 = vmax.f32 %v7039, %v7040
        %v7042 = vrot.slane %v7041, 1
        %v7043 = vmax.f32 %v7041, %v7042
        %v7044 = vsel %vm6354, %v6968, -inf
        %v7045 = vrot.slane %v7044, 4
        %v7046 = vmax.f32 %v7044, %v7045
        %v7047 = vrot.slane %v7046, 2
        %v7048 = vmax.f32 %v7046, %v7047
        %v7049 = vrot.slane %v7048, 1
        %v7050 = vmax.f32 %v7048, %v7049
        %v7051 = vsel %vm6354, %v6967, -inf
        %v7052 = vrot.slane %v7051, 4
        %v7053 = vmax.f32 %v7051, %v7052
        %v7054 = vrot.slane %v7053, 2
        %v7055 = vmax.f32 %v7053, %v7054
        %v7056 = vrot.slane %v7055, 1
        %v7057 = vmax.f32 %v7055, %v7056
        %v7058 = vsel %vm6354, %v6969, -inf
        %v7059 = vrot.slane %v7058, 4
        %v7060 = vmax.f32 %v7058, %v7059
        %v7061 = vrot.slane %v7060, 2
        %v7062 = vmax.f32 %v7060, %v7061
        %v7063 = vrot.slane %v7062, 1
        %v7064 = vmax.f32 %v7062, %v7063
        %v7065 = vsel %vm6354, %v6977, -inf
        %v7066 = vrot.slane %v7065, 4
        %v7067 = vmax.f32 %v7065, %v7066
        %v7068 = vrot.slane %v7067, 2
        %v7069 = vmax.f32 %v7067, %v7068
        %v7070 = vrot.slane %v7069, 1
        %v7071 = vmax.f32 %v7069, %v7070
        %v7072 = vsel %vm6354, %v6985, -inf
        %v7073 = vrot.slane %v7072, 4
        %v7074 = vmax.f32 %v7072, %v7073
        %v7075 = vrot.slane %v7074, 2
        %v7076 = vmax.f32 %v7074, %v7075
        %v7077 = vrot.slane %v7076, 1
        %v7078 = vmax.f32 %v7076, %v7077
        %v7079 = vsel %vm6354, %v6984, -inf
        %v7080 = vrot.slane %v7079, 4
        %v7081 = vmax.f32 %v7079, %v7080
        %v7082 = vrot.slane %v7081, 2
        %v7083 = vmax.f32 %v7081, %v7082
        %v7084 = vrot.slane %v7083, 1
        %v7085 = vmax.f32 %v7083, %v7084
        %v7086 = vsel %vm6354, %v6986, -inf
        %v7087 = vrot.slane %v7086, 4
        %v7088 = vmax.f32 %v7086, %v7087
        %v7089 = vrot.slane %v7088, 2
        %v7090 = vmax.f32 %v7088, %v7089
        %v7091 = vrot.slane %v7090, 1
        %v7092 = vmax.f32 %v7090, %v7091
        %v7093 = vsel %vm6354, %v6994, -inf
        %v7094 = vrot.slane %v7093, 4
        %v7095 = vmax.f32 %v7093, %v7094
        %v7096 = vrot.slane %v7095, 2
        %v7097 = vmax.f32 %v7095, %v7096
        %v7098 = vrot.slane %v7097, 1
        %v7099 = vmax.f32 %v7097, %v7098
        %v7100 = vsel %vm6354, %v7002, -inf
        %v7101 = vrot.slane %v7100, 4
        %v7102 = vmax.f32 %v7100, %v7101
        %v7103 = vrot.slane %v7102, 2
        %v7104 = vmax.f32 %v7102, %v7103
        %v7105 = vrot.slane %v7104, 1
        %v7106 = vmax.f32 %v7104, %v7105
        %v7107 = vsel %vm6354, %v7001, -inf
        %v7108 = vrot.slane %v7107, 4
        %v7109 = vmax.f32 %v7107, %v7108
        %v7110 = vrot.slane %v7109, 2
        %v7111 = vmax.f32 %v7109, %v7110
        %v7112 = vrot.slane %v7111, 1
        %v7113 = vmax.f32 %v7111, %v7112
        %v7114 = vsel %vm6354, %v7003, -inf
        %v7115 = vrot.slane %v7114, 4
        %v7116 = vmax.f32 %v7114, %v7115
        %v7117 = vrot.slane %v7116, 2
        %v7118 = vmax.f32 %v7116, %v7117
        %v7119 = vrot.slane %v7118, 1
        %v7120 = vmax.f32 %v7118, %v7119
        %v7121 = vsel %vm6354, %v7011, -inf
        %v7122 = vrot.slane %v7121, 4
        %v7123 = vmax.f32 %v7121, %v7122
        %v7124 = vrot.slane %v7123, 2
        %v7125 = vmax.f32 %v7123, %v7124
        %v7126 = vrot.slane %v7125, 1
        %v7127 = vmax.f32 %v7125, %v7126
        %v7128 = vsel %vm6354, %v7019, -inf
        %v7129 = vrot.slane %v7128, 4
        %v7130 = vmax.f32 %v7128, %v7129
        %v7131 = vrot.slane %v7130, 2
        %v7132 = vmax.f32 %v7130, %v7131
        %v7133 = vrot.slane %v7132, 1
        %v7134 = vmax.f32 %v7132, %v7133
        %v7135 = vsel %vm6354, %v7018, -inf
        %v7136 = vrot.slane %v7135, 4
        %v7137 = vmax.f32 %v7135, %v7136
        %v7138 = vrot.slane %v7137, 2
        %v7139 = vmax.f32 %v7137, %v7138
        %v7140 = vrot.slane %v7139, 1
        %v7141 = vmax.f32 %v7139, %v7140
        %v7142 = vsel %vm6354, %v7020, -inf
        %v7143 = vrot.slane %v7142, 4
        %v7144 = vmax.f32 %v7142, %v7143
        %v7145 = vrot.slane %v7144, 2
        %v7146 = vmax.f32 %v7144, %v7145
        %v7147 = vrot.slane %v7146, 1
        %v7148 = vmax.f32 %v7146, %v7147
        %vm7149 = vcmask 128000
        %7150 = vst.msk [vmem:[#allocation10] sm:$0x3f] %vm7149, 0.0
        %7151 = vst.msk [vmem:[#allocation10 + $0x8] sm:$0x3f] %vm7149, 0.0
        %7152 = vst.msk [vmem:[#allocation10 + $0x10] sm:$0x3f] %vm7149, 0.0
        %7153 = vst.msk [vmem:[#allocation10 + $0x18] sm:$0x3f] %vm7149, 0.0
        %7154 = vst.msk [vmem:[#allocation10 + $0x20] sm:$0x3f] %vm7149, 0.0
        %7155 = vst.msk [vmem:[#allocation10 + $0x28] sm:$0x3f] %vm7149, 0.0
        %v7172 = vsel %vm5710, %v7050, %v7043
        %v7173 = vsel %vm5712, %v7057, %v7172
        %v7174 = vsel %vm5714, %v7064, %v7173
        %v7175 = vsel %vm5710, %v7078, %v7071
        %v7176 = vsel %vm5712, %v7085, %v7175
        %v7177 = vsel %vm5714, %v7092, %v7176
        %v7178 = vsel %vm5710, %v7106, %v7099
        %v7179 = vsel %vm5712, %v7113, %v7178
        %v7180 = vsel %vm5714, %v7120, %v7179
        %v7181 = vsel %vm5710, %v7134, %v7127
        %v7182 = vsel %vm5712, %v7141, %v7181
        %v7183 = vsel %vm5714, %v7148, %v7182
        %s7188 = scalar_lea.vmem [#allocation10], 8
        %vm7189 = vcmask 125952
        %7190 = vst.msk [vmem:[%s7188 + $0x1] sm:$0xf] %vm7189, %v7174
        %7191 = vst.msk [vmem:[%s7188 + $0x9] sm:$0xf] %vm7189, %v7177
        %7192 = vst.msk [vmem:[%s7188 + $0x11] sm:$0xf] %vm7189, %v7180
        %7193 = vst.msk [vmem:[%s7188 + $0x19] sm:$0xf] %vm7189, %v7183
        %v7194 = vld [vmem:[#allocation10] sm:$0xf]
        %v7195 = vld [vmem:[#allocation10 + $0x8] sm:$0xf]
        %v7196 = vld [vmem:[#allocation10 + $0x10] sm:$0xf]
        %v7197 = vld [vmem:[#allocation10 + $0x18] sm:$0xf]
        %v7202 = vcombine.low %v7194, %v7195
        %v7203 = vcombine.low %v7196, %v7197
        %7206 = vst.msk [vmem:[#allocation11] sm:$0xff] %vm6352, %v7202
        %7207 = vst.msk [vmem:[#allocation11 + $0x10] sm:$0xff] %vm6352, %v7203
        %v7208 = vld [vmem:[#allocation10 + $0x1] sm:$0xf]
        %v7209 = vld [vmem:[#allocation10 + $0x9] sm:$0xf]
        %v7210 = vld [vmem:[#allocation10 + $0x11] sm:$0xf]
        %v7211 = vld [vmem:[#allocation10 + $0x19] sm:$0xf]
        %v7216 = vcombine.low %v7208, %v7209
        %v7217 = vcombine.low %v7210, %v7211
        %7218 = vrot.lane.b32.xlu0 %v7216, 16
        %v7219 = vpop.permute.xlu0 %7218
        %7220 = vrot.lane.b32.xlu0 %v7217, 16
        %v7221 = vpop.permute.xlu0 %7220
        %7224 = vst.msk [vmem:[#allocation11] sm:$0xff] %vm6439, %v7219
        %7225 = vst.msk [vmem:[#allocation11 + $0x10] sm:$0xff] %vm6439, %v7221
        %v7226 = vld [vmem:[#allocation10 + $0x2] sm:$0xf]
        %v7227 = vld [vmem:[#allocation10 + $0xa] sm:$0xf]
        %v7228 = vld [vmem:[#allocation10 + $0x12] sm:$0xf]
        %v7229 = vld [vmem:[#allocation10 + $0x1a] sm:$0xf]
        %v7234 = vcombine.low %v7226, %v7227
        %v7235 = vcombine.low %v7228, %v7229
        %7236 = vrot.lane.b32.xlu0 %v7234, 32
        %v7237 = vpop.permute.xlu0 %7236
        %7238 = vrot.lane.b32.xlu0 %v7235, 32
        %v7239 = vpop.permute.xlu0 %7238
        %7242 = vst.msk [vmem:[#allocation11] sm:$0xff] %vm6488, %v7237
        %7243 = vst.msk [vmem:[#allocation11 + $0x10] sm:$0xff] %vm6488, %v7239
        %v7244 = vld [vmem:[%s7188] sm:$0xf]
        %v7245 = vld [vmem:[%s7188 + $0x8] sm:$0xf]
        %v7246 = vld [vmem:[%s7188 + $0x10] sm:$0xf]
        %v7247 = vld [vmem:[%s7188 + $0x18] sm:$0xf]
        %v7252 = vcombine.low %v7244, %v7245
        %v7253 = vcombine.low %v7246, %v7247
        %7254 = vrot.lane.b32.xlu0 %v7252, 48
        %v7255 = vpop.permute.xlu0 %7254
        %7256 = vrot.lane.b32.xlu0 %v7253, 48
        %v7257 = vpop.permute.xlu0 %7256
        %7260 = vst.msk [vmem:[#allocation11] sm:$0xff] %vm6537, %v7255
        %7261 = vst.msk [vmem:[#allocation11 + $0x10] sm:$0xff] %vm6537, %v7257
        %v7262 = vld [vmem:[%s7188 + $0x1] sm:$0xf]
        %v7263 = vld [vmem:[%s7188 + $0x9] sm:$0xf]
        %v7264 = vld [vmem:[%s7188 + $0x11] sm:$0xf]
        %v7265 = vld [vmem:[%s7188 + $0x19] sm:$0xf]
        %v7270 = vcombine.low %v7262, %v7263
        %v7271 = vcombine.low %v7264, %v7265
        %7272 = vrot.lane.b32.xlu0 %v7270, 64
        %v7273 = vpop.permute.xlu0 %7272
        %7274 = vrot.lane.b32.xlu0 %v7271, 64
        %v7275 = vpop.permute.xlu0 %7274
        %7278 = vst.msk [vmem:[#allocation11] sm:$0xff] %vm6586, %v7273
        %7279 = vst.msk [vmem:[#allocation11 + $0x10] sm:$0xff] %vm6586, %v7275
        %v7280 = vld [vmem:[%s7188 + $0x2] sm:$0xf]
        %v7281 = vld [vmem:[%s7188 + $0xa] sm:$0xf]
        %v7282 = vld [vmem:[%s7188 + $0x12] sm:$0xf]
        %v7283 = vld [vmem:[%s7188 + $0x1a] sm:$0xf]
        %v7288 = vcombine.low %v7280, %v7281
        %v7289 = vcombine.low %v7282, %v7283
        %7290 = vrot.lane.b32.xlu0 %v7288, 80
        %v7291 = vpop.permute.xlu0 %7290
        %7292 = vrot.lane.b32.xlu0 %v7289, 80
        %v7293 = vpop.permute.xlu0 %7292
        %7296 = vst.msk [vmem:[#allocation11] sm:$0xff] %vm6635, %v7291
        %7297 = vst.msk [vmem:[#allocation11 + $0x10] sm:$0xff] %vm6635, %v7293
        %s7298 = scalar_lea.vmem [#allocation10], 16
        %v7299 = vld [vmem:[%s7298] sm:$0xf]
        %v7300 = vld [vmem:[%s7298 + $0x8] sm:$0xf]
        %v7301 = vld [vmem:[%s7298 + $0x10] sm:$0xf]
        %v7302 = vld [vmem:[%s7298 + $0x18] sm:$0xf]
        %v7307 = vcombine.low %v7299, %v7300
        %v7308 = vcombine.low %v7301, %v7302
        %7309 = vrot.lane.b32.xlu0 %v7307, 96
        %v7310 = vpop.permute.xlu0 %7309
        %7311 = vrot.lane.b32.xlu0 %v7308, 96
        %v7312 = vpop.permute.xlu0 %7311
        %7315 = vst.msk [vmem:[#allocation11] sm:$0xff] %vm6685, %v7310
        %7316 = vst.msk [vmem:[#allocation11 + $0x10] sm:$0xff] %vm6685, %v7312
        %v7317 = vld [vmem:[%s7298 + $0x1] sm:$0xf]
        %v7318 = vld [vmem:[%s7298 + $0x9] sm:$0xf]
        %v7319 = vld [vmem:[%s7298 + $0x11] sm:$0xf]
        %v7320 = vld [vmem:[%s7298 + $0x19] sm:$0xf]
        %v7325 = vcombine.low %v7317, %v7318
        %v7326 = vcombine.low %v7319, %v7320
        %7327 = vrot.lane.b32.xlu0 %v7325, 112
        %v7328 = vpop.permute.xlu0 %7327
        %7329 = vrot.lane.b32.xlu0 %v7326, 112
        %v7330 = vpop.permute.xlu0 %7329
        %7333 = vst.msk [vmem:[#allocation11] sm:$0xff] %vm6734, %v7328
        %7334 = vst.msk [vmem:[#allocation11 + $0x10] sm:$0xff] %vm6734, %v7330
        %v7335 = vld [vmem:[%s7298 + $0x2] sm:$0xf]
        %v7336 = vld [vmem:[%s7298 + $0xa] sm:$0xf]
        %v7337 = vld [vmem:[%s7298 + $0x12] sm:$0xf]
        %v7338 = vld [vmem:[%s7298 + $0x1a] sm:$0xf]
        %v7343 = vcombine.low %v7335, %v7336
        %v7344 = vcombine.low %v7337, %v7338
        %7347 = vst.msk [vmem:[#allocation11 + $0x8] sm:$0xff] %vm6352, %v7343
        %7348 = vst.msk [vmem:[#allocation11 + $0x18] sm:$0xff] %vm6352, %v7344
        %v7349 = vld [vmem:[#allocation11] sm:$0xff]
        %v7350 = vld [vmem:[#allocation11 + $0x8] sm:$0xff]
        %v7351 = vld [vmem:[#allocation11 + $0x10] sm:$0xff]
        %v7352 = vld [vmem:[#allocation11 + $0x18] sm:$0xff]
        %v7353 = vld [vmem:[%s9] sm:$0xff]
        %v7354 = vld [vmem:[%s9 + $0x8] sm:$0xff]
        %v7355 = vld [vmem:[%s9 + $0x10] sm:$0xff]
        %v7356 = vld [vmem:[%s9 + $0x18] sm:$0xff]
        %v7357 = vld [vmem:[%s9 + $0x20] sm:$0xff]
        %v7358 = vld [vmem:[%s9 + $0x28] sm:$0xff]
        %v7359 = vld [vmem:[%s9 + $0x30] sm:$0xff]
        %v7360 = vld [vmem:[%s9 + $0x38] sm:$0xff]
        %v7361 = vld [vmem:[%s9 + $0x40] sm:$0xff]
        %v7362 = vld [vmem:[%s9 + $0x48] sm:$0xff]
        %v7363 = vld [vmem:[%s9 + $0x50] sm:$0xff]
        %v7364 = vld [vmem:[%s9 + $0x58] sm:$0xff]
        %v7365 = vld [vmem:[%s9 + $0x60] sm:$0xff]
        %v7366 = vld [vmem:[%s9 + $0x68] sm:$0xff]
        %v7367 = vld [vmem:[%s9 + $0x70] sm:$0xff]
        %v7368 = vld [vmem:[%s9 + $0x78] sm:$0xff]
        %v7369 = vld [vmem:[%s9 + $0x80] sm:$0xff]
        %v7370 = vld [vmem:[%s9 + $0x88] sm:$0xff]
        %v7371 = vld [vmem:[%s10] sm:$0x1]
        %v7373 = vlaneseq
        %v7374 = vshrl.u32 %v7373, 7
        %v7375 = vsub.s32 0, %v7374
        %v7376 = vrot.slane %v7371, %v7375
        %v7379 = vsel %vm6352, %v7350, 0
        %v7382 = vsel %vm6352, %v7352, 0
        %7384 = vmatprep.subr.mxu0 0.0
        %7385 = vmatpush1.msra.mxu0 %v7368
        %7386 = vmatprep.subr.mxu0 0.0
        %7387 = vmatpush1.msra.mxu0 %v7367
        %7388 = vmatprep.subr.mxu0 0.0
        %7389 = vmatpush1.msra.mxu0 %v7366
        %7390 = vmatprep.subr.mxu0 0.0
        %7391 = vmatpush1.msra.mxu0 %v7365
        %7392 = vmatprep.subr.mxu0 0.0
        %7393 = vmatpush1.msra.mxu0 %v7364
        %7394 = vmatprep.subr.mxu0 0.0
        %7395 = vmatpush1.msra.mxu0 %v7363
        %7396 = vmatprep.subr.mxu0 0.0
        %7397 = vmatpush1.msra.mxu0 %v7362
        %7398 = vmatprep.subr.mxu0 0.0
        %7399 = vmatpush1.msra.mxu0 %v7361
        %7400 = vmatprep.subr.mxu0 0.0
        %7401 = vmatpush1.msra.mxu0 %v7360
        %7402 = vmatprep.subr.mxu0 0.0
        %7403 = vmatpush1.msra.mxu0 %v7359
        %7404 = vmatprep.subr.mxu0 0.0
        %7405 = vmatpush1.msra.mxu0 %v7358
        %7406 = vmatprep.subr.mxu0 0.0
        %7407 = vmatpush1.msra.mxu0 %v7357
        %7408 = vmatprep.subr.mxu0 0.0
        %7409 = vmatpush1.msra.mxu0 %v7356
        %7410 = vmatprep.subr.mxu0 0.0
        %7411 = vmatpush1.msra.mxu0 %v7355
        %7412 = vmatprep.subr.mxu0 0.0
        %7413 = vmatpush1.msra.mxu0 %v7354
        %7414 = vmatprep.subr.mxu0 0.0
        %7415 = vmatpush1.msra.mxu0 %v7353
        %7416 = vmatprep.subr.mxu0 0.0
        %7417 = vmatpush2.msra.mxu0 0.0
        %7418 = vmatprep.subr.mxu0 0.0
        %7419 = vmatpush2.msra.mxu0 0.0
        %7420 = vmatprep.subr.mxu0 0.0
        %7421 = vmatpush2.msra.mxu0 0.0
        %7422 = vmatprep.subr.mxu0 0.0
        %7423 = vmatpush2.msra.mxu0 0.0
        %7424 = vmatprep.subr.mxu0 0.0
        %7425 = vmatpush2.msra.mxu0 0.0
        %7426 = vmatprep.subr.mxu0 0.0
        %7427 = vmatpush2.msra.mxu0 0.0
        %7428 = vmatprep.subr.mxu0 0.0
        %7429 = vmatpush2.msra.mxu0 0.0
        %7430 = vmatprep.subr.mxu0 0.0
        %7431 = vmatpush2.msra.mxu0 0.0
        %7432 = vmatprep.subr.mxu0 0.0
        %7433 = vmatpush2.msra.mxu0 0.0
        %7434 = vmatprep.subr.mxu0 0.0
        %7435 = vmatpush2.msra.mxu0 0.0
        %7436 = vmatprep.subr.mxu0 0.0
        %7437 = vmatpush2.msra.mxu0 0.0
        %7438 = vmatprep.subr.mxu0 0.0
        %7439 = vmatpush2.msra.mxu0 0.0
        %7440 = vmatprep.subr.mxu0 0.0
        %7441 = vmatpush2.msra.mxu0 0.0
        %7442 = vmatprep.subr.mxu0 0.0
        %7443 = vmatpush2.msra.mxu0 0.0
        %7444 = vmatprep.subr.mxu0 0.0
        %7445 = vmatpush2.msra.mxu0 %v7370
        %7446 = vmatprep.subr.mxu0 0.0
        %7447 = vmatpush2.msra.mxu0 %v7369
        %7448 = vmatprep.mubr.f32.mxu0 %v7379
        %7449 = vmatmul.mubr.f32.gmra.mxu0 %v7349
        %v7450 = vpop.f32.mrf.mxu0
        %v7451 = vadd.f32 %v7376, %v7450
        %v7452 = vpop.f32.mrf.mxu0
        %7453 = vmatprep.mubr.f32.mxu0 %v7382
        %7454 = vmatmul.mubr.f32.gmra.mxu0 %v7351
        %v7455 = vpop.f32.mrf.mxu0
        %v7456 = vadd.f32 %v7376, %v7455
        %v7457 = vpop.f32.mrf.mxu0
        %7458 = vdwg.mxu0
        %v7459 = vmax.f32 %v7451, 0.0
        %v7460 = vmax.f32 %v7456, 0.0
        %v7463 = vcombine.high %v7459, %v7459
        %v7464 = vcombine.high %v7460, %v7460
        %vm7467 = vcmask 259072
        %7468 = vst.msk [vmem:[#allocation12] sm:$0x3f] %vm7467, 0.0
        %7469 = vst.msk [vmem:[#allocation12 + $0x8] sm:$0x3f] %vm7467, 0.0
        %7470 = vst.msk [vmem:[#allocation12 + $0x10] sm:$0x3f] %vm7467, 0.0
        %7471 = vst.msk [vmem:[#allocation12 + $0x18] sm:$0x3f] %vm7467, 0.0
        %7472 = vst.msk [vmem:[#allocation12 + $0x20] sm:$0x3f] %vm7467, 0.0
        %7473 = vst.msk [vmem:[#allocation12 + $0x28] sm:$0x3f] %vm7467, 0.0
        %s7474 = scalar_lea.vmem [#allocation12], 8
        %vm7475 = vcmask 257024
        %7476 = vst.msk [vmem:[%s7474 + $0x1] sm:$0xf] %vm7475, %v7459
        %7477 = vst.msk [vmem:[%s7474 + $0x9] sm:$0xf] %vm7475, %v7463
        %7478 = vst.msk [vmem:[%s7474 + $0x11] sm:$0xf] %vm7475, %v7460
        %7479 = vst.msk [vmem:[%s7474 + $0x19] sm:$0xf] %vm7475, %v7464
        %v7480 = vld [vmem:[#allocation12] sm:$0xf]
        %v7481 = vld [vmem:[#allocation12 + $0x8] sm:$0xf]
        %v7482 = vld [vmem:[#allocation12 + $0x10] sm:$0xf]
        %v7483 = vld [vmem:[#allocation12 + $0x18] sm:$0xf]
        %v7488 = vcombine.low %v7480, %v7481
        %v7489 = vcombine.low %v7482, %v7483
        %vm7492 = vcmask 261120
        %7493 = vst.msk [vmem:[#allocation13] sm:$0xff] %vm7492, %v7488
        %7494 = vst.msk [vmem:[#allocation13 + $0x18] sm:$0xff] %vm7492, %v7489
        %v7495 = vld [vmem:[#allocation12 + $0x1] sm:$0xf]
        %v7496 = vld [vmem:[#allocation12 + $0x9] sm:$0xf]
        %v7497 = vld [vmem:[#allocation12 + $0x11] sm:$0xf]
        %v7498 = vld [vmem:[#allocation12 + $0x19] sm:$0xf]
        %v7503 = vcombine.low %v7495, %v7496
        %v7504 = vcombine.low %v7497, %v7498
        %7505 = vrot.lane.b32.xlu0 %v7503, 32
        %v7506 = vpop.permute.xlu0 %7505
        %7507 = vrot.lane.b32.xlu0 %v7504, 32
        %v7508 = vpop.permute.xlu0 %7507
        %vm7511 = vcmask 523520
        %7512 = vst.msk [vmem:[#allocation13] sm:$0xff] %vm7511, %v7506
        %7513 = vst.msk [vmem:[#allocation13 + $0x18] sm:$0xff] %vm7511, %v7508
        %v7514 = vld [vmem:[#allocation12 + $0x2] sm:$0xf]
        %v7515 = vld [vmem:[#allocation12 + $0xa] sm:$0xf]
        %v7516 = vld [vmem:[#allocation12 + $0x12] sm:$0xf]
        %v7517 = vld [vmem:[#allocation12 + $0x1a] sm:$0xf]
        %v7522 = vcombine.low %v7514, %v7515
        %v7523 = vcombine.low %v7516, %v7517
        %7524 = vrot.lane.b32.xlu0 %v7522, 64
        %v7525 = vpop.permute.xlu0 %7524
        %7526 = vrot.lane.b32.xlu0 %v7523, 64
        %v7527 = vpop.permute.xlu0 %7526
        %vm7530 = vcmask 785920
        %7531 = vst.msk [vmem:[#allocation13] sm:$0xff] %vm7530, %v7525
        %7532 = vst.msk [vmem:[#allocation13 + $0x18] sm:$0xff] %vm7530, %v7527
        %v7533 = vld [vmem:[%s7474] sm:$0xf]
        %v7534 = vld [vmem:[%s7474 + $0x8] sm:$0xf]
        %v7535 = vld [vmem:[%s7474 + $0x10] sm:$0xf]
        %v7536 = vld [vmem:[%s7474 + $0x18] sm:$0xf]
        %v7541 = vcombine.low %v7533, %v7534
        %v7542 = vcombine.low %v7535, %v7536
        %7543 = vrot.lane.b32.xlu0 %v7541, 96
        %v7544 = vpop.permute.xlu0 %7543
        %7545 = vrot.lane.b32.xlu0 %v7542, 96
        %v7546 = vpop.permute.xlu0 %7545
        %vm7549 = vcmask 1048320
        %7550 = vst.msk [vmem:[#allocation13] sm:$0xff] %vm7549, %v7544
        %7551 = vst.msk [vmem:[#allocation13 + $0x18] sm:$0xff] %vm7549, %v7546
        %v7552 = vld [vmem:[%s7474 + $0x1] sm:$0xf]
        %v7553 = vld [vmem:[%s7474 + $0x9] sm:$0xf]
        %v7554 = vld [vmem:[%s7474 + $0x11] sm:$0xf]
        %v7555 = vld [vmem:[%s7474 + $0x19] sm:$0xf]
        %v7560 = vcombine.low %v7552, %v7553
        %v7561 = vcombine.low %v7554, %v7555
        %7564 = vst.msk [vmem:[#allocation13 + $0x8] sm:$0xff] %vm7492, %v7560
        %7565 = vst.msk [vmem:[#allocation13 + $0x20] sm:$0xff] %vm7492, %v7561
        %v7566 = vld [vmem:[%s7474 + $0x2] sm:$0xf]
        %v7567 = vld [vmem:[%s7474 + $0xa] sm:$0xf]
        %v7568 = vld [vmem:[%s7474 + $0x12] sm:$0xf]
        %v7569 = vld [vmem:[%s7474 + $0x1a] sm:$0xf]
        %v7574 = vcombine.low %v7566, %v7567
        %v7575 = vcombine.low %v7568, %v7569
        %7576 = vrot.lane.b32.xlu0 %v7574, 32
        %v7577 = vpop.permute.xlu0 %7576
        %7578 = vrot.lane.b32.xlu0 %v7575, 32
        %v7579 = vpop.permute.xlu0 %7578
        %7582 = vst.msk [vmem:[#allocation13 + $0x8] sm:$0xff] %vm7511, %v7577
        %7583 = vst.msk [vmem:[#allocation13 + $0x20] sm:$0xff] %vm7511, %v7579
        %s7584 = scalar_lea.vmem [#allocation12], 16
        %v7585 = vld [vmem:[%s7584] sm:$0xf]
        %v7586 = vld [vmem:[%s7584 + $0x8] sm:$0xf]
        %v7587 = vld [vmem:[%s7584 + $0x10] sm:$0xf]
        %v7588 = vld [vmem:[%s7584 + $0x18] sm:$0xf]
        %v7593 = vcombine.low %v7585, %v7586
        %v7594 = vcombine.low %v7587, %v7588
        %7595 = vrot.lane.b32.xlu0 %v7593, 64
        %v7596 = vpop.permute.xlu0 %7595
        %7597 = vrot.lane.b32.xlu0 %v7594, 64
        %v7598 = vpop.permute.xlu0 %7597
        %7601 = vst.msk [vmem:[#allocation13 + $0x8] sm:$0xff] %vm7530, %v7596
        %7602 = vst.msk [vmem:[#allocation13 + $0x20] sm:$0xff] %vm7530, %v7598
        %v7603 = vld [vmem:[%s7584 + $0x1] sm:$0xf]
        %v7604 = vld [vmem:[%s7584 + $0x9] sm:$0xf]
        %v7605 = vld [vmem:[%s7584 + $0x11] sm:$0xf]
        %v7606 = vld [vmem:[%s7584 + $0x19] sm:$0xf]
        %v7611 = vcombine.low %v7603, %v7604
        %v7612 = vcombine.low %v7605, %v7606
        %7613 = vrot.lane.b32.xlu0 %v7611, 96
        %v7614 = vpop.permute.xlu0 %7613
        %7615 = vrot.lane.b32.xlu0 %v7612, 96
        %v7616 = vpop.permute.xlu0 %7615
        %7619 = vst.msk [vmem:[#allocation13 + $0x8] sm:$0xff] %vm7549, %v7614
        %7620 = vst.msk [vmem:[#allocation13 + $0x20] sm:$0xff] %vm7549, %v7616
        %v7621 = vld [vmem:[%s7584 + $0x2] sm:$0xf]
        %v7622 = vld [vmem:[%s7584 + $0xa] sm:$0xf]
        %v7623 = vld [vmem:[%s7584 + $0x12] sm:$0xf]
        %v7624 = vld [vmem:[%s7584 + $0x1a] sm:$0xf]
        %v7629 = vcombine.low %v7621, %v7622
        %v7630 = vcombine.low %v7623, %v7624
        %7633 = vst.msk [vmem:[#allocation13 + $0x10] sm:$0xff] %vm7492, %v7629
        %7634 = vst.msk [vmem:[#allocation13 + $0x28] sm:$0xff] %vm7492, %v7630
        %v7635 = vld [vmem:[#allocation13] sm:$0xff]
        %v7636 = vld [vmem:[#allocation13 + $0x8] sm:$0xff]
        %v7637 = vld [vmem:[#allocation13 + $0x10] sm:$0xff]
        %v7638 = vld [vmem:[#allocation13 + $0x18] sm:$0xff]
        %v7639 = vld [vmem:[#allocation13 + $0x20] sm:$0xff]
        %v7640 = vld [vmem:[#allocation13 + $0x28] sm:$0xff]
        %v7641 = vld [vmem:[%s11] sm:$0xff]
        %v7642 = vld [vmem:[%s11 + $0x8] sm:$0xff]
        %v7643 = vld [vmem:[%s11 + $0x10] sm:$0xff]
        %v7644 = vld [vmem:[%s11 + $0x18] sm:$0xff]
        %v7645 = vld [vmem:[%s11 + $0x20] sm:$0xff]
        %v7646 = vld [vmem:[%s11 + $0x28] sm:$0xff]
        %v7647 = vld [vmem:[%s11 + $0x30] sm:$0xff]
        %v7648 = vld [vmem:[%s11 + $0x38] sm:$0xff]
        %v7649 = vld [vmem:[%s11 + $0x40] sm:$0xff]
        %v7650 = vld [vmem:[%s11 + $0x48] sm:$0xff]
        %v7651 = vld [vmem:[%s11 + $0x50] sm:$0xff]
        %v7652 = vld [vmem:[%s11 + $0x58] sm:$0xff]
        %v7653 = vld [vmem:[%s11 + $0x60] sm:$0xff]
        %v7654 = vld [vmem:[%s11 + $0x68] sm:$0xff]
        %v7655 = vld [vmem:[%s11 + $0x70] sm:$0xff]
        %v7656 = vld [vmem:[%s11 + $0x78] sm:$0xff]
        %v7657 = vld [vmem:[%s11 + $0x80] sm:$0xff]
        %v7658 = vld [vmem:[%s11 + $0x88] sm:$0xff]
        %v7659 = vld [vmem:[%s11 + $0x90] sm:$0xff]
        %v7660 = vld [vmem:[%s11 + $0x98] sm:$0xff]
        %v7661 = vld [vmem:[%s11 + $0xa0] sm:$0xff]
        %v7662 = vld [vmem:[%s11 + $0xa8] sm:$0xff]
        %v7663 = vld [vmem:[%s11 + $0xb0] sm:$0xff]
        %v7664 = vld [vmem:[%s11 + $0xb8] sm:$0xff]
        %v7665 = vld [vmem:[%s11 + $0xc0] sm:$0xff]
        %v7666 = vld [vmem:[%s11 + $0xc8] sm:$0xff]
        %v7667 = vld [vmem:[%s11 + $0xd0] sm:$0xff]
        %v7668 = vld [vmem:[%s11 + $0xd8] sm:$0xff]
        %v7669 = vld [vmem:[%s11 + $0xe0] sm:$0xff]
        %v7670 = vld [vmem:[%s11 + $0xe8] sm:$0xff]
        %v7671 = vld [vmem:[%s11 + $0xf0] sm:$0xff]
        %v7672 = vld [vmem:[%s11 + $0xf8] sm:$0xff]
        %v7673 = vld [vmem:[%s11 + $0x100] sm:$0xff]
        %v7674 = vld [vmem:[%s11 + $0x108] sm:$0xff]
        %v7675 = vld [vmem:[%s11 + $0x110] sm:$0xff]
        %v7676 = vld [vmem:[%s11 + $0x118] sm:$0xff]
        %v7677 = vld [vmem:[%s12] sm:$0x1]
        %v7679 = vlaneseq
        %v7680 = vshrl.u32 %v7679, 7
        %v7681 = vsub.s32 0, %v7680
        %v7682 = vrot.slane %v7677, %v7681
        %v7685 = vsel %vm7492, %v7637, 0
        %v7688 = vsel %vm7492, %v7640, 0
        %7690 = vmatprep.subr.mxu0 0.0
        %7691 = vmatpush1.msra.mxu0 %v7656
        %7692 = vmatprep.subr.mxu0 0.0
        %7693 = vmatpush1.msra.mxu0 %v7655
        %7694 = vmatprep.subr.mxu0 0.0
        %7695 = vmatpush1.msra.mxu0 %v7654
        %7696 = vmatprep.subr.mxu0 0.0
        %7697 = vmatpush1.msra.mxu0 %v7653
        %7698 = vmatprep.subr.mxu0 0.0
        %7699 = vmatpush1.msra.mxu0 %v7652
        %7700 = vmatprep.subr.mxu0 0.0
        %7701 = vmatpush1.msra.mxu0 %v7651
        %7702 = vmatprep.subr.mxu0 0.0
        %7703 = vmatpush1.msra.mxu0 %v7650
        %7704 = vmatprep.subr.mxu0 0.0
        %7705 = vmatpush1.msra.mxu0 %v7649
        %7706 = vmatprep.subr.mxu0 0.0
        %7707 = vmatpush1.msra.mxu0 %v7648
        %7708 = vmatprep.subr.mxu0 0.0
        %7709 = vmatpush1.msra.mxu0 %v7647
        %7710 = vmatprep.subr.mxu0 0.0
        %7711 = vmatpush1.msra.mxu0 %v7646
        %7712 = vmatprep.subr.mxu0 0.0
        %7713 = vmatpush1.msra.mxu0 %v7645
        %7714 = vmatprep.subr.mxu0 0.0
        %7715 = vmatpush1.msra.mxu0 %v7644
        %7716 = vmatprep.subr.mxu0 0.0
        %7717 = vmatpush1.msra.mxu0 %v7643
        %7718 = vmatprep.subr.mxu0 0.0
        %7719 = vmatpush1.msra.mxu0 %v7642
        %7720 = vmatprep.subr.mxu0 0.0
        %7721 = vmatpush1.msra.mxu0 %v7641
        %7722 = vmatprep.subr.mxu0 0.0
        %7723 = vmatpush2.msra.mxu0 %v7672
        %7724 = vmatprep.subr.mxu0 0.0
        %7725 = vmatpush2.msra.mxu0 %v7671
        %7726 = vmatprep.subr.mxu0 0.0
        %7727 = vmatpush2.msra.mxu0 %v7670
        %7728 = vmatprep.subr.mxu0 0.0
        %7729 = vmatpush2.msra.mxu0 %v7669
        %7730 = vmatprep.subr.mxu0 0.0
        %7731 = vmatpush2.msra.mxu0 %v7668
        %7732 = vmatprep.subr.mxu0 0.0
        %7733 = vmatpush2.msra.mxu0 %v7667
        %7734 = vmatprep.subr.mxu0 0.0
        %7735 = vmatpush2.msra.mxu0 %v7666
        %7736 = vmatprep.subr.mxu0 0.0
        %7737 = vmatpush2.msra.mxu0 %v7665
        %7738 = vmatprep.subr.mxu0 0.0
        %7739 = vmatpush2.msra.mxu0 %v7664
        %7740 = vmatprep.subr.mxu0 0.0
        %7741 = vmatpush2.msra.mxu0 %v7663
        %7742 = vmatprep.subr.mxu0 0.0
        %7743 = vmatpush2.msra.mxu0 %v7662
        %7744 = vmatprep.subr.mxu0 0.0
        %7745 = vmatpush2.msra.mxu0 %v7661
        %7746 = vmatprep.subr.mxu0 0.0
        %7747 = vmatpush2.msra.mxu0 %v7660
        %7748 = vmatprep.subr.mxu0 0.0
        %7749 = vmatpush2.msra.mxu0 %v7659
        %7750 = vmatprep.subr.mxu0 0.0
        %7751 = vmatpush2.msra.mxu0 %v7658
        %7752 = vmatprep.subr.mxu0 0.0
        %7753 = vmatpush2.msra.mxu0 %v7657
        %7754 = vmatprep.mubr.f32.mxu0 %v7636
        %7755 = vmatmul.mubr.f32.gmra.mxu0 %v7635
        %v7756 = vpop.f32.mrf.mxu0
        %v7757 = vadd.f32 %v7682, %v7756
        %v7758 = vpop.f32.mrf.mxu0
        %7759 = vmatprep.mubr.f32.mxu0 %v7639
        %7760 = vmatmul.mubr.f32.gmra.mxu0 %v7638
        %v7761 = vpop.f32.mrf.mxu0
        %v7762 = vadd.f32 %v7682, %v7761
        %v7763 = vpop.f32.mrf.mxu0
        %7764 = vdwg.mxu0
        %7765 = vmatprep.subr.mxu0 0.0
        %7766 = vmatpush1.msra.mxu0 0.0
        %7767 = vmatprep.subr.mxu0 0.0
        %7768 = vmatpush1.msra.mxu0 0.0
        %7769 = vmatprep.subr.mxu0 0.0
        %7770 = vmatpush1.msra.mxu0 0.0
        %7771 = vmatprep.subr.mxu0 0.0
        %7772 = vmatpush1.msra.mxu0 0.0
        %7773 = vmatprep.subr.mxu0 0.0
        %7774 = vmatpush1.msra.mxu0 0.0
        %7775 = vmatprep.subr.mxu0 0.0
        %7776 = vmatpush1.msra.mxu0 0.0
        %7777 = vmatprep.subr.mxu0 0.0
        %7778 = vmatpush1.msra.mxu0 0.0
        %7779 = vmatprep.subr.mxu0 0.0
        %7780 = vmatpush1.msra.mxu0 0.0
        %7781 = vmatprep.subr.mxu0 0.0
        %7782 = vmatpush1.msra.mxu0 0.0
        %7783 = vmatprep.subr.mxu0 0.0
        %7784 = vmatpush1.msra.mxu0 0.0
        %7785 = vmatprep.subr.mxu0 0.0
        %7786 = vmatpush1.msra.mxu0 0.0
        %7787 = vmatprep.subr.mxu0 0.0
        %7788 = vmatpush1.msra.mxu0 0.0
        %7789 = vmatprep.subr.mxu0 0.0
        %7790 = vmatpush1.msra.mxu0 %v7676
        %7791 = vmatprep.subr.mxu0 0.0
        %7792 = vmatpush1.msra.mxu0 %v7675
        %7793 = vmatprep.subr.mxu0 0.0
        %7794 = vmatpush1.msra.mxu0 %v7674
        %7795 = vmatprep.subr.mxu0 0.0
        %7796 = vmatpush1.msra.mxu0 %v7673
        %7797 = vmatprep.subr.mxu0 0.0
        %7798 = vmatpush2.msra.mxu0 0.0
        %7799 = vmatprep.subr.mxu0 0.0
        %7800 = vmatpush2.msra.mxu0 0.0
        %7801 = vmatprep.subr.mxu0 0.0
        %7802 = vmatpush2.msra.mxu0 0.0
        %7803 = vmatprep.subr.mxu0 0.0
        %7804 = vmatpush2.msra.mxu0 0.0
        %7805 = vmatprep.subr.mxu0 0.0
        %7806 = vmatpush2.msra.mxu0 0.0
        %7807 = vmatprep.subr.mxu0 0.0
        %7808 = vmatpush2.msra.mxu0 0.0
        %7809 = vmatprep.subr.mxu0 0.0
        %7810 = vmatpush2.msra.mxu0 0.0
        %7811 = vmatprep.subr.mxu0 0.0
        %7812 = vmatpush2.msra.mxu0 0.0
        %7813 = vmatprep.subr.mxu0 0.0
        %7814 = vmatpush2.msra.mxu0 0.0
        %7815 = vmatprep.subr.mxu0 0.0
        %7816 = vmatpush2.msra.mxu0 0.0
        %7817 = vmatprep.subr.mxu0 0.0
        %7818 = vmatpush2.msra.mxu0 0.0
        %7819 = vmatprep.subr.mxu0 0.0
        %7820 = vmatpush2.msra.mxu0 0.0
        %7821 = vmatprep.subr.mxu0 0.0
        %7822 = vmatpush2.msra.mxu0 0.0
        %7823 = vmatprep.subr.mxu0 0.0
        %7824 = vmatpush2.msra.mxu0 0.0
        %7825 = vmatprep.subr.mxu0 0.0
        %7826 = vmatpush2.msra.mxu0 0.0
        %7827 = vmatprep.subr.mxu0 0.0
        %7828 = vmatpush2.msra.mxu0 0.0
        %7829 = vmatprep.mubr.f32.mxu0 0.0
        %7830 = vmatmul.mubr.f32.gmra.mxu0 %v7685
        %v7831 = vpop.f32.mrf.mxu0
        %v7832 = vadd.f32 %v7757, %v7831
        %v7833 = vpop.f32.mrf.mxu0
        %7834 = vmatprep.mubr.f32.mxu0 0.0
        %7835 = vmatmul.mubr.f32.gmra.mxu0 %v7688
        %v7836 = vpop.f32.mrf.mxu0
        %v7837 = vadd.f32 %v7762, %v7836
        %v7838 = vpop.f32.mrf.mxu0
        %7839 = vdwg.mxu0
        %v7840 = vmax.f32 %v7832, 0.0
        %v7841 = vmax.f32 %v7837, 0.0
        %v7842 = vsel %vm7492, %v7840, 0.0
        %v7843 = vsel %vm7492, %v7841, 0.0
        %v7844 = vadd.f32 %v7842, %v7843
        %v7845 = vrot.slane %v7844, 4
        %v7846 = vadd.f32 %v7844, %v7845
        %v7847 = vrot.slane %v7846, 2
        %v7848 = vadd.f32 %v7846, %v7847
        %v7849 = vrot.slane %v7848, 1
        %v7850 = vadd.f32 %v7848, %v7849
        %v7851 = vmul.f32 %v7850, 0.0625
        %v7852 = vld [vmem:[%s13] sm:$0xff]
        %v7853 = vld [vmem:[%s13 + $0x8] sm:$0xff]
        %v7854 = vld [vmem:[%s13 + $0x10] sm:$0xff]
        %v7855 = vld [vmem:[%s13 + $0x18] sm:$0xff]
        %v7856 = vld [vmem:[%s14] sm:$0x1]
        %v7858 = vsel %vm7492, %v7851, 0
        %7860 = vmatprep.subr.mxu0 0.0
        %7861 = vmatpush1.msra.mxu0 0.0
        %7862 = vmatprep.subr.mxu0 0.0
        %7863 = vmatpush1.msra.mxu0 0.0
        %7864 = vmatprep.subr.mxu0 0.0
        %7865 = vmatpush1.msra.mxu0 0.0
        %7866 = vmatprep.subr.mxu0 0.0
        %7867 = vmatpush1.msra.mxu0 0.0
        %7868 = vmatprep.subr.mxu0 0.0
        %7869 = vmatpush1.msra.mxu0 0.0
        %7870 = vmatprep.subr.mxu0 0.0
        %7871 = vmatpush1.msra.mxu0 0.0
        %7872 = vmatprep.subr.mxu0 0.0
        %7873 = vmatpush1.msra.mxu0 0.0
        %7874 = vmatprep.subr.mxu0 0.0
        %7875 = vmatpush1.msra.mxu0 0.0
        %7876 = vmatprep.subr.mxu0 0.0
        %7877 = vmatpush1.msra.mxu0 0.0
        %7878 = vmatprep.subr.mxu0 0.0
        %7879 = vmatpush1.msra.mxu0 0.0
        %7880 = vmatprep.subr.mxu0 0.0
        %7881 = vmatpush1.msra.mxu0 0.0
        %7882 = vmatprep.subr.mxu0 0.0
        %7883 = vmatpush1.msra.mxu0 0.0
        %7884 = vmatprep.subr.mxu0 0.0
        %7885 = vmatpush1.msra.mxu0 %v7855
        %7886 = vmatprep.subr.mxu0 0.0
        %7887 = vmatpush1.msra.mxu0 %v7854
        %7888 = vmatprep.subr.mxu0 0.0
        %7889 = vmatpush1.msra.mxu0 %v7853
        %7890 = vmatprep.subr.mxu0 0.0
        %7891 = vmatpush1.msra.mxu0 %v7852
        %7892 = vmatprep.subr.mxu0 0.0
        %7893 = vmatpush2.msra.mxu0 0.0
        %7894 = vmatprep.subr.mxu0 0.0
        %7895 = vmatpush2.msra.mxu0 0.0
        %7896 = vmatprep.subr.mxu0 0.0
        %7897 = vmatpush2.msra.mxu0 0.0
        %7898 = vmatprep.subr.mxu0 0.0
        %7899 = vmatpush2.msra.mxu0 0.0
        %7900 = vmatprep.subr.mxu0 0.0
        %7901 = vmatpush2.msra.mxu0 0.0
        %7902 = vmatprep.subr.mxu0 0.0
        %7903 = vmatpush2.msra.mxu0 0.0
        %7904 = vmatprep.subr.mxu0 0.0
        %7905 = vmatpush2.msra.mxu0 0.0
        %7906 = vmatprep.subr.mxu0 0.0
        %7907 = vmatpush2.msra.mxu0 0.0
        %7908 = vmatprep.subr.mxu0 0.0
        %7909 = vmatpush2.msra.mxu0 0.0
        %7910 = vmatprep.subr.mxu0 0.0
        %7911 = vmatpush2.msra.mxu0 0.0
        %7912 = vmatprep.subr.mxu0 0.0
        %7913 = vmatpush2.msra.mxu0 0.0
        %7914 = vmatprep.subr.mxu0 0.0
        %7915 = vmatpush2.msra.mxu0 0.0
        %7916 = vmatprep.subr.mxu0 0.0
        %7917 = vmatpush2.msra.mxu0 0.0
        %7918 = vmatprep.subr.mxu0 0.0
        %7919 = vmatpush2.msra.mxu0 0.0
        %7920 = vmatprep.subr.mxu0 0.0
        %7921 = vmatpush2.msra.mxu0 0.0
        %7922 = vmatprep.subr.mxu0 0.0
        %7923 = vmatpush2.msra.mxu0 0.0
        %7924 = vmatprep.mubr.f32.mxu0 0.0
        %7925 = vmatmul.mubr.f32.gmra.mxu0 %v7858
        %v7926 = vpop.f32.mrf.mxu0
        %v7927 = vadd.f32 %v7856, %v7926
        %v7928 = vpop.f32.mrf.mxu0
        %7929 = vdwg.mxu0
        %vm7930 = vcmp.ge.f32.partialorder %v7927, 0.0
        %v7931 = vmul.f32 %v7927, 0.0
        %v7932 = vsel %vm7930, %v7927, %v7931
        %v7933 = vld [vmem:[%s15] sm:$0xff]
        %v7934 = vld [vmem:[%s15 + $0x8] sm:$0xff]
        %v7935 = vld [vmem:[%s15 + $0x10] sm:$0xff]
        %v7936 = vld [vmem:[%s15 + $0x18] sm:$0xff]
        %v7937 = vld [vmem:[%s15 + $0x20] sm:$0xff]
        %v7938 = vld [vmem:[%s15 + $0x28] sm:$0xff]
        %v7939 = vld [vmem:[%s15 + $0x30] sm:$0xff]
        %v7940 = vld [vmem:[%s15 + $0x38] sm:$0xff]
        %v7941 = vld [vmem:[%s16] sm:$0x1]
        %vm7942 = vcmask 523264
        %v7944 = vsel %vm7942, %v7932, 0
        %7946 = vmatprep.subr.mxu0 0.0
        %7947 = vmatpush1.msra.mxu0 0.0
        %7948 = vmatprep.subr.mxu0 0.0
        %7949 = vmatpush1.msra.mxu0 0.0
        %7950 = vmatprep.subr.mxu0 0.0
        %7951 = vmatpush1.msra.mxu0 0.0
        %7952 = vmatprep.subr.mxu0 0.0
        %7953 = vmatpush1.msra.mxu0 0.0
        %7954 = vmatprep.subr.mxu0 0.0
        %7955 = vmatpush1.msra.mxu0 0.0
        %7956 = vmatprep.subr.mxu0 0.0
        %7957 = vmatpush1.msra.mxu0 0.0
        %7958 = vmatprep.subr.mxu0 0.0
        %7959 = vmatpush1.msra.mxu0 0.0
        %7960 = vmatprep.subr.mxu0 0.0
        %7961 = vmatpush1.msra.mxu0 0.0
        %7962 = vmatprep.subr.mxu0 0.0
        %7963 = vmatpush1.msra.mxu0 %v7940
        %7964 = vmatprep.subr.mxu0 0.0
        %7965 = vmatpush1.msra.mxu0 %v7939
        %7966 = vmatprep.subr.mxu0 0.0
        %7967 = vmatpush1.msra.mxu0 %v7938
        %7968 = vmatprep.subr.mxu0 0.0
        %7969 = vmatpush1.msra.mxu0 %v7937
        %7970 = vmatprep.subr.mxu0 0.0
        %7971 = vmatpush1.msra.mxu0 %v7936
        %7972 = vmatprep.subr.mxu0 0.0
        %7973 = vmatpush1.msra.mxu0 %v7935
        %7974 = vmatprep.subr.mxu0 0.0
        %7975 = vmatpush1.msra.mxu0 %v7934
        %7976 = vmatprep.subr.mxu0 0.0
        %7977 = vmatpush1.msra.mxu0 %v7933
        %7978 = vmatprep.subr.mxu0 0.0
        %7979 = vmatpush2.msra.mxu0 0.0
        %7980 = vmatprep.subr.mxu0 0.0
        %7981 = vmatpush2.msra.mxu0 0.0
        %7982 = vmatprep.subr.mxu0 0.0
        %7983 = vmatpush2.msra.mxu0 0.0
        %7984 = vmatprep.subr.mxu0 0.0
        %7985 = vmatpush2.msra.mxu0 0.0
        %7986 = vmatprep.subr.mxu0 0.0
        %7987 = vmatpush2.msra.mxu0 0.0
        %7988 = vmatprep.subr.mxu0 0.0
        %7989 = vmatpush2.msra.mxu0 0.0
        %7990 = vmatprep.subr.mxu0 0.0
        %7991 = vmatpush2.msra.mxu0 0.0
        %7992 = vmatprep.subr.mxu0 0.0
        %7993 = vmatpush2.msra.mxu0 0.0
        %7994 = vmatprep.subr.mxu0 0.0
        %7995 = vmatpush2.msra.mxu0 0.0
        %7996 = vmatprep.subr.mxu0 0.0
        %7997 = vmatpush2.msra.mxu0 0.0
        %7998 = vmatprep.subr.mxu0 0.0
        %7999 = vmatpush2.msra.mxu0 0.0
        %8000 = vmatprep.subr.mxu0 0.0
        %8001 = vmatpush2.msra.mxu0 0.0
        %8002 = vmatprep.subr.mxu0 0.0
        %8003 = vmatpush2.msra.mxu0 0.0
        %8004 = vmatprep.subr.mxu0 0.0
        %8005 = vmatpush2.msra.mxu0 0.0
        %8006 = vmatprep.subr.mxu0 0.0
        %8007 = vmatpush2.msra.mxu0 0.0
        %8008 = vmatprep.subr.mxu0 0.0
        %8009 = vmatpush2.msra.mxu0 0.0
        %8010 = vmatprep.mubr.f32.mxu0 0.0
        %8011 = vmatmul.mubr.f32.gmra.mxu0 %v7944
        %v8012 = vpop.f32.mrf.mxu0
        %v8013 = vadd.f32 %v7941, %v8012
        %v8014 = vpop.f32.mrf.mxu0
        %8015 = vdwg.mxu0
        %vm8016 = vcmask 253952
        %8017 = vst.msk [vmem:[%s540] sm:$0x1] %vm8016, %v8013
        %s8018 = sand.u32 %s401, 1
        %s8019 = scalar_lea.sflag [#allocation15], %s8018
        %s8020 = sand.u32 %s401, 1
        %s8021 = scalar_lea.vmem [#allocation14], %s8020
        // Predicated region
        $region89: #{tpu_custom_call.1} parent=87 // pred_check
          %p8022 = pneg %p411
        $region90: #{tpu_custom_call.1} parent=87 // pred_check_branch
          %8024 = sbr.rel (%p8022) target = $region92
        $region91: #{tpu_custom_call.1} parent=87 // pred_region
          %s8026 = ssub.s32 16, 16
          %8027 = vsyncadd %s8019, %s8026
          %s8028 = smul.addr %s31, 16
          %s8029 = scalar_lea.hbm %s17, %s8028
          %s8031 = sshll.u32 %s8021, 4
          %s8032 = int_to_ptr.vmem [resolvable:$true] %s8031
          %8034 = dma.vmem_to_hbm [thread:$0]  %s8032, 16, %s8029, %s8019
        $region92: #{tpu_custom_call.1} parent=87 // pred_fallthru
          _
      $region88: #{tpu_custom_call.1} parent=5 // pred_fallthru
        _
      %p8035 = scmp.le.s32.totalorder 2, %s26
      // Predicated region
      $region93: #{tpu_custom_call.1} parent=5 // pred_check
        %p8036 = pneg %p8035
      $region94: #{tpu_custom_call.1} parent=5 // pred_check_branch
        %8038 = sbr.rel (%p8036) target = $region96
      $region95: #{tpu_custom_call.1} parent=5 // pred_region
        %s8039 = ssub.s32 %s26, 2
        // Predicated region
        $region97: #{tpu_custom_call.1} parent=95 // pred_check
          %p8040 = pneg %p417
        $region98: #{tpu_custom_call.1} parent=95 // pred_check_branch
          %8042 = sbr.rel (%p8040) target = $region100
        $region99: #{tpu_custom_call.1} parent=95 // pred_region
          %s8043 = sand.u32 %s402, 1
          %s8044 = scalar_lea.sflag [#allocation15], %s8043
          %s8045 = sand.u32 %s402, 1
          %s8046 = scalar_lea.vmem [#allocation14], %s8045
          %8047 = dma.done %s8044, 16
        $region100: #{tpu_custom_call.1} parent=95 // pred_fallthru
          _
      $region96: #{tpu_custom_call.1} parent=5 // pred_fallthru
        _
    $region6: #{tpu_custom_call.1} parent=1 // loop_footer
      %s30 = sadd.s32 1, %s26
    $region7: #{tpu_custom_call.1} parent=1 // loop_footer_branch
      %25 = sbr.rel target = $region3
    $region8: #{tpu_custom_call.1} parent=1 // loop_exit
      _
    %8048 = vsyncpa [#allocation15], 1
    %s8049 = scalar_lea.sflag [#allocation15], 1
    %8050 = vsyncpa %s8049, 1

</llo_original>
